<compile_context>
chip_gen: v7x
topology: tpu7x:2x2x1
jax: 0.10.0
libtpu: 0.0.40
codegen_flags: <defaults>
</compile_context>

<pallas_src>
import functools
import math

import jax
import jax.numpy as jnp
from jax.experimental import pallas as pl
from jax.experimental.pallas import tpu as pltpu

_LANES = 128


# ----------------------------- helpers (shared) -----------------------------
def _tsl_layernorm(x, w, b, eps=1e-5):
    # tsl LayerNorm: (x - mean) / (std + eps) * w + b,  std = sqrt(biased var)
    mean = jnp.mean(x, axis=-1, keepdims=True)
    var = jnp.mean((x - mean) ** 2, axis=-1, keepdims=True)
    std = jnp.sqrt(var)
    return (x - mean) / (std + eps) * w + b


def _elu(x):
    # ELU(alpha=1).  exp(min(x,0))-1 keeps the positive branch overflow-free.
    return jnp.where(x > 0, x, jnp.exp(jnp.minimum(x, 0.0)) - 1.0)


def _tensorcores_per_chip():
    """Grid of 2 parallel steps only where the chip has two TensorCores
    (v4/v5p megacore, v7x); a single step on single-TC v5e/v6e."""
    try:
        kind = jax.devices()[0].device_kind.lower()
    except Exception:
        return 1
    if "v7" in kind or "v4" in kind or "v5p" in kind:
        return 2
    return 1


# ------------------------- parameter folding / packing -------------------------
def pack_transformer_params(layers, readout, n_heads):
    """Fold layer-0 q in-projection and the 1/sqrt(d) scale into the q weights,
    fuse q/k/v into one (C, 3H) weight, and pack all matrices / vectors into
    two contiguous f32 slabs (2 DMAs instead of ~40)."""
    mats, vecs = [], []
    row_off = [0]

    def add_mat(a):
        a = jnp.asarray(a, jnp.float32)
        r, c = a.shape
        rp = ((r + 7) // 8) * 8                      # sublane-aligned row start
        buf = jnp.zeros((rp, _LANES), jnp.float32).at[:r, :c].set(a)
        entry = (row_off[0], r, c)
        mats.append(buf)
        row_off[0] += rp
        return entry

    def add_vec(a):
        a = jnp.asarray(a, jnp.float32).reshape(-1)
        n = a.shape[0]
        buf = jnp.zeros((_LANES,), jnp.float32).at[:n].set(a)
        entry = (len(vecs), n)
        vecs.append(buf)
        return entry

    plan_layers = []
    for p in layers:
        H = p["wq"].shape[1]
        d = H // n_heads
        scale = 1.0 / math.sqrt(d)
        if "wq0" in p:                               # c_in != hidden: fold q in-proj
            wq_eff = p["wq0"] @ p["wq"]
            bq_eff = p["bq0"] @ p["wq"] + p["bq"]
        else:                                        # nn.Identity path
            wq_eff, bq_eff = p["wq"], p["bq"]
        # fold 1/sqrt(d) into the q weights; fuse q/k/v into one GEMM
        wqkv = jnp.concatenate([wq_eff * scale, p["wk"], p["wv"]], axis=1)
        bqkv = jnp.concatenate([bq_eff * scale, p["bk"], p["bv"]], axis=1)
        lp = {
            "H": H,
            "ln1_w": add_vec(p["ln1_w"]), "ln1_b": add_vec(p["ln1_b"]),
            "wqkv": add_mat(wqkv), "bqkv": add_vec(bqkv),
            "wo": add_mat(p["wo"]), "bo": add_vec(p["bo"]),
            "ln2_w": add_vec(p["ln2_w"]), "ln2_b": add_vec(p["ln2_b"]),
            "w1": add_mat(p["w1"]), "b1": add_vec(p["b1"]),
            "w2": add_mat(p["w2"]), "b2": add_vec(p["b2"]),
        }
        if "wskip" in p:                             # real skip Linear (layer 0)
            lp["wskip"] = add_mat(p["wskip"])
            lp["bskip"] = add_vec(p["bskip"])
        plan_layers.append(lp)

    plan_readout = None
    if readout is not None:
        plan_readout = {"w": add_mat(readout[0]), "b": add_vec(readout[1])}

    wmat = jnp.concatenate(mats, axis=0)             # (R_total, 128)
    wvec = jnp.stack(vecs, axis=0)                   # (NV, 128)
    plan = {"layers": plan_layers, "readout": plan_readout}
    return wmat, wvec, plan


# ------------------------------ Pallas kernel ------------------------------
def transformer_stack_kernel(x_ref, wmat_ref, wvec_ref, mask_ref, o_ref, *,
                             plan, n_heads):
    def mat(e):                                      # static slice of weight slab
        off, r, c = e
        return wmat_ref[off:off + r, :c]

    def vec(e):                                      # static slice of vector slab
        i, n = e
        return wvec_ref[i:i + 1, :n]                 # (1, n) -> broadcasts

    x = x_ref[...]                                   # (Gb, L, C_in)
    Gb, L, C = x.shape
    M = Gb * L
    y = x.reshape(M, C)                              # L multiple of 8 -> free
    bias = mask_ref[...]                             # (M, M) 0 / -1e9 additive mask

    for lp in plan["layers"]:
        H = lp["H"]
        d = H // n_heads

        # pre-norm
        h = _tsl_layernorm(y, vec(lp["ln1_w"]), vec(lp["ln1_b"]))

        # skip connection (real Linear only when c_in != hidden)
        if "wskip" in lp:
            skip = jnp.dot(y, mat(lp["wskip"]),
                           preferred_element_type=jnp.float32) + vec(lp["bskip"])
        else:
            skip = y

        # fused q/k/v GEMM (q in-proj and 1/sqrt(d) already folded in)
        qkv = jnp.dot(h, mat(lp["wqkv"]),
                      preferred_element_type=jnp.float32) + vec(lp["bqkv"])
        q = qkv[:, 0:H]
        k = qkv[:, H:2 * H]
        v = qkv[:, 2 * H:3 * H]

        # block-diagonal (per-sequence) causal attention over all Gb sequences
        wo = mat(lp["wo"])
        attn = None
        for hh in range(n_heads):                    # static unroll over heads
            lo = hh * d
            qh = q[:, lo:lo + d]                     # (M, d)
            kh = k[:, lo:lo + d]
            vh = v[:, lo:lo + d]
            s = jax.lax.dot_general(qh, kh, (((1,), (1,)), ((), ())),
                                    preferred_element_type=jnp.float32)  # (M, M)
            s = s + bias
            m = jnp.max(s, axis=-1, keepdims=True)
            p = jnp.exp(s - m)
            denom = jnp.sum(p, axis=-1, keepdims=True)
            p = p * pl.reciprocal(denom, approx=True)
            oh = jnp.dot(p, vh, preferred_element_type=jnp.float32)      # (M, d)
            # fold output projection per head (no concat / lane regroup)
            part = jnp.dot(oh, wo[lo:lo + d, :],
                           preferred_element_type=jnp.float32)           # (M, H)
            attn = part if attn is None else attn + part

        y = skip + attn + vec(lp["bo"])

        # MLP: LayerNorm -> Linear -> ELU -> Linear (dropout p=0 omitted)
        h2 = _tsl_layernorm(y, vec(lp["ln2_w"]), vec(lp["ln2_b"]))
        z = jnp.dot(h2, mat(lp["w1"]), preferred_element_type=jnp.float32) + vec(lp["b1"])
        z = _elu(z)
        z = jnp.dot(z, mat(lp["w2"]), preferred_element_type=jnp.float32) + vec(lp["b2"])
        y = y + z

    if plan["readout"] is not None:                  # fused final linear readout
        y = jnp.dot(y, mat(plan["readout"]["w"]),
                    preferred_element_type=jnp.float32) + vec(plan["readout"]["b"])

    o_ref[...] = y.reshape(Gb, L, y.shape[-1])


# ------------------------------ Pallas wrapper ------------------------------
def transformer_forward(x, layers, readout, n_heads, causal):
    B, S, N, C = x.shape
    G = B * N
    # axis='time': attend over S, batch over (B, N).  Single transpose in/out.
    xg = jnp.transpose(x, (0, 2, 1, 3)).reshape(G, S, C)

    wmat, wvec, plan = pack_transformer_params(layers, readout, n_heads)
    H = layers[-1]["wq"].shape[1]
    out_dim = readout[0].shape[1] if readout is not None else H

    # Generation-aware grid: 2 parallel blocks only with 2 TensorCores.
    nblk = 2 if (_tensorcores_per_chip() >= 2 and G >= 2) else 1
    if nblk == 2 and G % 2 != 0:
        # pad one dummy all-zero sequence so both cores get equal work
        xg = jnp.concatenate([xg, jnp.zeros((1, S, C), xg.dtype)], axis=0)
    Gp = xg.shape[0]
    Gb = Gp // nblk
    M = Gb * S

    # Block-diagonal (per-sequence) + causal additive mask, built once in XLA.
    seq = jnp.repeat(jnp.arange(Gb, dtype=jnp.int32), S)
    pos = jnp.tile(jnp.arange(S, dtype=jnp.int32), Gb)
    allow = seq[:, None] == seq[None, :]
    if causal:
        allow = allow & (pos[:, None] >= pos[None, :])
    mask_bias = jnp.where(allow, 0.0, -1e9).astype(jnp.float32)      # (M, M)

    kernel = functools.partial(transformer_stack_kernel, plan=plan,
                               n_heads=n_heads)

    out = pl.pallas_call(
        kernel,
        out_shape=jax.ShapeDtypeStruct((Gp, S, out_dim), jnp.float32),
        grid=(nblk,),
        in_specs=[
            pl.BlockSpec((Gb, S, C), lambda g: (g, 0, 0)),
            pl.BlockSpec(memory_space=pltpu.MemorySpace.VMEM),   # weight slab
            pl.BlockSpec(memory_space=pltpu.MemorySpace.VMEM),   # bias/LN slab
            pl.BlockSpec(memory_space=pltpu.MemorySpace.VMEM),   # attention mask
        ],
        out_specs=pl.BlockSpec((Gb, S, out_dim), lambda g: (g, 0, 0)),
        compiler_params=pltpu.CompilerParams(
            dimension_semantics=("parallel",)),
    )(xg, wmat, wvec, mask_bias)

    out = out[:G]
    return out.reshape(B, N, S, out_dim).transpose(0, 2, 1, 3)


# ------------------------------ pure-JAX reference ------------------------------
def ref_layer(xg, p, n_heads, causal):
    G, L, _ = xg.shape
    H = p["wq"].shape[1]
    dh = H // n_heads
    h = _tsl_layernorm(xg, p["ln1_w"], p["ln1_b"])
    if "wq0" in p:
        q_in = h @ p["wq0"] + p["bq0"]
        skip = xg @ p["wskip"] + p["bskip"]
    else:
        q_in = h
        skip = xg
    q = q_in @ p["wq"] + p["bq"]
    k = h @ p["wk"] + p["bk"]
    v = h @ p["wv"] + p["bv"]
    q = q.reshape(G, L, n_heads, dh).transpose(0, 2, 1, 3)
    k = k.reshape(G, L, n_heads, dh).transpose(0, 2, 1, 3)
    v = v.reshape(G, L, n_heads, dh).transpose(0, 2, 1, 3)
    s = jnp.einsum("ghld,ghmd->ghlm", q * (1.0 / math.sqrt(dh)), k)
    if causal:
        mask = jnp.tril(jnp.ones((L, L), dtype=bool))
        s = jnp.where(mask, s, -1e30)
    a = jax.nn.softmax(s, axis=-1)
    o = jnp.einsum("ghlm,ghmd->ghld", a, v)
    o = o.transpose(0, 2, 1, 3).reshape(G, L, H)
    attn = o @ p["wo"] + p["bo"]
    y = skip + attn
    h2 = _tsl_layernorm(y, p["ln2_w"], p["ln2_b"])
    z = h2 @ p["w1"] + p["b1"]
    z = _elu(z)
    z = z @ p["w2"] + p["b2"]
    return y + z


def reference_forward(x, layers, readout, n_heads, causal):
    B, S, N, _ = x.shape
    for p in layers:
        c_in = p["wk"].shape[0]
        xg = jnp.transpose(x, (0, 2, 1, 3)).reshape(B * N, S, c_in)
        yg = ref_layer(xg, p, n_heads, causal)
        x = yg.reshape(B, N, S, -1).transpose(0, 2, 1, 3)
    if readout is not None:
        Wr, br = readout
        x = x @ Wr + br
    return x


# ------------------------------ parameter setup ------------------------------
def init_params(key, input_size, hidden_size, ff_size, n_layers, output_size):
    def nrm(k, shape, scale):
        return scale * jax.random.normal(k, shape, dtype=jnp.float32)

    layers = []
    for i in range(n_layers):
        c_in = input_size if i == 0 else hidden_size
        ks = jax.random.split(jax.random.fold_in(key, i), 16)
        p = {}
        p["ln1_w"] = jnp.ones((1, c_in), jnp.float32)
        p["ln1_b"] = jnp.zeros((1, c_in), jnp.float32)
        if c_in != hidden_size:
            # q_proj / skip_conn are real Linears only when sizes differ;
            # otherwise they are nn.Identity and skipped/folded.
            p["wq0"] = nrm(ks[0], (c_in, hidden_size), 1.0 / math.sqrt(c_in))
            p["bq0"] = nrm(ks[1], (1, hidden_size), 0.01)
            p["wskip"] = nrm(ks[2], (c_in, hidden_size), 1.0 / math.sqrt(c_in))
            p["bskip"] = nrm(ks[3], (1, hidden_size), 0.01)
        p["wq"] = nrm(ks[4], (hidden_size, hidden_size), 1.0 / math.sqrt(hidden_size))
        p["bq"] = nrm(ks[5], (1, hidden_size), 0.01)
        p["wk"] = nrm(ks[6], (c_in, hidden_size), 1.0 / math.sqrt(c_in))
        p["bk"] = nrm(ks[7], (1, hidden_size), 0.01)
        p["wv"] = nrm(ks[8], (c_in, hidden_size), 1.0 / math.sqrt(c_in))
        p["bv"] = nrm(ks[9], (1, hidden_size), 0.01)
        p["wo"] = nrm(ks[10], (hidden_size, hidden_size), 1.0 / math.sqrt(hidden_size))
        p["bo"] = nrm(ks[11], (1, hidden_size), 0.01)
        p["ln2_w"] = jnp.ones((1, hidden_size), jnp.float32)
        p["ln2_b"] = jnp.zeros((1, hidden_size), jnp.float32)
        p["w1"] = nrm(ks[12], (hidden_size, ff_size), 1.0 / math.sqrt(hidden_size))
        p["b1"] = nrm(ks[13], (1, ff_size), 0.01)
        p["w2"] = nrm(ks[14], (ff_size, hidden_size), 1.0 / math.sqrt(ff_size))
        p["b2"] = nrm(ks[15], (1, hidden_size), 0.01)
        layers.append(p)

    readout = None
    if output_size is not None:
        kr = jax.random.fold_in(key, 999)
        k1, k2 = jax.random.split(kr)
        readout = (nrm(k1, (hidden_size, output_size), 1.0 / math.sqrt(hidden_size)),
                   nrm(k2, (1, output_size), 0.01))
    return layers, readout


# ------------------------------------ main ------------------------------------
if __name__ == "__main__":
    # Transformer(input_size=16, hidden_size=32, ff_size=64, output_size=8,
    #             n_layers=2, n_heads=4, axis='time', causal=True,
    #             activation='elu', dropout=0.0)
    B, S, N = 2, 8, 6
    input_size, hidden_size, ff_size = 16, 32, 64
    n_layers, n_heads, output_size = 2, 4, 8
    causal = True

    key = jax.random.PRNGKey(0)
    kx, kp = jax.random.split(key)
    x = jax.random.normal(kx, (B, S, N, input_size), dtype=jnp.float32)
    layers, readout = init_params(kp, input_size, hidden_size, ff_size,
                                  n_layers, output_size)

    out = transformer_forward(x, layers, readout, n_heads, causal)
    out = jax.block_until_ready(out)

    ref = reference_forward(x, layers, readout, n_heads, causal)
    err = float(jnp.max(jnp.abs(out - ref)))
    if err > 1e-2:
        raise RuntimeError(f"Pallas output mismatch vs reference, max abs err = {err}")

    print("KERNEL_OK")
</pallas_src>

<mosaic_0001>
module attributes {stable_mosaic.version = 11 : i64} {
  func.func @transformer_stack_kernel(%arg0: i32, %arg1: memref<12x8x16xf32, #tpu.memory_space<vmem>>, %arg2: memref<352x128xf32, #tpu.memory_space<vmem>>, %arg3: memref<18x128xf32, #tpu.memory_space<vmem>>, %arg4: memref<96x96xf32, #tpu.memory_space<vmem>>, %arg5: memref<12x8x8xf32, #tpu.memory_space<vmem>>) attributes {dimension_semantics = [#tpu.dimension_semantics<parallel>], iteration_bounds = array<i64: 1>, scalar_prefetch = 0 : i64, scratch_operands = 0 : i64, tpu.core_type = #tpu.core_type<tc>, window_params = [{transform_indices = @transform_0, window_bounds = array<i64: 12, 8, 16>}, {pipeline_mode = #tpu.pipeline_mode<synchronous>, transform_indices = @transform_1, window_bounds = array<i64: 352, 128>}, {pipeline_mode = #tpu.pipeline_mode<synchronous>, transform_indices = @transform_2, window_bounds = array<i64: 18, 128>}, {pipeline_mode = #tpu.pipeline_mode<synchronous>, transform_indices = @transform_3, window_bounds = array<i64: 96, 96>}, {transform_indices = @transform_4, window_bounds = array<i64: 12, 8, 8>}]} {
    %c0 = arith.constant 0 : index
    %c0_0 = arith.constant 0 : index
    %c0_1 = arith.constant 0 : index
    %0 = vector.load %arg1[%c0, %c0_0, %c0_1] : memref<12x8x16xf32, #tpu.memory_space<vmem>>, vector<12x8x16xf32>
    %1 = vector.shape_cast %0 : vector<12x8x16xf32> to vector<96x16xf32>
    %c0_2 = arith.constant 0 : index
    %c0_3 = arith.constant 0 : index
    %2 = vector.load %arg4[%c0_2, %c0_3] : memref<96x96xf32, #tpu.memory_space<vmem>>, vector<96x96xf32>
    %c0_4 = arith.constant 0 : index
    %c0_5 = arith.constant 0 : index
    %3 = vector.load %arg3[%c0_4, %c0_5] : memref<18x128xf32, #tpu.memory_space<vmem>>, vector<1x16xf32>
    %c1 = arith.constant 1 : index
    %c0_6 = arith.constant 0 : index
    %4 = vector.load %arg3[%c1, %c0_6] : memref<18x128xf32, #tpu.memory_space<vmem>>, vector<1x16xf32>
    %cst = arith.constant dense<0.000000e+00> : vector<96xf32>
    %5 = vector.multi_reduction <add>, %1, %cst [1] : vector<96x16xf32> to vector<96xf32>
    %6 = vector.shape_cast %5 : vector<96xf32> to vector<96x1xf32>
    %cst_7 = arith.constant 1.600000e+01 : f32
    %7 = vector.broadcast %cst_7 : f32 to vector<96x1xf32>
    %8 = arith.divf %6, %7 : vector<96x1xf32>
    %9 = vector.broadcast %8 : vector<96x1xf32> to vector<96x16xf32>
    %10 = arith.subf %1, %9 : vector<96x16xf32>
    %11 = arith.mulf %10, %10 : vector<96x16xf32>
    %cst_8 = arith.constant dense<0.000000e+00> : vector<96xf32>
    %12 = vector.multi_reduction <add>, %11, %cst_8 [1] : vector<96x16xf32> to vector<96xf32>
    %13 = vector.shape_cast %12 : vector<96xf32> to vector<96x1xf32>
    %cst_9 = arith.constant 1.600000e+01 : f32
    %14 = vector.broadcast %cst_9 : f32 to vector<96x1xf32>
    %15 = arith.divf %13, %14 : vector<96x1xf32>
    %16 = math.sqrt %15 : vector<96x1xf32>
    %17 = vector.broadcast %8 : vector<96x1xf32> to vector<96x16xf32>
    %18 = arith.subf %1, %17 : vector<96x16xf32>
    %cst_10 = arith.constant 9.99999974E-6 : f32
    %19 = vector.broadcast %cst_10 : f32 to vector<96x1xf32>
    %20 = arith.addf %16, %19 : vector<96x1xf32>
    %21 = vector.broadcast %20 : vector<96x1xf32> to vector<96x16xf32>
    %22 = arith.divf %18, %21 : vector<96x16xf32>
    %23 = vector.broadcast %3 : vector<1x16xf32> to vector<96x16xf32>
    %24 = arith.mulf %22, %23 : vector<96x16xf32>
    %25 = vector.broadcast %4 : vector<1x16xf32> to vector<96x16xf32>
    %26 = arith.addf %24, %25 : vector<96x16xf32>
    %c144 = arith.constant 144 : index
    %c0_11 = arith.constant 0 : index
    %27 = vector.load %arg2[%c144, %c0_11] : memref<352x128xf32, #tpu.memory_space<vmem>>, vector<16x32xf32>
    %cst_12 = arith.constant dense<0.000000e+00> : vector<96x32xf32>
    %28 = tpu.matmul %1, %27, %cst_12 {dimension_numbers = #tpu.dot_dimension_numbers<[1], [0], [0], [1], [0, 0, 1, 1], [], []>} : vector<96x16xf32>, vector<16x32xf32>, vector<96x32xf32> -> vector<96x32xf32>
    %c8 = arith.constant 8 : index
    %c0_13 = arith.constant 0 : index
    %29 = vector.load %arg3[%c8, %c0_13] : memref<18x128xf32, #tpu.memory_space<vmem>>, vector<1x32xf32>
    %30 = vector.broadcast %29 : vector<1x32xf32> to vector<96x32xf32>
    %31 = arith.addf %28, %30 : vector<96x32xf32>
    %c0_14 = arith.constant 0 : index
    %c0_15 = arith.constant 0 : index
    %32 = vector.load %arg2[%c0_14, %c0_15] : memref<352x128xf32, #tpu.memory_space<vmem>>, vector<16x96xf32>
    %cst_16 = arith.constant dense<0.000000e+00> : vector<96x96xf32>
    %33 = tpu.matmul %26, %32, %cst_16 {dimension_numbers = #tpu.dot_dimension_numbers<[1], [0], [0], [1], [0, 0, 1, 1], [], []>} : vector<96x16xf32>, vector<16x96xf32>, vector<96x96xf32> -> vector<96x96xf32>
    %c2 = arith.constant 2 : index
    %c0_17 = arith.constant 0 : index
    %34 = vector.load %arg3[%c2, %c0_17] : memref<18x128xf32, #tpu.memory_space<vmem>>, vector<1x96xf32>
    %35 = vector.broadcast %34 : vector<1x96xf32> to vector<96x96xf32>
    %36 = arith.addf %33, %35 : vector<96x96xf32>
    %37 = vector.extract_strided_slice %36 {offsets = [0, 0], sizes = [96, 32], strides = [1, 1]} : vector<96x96xf32> to vector<96x32xf32>
    %38 = vector.extract_strided_slice %36 {offsets = [0, 32], sizes = [96, 32], strides = [1, 1]} : vector<96x96xf32> to vector<96x32xf32>
    %39 = vector.extract_strided_slice %36 {offsets = [0, 64], sizes = [96, 32], strides = [1, 1]} : vector<96x96xf32> to vector<96x32xf32>
    %c16 = arith.constant 16 : index
    %c0_18 = arith.constant 0 : index
    %40 = vector.load %arg2[%c16, %c0_18] : memref<352x128xf32, #tpu.memory_space<vmem>>, vector<32x32xf32>
    %41 = vector.extract_strided_slice %37 {offsets = [0, 0], sizes = [96, 8], strides = [1, 1]} : vector<96x32xf32> to vector<96x8xf32>
    %42 = vector.extract_strided_slice %38 {offsets = [0, 0], sizes = [96, 8], strides = [1, 1]} : vector<96x32xf32> to vector<96x8xf32>
    %43 = vector.extract_strided_slice %39 {offsets = [0, 0], sizes = [96, 8], strides = [1, 1]} : vector<96x32xf32> to vector<96x8xf32>
    %cst_19 = arith.constant dense<0.000000e+00> : vector<96x96xf32>
    %44 = tpu.matmul %41, %42, %cst_19 {dimension_numbers = #tpu.dot_dimension_numbers<[1], [1], [0], [0], [0, 0, 1, 0], [], []>} : vector<96x8xf32>, vector<96x8xf32>, vector<96x96xf32> -> vector<96x96xf32>
    %45 = arith.addf %44, %2 : vector<96x96xf32>
    %cst_20 = arith.constant dense<0xFF800000> : vector<96xf32>
    %46 = vector.multi_reduction <maximumf>, %45, %cst_20 [1] : vector<96x96xf32> to vector<96xf32>
    %47 = vector.shape_cast %46 : vector<96xf32> to vector<96x1xf32>
    %48 = vector.broadcast %47 : vector<96x1xf32> to vector<96x96xf32>
    %49 = arith.subf %45, %48 : vector<96x96xf32>
    %50 = math.exp %49 : vector<96x96xf32>
    %cst_21 = arith.constant dense<0.000000e+00> : vector<96xf32>
    %51 = vector.multi_reduction <add>, %50, %cst_21 [1] : vector<96x96xf32> to vector<96xf32>
    %52 = vector.shape_cast %51 : vector<96xf32> to vector<96x1xf32>
    %53 = tpu.reciprocal %52 {approx = true} : vector<96x1xf32> -> vector<96x1xf32>
    %54 = vector.broadcast %53 : vector<96x1xf32> to vector<96x96xf32>
    %55 = arith.mulf %50, %54 : vector<96x96xf32>
    %cst_22 = arith.constant dense<0.000000e+00> : vector<96x8xf32>
    %56 = tpu.matmul %55, %43, %cst_22 {dimension_numbers = #tpu.dot_dimension_numbers<[1], [0], [0], [1], [0, 0, 1, 1], [], []>} : vector<96x96xf32>, vector<96x8xf32>, vector<96x8xf32> -> vector<96x8xf32>
    %57 = vector.extract_strided_slice %40 {offsets = [0, 0], sizes = [8, 32], strides = [1, 1]} : vector<32x32xf32> to vector<8x32xf32>
    %cst_23 = arith.constant dense<0.000000e+00> : vector<96x32xf32>
    %58 = tpu.matmul %56, %57, %cst_23 {dimension_numbers = #tpu.dot_dimension_numbers<[1], [0], [0], [1], [0, 0, 1, 1], [], []>} : vector<96x8xf32>, vector<8x32xf32>, vector<96x32xf32> -> vector<96x32xf32>
    %59 = vector.extract_strided_slice %37 {offsets = [0, 8], sizes = [96, 8], strides = [1, 1]} : vector<96x32xf32> to vector<96x8xf32>
    %60 = vector.extract_strided_slice %38 {offsets = [0, 8], sizes = [96, 8], strides = [1, 1]} : vector<96x32xf32> to vector<96x8xf32>
    %61 = vector.extract_strided_slice %39 {offsets = [0, 8], sizes = [96, 8], strides = [1, 1]} : vector<96x32xf32> to vector<96x8xf32>
    %cst_24 = arith.constant dense<0.000000e+00> : vector<96x96xf32>
    %62 = tpu.matmul %59, %60, %cst_24 {dimension_numbers = #tpu.dot_dimension_numbers<[1], [1], [0], [0], [0, 0, 1, 0], [], []>} : vector<96x8xf32>, vector<96x8xf32>, vector<96x96xf32> -> vector<96x96xf32>
    %63 = arith.addf %62, %2 : vector<96x96xf32>
    %cst_25 = arith.constant dense<0xFF800000> : vector<96xf32>
    %64 = vector.multi_reduction <maximumf>, %63, %cst_25 [1] : vector<96x96xf32> to vector<96xf32>
    %65 = vector.shape_cast %64 : vector<96xf32> to vector<96x1xf32>
    %66 = vector.broadcast %65 : vector<96x1xf32> to vector<96x96xf32>
    %67 = arith.subf %63, %66 : vector<96x96xf32>
    %68 = math.exp %67 : vector<96x96xf32>
    %cst_26 = arith.constant dense<0.000000e+00> : vector<96xf32>
    %69 = vector.multi_reduction <add>, %68, %cst_26 [1] : vector<96x96xf32> to vector<96xf32>
    %70 = vector.shape_cast %69 : vector<96xf32> to vector<96x1xf32>
    %71 = tpu.reciprocal %70 {approx = true} : vector<96x1xf32> -> vector<96x1xf32>
    %72 = vector.broadcast %71 : vector<96x1xf32> to vector<96x96xf32>
    %73 = arith.mulf %68, %72 : vector<96x96xf32>
    %cst_27 = arith.constant dense<0.000000e+00> : vector<96x8xf32>
    %74 = tpu.matmul %73, %61, %cst_27 {dimension_numbers = #tpu.dot_dimension_numbers<[1], [0], [0], [1], [0, 0, 1, 1], [], []>} : vector<96x96xf32>, vector<96x8xf32>, vector<96x8xf32> -> vector<96x8xf32>
    %75 = vector.extract_strided_slice %40 {offsets = [8, 0], sizes = [8, 32], strides = [1, 1]} : vector<32x32xf32> to vector<8x32xf32>
    %cst_28 = arith.constant dense<0.000000e+00> : vector<96x32xf32>
    %76 = tpu.matmul %74, %75, %cst_28 {dimension_numbers = #tpu.dot_dimension_numbers<[1], [0], [0], [1], [0, 0, 1, 1], [], []>} : vector<96x8xf32>, vector<8x32xf32>, vector<96x32xf32> -> vector<96x32xf32>
    %77 = arith.addf %58, %76 : vector<96x32xf32>
    %78 = vector.extract_strided_slice %37 {offsets = [0, 16], sizes = [96, 8], strides = [1, 1]} : vector<96x32xf32> to vector<96x8xf32>
    %79 = vector.extract_strided_slice %38 {offsets = [0, 16], sizes = [96, 8], strides = [1, 1]} : vector<96x32xf32> to vector<96x8xf32>
    %80 = vector.extract_strided_slice %39 {offsets = [0, 16], sizes = [96, 8], strides = [1, 1]} : vector<96x32xf32> to vector<96x8xf32>
    %cst_29 = arith.constant dense<0.000000e+00> : vector<96x96xf32>
    %81 = tpu.matmul %78, %79, %cst_29 {dimension_numbers = #tpu.dot_dimension_numbers<[1], [1], [0], [0], [0, 0, 1, 0], [], []>} : vector<96x8xf32>, vector<96x8xf32>, vector<96x96xf32> -> vector<96x96xf32>
    %82 = arith.addf %81, %2 : vector<96x96xf32>
    %cst_30 = arith.constant dense<0xFF800000> : vector<96xf32>
    %83 = vector.multi_reduction <maximumf>, %82, %cst_30 [1] : vector<96x96xf32> to vector<96xf32>
    %84 = vector.shape_cast %83 : vector<96xf32> to vector<96x1xf32>
    %85 = vector.broadcast %84 : vector<96x1xf32> to vector<96x96xf32>
    %86 = arith.subf %82, %85 : vector<96x96xf32>
    %87 = math.exp %86 : vector<96x96xf32>
    %cst_31 = arith.constant dense<0.000000e+00> : vector<96xf32>
    %88 = vector.multi_reduction <add>, %87, %cst_31 [1] : vector<96x96xf32> to vector<96xf32>
    %89 = vector.shape_cast %88 : vector<96xf32> to vector<96x1xf32>
    %90 = tpu.reciprocal %89 {approx = true} : vector<96x1xf32> -> vector<96x1xf32>
    %91 = vector.broadcast %90 : vector<96x1xf32> to vector<96x96xf32>
    %92 = arith.mulf %87, %91 : vector<96x96xf32>
    %cst_32 = arith.constant dense<0.000000e+00> : vector<96x8xf32>
    %93 = tpu.matmul %92, %80, %cst_32 {dimension_numbers = #tpu.dot_dimension_numbers<[1], [0], [0], [1], [0, 0, 1, 1], [], []>} : vector<96x96xf32>, vector<96x8xf32>, vector<96x8xf32> -> vector<96x8xf32>
    %94 = vector.extract_strided_slice %40 {offsets = [16, 0], sizes = [8, 32], strides = [1, 1]} : vector<32x32xf32> to vector<8x32xf32>
    %cst_33 = arith.constant dense<0.000000e+00> : vector<96x32xf32>
    %95 = tpu.matmul %93, %94, %cst_33 {dimension_numbers = #tpu.dot_dimension_numbers<[1], [0], [0], [1], [0, 0, 1, 1], [], []>} : vector<96x8xf32>, vector<8x32xf32>, vector<96x32xf32> -> vector<96x32xf32>
    %96 = arith.addf %77, %95 : vector<96x32xf32>
    %97 = vector.extract_strided_slice %37 {offsets = [0, 24], sizes = [96, 8], strides = [1, 1]} : vector<96x32xf32> to vector<96x8xf32>
    %98 = vector.extract_strided_slice %38 {offsets = [0, 24], sizes = [96, 8], strides = [1, 1]} : vector<96x32xf32> to vector<96x8xf32>
    %99 = vector.extract_strided_slice %39 {offsets = [0, 24], sizes = [96, 8], strides = [1, 1]} : vector<96x32xf32> to vector<96x8xf32>
    %cst_34 = arith.constant dense<0.000000e+00> : vector<96x96xf32>
    %100 = tpu.matmul %97, %98, %cst_34 {dimension_numbers = #tpu.dot_dimension_numbers<[1], [1], [0], [0], [0, 0, 1, 0], [], []>} : vector<96x8xf32>, vector<96x8xf32>, vector<96x96xf32> -> vector<96x96xf32>
    %101 = arith.addf %100, %2 : vector<96x96xf32>
    %cst_35 = arith.constant dense<0xFF800000> : vector<96xf32>
    %102 = vector.multi_reduction <maximumf>, %101, %cst_35 [1] : vector<96x96xf32> to vector<96xf32>
    %103 = vector.shape_cast %102 : vector<96xf32> to vector<96x1xf32>
    %104 = vector.broadcast %103 : vector<96x1xf32> to vector<96x96xf32>
    %105 = arith.subf %101, %104 : vector<96x96xf32>
    %106 = math.exp %105 : vector<96x96xf32>
    %cst_36 = arith.constant dense<0.000000e+00> : vector<96xf32>
    %107 = vector.multi_reduction <add>, %106, %cst_36 [1] : vector<96x96xf32> to vector<96xf32>
    %108 = vector.shape_cast %107 : vector<96xf32> to vector<96x1xf32>
    %109 = tpu.reciprocal %108 {approx = true} : vector<96x1xf32> -> vector<96x1xf32>
    %110 = vector.broadcast %109 : vector<96x1xf32> to vector<96x96xf32>
    %111 = arith.mulf %106, %110 : vector<96x96xf32>
    %cst_37 = arith.constant dense<0.000000e+00> : vector<96x8xf32>
    %112 = tpu.matmul %111, %99, %cst_37 {dimension_numbers = #tpu.dot_dimension_numbers<[1], [0], [0], [1], [0, 0, 1, 1], [], []>} : vector<96x96xf32>, vector<96x8xf32>, vector<96x8xf32> -> vector<96x8xf32>
    %113 = vector.extract_strided_slice %40 {offsets = [24, 0], sizes = [8, 32], strides = [1, 1]} : vector<32x32xf32> to vector<8x32xf32>
    %cst_38 = arith.constant dense<0.000000e+00> : vector<96x32xf32>
    %114 = tpu.matmul %112, %113, %cst_38 {dimension_numbers = #tpu.dot_dimension_numbers<[1], [0], [0], [1], [0, 0, 1, 1], [], []>} : vector<96x8xf32>, vector<8x32xf32>, vector<96x32xf32> -> vector<96x32xf32>
    %115 = arith.addf %96, %114 : vector<96x32xf32>
    %116 = arith.addf %31, %115 : vector<96x32xf32>
    %c3 = arith.constant 3 : index
    %c0_39 = arith.constant 0 : index
    %117 = vector.load %arg3[%c3, %c0_39] : memref<18x128xf32, #tpu.memory_space<vmem>>, vector<1x32xf32>
    %118 = vector.broadcast %117 : vector<1x32xf32> to vector<96x32xf32>
    %119 = arith.addf %116, %118 : vector<96x32xf32>
    %c4 = arith.constant 4 : index
    %c0_40 = arith.constant 0 : index
    %120 = vector.load %arg3[%c4, %c0_40] : memref<18x128xf32, #tpu.memory_space<vmem>>, vector<1x32xf32>
    %c5 = arith.constant 5 : index
    %c0_41 = arith.constant 0 : index
    %121 = vector.load %arg3[%c5, %c0_41] : memref<18x128xf32, #tpu.memory_space<vmem>>, vector<1x32xf32>
    %cst_42 = arith.constant dense<0.000000e+00> : vector<96xf32>
    %122 = vector.multi_reduction <add>, %119, %cst_42 [1] : vector<96x32xf32> to vector<96xf32>
    %123 = vector.shape_cast %122 : vector<96xf32> to vector<96x1xf32>
    %cst_43 = arith.constant 3.200000e+01 : f32
    %124 = vector.broadcast %cst_43 : f32 to vector<96x1xf32>
    %125 = arith.divf %123, %124 : vector<96x1xf32>
    %126 = vector.broadcast %125 : vector<96x1xf32> to vector<96x32xf32>
    %127 = arith.subf %119, %126 : vector<96x32xf32>
    %128 = arith.mulf %127, %127 : vector<96x32xf32>
    %cst_44 = arith.constant dense<0.000000e+00> : vector<96xf32>
    %129 = vector.multi_reduction <add>, %128, %cst_44 [1] : vector<96x32xf32> to vector<96xf32>
    %130 = vector.shape_cast %129 : vector<96xf32> to vector<96x1xf32>
    %cst_45 = arith.constant 3.200000e+01 : f32
    %131 = vector.broadcast %cst_45 : f32 to vector<96x1xf32>
    %132 = arith.divf %130, %131 : vector<96x1xf32>
    %133 = math.sqrt %132 : vector<96x1xf32>
    %134 = vector.broadcast %125 : vector<96x1xf32> to vector<96x32xf32>
    %135 = arith.subf %119, %134 : vector<96x32xf32>
    %cst_46 = arith.constant 9.99999974E-6 : f32
    %136 = vector.broadcast %cst_46 : f32 to vector<96x1xf32>
    %137 = arith.addf %133, %136 : vector<96x1xf32>
    %138 = vector.broadcast %137 : vector<96x1xf32> to vector<96x32xf32>
    %139 = arith.divf %135, %138 : vector<96x32xf32>
    %140 = vector.broadcast %120 : vector<1x32xf32> to vector<96x32xf32>
    %141 = arith.mulf %139, %140 : vector<96x32xf32>
    %142 = vector.broadcast %121 : vector<1x32xf32> to vector<96x32xf32>
    %143 = arith.addf %141, %142 : vector<96x32xf32>
    %c48 = arith.constant 48 : index
    %c0_47 = arith.constant 0 : index
    %144 = vector.load %arg2[%c48, %c0_47] : memref<352x128xf32, #tpu.memory_space<vmem>>, vector<32x64xf32>
    %cst_48 = arith.constant dense<0.000000e+00> : vector<96x64xf32>
    %145 = tpu.matmul %143, %144, %cst_48 {dimension_numbers = #tpu.dot_dimension_numbers<[1], [0], [0], [1], [0, 0, 1, 1], [], []>} : vector<96x32xf32>, vector<32x64xf32>, vector<96x64xf32> -> vector<96x64xf32>
    %c6 = arith.constant 6 : index
    %c0_49 = arith.constant 0 : index
    %146 = vector.load %arg3[%c6, %c0_49] : memref<18x128xf32, #tpu.memory_space<vmem>>, vector<1x64xf32>
    %147 = vector.broadcast %146 : vector<1x64xf32> to vector<96x64xf32>
    %148 = arith.addf %145, %147 : vector<96x64xf32>
    %cst_50 = arith.constant 0.000000e+00 : f32
    %149 = vector.broadcast %cst_50 : f32 to vector<96x64xf32>
    %150 = arith.cmpf ogt, %148, %149 : vector<96x64xf32>
    %cst_51 = arith.constant 0.000000e+00 : f32
    %151 = vector.broadcast %cst_51 : f32 to vector<96x64xf32>
    %152 = arith.minimumf %148, %151 : vector<96x64xf32>
    %153 = math.exp %152 : vector<96x64xf32>
    %cst_52 = arith.constant 1.000000e+00 : f32
    %154 = vector.broadcast %cst_52 : f32 to vector<96x64xf32>
    %155 = arith.subf %153, %154 : vector<96x64xf32>
    %156 = arith.select %150, %148, %155 : vector<96x64xi1>, vector<96x64xf32>
    %c80 = arith.constant 80 : index
    %c0_53 = arith.constant 0 : index
    %157 = vector.load %arg2[%c80, %c0_53] : memref<352x128xf32, #tpu.memory_space<vmem>>, vector<64x32xf32>
    %cst_54 = arith.constant dense<0.000000e+00> : vector<96x32xf32>
    %158 = tpu.matmul %156, %157, %cst_54 {dimension_numbers = #tpu.dot_dimension_numbers<[1], [0], [0], [1], [0, 0, 1, 1], [], []>} : vector<96x64xf32>, vector<64x32xf32>, vector<96x32xf32> -> vector<96x32xf32>
    %c7 = arith.constant 7 : index
    %c0_55 = arith.constant 0 : index
    %159 = vector.load %arg3[%c7, %c0_55] : memref<18x128xf32, #tpu.memory_space<vmem>>, vector<1x32xf32>
    %160 = vector.broadcast %159 : vector<1x32xf32> to vector<96x32xf32>
    %161 = arith.addf %158, %160 : vector<96x32xf32>
    %162 = arith.addf %119, %161 : vector<96x32xf32>
    %c9 = arith.constant 9 : index
    %c0_56 = arith.constant 0 : index
    %163 = vector.load %arg3[%c9, %c0_56] : memref<18x128xf32, #tpu.memory_space<vmem>>, vector<1x32xf32>
    %c10 = arith.constant 10 : index
    %c0_57 = arith.constant 0 : index
    %164 = vector.load %arg3[%c10, %c0_57] : memref<18x128xf32, #tpu.memory_space<vmem>>, vector<1x32xf32>
    %cst_58 = arith.constant dense<0.000000e+00> : vector<96xf32>
    %165 = vector.multi_reduction <add>, %162, %cst_58 [1] : vector<96x32xf32> to vector<96xf32>
    %166 = vector.shape_cast %165 : vector<96xf32> to vector<96x1xf32>
    %cst_59 = arith.constant 3.200000e+01 : f32
    %167 = vector.broadcast %cst_59 : f32 to vector<96x1xf32>
    %168 = arith.divf %166, %167 : vector<96x1xf32>
    %169 = vector.broadcast %168 : vector<96x1xf32> to vector<96x32xf32>
    %170 = arith.subf %162, %169 : vector<96x32xf32>
    %171 = arith.mulf %170, %170 : vector<96x32xf32>
    %cst_60 = arith.constant dense<0.000000e+00> : vector<96xf32>
    %172 = vector.multi_reduction <add>, %171, %cst_60 [1] : vector<96x32xf32> to vector<96xf32>
    %173 = vector.shape_cast %172 : vector<96xf32> to vector<96x1xf32>
    %cst_61 = arith.constant 3.200000e+01 : f32
    %174 = vector.broadcast %cst_61 : f32 to vector<96x1xf32>
    %175 = arith.divf %173, %174 : vector<96x1xf32>
    %176 = math.sqrt %175 : vector<96x1xf32>
    %177 = vector.broadcast %168 : vector<96x1xf32> to vector<96x32xf32>
    %178 = arith.subf %162, %177 : vector<96x32xf32>
    %cst_62 = arith.constant 9.99999974E-6 : f32
    %179 = vector.broadcast %cst_62 : f32 to vector<96x1xf32>
    %180 = arith.addf %176, %179 : vector<96x1xf32>
    %181 = vector.broadcast %180 : vector<96x1xf32> to vector<96x32xf32>
    %182 = arith.divf %178, %181 : vector<96x32xf32>
    %183 = vector.broadcast %163 : vector<1x32xf32> to vector<96x32xf32>
    %184 = arith.mulf %182, %183 : vector<96x32xf32>
    %185 = vector.broadcast %164 : vector<1x32xf32> to vector<96x32xf32>
    %186 = arith.addf %184, %185 : vector<96x32xf32>
    %c160 = arith.constant 160 : index
    %c0_63 = arith.constant 0 : index
    %187 = vector.load %arg2[%c160, %c0_63] : memref<352x128xf32, #tpu.memory_space<vmem>>, vector<32x96xf32>
    %cst_64 = arith.constant dense<0.000000e+00> : vector<96x96xf32>
    %188 = tpu.matmul %186, %187, %cst_64 {dimension_numbers = #tpu.dot_dimension_numbers<[1], [0], [0], [1], [0, 0, 1, 1], [], []>} : vector<96x32xf32>, vector<32x96xf32>, vector<96x96xf32> -> vector<96x96xf32>
    %c11 = arith.constant 11 : index
    %c0_65 = arith.constant 0 : index
    %189 = vector.load %arg3[%c11, %c0_65] : memref<18x128xf32, #tpu.memory_space<vmem>>, vector<1x96xf32>
    %190 = vector.broadcast %189 : vector<1x96xf32> to vector<96x96xf32>
    %191 = arith.addf %188, %190 : vector<96x96xf32>
    %192 = vector.extract_strided_slice %191 {offsets = [0, 0], sizes = [96, 32], strides = [1, 1]} : vector<96x96xf32> to vector<96x32xf32>
    %193 = vector.extract_strided_slice %191 {offsets = [0, 32], sizes = [96, 32], strides = [1, 1]} : vector<96x96xf32> to vector<96x32xf32>
    %194 = vector.extract_strided_slice %191 {offsets = [0, 64], sizes = [96, 32], strides = [1, 1]} : vector<96x96xf32> to vector<96x32xf32>
    %c192 = arith.constant 192 : index
    %c0_66 = arith.constant 0 : index
    %195 = vector.load %arg2[%c192, %c0_66] : memref<352x128xf32, #tpu.memory_space<vmem>>, vector<32x32xf32>
    %196 = vector.extract_strided_slice %192 {offsets = [0, 0], sizes = [96, 8], strides = [1, 1]} : vector<96x32xf32> to vector<96x8xf32>
    %197 = vector.extract_strided_slice %193 {offsets = [0, 0], sizes = [96, 8], strides = [1, 1]} : vector<96x32xf32> to vector<96x8xf32>
    %198 = vector.extract_strided_slice %194 {offsets = [0, 0], sizes = [96, 8], strides = [1, 1]} : vector<96x32xf32> to vector<96x8xf32>
    %cst_67 = arith.constant dense<0.000000e+00> : vector<96x96xf32>
    %199 = tpu.matmul %196, %197, %cst_67 {dimension_numbers = #tpu.dot_dimension_numbers<[1], [1], [0], [0], [0, 0, 1, 0], [], []>} : vector<96x8xf32>, vector<96x8xf32>, vector<96x96xf32> -> vector<96x96xf32>
    %200 = arith.addf %199, %2 : vector<96x96xf32>
    %cst_68 = arith.constant dense<0xFF800000> : vector<96xf32>
    %201 = vector.multi_reduction <maximumf>, %200, %cst_68 [1] : vector<96x96xf32> to vector<96xf32>
    %202 = vector.shape_cast %201 : vector<96xf32> to vector<96x1xf32>
    %203 = vector.broadcast %202 : vector<96x1xf32> to vector<96x96xf32>
    %204 = arith.subf %200, %203 : vector<96x96xf32>
    %205 = math.exp %204 : vector<96x96xf32>
    %cst_69 = arith.constant dense<0.000000e+00> : vector<96xf32>
    %206 = vector.multi_reduction <add>, %205, %cst_69 [1] : vector<96x96xf32> to vector<96xf32>
    %207 = vector.shape_cast %206 : vector<96xf32> to vector<96x1xf32>
    %208 = tpu.reciprocal %207 {approx = true} : vector<96x1xf32> -> vector<96x1xf32>
    %209 = vector.broadcast %208 : vector<96x1xf32> to vector<96x96xf32>
    %210 = arith.mulf %205, %209 : vector<96x96xf32>
    %cst_70 = arith.constant dense<0.000000e+00> : vector<96x8xf32>
    %211 = tpu.matmul %210, %198, %cst_70 {dimension_numbers = #tpu.dot_dimension_numbers<[1], [0], [0], [1], [0, 0, 1, 1], [], []>} : vector<96x96xf32>, vector<96x8xf32>, vector<96x8xf32> -> vector<96x8xf32>
    %212 = vector.extract_strided_slice %195 {offsets = [0, 0], sizes = [8, 32], strides = [1, 1]} : vector<32x32xf32> to vector<8x32xf32>
    %cst_71 = arith.constant dense<0.000000e+00> : vector<96x32xf32>
    %213 = tpu.matmul %211, %212, %cst_71 {dimension_numbers = #tpu.dot_dimension_numbers<[1], [0], [0], [1], [0, 0, 1, 1], [], []>} : vector<96x8xf32>, vector<8x32xf32>, vector<96x32xf32> -> vector<96x32xf32>
    %214 = vector.extract_strided_slice %192 {offsets = [0, 8], sizes = [96, 8], strides = [1, 1]} : vector<96x32xf32> to vector<96x8xf32>
    %215 = vector.extract_strided_slice %193 {offsets = [0, 8], sizes = [96, 8], strides = [1, 1]} : vector<96x32xf32> to vector<96x8xf32>
    %216 = vector.extract_strided_slice %194 {offsets = [0, 8], sizes = [96, 8], strides = [1, 1]} : vector<96x32xf32> to vector<96x8xf32>
    %cst_72 = arith.constant dense<0.000000e+00> : vector<96x96xf32>
    %217 = tpu.matmul %214, %215, %cst_72 {dimension_numbers = #tpu.dot_dimension_numbers<[1], [1], [0], [0], [0, 0, 1, 0], [], []>} : vector<96x8xf32>, vector<96x8xf32>, vector<96x96xf32> -> vector<96x96xf32>
    %218 = arith.addf %217, %2 : vector<96x96xf32>
    %cst_73 = arith.constant dense<0xFF800000> : vector<96xf32>
    %219 = vector.multi_reduction <maximumf>, %218, %cst_73 [1] : vector<96x96xf32> to vector<96xf32>
    %220 = vector.shape_cast %219 : vector<96xf32> to vector<96x1xf32>
    %221 = vector.broadcast %220 : vector<96x1xf32> to vector<96x96xf32>
    %222 = arith.subf %218, %221 : vector<96x96xf32>
    %223 = math.exp %222 : vector<96x96xf32>
    %cst_74 = arith.constant dense<0.000000e+00> : vector<96xf32>
    %224 = vector.multi_reduction <add>, %223, %cst_74 [1] : vector<96x96xf32> to vector<96xf32>
    %225 = vector.shape_cast %224 : vector<96xf32> to vector<96x1xf32>
    %226 = tpu.reciprocal %225 {approx = true} : vector<96x1xf32> -> vector<96x1xf32>
    %227 = vector.broadcast %226 : vector<96x1xf32> to vector<96x96xf32>
    %228 = arith.mulf %223, %227 : vector<96x96xf32>
    %cst_75 = arith.constant dense<0.000000e+00> : vector<96x8xf32>
    %229 = tpu.matmul %228, %216, %cst_75 {dimension_numbers = #tpu.dot_dimension_numbers<[1], [0], [0], [1], [0, 0, 1, 1], [], []>} : vector<96x96xf32>, vector<96x8xf32>, vector<96x8xf32> -> vector<96x8xf32>
    %230 = vector.extract_strided_slice %195 {offsets = [8, 0], sizes = [8, 32], strides = [1, 1]} : vector<32x32xf32> to vector<8x32xf32>
    %cst_76 = arith.constant dense<0.000000e+00> : vector<96x32xf32>
    %231 = tpu.matmul %229, %230, %cst_76 {dimension_numbers = #tpu.dot_dimension_numbers<[1], [0], [0], [1], [0, 0, 1, 1], [], []>} : vector<96x8xf32>, vector<8x32xf32>, vector<96x32xf32> -> vector<96x32xf32>
    %232 = arith.addf %213, %231 : vector<96x32xf32>
    %233 = vector.extract_strided_slice %192 {offsets = [0, 16], sizes = [96, 8], strides = [1, 1]} : vector<96x32xf32> to vector<96x8xf32>
    %234 = vector.extract_strided_slice %193 {offsets = [0, 16], sizes = [96, 8], strides = [1, 1]} : vector<96x32xf32> to vector<96x8xf32>
    %235 = vector.extract_strided_slice %194 {offsets = [0, 16], sizes = [96, 8], strides = [1, 1]} : vector<96x32xf32> to vector<96x8xf32>
    %cst_77 = arith.constant dense<0.000000e+00> : vector<96x96xf32>
    %236 = tpu.matmul %233, %234, %cst_77 {dimension_numbers = #tpu.dot_dimension_numbers<[1], [1], [0], [0], [0, 0, 1, 0], [], []>} : vector<96x8xf32>, vector<96x8xf32>, vector<96x96xf32> -> vector<96x96xf32>
    %237 = arith.addf %236, %2 : vector<96x96xf32>
    %cst_78 = arith.constant dense<0xFF800000> : vector<96xf32>
    %238 = vector.multi_reduction <maximumf>, %237, %cst_78 [1] : vector<96x96xf32> to vector<96xf32>
    %239 = vector.shape_cast %238 : vector<96xf32> to vector<96x1xf32>
    %240 = vector.broadcast %239 : vector<96x1xf32> to vector<96x96xf32>
    %241 = arith.subf %237, %240 : vector<96x96xf32>
    %242 = math.exp %241 : vector<96x96xf32>
    %cst_79 = arith.constant dense<0.000000e+00> : vector<96xf32>
    %243 = vector.multi_reduction <add>, %242, %cst_79 [1] : vector<96x96xf32> to vector<96xf32>
    %244 = vector.shape_cast %243 : vector<96xf32> to vector<96x1xf32>
    %245 = tpu.reciprocal %244 {approx = true} : vector<96x1xf32> -> vector<96x1xf32>
    %246 = vector.broadcast %245 : vector<96x1xf32> to vector<96x96xf32>
    %247 = arith.mulf %242, %246 : vector<96x96xf32>
    %cst_80 = arith.constant dense<0.000000e+00> : vector<96x8xf32>
    %248 = tpu.matmul %247, %235, %cst_80 {dimension_numbers = #tpu.dot_dimension_numbers<[1], [0], [0], [1], [0, 0, 1, 1], [], []>} : vector<96x96xf32>, vector<96x8xf32>, vector<96x8xf32> -> vector<96x8xf32>
    %249 = vector.extract_strided_slice %195 {offsets = [16, 0], sizes = [8, 32], strides = [1, 1]} : vector<32x32xf32> to vector<8x32xf32>
    %cst_81 = arith.constant dense<0.000000e+00> : vector<96x32xf32>
    %250 = tpu.matmul %248, %249, %cst_81 {dimension_numbers = #tpu.dot_dimension_numbers<[1], [0], [0], [1], [0, 0, 1, 1], [], []>} : vector<96x8xf32>, vector<8x32xf32>, vector<96x32xf32> -> vector<96x32xf32>
    %251 = arith.addf %232, %250 : vector<96x32xf32>
    %252 = vector.extract_strided_slice %192 {offsets = [0, 24], sizes = [96, 8], strides = [1, 1]} : vector<96x32xf32> to vector<96x8xf32>
    %253 = vector.extract_strided_slice %193 {offsets = [0, 24], sizes = [96, 8], strides = [1, 1]} : vector<96x32xf32> to vector<96x8xf32>
    %254 = vector.extract_strided_slice %194 {offsets = [0, 24], sizes = [96, 8], strides = [1, 1]} : vector<96x32xf32> to vector<96x8xf32>
    %cst_82 = arith.constant dense<0.000000e+00> : vector<96x96xf32>
    %255 = tpu.matmul %252, %253, %cst_82 {dimension_numbers = #tpu.dot_dimension_numbers<[1], [1], [0], [0], [0, 0, 1, 0], [], []>} : vector<96x8xf32>, vector<96x8xf32>, vector<96x96xf32> -> vector<96x96xf32>
    %256 = arith.addf %255, %2 : vector<96x96xf32>
    %cst_83 = arith.constant dense<0xFF800000> : vector<96xf32>
    %257 = vector.multi_reduction <maximumf>, %256, %cst_83 [1] : vector<96x96xf32> to vector<96xf32>
    %258 = vector.shape_cast %257 : vector<96xf32> to vector<96x1xf32>
    %259 = vector.broadcast %258 : vector<96x1xf32> to vector<96x96xf32>
    %260 = arith.subf %256, %259 : vector<96x96xf32>
    %261 = math.exp %260 : vector<96x96xf32>
    %cst_84 = arith.constant dense<0.000000e+00> : vector<96xf32>
    %262 = vector.multi_reduction <add>, %261, %cst_84 [1] : vector<96x96xf32> to vector<96xf32>
    %263 = vector.shape_cast %262 : vector<96xf32> to vector<96x1xf32>
    %264 = tpu.reciprocal %263 {approx = true} : vector<96x1xf32> -> vector<96x1xf32>
    %265 = vector.broadcast %264 : vector<96x1xf32> to vector<96x96xf32>
    %266 = arith.mulf %261, %265 : vector<96x96xf32>
    %cst_85 = arith.constant dense<0.000000e+00> : vector<96x8xf32>
    %267 = tpu.matmul %266, %254, %cst_85 {dimension_numbers = #tpu.dot_dimension_numbers<[1], [0], [0], [1], [0, 0, 1, 1], [], []>} : vector<96x96xf32>, vector<96x8xf32>, vector<96x8xf32> -> vector<96x8xf32>
    %268 = vector.extract_strided_slice %195 {offsets = [24, 0], sizes = [8, 32], strides = [1, 1]} : vector<32x32xf32> to vector<8x32xf32>
    %cst_86 = arith.constant dense<0.000000e+00> : vector<96x32xf32>
    %269 = tpu.matmul %267, %268, %cst_86 {dimension_numbers = #tpu.dot_dimension_numbers<[1], [0], [0], [1], [0, 0, 1, 1], [], []>} : vector<96x8xf32>, vector<8x32xf32>, vector<96x32xf32> -> vector<96x32xf32>
    %270 = arith.addf %251, %269 : vector<96x32xf32>
    %271 = arith.addf %162, %270 : vector<96x32xf32>
    %c12 = arith.constant 12 : index
    %c0_87 = arith.constant 0 : index
    %272 = vector.load %arg3[%c12, %c0_87] : memref<18x128xf32, #tpu.memory_space<vmem>>, vector<1x32xf32>
    %273 = vector.broadcast %272 : vector<1x32xf32> to vector<96x32xf32>
    %274 = arith.addf %271, %273 : vector<96x32xf32>
    %c13 = arith.constant 13 : index
    %c0_88 = arith.constant 0 : index
    %275 = vector.load %arg3[%c13, %c0_88] : memref<18x128xf32, #tpu.memory_space<vmem>>, vector<1x32xf32>
    %c14 = arith.constant 14 : index
    %c0_89 = arith.constant 0 : index
    %276 = vector.load %arg3[%c14, %c0_89] : memref<18x128xf32, #tpu.memory_space<vmem>>, vector<1x32xf32>
    %cst_90 = arith.constant dense<0.000000e+00> : vector<96xf32>
    %277 = vector.multi_reduction <add>, %274, %cst_90 [1] : vector<96x32xf32> to vector<96xf32>
    %278 = vector.shape_cast %277 : vector<96xf32> to vector<96x1xf32>
    %cst_91 = arith.constant 3.200000e+01 : f32
    %279 = vector.broadcast %cst_91 : f32 to vector<96x1xf32>
    %280 = arith.divf %278, %279 : vector<96x1xf32>
    %281 = vector.broadcast %280 : vector<96x1xf32> to vector<96x32xf32>
    %282 = arith.subf %274, %281 : vector<96x32xf32>
    %283 = arith.mulf %282, %282 : vector<96x32xf32>
    %cst_92 = arith.constant dense<0.000000e+00> : vector<96xf32>
    %284 = vector.multi_reduction <add>, %283, %cst_92 [1] : vector<96x32xf32> to vector<96xf32>
    %285 = vector.shape_cast %284 : vector<96xf32> to vector<96x1xf32>
    %cst_93 = arith.constant 3.200000e+01 : f32
    %286 = vector.broadcast %cst_93 : f32 to vector<96x1xf32>
    %287 = arith.divf %285, %286 : vector<96x1xf32>
    %288 = math.sqrt %287 : vector<96x1xf32>
    %289 = vector.broadcast %280 : vector<96x1xf32> to vector<96x32xf32>
    %290 = arith.subf %274, %289 : vector<96x32xf32>
    %cst_94 = arith.constant 9.99999974E-6 : f32
    %291 = vector.broadcast %cst_94 : f32 to vector<96x1xf32>
    %292 = arith.addf %288, %291 : vector<96x1xf32>
    %293 = vector.broadcast %292 : vector<96x1xf32> to vector<96x32xf32>
    %294 = arith.divf %290, %293 : vector<96x32xf32>
    %295 = vector.broadcast %275 : vector<1x32xf32> to vector<96x32xf32>
    %296 = arith.mulf %294, %295 : vector<96x32xf32>
    %297 = vector.broadcast %276 : vector<1x32xf32> to vector<96x32xf32>
    %298 = arith.addf %296, %297 : vector<96x32xf32>
    %c224 = arith.constant 224 : index
    %c0_95 = arith.constant 0 : index
    %299 = vector.load %arg2[%c224, %c0_95] : memref<352x128xf32, #tpu.memory_space<vmem>>, vector<32x64xf32>
    %cst_96 = arith.constant dense<0.000000e+00> : vector<96x64xf32>
    %300 = tpu.matmul %298, %299, %cst_96 {dimension_numbers = #tpu.dot_dimension_numbers<[1], [0], [0], [1], [0, 0, 1, 1], [], []>} : vector<96x32xf32>, vector<32x64xf32>, vector<96x64xf32> -> vector<96x64xf32>
    %c15 = arith.constant 15 : index
    %c0_97 = arith.constant 0 : index
    %301 = vector.load %arg3[%c15, %c0_97] : memref<18x128xf32, #tpu.memory_space<vmem>>, vector<1x64xf32>
    %302 = vector.broadcast %301 : vector<1x64xf32> to vector<96x64xf32>
    %303 = arith.addf %300, %302 : vector<96x64xf32>
    %cst_98 = arith.constant 0.000000e+00 : f32
    %304 = vector.broadcast %cst_98 : f32 to vector<96x64xf32>
    %305 = arith.cmpf ogt, %303, %304 : vector<96x64xf32>
    %cst_99 = arith.constant 0.000000e+00 : f32
    %306 = vector.broadcast %cst_99 : f32 to vector<96x64xf32>
    %307 = arith.minimumf %303, %306 : vector<96x64xf32>
    %308 = math.exp %307 : vector<96x64xf32>
    %cst_100 = arith.constant 1.000000e+00 : f32
    %309 = vector.broadcast %cst_100 : f32 to vector<96x64xf32>
    %310 = arith.subf %308, %309 : vector<96x64xf32>
    %311 = arith.select %305, %303, %310 : vector<96x64xi1>, vector<96x64xf32>
    %c256 = arith.constant 256 : index
    %c0_101 = arith.constant 0 : index
    %312 = vector.load %arg2[%c256, %c0_101] : memref<352x128xf32, #tpu.memory_space<vmem>>, vector<64x32xf32>
    %cst_102 = arith.constant dense<0.000000e+00> : vector<96x32xf32>
    %313 = tpu.matmul %311, %312, %cst_102 {dimension_numbers = #tpu.dot_dimension_numbers<[1], [0], [0], [1], [0, 0, 1, 1], [], []>} : vector<96x64xf32>, vector<64x32xf32>, vector<96x32xf32> -> vector<96x32xf32>
    %c16_103 = arith.constant 16 : index
    %c0_104 = arith.constant 0 : index
    %314 = vector.load %arg3[%c16_103, %c0_104] : memref<18x128xf32, #tpu.memory_space<vmem>>, vector<1x32xf32>
    %315 = vector.broadcast %314 : vector<1x32xf32> to vector<96x32xf32>
    %316 = arith.addf %313, %315 : vector<96x32xf32>
    %317 = arith.addf %274, %316 : vector<96x32xf32>
    %c320 = arith.constant 320 : index
    %c0_105 = arith.constant 0 : index
    %318 = vector.load %arg2[%c320, %c0_105] : memref<352x128xf32, #tpu.memory_space<vmem>>, vector<32x8xf32>
    %cst_106 = arith.constant dense<0.000000e+00> : vector<96x8xf32>
    %319 = tpu.matmul %317, %318, %cst_106 {dimension_numbers = #tpu.dot_dimension_numbers<[1], [0], [0], [1], [0, 0, 1, 1], [], []>} : vector<96x32xf32>, vector<32x8xf32>, vector<96x8xf32> -> vector<96x8xf32>
    %c17 = arith.constant 17 : index
    %c0_107 = arith.constant 0 : index
    %320 = vector.load %arg3[%c17, %c0_107] : memref<18x128xf32, #tpu.memory_space<vmem>>, vector<1x8xf32>
    %321 = vector.broadcast %320 : vector<1x8xf32> to vector<96x8xf32>
    %322 = arith.addf %319, %321 : vector<96x8xf32>
    %323 = vector.shape_cast %322 : vector<96x8xf32> to vector<12x8x8xf32>
    %c0_108 = arith.constant 0 : index
    %c0_109 = arith.constant 0 : index
    %c0_110 = arith.constant 0 : index
    %324 = vector.load %arg5[%c0_108, %c0_109, %c0_110] : memref<12x8x8xf32, #tpu.memory_space<vmem>>, vector<12x8x8xf32>
    tpu.vector_store %arg5[%c0_108, %c0_109, %c0_110], %323 {strides = array<i32>} : memref<12x8x8xf32, #tpu.memory_space<vmem>>, vector<12x8x8xf32>,
    return
  }
  func.func @transform_0(%arg0: i32) -> (i32, i32, i32) {
    %c0_i32 = arith.constant 0 : i32
    %c0_i32_0 = arith.constant 0 : i32
    %c0_i32_1 = arith.constant 0 : i32
    return %arg0, %c0_i32, %c0_i32_0 : i32, i32, i32
  }
  func.func @transform_1(%arg0: i32) -> (i32, i32) {
    %c0_i32 = arith.constant 0 : i32
    %c0_i32_0 = arith.constant 0 : i32
    %c0_i32_1 = arith.constant 0 : i32
    return %c0_i32, %c0_i32_0 : i32, i32
  }
  func.func @transform_2(%arg0: i32) -> (i32, i32) {
    %c0_i32 = arith.constant 0 : i32
    %c0_i32_0 = arith.constant 0 : i32
    %c0_i32_1 = arith.constant 0 : i32
    return %c0_i32, %c0_i32_0 : i32, i32
  }
  func.func @transform_3(%arg0: i32) -> (i32, i32) {
    %c0_i32 = arith.constant 0 : i32
    %c0_i32_0 = arith.constant 0 : i32
    %c0_i32_1 = arith.constant 0 : i32
    return %c0_i32, %c0_i32_0 : i32, i32
  }
  func.func @transform_4(%arg0: i32) -> (i32, i32, i32) {
    %c0_i32 = arith.constant 0 : i32
    %c0_i32_0 = arith.constant 0 : i32
    %c0_i32_1 = arith.constant 0 : i32
    return %arg0, %c0_i32, %c0_i32_0 : i32, i32, i32
  }
}

</mosaic_0001>

<llo_original>
// kernel: tpu_custom_call.1
$region0: #{tpu_custom_call.1}
  #allocation0 [shape = 'u32[]', space=smem, size = 0x4, offset = 0x4, fixed_abs, tag = 'smem constant byte address 0x4 - core index']
  #allocation1 [shape = 'u32[144,128]{1,0:T(1,128)}', space=vmem, size = 0x12000, scoped, tag = 'internal scratch']
  %s0 = inlined_call_operand.hbm [shape: f32[12,8,16], index: 0, kind: input, shape index: {}]
  %s1 = inlined_call_operand.hbm [shape: f32[352,128], index: 1, kind: input, shape index: {}]
  %s2 = inlined_call_operand.hbm [shape: f32[18,128], index: 2, kind: input, shape index: {}]
  %s3 = inlined_call_operand.hbm [shape: f32[96,96], index: 3, kind: input, shape index: {}]
  %s4 = inlined_call_operand.vmem [shape: f32[12,8,8], index: 4, kind: output, shape index: {}]
  %s5 = sld [smem:[#allocation0]]
  $region42: #{tpu_custom_call.1} parent=0
    _
  %s7 = ssub.s32 1, %s5
  %s8 = scalar_select 0, %s7, %s5
  $region1: #{tpu_custom_call.1} parent=0
    #allocation2 [shape = 'u8[49152]{0}', space=vmem, size = 0xc000, scoped, tag = 'input window, operand 0, single buffered']
    #allocation3 [shape = 's32[1]{0}', space=sflag, size = 0x4, scoped, tag = 'scoped memory for tpu_custom_call.1']
    #allocation4 [shape = 'u8[180224]{0}', space=vmem, size = 0x2c000, scoped, tag = 'input window, operand 1, single buffered']
    #allocation5 [shape = 's32[1]{0}', space=sflag, size = 0x4, scoped, tag = 'scoped memory for tpu_custom_call.1']
    #allocation6 [shape = 'u8[12288]{0}', space=vmem, size = 0x3000, scoped, tag = 'input window, operand 2, single buffered']
    #allocation7 [shape = 'u8[49152]{0}', space=vmem, size = 0xc000, scoped, tag = 'input window, operand 3, single buffered']
    #allocation8 [shape = 's32[1]{0}', space=sflag, size = 0x4, scoped, tag = 'scoped memory for tpu_custom_call.1']
    %9 = vsyncpa [#allocation3], 0
    %10 = vsyncpa [#allocation5], 0
    %11 = vsyncpa [#allocation8], 0
    // Predicated region
    $region2: #{tpu_custom_call.1} parent=1 // pred_check
      _
    $region3: #{tpu_custom_call.1} parent=1 // pred_check_branch
      %13 = sbr.rel (0) target = $region5
    $region4: #{tpu_custom_call.1} parent=1 // pred_region
      %s15 = ssub.s32 1536, 1536
      %16 = vsyncadd [#allocation3], %s15
      %s17 = sshll.u32 [#allocation2], 4
      %s18 = int_to_ptr.vmem [resolvable:$true] %s17
      %23 = dma.hbm_to_vmem [thread:$0]  %s0, 1536, %s18, [#allocation3], 128, 128, 8
    $region5: #{tpu_custom_call.1} parent=1 // pred_fallthru
      _
    // Predicated region
    $region6: #{tpu_custom_call.1} parent=1 // pred_check
      _
    $region7: #{tpu_custom_call.1} parent=1 // pred_check_branch
      %25 = sbr.rel (0) target = $region9
    $region8: #{tpu_custom_call.1} parent=1 // pred_region
      %s27 = ssub.s32 5632, 5632
      %28 = vsyncadd [#allocation5], %s27
      %s29 = sshll.u32 [#allocation4], 4
      %s30 = int_to_ptr.vmem [resolvable:$true] %s29
      %35 = dma.hbm_to_vmem [thread:$0]  %s1, 5632, %s30, [#allocation5], 128, 128, 8
    $region9: #{tpu_custom_call.1} parent=1 // pred_fallthru
      _
    // Predicated region
    $region10: #{tpu_custom_call.1} parent=1 // pred_check
      _
    $region11: #{tpu_custom_call.1} parent=1 // pred_check_branch
      %37 = sbr.rel (0) target = $region13
    $region12: #{tpu_custom_call.1} parent=1 // pred_region
      %s39 = ssub.s32 384, 384
      %40 = vsyncadd [#allocation5], %s39
      %s41 = sshll.u32 [#allocation6], 4
      %s42 = int_to_ptr.vmem [resolvable:$true] %s41
      %47 = dma.hbm_to_vmem [thread:$0]  %s2, 384, %s42, [#allocation5], 128, 128, 8
    $region13: #{tpu_custom_call.1} parent=1 // pred_fallthru
      _
    // Predicated region
    $region14: #{tpu_custom_call.1} parent=1 // pred_check
      _
    $region15: #{tpu_custom_call.1} parent=1 // pred_check_branch
      %49 = sbr.rel (0) target = $region17
    $region16: #{tpu_custom_call.1} parent=1 // pred_region
      %s51 = ssub.s32 1536, 1536
      %52 = vsyncadd [#allocation8], %s51
      %s53 = sshll.u32 [#allocation7], 4
      %s54 = int_to_ptr.vmem [resolvable:$true] %s53
      %59 = dma.hbm_to_vmem [thread:$0]  %s3, 1536, %s54, [#allocation8], 128, 128, 8
    $region17: #{tpu_custom_call.1} parent=1 // pred_fallthru
      _
    // Predicated region
    $region18: #{tpu_custom_call.1} parent=1 // pred_check
      _
    $region19: #{tpu_custom_call.1} parent=1 // pred_check_branch
      %61 = sbr.rel (0) target = $region21
    $region20: #{tpu_custom_call.1} parent=1 // pred_region
      %62 = dma.done [#allocation3], 1536
    $region21: #{tpu_custom_call.1} parent=1 // pred_fallthru
      _
    // Predicated region
    $region22: #{tpu_custom_call.1} parent=1 // pred_check
      _
    $region23: #{tpu_custom_call.1} parent=1 // pred_check_branch
      %64 = sbr.rel (0) target = $region25
    $region24: #{tpu_custom_call.1} parent=1 // pred_region
      %65 = dma.done [#allocation5], 5632
    $region25: #{tpu_custom_call.1} parent=1 // pred_fallthru
      _
    // Predicated region
    $region26: #{tpu_custom_call.1} parent=1 // pred_check
      _
    $region27: #{tpu_custom_call.1} parent=1 // pred_check_branch
      %67 = sbr.rel (0) target = $region29
    $region28: #{tpu_custom_call.1} parent=1 // pred_region
      %68 = dma.done [#allocation5], 384
    $region29: #{tpu_custom_call.1} parent=1 // pred_fallthru
      _
    // Predicated region
    $region30: #{tpu_custom_call.1} parent=1 // pred_check
      _
    $region31: #{tpu_custom_call.1} parent=1 // pred_check_branch
      %70 = sbr.rel (0) target = $region33
    $region32: #{tpu_custom_call.1} parent=1 // pred_region
      %71 = dma.done [#allocation8], 1536
    $region33: #{tpu_custom_call.1} parent=1 // pred_fallthru
      _
    %v72 = vld [vmem:[#allocation2] sm:$0xff]
    %v73 = vld [vmem:[#allocation2 + $0x8] sm:$0xff]
    %v74 = vld [vmem:[#allocation2 + $0x10] sm:$0xff]
    %v75 = vld [vmem:[#allocation2 + $0x18] sm:$0xff]
    %v76 = vld [vmem:[#allocation2 + $0x20] sm:$0xff]
    %v77 = vld [vmem:[#allocation2 + $0x28] sm:$0xff]
    %v78 = vld [vmem:[#allocation2 + $0x30] sm:$0xff]
    %v79 = vld [vmem:[#allocation2 + $0x38] sm:$0xff]
    %v80 = vld [vmem:[#allocation2 + $0x40] sm:$0xff]
    %v81 = vld [vmem:[#allocation2 + $0x48] sm:$0xff]
    %v82 = vld [vmem:[#allocation2 + $0x50] sm:$0xff]
    %v83 = vld [vmem:[#allocation2 + $0x58] sm:$0xff]
    %v84 = vld [vmem:[#allocation7] sm:$0xff]
    %v85 = vld [vmem:[#allocation7 + $0x8] sm:$0xff]
    %v86 = vld [vmem:[#allocation7 + $0x10] sm:$0xff]
    %v87 = vld [vmem:[#allocation7 + $0x18] sm:$0xff]
    %v88 = vld [vmem:[#allocation7 + $0x20] sm:$0xff]
    %v89 = vld [vmem:[#allocation7 + $0x28] sm:$0xff]
    %v90 = vld [vmem:[#allocation7 + $0x30] sm:$0xff]
    %v91 = vld [vmem:[#allocation7 + $0x38] sm:$0xff]
    %v92 = vld [vmem:[#allocation7 + $0x40] sm:$0xff]
    %v93 = vld [vmem:[#allocation7 + $0x48] sm:$0xff]
    %v94 = vld [vmem:[#allocation7 + $0x50] sm:$0xff]
    %v95 = vld [vmem:[#allocation7 + $0x58] sm:$0xff]
    %v96 = vld [vmem:[#allocation6] sm:$0x1]
    %v97 = vld [vmem:[#allocation6 + $0x1] sm:$0x1]
    %vm98 = vcmask 130048
    %v99 = vsel %vm98, %v72, 0.0
    %100 = vadd.xlane.f32.xlu0 %v99
    %v101 = vpop.xlane.xlu0 %100
    %v102 = vsel %vm98, %v73, 0.0
    %103 = vadd.xlane.f32.xlu0 %v102
    %v104 = vpop.xlane.xlu0 %103
    %v105 = vsel %vm98, %v74, 0.0
    %106 = vadd.xlane.f32.xlu0 %v105
    %v107 = vpop.xlane.xlu0 %106
    %v108 = vsel %vm98, %v75, 0.0
    %109 = vadd.xlane.f32.xlu0 %v108
    %v110 = vpop.xlane.xlu0 %109
    %v111 = vsel %vm98, %v76, 0.0
    %112 = vadd.xlane.f32.xlu0 %v111
    %v113 = vpop.xlane.xlu0 %112
    %v114 = vsel %vm98, %v77, 0.0
    %115 = vadd.xlane.f32.xlu0 %v114
    %v116 = vpop.xlane.xlu0 %115
    %v117 = vsel %vm98, %v78, 0.0
    %118 = vadd.xlane.f32.xlu0 %v117
    %v119 = vpop.xlane.xlu0 %118
    %v120 = vsel %vm98, %v79, 0.0
    %121 = vadd.xlane.f32.xlu0 %v120
    %v122 = vpop.xlane.xlu0 %121
    %v123 = vsel %vm98, %v80, 0.0
    %124 = vadd.xlane.f32.xlu0 %v123
    %v125 = vpop.xlane.xlu0 %124
    %v126 = vsel %vm98, %v81, 0.0
    %127 = vadd.xlane.f32.xlu0 %v126
    %v128 = vpop.xlane.xlu0 %127
    %v129 = vsel %vm98, %v82, 0.0
    %130 = vadd.xlane.f32.xlu0 %v129
    %v131 = vpop.xlane.xlu0 %130
    %v132 = vsel %vm98, %v83, 0.0
    %133 = vadd.xlane.f32.xlu0 %v132
    %v134 = vpop.xlane.xlu0 %133
    %v135 = vrcp.pop 16.0
    %v136 = vmul.f32 %v101, %v135
    %v137 = vmul.f32 %v104, %v135
    %v138 = vmul.f32 %v107, %v135
    %v139 = vmul.f32 %v110, %v135
    %v140 = vmul.f32 %v113, %v135
    %v141 = vmul.f32 %v116, %v135
    %v142 = vmul.f32 %v119, %v135
    %v143 = vmul.f32 %v122, %v135
    %v144 = vmul.f32 %v125, %v135
    %v145 = vmul.f32 %v128, %v135
    %v146 = vmul.f32 %v131, %v135
    %v147 = vmul.f32 %v134, %v135
    %v148 = vsub.f32 %v72, %v136
    %v149 = vsub.f32 %v73, %v137
    %v150 = vsub.f32 %v74, %v138
    %v151 = vsub.f32 %v75, %v139
    %v152 = vsub.f32 %v76, %v140
    %v153 = vsub.f32 %v77, %v141
    %v154 = vsub.f32 %v78, %v142
    %v155 = vsub.f32 %v79, %v143
    %v156 = vsub.f32 %v80, %v144
    %v157 = vsub.f32 %v81, %v145
    %v158 = vsub.f32 %v82, %v146
    %v159 = vsub.f32 %v83, %v147
    %v160 = vmul.f32 %v148, %v148
    %v161 = vmul.f32 %v149, %v149
    %v162 = vmul.f32 %v150, %v150
    %v163 = vmul.f32 %v151, %v151
    %v164 = vmul.f32 %v152, %v152
    %v165 = vmul.f32 %v153, %v153
    %v166 = vmul.f32 %v154, %v154
    %v167 = vmul.f32 %v155, %v155
    %v168 = vmul.f32 %v156, %v156
    %v169 = vmul.f32 %v157, %v157
    %v170 = vmul.f32 %v158, %v158
    %v171 = vmul.f32 %v159, %v159
    %v172 = vsel %vm98, %v160, 0.0
    %173 = vadd.xlane.f32.xlu0 %v172
    %v174 = vpop.xlane.xlu0 %173
    %v175 = vsel %vm98, %v161, 0.0
    %176 = vadd.xlane.f32.xlu0 %v175
    %v177 = vpop.xlane.xlu0 %176
    %v178 = vsel %vm98, %v162, 0.0
    %179 = vadd.xlane.f32.xlu0 %v178
    %v180 = vpop.xlane.xlu0 %179
    %v181 = vsel %vm98, %v163, 0.0
    %182 = vadd.xlane.f32.xlu0 %v181
    %v183 = vpop.xlane.xlu0 %182
    %v184 = vsel %vm98, %v164, 0.0
    %185 = vadd.xlane.f32.xlu0 %v184
    %v186 = vpop.xlane.xlu0 %185
    %v187 = vsel %vm98, %v165, 0.0
    %188 = vadd.xlane.f32.xlu0 %v187
    %v189 = vpop.xlane.xlu0 %188
    %v190 = vsel %vm98, %v166, 0.0
    %191 = vadd.xlane.f32.xlu0 %v190
    %v192 = vpop.xlane.xlu0 %191
    %v193 = vsel %vm98, %v167, 0.0
    %194 = vadd.xlane.f32.xlu0 %v193
    %v195 = vpop.xlane.xlu0 %194
    %v196 = vsel %vm98, %v168, 0.0
    %197 = vadd.xlane.f32.xlu0 %v196
    %v198 = vpop.xlane.xlu0 %197
    %v199 = vsel %vm98, %v169, 0.0
    %200 = vadd.xlane.f32.xlu0 %v199
    %v201 = vpop.xlane.xlu0 %200
    %v202 = vsel %vm98, %v170, 0.0
    %203 = vadd.xlane.f32.xlu0 %v202
    %v204 = vpop.xlane.xlu0 %203
    %v205 = vsel %vm98, %v171, 0.0
    %206 = vadd.xlane.f32.xlu0 %v205
    %v207 = vpop.xlane.xlu0 %206
    %v208 = vmul.f32 %v174, %v135
    %v209 = vmul.f32 %v177, %v135
    %v210 = vmul.f32 %v180, %v135
    %v211 = vmul.f32 %v183, %v135
    %v212 = vmul.f32 %v186, %v135
    %v213 = vmul.f32 %v189, %v135
    %v214 = vmul.f32 %v192, %v135
    %v215 = vmul.f32 %v195, %v135
    %v216 = vmul.f32 %v198, %v135
    %v217 = vmul.f32 %v201, %v135
    %v218 = vmul.f32 %v204, %v135
    %v219 = vmul.f32 %v207, %v135
    %v220 = vrsqrt.pop %v208
    %v221 = vmul.f32 %v208, %v220
    %vm222 = vcmp.eq.f32.partialorder %v208, inf
    %v223 = vsel %vm222, %v208, %v221
    %vm224 = vcmp.eq.f32.partialorder %v208, 0.0
    %v225 = vand.u32 %v208, 2147483648
    %v226 = vsel %vm224, %v225, %v223
    %v227 = vrsqrt.pop %v209
    %v228 = vmul.f32 %v209, %v227
    %vm229 = vcmp.eq.f32.partialorder %v209, inf
    %v230 = vsel %vm229, %v209, %v228
    %vm231 = vcmp.eq.f32.partialorder %v209, 0.0
    %v232 = vand.u32 %v209, 2147483648
    %v233 = vsel %vm231, %v232, %v230
    %v234 = vrsqrt.pop %v210
    %v235 = vmul.f32 %v210, %v234
    %vm236 = vcmp.eq.f32.partialorder %v210, inf
    %v237 = vsel %vm236, %v210, %v235
    %vm238 = vcmp.eq.f32.partialorder %v210, 0.0
    %v239 = vand.u32 %v210, 2147483648
    %v240 = vsel %vm238, %v239, %v237
    %v241 = vrsqrt.pop %v211
    %v242 = vmul.f32 %v211, %v241
    %vm243 = vcmp.eq.f32.partialorder %v211, inf
    %v244 = vsel %vm243, %v211, %v242
    %vm245 = vcmp.eq.f32.partialorder %v211, 0.0
    %v246 = vand.u32 %v211, 2147483648
    %v247 = vsel %vm245, %v246, %v244
    %v248 = vrsqrt.pop %v212
    %v249 = vmul.f32 %v212, %v248
    %vm250 = vcmp.eq.f32.partialorder %v212, inf
    %v251 = vsel %vm250, %v212, %v249
    %vm252 = vcmp.eq.f32.partialorder %v212, 0.0
    %v253 = vand.u32 %v212, 2147483648
    %v254 = vsel %vm252, %v253, %v251
    %v255 = vrsqrt.pop %v213
    %v256 = vmul.f32 %v213, %v255
    %vm257 = vcmp.eq.f32.partialorder %v213, inf
    %v258 = vsel %vm257, %v213, %v256
    %vm259 = vcmp.eq.f32.partialorder %v213, 0.0
    %v260 = vand.u32 %v213, 2147483648
    %v261 = vsel %vm259, %v260, %v258
    %v262 = vrsqrt.pop %v214
    %v263 = vmul.f32 %v214, %v262
    %vm264 = vcmp.eq.f32.partialorder %v214, inf
    %v265 = vsel %vm264, %v214, %v263
    %vm266 = vcmp.eq.f32.partialorder %v214, 0.0
    %v267 = vand.u32 %v214, 2147483648
    %v268 = vsel %vm266, %v267, %v265
    %v269 = vrsqrt.pop %v215
    %v270 = vmul.f32 %v215, %v269
    %vm271 = vcmp.eq.f32.partialorder %v215, inf
    %v272 = vsel %vm271, %v215, %v270
    %vm273 = vcmp.eq.f32.partialorder %v215, 0.0
    %v274 = vand.u32 %v215, 2147483648
    %v275 = vsel %vm273, %v274, %v272
    %v276 = vrsqrt.pop %v216
    %v277 = vmul.f32 %v216, %v276
    %vm278 = vcmp.eq.f32.partialorder %v216, inf
    %v279 = vsel %vm278, %v216, %v277
    %vm280 = vcmp.eq.f32.partialorder %v216, 0.0
    %v281 = vand.u32 %v216, 2147483648
    %v282 = vsel %vm280, %v281, %v279
    %v283 = vrsqrt.pop %v217
    %v284 = vmul.f32 %v217, %v283
    %vm285 = vcmp.eq.f32.partialorder %v217, inf
    %v286 = vsel %vm285, %v217, %v284
    %vm287 = vcmp.eq.f32.partialorder %v217, 0.0
    %v288 = vand.u32 %v217, 2147483648
    %v289 = vsel %vm287, %v288, %v286
    %v290 = vrsqrt.pop %v218
    %v291 = vmul.f32 %v218, %v290
    %vm292 = vcmp.eq.f32.partialorder %v218, inf
    %v293 = vsel %vm292, %v218, %v291
    %vm294 = vcmp.eq.f32.partialorder %v218, 0.0
    %v295 = vand.u32 %v218, 2147483648
    %v296 = vsel %vm294, %v295, %v293
    %v297 = vrsqrt.pop %v219
    %v298 = vmul.f32 %v219, %v297
    %vm299 = vcmp.eq.f32.partialorder %v219, inf
    %v300 = vsel %vm299, %v219, %v298
    %vm301 = vcmp.eq.f32.partialorder %v219, 0.0
    %v302 = vand.u32 %v219, 2147483648
    %v303 = vsel %vm301, %v302, %v300
    %v304 = vadd.f32 %v226, 1e-05
    %v305 = vadd.f32 %v233, 1e-05
    %v306 = vadd.f32 %v240, 1e-05
    %v307 = vadd.f32 %v247, 1e-05
    %v308 = vadd.f32 %v254, 1e-05
    %v309 = vadd.f32 %v261, 1e-05
    %v310 = vadd.f32 %v268, 1e-05
    %v311 = vadd.f32 %v275, 1e-05
    %v312 = vadd.f32 %v282, 1e-05
    %v313 = vadd.f32 %v289, 1e-05
    %v314 = vadd.f32 %v296, 1e-05
    %v315 = vadd.f32 %v303, 1e-05
    %v316 = vrcp.pop %v304
    %v317 = vmul.f32 %v148, %v316
    %v318 = vrcp.pop %v305
    %v319 = vmul.f32 %v149, %v318
    %v320 = vrcp.pop %v306
    %v321 = vmul.f32 %v150, %v320
    %v322 = vrcp.pop %v307
    %v323 = vmul.f32 %v151, %v322
    %v324 = vrcp.pop %v308
    %v325 = vmul.f32 %v152, %v324
    %v326 = vrcp.pop %v309
    %v327 = vmul.f32 %v153, %v326
    %v328 = vrcp.pop %v310
    %v329 = vmul.f32 %v154, %v328
    %v330 = vrcp.pop %v311
    %v331 = vmul.f32 %v155, %v330
    %v332 = vrcp.pop %v312
    %v333 = vmul.f32 %v156, %v332
    %v334 = vrcp.pop %v313
    %v335 = vmul.f32 %v157, %v334
    %v336 = vrcp.pop %v314
    %v337 = vmul.f32 %v158, %v336
    %v338 = vrcp.pop %v315
    %v339 = vmul.f32 %v159, %v338
    %v340 = vlaneseq
    %v341 = vshrl.u32 %v340, 7
    %v342 = vsub.s32 0, %v341
    %v343 = vrot.slane %v96, %v342
    %v344 = vmul.f32 %v317, %v343
    %v345 = vmul.f32 %v319, %v343
    %v346 = vmul.f32 %v321, %v343
    %v347 = vmul.f32 %v323, %v343
    %v348 = vmul.f32 %v325, %v343
    %v349 = vmul.f32 %v327, %v343
    %v350 = vmul.f32 %v329, %v343
    %v351 = vmul.f32 %v331, %v343
    %v352 = vmul.f32 %v333, %v343
    %v353 = vmul.f32 %v335, %v343
    %v354 = vmul.f32 %v337, %v343
    %v355 = vmul.f32 %v339, %v343
    %v356 = vlaneseq
    %v357 = vshrl.u32 %v356, 7
    %v358 = vsub.s32 0, %v357
    %v359 = vrot.slane %v97, %v358
    %v360 = vadd.f32 %v344, %v359
    %v361 = vadd.f32 %v345, %v359
    %v362 = vadd.f32 %v346, %v359
    %v363 = vadd.f32 %v347, %v359
    %v364 = vadd.f32 %v348, %v359
    %v365 = vadd.f32 %v349, %v359
    %v366 = vadd.f32 %v350, %v359
    %v367 = vadd.f32 %v351, %v359
    %v368 = vadd.f32 %v352, %v359
    %v369 = vadd.f32 %v353, %v359
    %v370 = vadd.f32 %v354, %v359
    %v371 = vadd.f32 %v355, %v359
    %v372 = vld [vmem:[#allocation4 + $0x90] sm:$0xff]
    %v373 = vld [vmem:[#allocation4 + $0x98] sm:$0xff]
    %v374 = vld [vmem:[#allocation6 + $0x8] sm:$0x1]
    %v375 = vlaneseq
    %v376 = vshrl.u32 %v375, 7
    %v377 = vsub.s32 0, %v376
    %v378 = vrot.slane %v374, %v377
    %v380 = vsel %vm98, %v72, 0
    %v383 = vsel %vm98, %v73, 0
    %v386 = vsel %vm98, %v74, 0
    %v389 = vsel %vm98, %v75, 0
    %v392 = vsel %vm98, %v76, 0
    %v395 = vsel %vm98, %v77, 0
    %v398 = vsel %vm98, %v78, 0
    %v401 = vsel %vm98, %v79, 0
    %v404 = vsel %vm98, %v80, 0
    %v407 = vsel %vm98, %v81, 0
    %v410 = vsel %vm98, %v82, 0
    %v413 = vsel %vm98, %v83, 0
    %415 = vmatprep.subr.mxu0 0.0
    %416 = vmatpush1.msra.mxu0 %v372
    %417 = vmatprep.subr.mxu0 0.0
    %418 = vmatpush1.msra.mxu0 %v373
    %419 = vmatprep.subr.mxu0 0.0
    %420 = vmatpush1.msra.mxu0 0.0
    %421 = vmatprep.subr.mxu0 0.0
    %422 = vmatpush1.msra.mxu0 0.0
    %423 = vmatprep.subr.mxu0 0.0
    %424 = vmatpush1.msra.mxu0 0.0
    %425 = vmatprep.subr.mxu0 0.0
    %426 = vmatpush1.msra.mxu0 0.0
    %427 = vmatprep.subr.mxu0 0.0
    %428 = vmatpush1.msra.mxu0 0.0
    %429 = vmatprep.subr.mxu0 0.0
    %430 = vmatpush1.msra.mxu0 0.0
    %431 = vmatprep.subr.mxu0 0.0
    %432 = vmatpush1.msra.mxu0 0.0
    %433 = vmatprep.subr.mxu0 0.0
    %434 = vmatpush1.msra.mxu0 0.0
    %435 = vmatprep.subr.mxu0 0.0
    %436 = vmatpush1.msra.mxu0 0.0
    %437 = vmatprep.subr.mxu0 0.0
    %438 = vmatpush1.msra.mxu0 0.0
    %439 = vmatprep.subr.mxu0 0.0
    %440 = vmatpush1.msra.mxu0 0.0
    %441 = vmatprep.subr.mxu0 0.0
    %442 = vmatpush1.msra.mxu0 0.0
    %443 = vmatprep.subr.mxu0 0.0
    %444 = vmatpush1.msra.mxu0 0.0
    %445 = vmatprep.subr.mxu0 0.0
    %446 = vmatpush1.msra.mxu0 0.0
    %447 = vmatprep.subr.mxu0 0.0
    %448 = vmatpush1.msra.mxu0 0.0
    %449 = vmatprep.subr.mxu0 0.0
    %450 = vmatpush1.msra.mxu0 0.0
    %451 = vmatprep.subr.mxu0 0.0
    %452 = vmatpush1.msra.mxu0 0.0
    %453 = vmatprep.subr.mxu0 0.0
    %454 = vmatpush1.msra.mxu0 0.0
    %455 = vmatprep.subr.mxu0 0.0
    %456 = vmatpush1.msra.mxu0 0.0
    %457 = vmatprep.subr.mxu0 0.0
    %458 = vmatpush1.msra.mxu0 0.0
    %459 = vmatprep.subr.mxu0 0.0
    %460 = vmatpush1.msra.mxu0 0.0
    %461 = vmatprep.subr.mxu0 0.0
    %462 = vmatpush1.msra.mxu0 0.0
    %463 = vmatprep.subr.mxu0 0.0
    %464 = vmatpush1.msra.mxu0 0.0
    %465 = vmatprep.subr.mxu0 0.0
    %466 = vmatpush1.msra.mxu0 0.0
    %467 = vmatprep.subr.mxu0 0.0
    %468 = vmatpush1.msra.mxu0 0.0
    %469 = vmatprep.subr.mxu0 0.0
    %470 = vmatpush1.msra.mxu0 0.0
    %471 = vmatprep.subr.mxu0 0.0
    %472 = vmatpush1.msra.mxu0 0.0
    %473 = vmatprep.subr.mxu0 0.0
    %474 = vmatpush1.msra.mxu0 0.0
    %475 = vmatprep.subr.mxu0 0.0
    %476 = vmatpush1.msra.mxu0 0.0
    %477 = vmatprep.subr.mxu0 0.0
    %478 = vmatpush1.msra.mxu0 0.0
    %479 = vmatprep.mubr.f32.mxu0 0.0
    %480 = vmatmul.mubr.f32.gmra.mrb[0].mxu0 %v380
    %v481 = vpop.f32.mrb[0].mxu0
    %v482 = vadd.f32 %v378, %v481
    %v483 = vpop.f32.mrb[0].mxu0
    %484 = vmatprep.mubr.f32.mxu0 0.0
    %485 = vmatmul.mubr.f32.gmra.mrb[0].mxu0 %v383
    %v486 = vpop.f32.mrb[0].mxu0
    %v487 = vadd.f32 %v378, %v486
    %v488 = vpop.f32.mrb[0].mxu0
    %489 = vmatprep.mubr.f32.mxu0 0.0
    %490 = vmatmul.mubr.f32.gmra.mrb[0].mxu0 %v386
    %v491 = vpop.f32.mrb[0].mxu0
    %v492 = vadd.f32 %v378, %v491
    %v493 = vpop.f32.mrb[0].mxu0
    %494 = vmatprep.mubr.f32.mxu0 0.0
    %495 = vmatmul.mubr.f32.gmra.mrb[0].mxu0 %v389
    %v496 = vpop.f32.mrb[0].mxu0
    %v497 = vadd.f32 %v378, %v496
    %v498 = vpop.f32.mrb[0].mxu0
    %499 = vmatprep.mubr.f32.mxu0 0.0
    %500 = vmatmul.mubr.f32.gmra.mrb[0].mxu0 %v392
    %v501 = vpop.f32.mrb[0].mxu0
    %v502 = vadd.f32 %v378, %v501
    %v503 = vpop.f32.mrb[0].mxu0
    %504 = vmatprep.mubr.f32.mxu0 0.0
    %505 = vmatmul.mubr.f32.gmra.mrb[0].mxu0 %v395
    %v506 = vpop.f32.mrb[0].mxu0
    %v507 = vadd.f32 %v378, %v506
    %v508 = vpop.f32.mrb[0].mxu0
    %509 = vmatprep.mubr.f32.mxu0 0.0
    %510 = vmatmul.mubr.f32.gmra.mrb[0].mxu0 %v398
    %v511 = vpop.f32.mrb[0].mxu0
    %v512 = vadd.f32 %v378, %v511
    %v513 = vpop.f32.mrb[0].mxu0
    %514 = vmatprep.mubr.f32.mxu0 0.0
    %515 = vmatmul.mubr.f32.gmra.mrb[0].mxu0 %v401
    %v516 = vpop.f32.mrb[0].mxu0
    %v517 = vadd.f32 %v378, %v516
    %v518 = vpop.f32.mrb[0].mxu0
    %519 = vmatprep.mubr.f32.mxu0 0.0
    %520 = vmatmul.mubr.f32.gmra.mrb[0].mxu0 %v404
    %v521 = vpop.f32.mrb[0].mxu0
    %v522 = vadd.f32 %v378, %v521
    %v523 = vpop.f32.mrb[0].mxu0
    %524 = vmatprep.mubr.f32.mxu0 0.0
    %525 = vmatmul.mubr.f32.gmra.mrb[0].mxu0 %v407
    %v526 = vpop.f32.mrb[0].mxu0
    %v527 = vadd.f32 %v378, %v526
    %v528 = vpop.f32.mrb[0].mxu0
    %529 = vmatprep.mubr.f32.mxu0 0.0
    %530 = vmatmul.mubr.f32.gmra.mrb[0].mxu0 %v410
    %v531 = vpop.f32.mrb[0].mxu0
    %v532 = vadd.f32 %v378, %v531
    %v533 = vpop.f32.mrb[0].mxu0
    %534 = vmatprep.mubr.f32.mxu0 0.0
    %535 = vmatmul.mubr.f32.gmra.mrb[0].mxu0 %v413
    %v536 = vpop.f32.mrb[0].mxu0
    %v537 = vadd.f32 %v378, %v536
    %v538 = vpop.f32.mrb[0].mxu0
    %539 = vdwg.mxu0
    %v540 = vld [vmem:[#allocation4] sm:$0xff]
    %v541 = vld [vmem:[#allocation4 + $0x8] sm:$0xff]
    %v542 = vld [vmem:[#allocation6 + $0x2] sm:$0x1]
    %v543 = vlaneseq
    %v544 = vshrl.u32 %v543, 7
    %v545 = vsub.s32 0, %v544
    %v546 = vrot.slane %v542, %v545
    %v548 = vsel %vm98, %v360, 0
    %v551 = vsel %vm98, %v361, 0
    %v554 = vsel %vm98, %v362, 0
    %v557 = vsel %vm98, %v363, 0
    %v560 = vsel %vm98, %v364, 0
    %v563 = vsel %vm98, %v365, 0
    %v566 = vsel %vm98, %v366, 0
    %v569 = vsel %vm98, %v367, 0
    %v572 = vsel %vm98, %v368, 0
    %v575 = vsel %vm98, %v369, 0
    %v578 = vsel %vm98, %v370, 0
    %v581 = vsel %vm98, %v371, 0
    %583 = vmatprep.subr.mxu0 0.0
    %584 = vmatpush1.msra.mxu0 %v540
    %585 = vmatprep.subr.mxu0 0.0
    %586 = vmatpush1.msra.mxu0 %v541
    %587 = vmatprep.subr.mxu0 0.0
    %588 = vmatpush1.msra.mxu0 0.0
    %589 = vmatprep.subr.mxu0 0.0
    %590 = vmatpush1.msra.mxu0 0.0
    %591 = vmatprep.subr.mxu0 0.0
    %592 = vmatpush1.msra.mxu0 0.0
    %593 = vmatprep.subr.mxu0 0.0
    %594 = vmatpush1.msra.mxu0 0.0
    %595 = vmatprep.subr.mxu0 0.0
    %596 = vmatpush1.msra.mxu0 0.0
    %597 = vmatprep.subr.mxu0 0.0
    %598 = vmatpush1.msra.mxu0 0.0
    %599 = vmatprep.subr.mxu0 0.0
    %600 = vmatpush1.msra.mxu0 0.0
    %601 = vmatprep.subr.mxu0 0.0
    %602 = vmatpush1.msra.mxu0 0.0
    %603 = vmatprep.subr.mxu0 0.0
    %604 = vmatpush1.msra.mxu0 0.0
    %605 = vmatprep.subr.mxu0 0.0
    %606 = vmatpush1.msra.mxu0 0.0
    %607 = vmatprep.subr.mxu0 0.0
    %608 = vmatpush1.msra.mxu0 0.0
    %609 = vmatprep.subr.mxu0 0.0
    %610 = vmatpush1.msra.mxu0 0.0
    %611 = vmatprep.subr.mxu0 0.0
    %612 = vmatpush1.msra.mxu0 0.0
    %613 = vmatprep.subr.mxu0 0.0
    %614 = vmatpush1.msra.mxu0 0.0
    %615 = vmatprep.subr.mxu0 0.0
    %616 = vmatpush1.msra.mxu0 0.0
    %617 = vmatprep.subr.mxu0 0.0
    %618 = vmatpush1.msra.mxu0 0.0
    %619 = vmatprep.subr.mxu0 0.0
    %620 = vmatpush1.msra.mxu0 0.0
    %621 = vmatprep.subr.mxu0 0.0
    %622 = vmatpush1.msra.mxu0 0.0
    %623 = vmatprep.subr.mxu0 0.0
    %624 = vmatpush1.msra.mxu0 0.0
    %625 = vmatprep.subr.mxu0 0.0
    %626 = vmatpush1.msra.mxu0 0.0
    %627 = vmatprep.subr.mxu0 0.0
    %628 = vmatpush1.msra.mxu0 0.0
    %629 = vmatprep.subr.mxu0 0.0
    %630 = vmatpush1.msra.mxu0 0.0
    %631 = vmatprep.subr.mxu0 0.0
    %632 = vmatpush1.msra.mxu0 0.0
    %633 = vmatprep.subr.mxu0 0.0
    %634 = vmatpush1.msra.mxu0 0.0
    %635 = vmatprep.subr.mxu0 0.0
    %636 = vmatpush1.msra.mxu0 0.0
    %637 = vmatprep.subr.mxu0 0.0
    %638 = vmatpush1.msra.mxu0 0.0
    %639 = vmatprep.subr.mxu0 0.0
    %640 = vmatpush1.msra.mxu0 0.0
    %641 = vmatprep.subr.mxu0 0.0
    %642 = vmatpush1.msra.mxu0 0.0
    %643 = vmatprep.subr.mxu0 0.0
    %644 = vmatpush1.msra.mxu0 0.0
    %645 = vmatprep.subr.mxu0 0.0
    %646 = vmatpush1.msra.mxu0 0.0
    %647 = vmatprep.mubr.f32.mxu0 0.0
    %648 = vmatmul.mubr.f32.gmra.mrb[0].mxu0 %v548
    %v649 = vpop.f32.mrb[0].mxu0
    %v650 = vadd.f32 %v546, %v649
    %v651 = vpop.f32.mrb[0].mxu0
    %652 = vmatprep.mubr.f32.mxu0 0.0
    %653 = vmatmul.mubr.f32.gmra.mrb[0].mxu0 %v551
    %v654 = vpop.f32.mrb[0].mxu0
    %v655 = vadd.f32 %v546, %v654
    %v656 = vpop.f32.mrb[0].mxu0
    %657 = vmatprep.mubr.f32.mxu0 0.0
    %658 = vmatmul.mubr.f32.gmra.mrb[0].mxu0 %v554
    %v659 = vpop.f32.mrb[0].mxu0
    %v660 = vadd.f32 %v546, %v659
    %v661 = vpop.f32.mrb[0].mxu0
    %662 = vmatprep.mubr.f32.mxu0 0.0
    %663 = vmatmul.mubr.f32.gmra.mrb[0].mxu0 %v557
    %v664 = vpop.f32.mrb[0].mxu0
    %v665 = vadd.f32 %v546, %v664
    %v666 = vpop.f32.mrb[0].mxu0
    %667 = vmatprep.mubr.f32.mxu0 0.0
    %668 = vmatmul.mubr.f32.gmra.mrb[0].mxu0 %v560
    %v669 = vpop.f32.mrb[0].mxu0
    %v670 = vadd.f32 %v546, %v669
    %v671 = vpop.f32.mrb[0].mxu0
    %672 = vmatprep.mubr.f32.mxu0 0.0
    %673 = vmatmul.mubr.f32.gmra.mrb[0].mxu0 %v563
    %v674 = vpop.f32.mrb[0].mxu0
    %v675 = vadd.f32 %v546, %v674
    %v676 = vpop.f32.mrb[0].mxu0
    %677 = vmatprep.mubr.f32.mxu0 0.0
    %678 = vmatmul.mubr.f32.gmra.mrb[0].mxu0 %v566
    %v679 = vpop.f32.mrb[0].mxu0
    %v680 = vadd.f32 %v546, %v679
    %v681 = vpop.f32.mrb[0].mxu0
    %682 = vmatprep.mubr.f32.mxu0 0.0
    %683 = vmatmul.mubr.f32.gmra.mrb[0].mxu0 %v569
    %v684 = vpop.f32.mrb[0].mxu0
    %v685 = vadd.f32 %v546, %v684
    %v686 = vpop.f32.mrb[0].mxu0
    %687 = vmatprep.mubr.f32.mxu0 0.0
    %688 = vmatmul.mubr.f32.gmra.mrb[0].mxu0 %v572
    %v689 = vpop.f32.mrb[0].mxu0
    %v690 = vadd.f32 %v546, %v689
    %v691 = vpop.f32.mrb[0].mxu0
    %692 = vmatprep.mubr.f32.mxu0 0.0
    %693 = vmatmul.mubr.f32.gmra.mrb[0].mxu0 %v575
    %v694 = vpop.f32.mrb[0].mxu0
    %v695 = vadd.f32 %v546, %v694
    %v696 = vpop.f32.mrb[0].mxu0
    %697 = vmatprep.mubr.f32.mxu0 0.0
    %698 = vmatmul.mubr.f32.gmra.mrb[0].mxu0 %v578
    %v699 = vpop.f32.mrb[0].mxu0
    %v700 = vadd.f32 %v546, %v699
    %v701 = vpop.f32.mrb[0].mxu0
    %702 = vmatprep.mubr.f32.mxu0 0.0
    %703 = vmatmul.mubr.f32.gmra.mrb[0].mxu0 %v581
    %v704 = vpop.f32.mrb[0].mxu0
    %v705 = vadd.f32 %v546, %v704
    %v706 = vpop.f32.mrb[0].mxu0
    %707 = vdwg.mxu0
    %v708 = vld [vmem:[#allocation4 + $0x10] sm:$0xff]
    %v709 = vld [vmem:[#allocation4 + $0x18] sm:$0xff]
    %v710 = vld [vmem:[#allocation4 + $0x20] sm:$0xff]
    %v711 = vld [vmem:[#allocation4 + $0x28] sm:$0xff]
    %724 = vrot.lane.b32.xlu0 %v650, 96
    %v725 = vpop.permute.xlu0 %724
    %726 = vrot.lane.b32.xlu0 %v655, 96
    %v727 = vpop.permute.xlu0 %726
    %728 = vrot.lane.b32.xlu0 %v660, 96
    %v729 = vpop.permute.xlu0 %728
    %730 = vrot.lane.b32.xlu0 %v665, 96
    %v731 = vpop.permute.xlu0 %730
    %732 = vrot.lane.b32.xlu0 %v670, 96
    %v733 = vpop.permute.xlu0 %732
    %734 = vrot.lane.b32.xlu0 %v675, 96
    %v735 = vpop.permute.xlu0 %734
    %736 = vrot.lane.b32.xlu0 %v680, 96
    %v737 = vpop.permute.xlu0 %736
    %738 = vrot.lane.b32.xlu0 %v685, 96
    %v739 = vpop.permute.xlu0 %738
    %740 = vrot.lane.b32.xlu0 %v690, 96
    %v741 = vpop.permute.xlu0 %740
    %742 = vrot.lane.b32.xlu0 %v695, 96
    %v743 = vpop.permute.xlu0 %742
    %744 = vrot.lane.b32.xlu0 %v700, 96
    %v745 = vpop.permute.xlu0 %744
    %746 = vrot.lane.b32.xlu0 %v705, 96
    %v747 = vpop.permute.xlu0 %746
    %vm748 = vcmask 64512
    %v749 = vsel %vm748, %v650, 0
    %v751 = vsel %vm748, %v655, 0
    %v753 = vsel %vm748, %v660, 0
    %v755 = vsel %vm748, %v665, 0
    %v757 = vsel %vm748, %v670, 0
    %v759 = vsel %vm748, %v675, 0
    %v761 = vsel %vm748, %v680, 0
    %v763 = vsel %vm748, %v685, 0
    %v765 = vsel %vm748, %v690, 0
    %v767 = vsel %vm748, %v695, 0
    %v769 = vsel %vm748, %v700, 0
    %v771 = vsel %vm748, %v705, 0
    %v773 = vsel %vm748, %v725, 0
    %v775 = vsel %vm748, %v727, 0
    %v777 = vsel %vm748, %v729, 0
    %v779 = vsel %vm748, %v731, 0
    %v781 = vsel %vm748, %v733, 0
    %v783 = vsel %vm748, %v735, 0
    %v785 = vsel %vm748, %v737, 0
    %v787 = vsel %vm748, %v739, 0
    %v789 = vsel %vm748, %v741, 0
    %v791 = vsel %vm748, %v743, 0
    %v793 = vsel %vm748, %v745, 0
    %v795 = vsel %vm748, %v747, 0
    %797 = vmatprep.subr.mxu0 0.0
    %798 = vmatpush1.xpose.msra.mxu0 %v773
    %799 = vmatprep.subr.mxu0 0.0
    %800 = vmatpush1.xpose.msra.mxu0 %v775
    %801 = vmatprep.subr.mxu0 0.0
    %802 = vmatpush1.xpose.msra.mxu0 %v777
    %803 = vmatprep.subr.mxu0 0.0
    %804 = vmatpush1.xpose.msra.mxu0 %v779
    %805 = vmatprep.subr.mxu0 0.0
    %806 = vmatpush1.xpose.msra.mxu0 %v781
    %807 = vmatprep.subr.mxu0 0.0
    %808 = vmatpush1.xpose.msra.mxu0 %v783
    %809 = vmatprep.subr.mxu0 0.0
    %810 = vmatpush1.xpose.msra.mxu0 %v785
    %811 = vmatprep.subr.mxu0 0.0
    %812 = vmatpush1.xpose.msra.mxu0 %v787
    %813 = vmatprep.subr.mxu0 0.0
    %814 = vmatpush1.xpose.msra.mxu0 %v789
    %815 = vmatprep.subr.mxu0 0.0
    %816 = vmatpush1.xpose.msra.mxu0 %v791
    %817 = vmatprep.subr.mxu0 0.0
    %818 = vmatpush1.xpose.msra.mxu0 %v793
    %819 = vmatprep.subr.mxu0 0.0
    %820 = vmatpush1.xpose.msra.mxu0 %v795
    %821 = vmatprep.subr.mxu0 0.0
    %822 = vmatpush1.xpose.msra.mxu0 0.0
    %823 = vmatprep.subr.mxu0 0.0
    %824 = vmatpush1.xpose.msra.mxu0 0.0
    %825 = vmatprep.subr.mxu0 0.0
    %826 = vmatpush1.xpose.msra.mxu0 0.0
    %827 = vmatprep.subr.mxu0 0.0
    %828 = vmatpush1.xpose.msra.mxu0 0.0
    %829 = vmatprep.subr.mxu0 0.0
    %830 = vmatpush1.xpose.msra.mxu0 0.0
    %831 = vmatprep.subr.mxu0 0.0
    %832 = vmatpush1.xpose.msra.mxu0 0.0
    %833 = vmatprep.subr.mxu0 0.0
    %834 = vmatpush1.xpose.msra.mxu0 0.0
    %835 = vmatprep.subr.mxu0 0.0
    %836 = vmatpush1.xpose.msra.mxu0 0.0
    %837 = vmatprep.subr.mxu0 0.0
    %838 = vmatpush1.xpose.msra.mxu0 0.0
    %839 = vmatprep.subr.mxu0 0.0
    %840 = vmatpush1.xpose.msra.mxu0 0.0
    %841 = vmatprep.subr.mxu0 0.0
    %842 = vmatpush1.xpose.msra.mxu0 0.0
    %843 = vmatprep.subr.mxu0 0.0
    %844 = vmatpush1.xpose.msra.mxu0 0.0
    %845 = vmatprep.subr.mxu0 0.0
    %846 = vmatpush1.xpose.msra.mxu0 0.0
    %847 = vmatprep.subr.mxu0 0.0
    %848 = vmatpush1.xpose.msra.mxu0 0.0
    %849 = vmatprep.subr.mxu0 0.0
    %850 = vmatpush1.xpose.msra.mxu0 0.0
    %851 = vmatprep.subr.mxu0 0.0
    %852 = vmatpush1.xpose.msra.mxu0 0.0
    %853 = vmatprep.subr.mxu0 0.0
    %854 = vmatpush1.xpose.msra.mxu0 0.0
    %855 = vmatprep.subr.mxu0 0.0
    %856 = vmatpush1.xpose.msra.mxu0 0.0
    %857 = vmatprep.subr.mxu0 0.0
    %858 = vmatpush1.xpose.msra.mxu0 0.0
    %859 = vmatprep.subr.mxu0 0.0
    %860 = vmatpush1.xpose.msra.mxu0 0.0
    %861 = vmatprep.mubr.f32.mxu0 0.0
    %862 = vmatmul.mubr.f32.gmra.mrb[0].mxu0 %v749
    %v863 = vpop.f32.mrb[0].mxu0
    %v864 = vadd.f32 %v84, %v863
    %v865 = vpop.f32.mrb[0].mxu0
    %866 = vmatprep.mubr.f32.mxu0 0.0
    %867 = vmatmul.mubr.f32.gmra.mrb[0].mxu0 %v751
    %v868 = vpop.f32.mrb[0].mxu0
    %v869 = vadd.f32 %v85, %v868
    %v870 = vpop.f32.mrb[0].mxu0
    %871 = vmatprep.mubr.f32.mxu0 0.0
    %872 = vmatmul.mubr.f32.gmra.mrb[0].mxu0 %v753
    %v873 = vpop.f32.mrb[0].mxu0
    %v874 = vadd.f32 %v86, %v873
    %v875 = vpop.f32.mrb[0].mxu0
    %876 = vmatprep.mubr.f32.mxu0 0.0
    %877 = vmatmul.mubr.f32.gmra.mrb[0].mxu0 %v755
    %v878 = vpop.f32.mrb[0].mxu0
    %v879 = vadd.f32 %v87, %v878
    %v880 = vpop.f32.mrb[0].mxu0
    %881 = vmatprep.mubr.f32.mxu0 0.0
    %882 = vmatmul.mubr.f32.gmra.mrb[0].mxu0 %v757
    %v883 = vpop.f32.mrb[0].mxu0
    %v884 = vadd.f32 %v88, %v883
    %v885 = vpop.f32.mrb[0].mxu0
    %886 = vmatprep.mubr.f32.mxu0 0.0
    %887 = vmatmul.mubr.f32.gmra.mrb[0].mxu0 %v759
    %v888 = vpop.f32.mrb[0].mxu0
    %v889 = vadd.f32 %v89, %v888
    %v890 = vpop.f32.mrb[0].mxu0
    %891 = vmatprep.mubr.f32.mxu0 0.0
    %892 = vmatmul.mubr.f32.gmra.mrb[0].mxu0 %v761
    %v893 = vpop.f32.mrb[0].mxu0
    %v894 = vadd.f32 %v90, %v893
    %v895 = vpop.f32.mrb[0].mxu0
    %896 = vmatprep.mubr.f32.mxu0 0.0
    %897 = vmatmul.mubr.f32.gmra.mrb[0].mxu0 %v763
    %v898 = vpop.f32.mrb[0].mxu0
    %v899 = vadd.f32 %v91, %v898
    %v900 = vpop.f32.mrb[0].mxu0
    %901 = vmatprep.mubr.f32.mxu0 0.0
    %902 = vmatmul.mubr.f32.gmra.mrb[0].mxu0 %v765
    %v903 = vpop.f32.mrb[0].mxu0
    %v904 = vadd.f32 %v92, %v903
    %v905 = vpop.f32.mrb[0].mxu0
    %906 = vmatprep.mubr.f32.mxu0 0.0
    %907 = vmatmul.mubr.f32.gmra.mrb[0].mxu0 %v767
    %v908 = vpop.f32.mrb[0].mxu0
    %v909 = vadd.f32 %v93, %v908
    %v910 = vpop.f32.mrb[0].mxu0
    %911 = vmatprep.mubr.f32.mxu0 0.0
    %912 = vmatmul.mubr.f32.gmra.mrb[0].mxu0 %v769
    %v913 = vpop.f32.mrb[0].mxu0
    %v914 = vadd.f32 %v94, %v913
    %v915 = vpop.f32.mrb[0].mxu0
    %916 = vmatprep.mubr.f32.mxu0 0.0
    %917 = vmatmul.mubr.f32.gmra.mrb[0].mxu0 %v771
    %v918 = vpop.f32.mrb[0].mxu0
    %v919 = vadd.f32 %v95, %v918
    %v920 = vpop.f32.mrb[0].mxu0
    %921 = vdwg.mxu0
    %vm922 = vcmask 785408
    %v923 = vsel %vm922, %v864, -inf
    %924 = vmax.xlane.f32.xlu0 %v923
    %v925 = vpop.xlane.xlu0 %924
    %v926 = vsel %vm922, %v869, -inf
    %927 = vmax.xlane.f32.xlu0 %v926
    %v928 = vpop.xlane.xlu0 %927
    %v929 = vsel %vm922, %v874, -inf
    %930 = vmax.xlane.f32.xlu0 %v929
    %v931 = vpop.xlane.xlu0 %930
    %v932 = vsel %vm922, %v879, -inf
    %933 = vmax.xlane.f32.xlu0 %v932
    %v934 = vpop.xlane.xlu0 %933
    %v935 = vsel %vm922, %v884, -inf
    %936 = vmax.xlane.f32.xlu0 %v935
    %v937 = vpop.xlane.xlu0 %936
    %v938 = vsel %vm922, %v889, -inf
    %939 = vmax.xlane.f32.xlu0 %v938
    %v940 = vpop.xlane.xlu0 %939
    %v941 = vsel %vm922, %v894, -inf
    %942 = vmax.xlane.f32.xlu0 %v941
    %v943 = vpop.xlane.xlu0 %942
    %v944 = vsel %vm922, %v899, -inf
    %945 = vmax.xlane.f32.xlu0 %v944
    %v946 = vpop.xlane.xlu0 %945
    %v947 = vsel %vm922, %v904, -inf
    %948 = vmax.xlane.f32.xlu0 %v947
    %v949 = vpop.xlane.xlu0 %948
    %v950 = vsel %vm922, %v909, -inf
    %951 = vmax.xlane.f32.xlu0 %v950
    %v952 = vpop.xlane.xlu0 %951
    %v953 = vsel %vm922, %v914, -inf
    %954 = vmax.xlane.f32.xlu0 %v953
    %v955 = vpop.xlane.xlu0 %954
    %v956 = vsel %vm922, %v919, -inf
    %957 = vmax.xlane.f32.xlu0 %v956
    %v958 = vpop.xlane.xlu0 %957
    %v959 = vsub.f32 %v864, %v925
    %v960 = vsub.f32 %v869, %v928
    %v961 = vsub.f32 %v874, %v931
    %v962 = vsub.f32 %v879, %v934
    %v963 = vsub.f32 %v884, %v937
    %v964 = vsub.f32 %v889, %v940
    %v965 = vsub.f32 %v894, %v943
    %v966 = vsub.f32 %v899, %v946
    %v967 = vsub.f32 %v904, %v949
    %v968 = vsub.f32 %v909, %v952
    %v969 = vsub.f32 %v914, %v955
    %v970 = vsub.f32 %v919, %v958
    %v971 = vmul.f32 %v959, 1.442695
    %v972 = vpow.pop %v971
    %v973 = vmul.f32 %v960, 1.442695
    %v974 = vpow.pop %v973
    %v975 = vmul.f32 %v961, 1.442695
    %v976 = vpow.pop %v975
    %v977 = vmul.f32 %v962, 1.442695
    %v978 = vpow.pop %v977
    %v979 = vmul.f32 %v963, 1.442695
    %v980 = vpow.pop %v979
    %v981 = vmul.f32 %v964, 1.442695
    %v982 = vpow.pop %v981
    %v983 = vmul.f32 %v965, 1.442695
    %v984 = vpow.pop %v983
    %v985 = vmul.f32 %v966, 1.442695
    %v986 = vpow.pop %v985
    %v987 = vmul.f32 %v967, 1.442695
    %v988 = vpow.pop %v987
    %v989 = vmul.f32 %v968, 1.442695
    %v990 = vpow.pop %v989
    %v991 = vmul.f32 %v969, 1.442695
    %v992 = vpow.pop %v991
    %v993 = vmul.f32 %v970, 1.442695
    %v994 = vpow.pop %v993
    %v995 = vsel %vm922, %v972, 0.0
    %996 = vadd.xlane.f32.xlu0 %v995
    %v997 = vpop.xlane.xlu0 %996
    %v998 = vsel %vm922, %v974, 0.0
    %999 = vadd.xlane.f32.xlu0 %v998
    %v1000 = vpop.xlane.xlu0 %999
    %v1001 = vsel %vm922, %v976, 0.0
    %1002 = vadd.xlane.f32.xlu0 %v1001
    %v1003 = vpop.xlane.xlu0 %1002
    %v1004 = vsel %vm922, %v978, 0.0
    %1005 = vadd.xlane.f32.xlu0 %v1004
    %v1006 = vpop.xlane.xlu0 %1005
    %v1007 = vsel %vm922, %v980, 0.0
    %1008 = vadd.xlane.f32.xlu0 %v1007
    %v1009 = vpop.xlane.xlu0 %1008
    %v1010 = vsel %vm922, %v982, 0.0
    %1011 = vadd.xlane.f32.xlu0 %v1010
    %v1012 = vpop.xlane.xlu0 %1011
    %v1013 = vsel %vm922, %v984, 0.0
    %1014 = vadd.xlane.f32.xlu0 %v1013
    %v1015 = vpop.xlane.xlu0 %1014
    %v1016 = vsel %vm922, %v986, 0.0
    %1017 = vadd.xlane.f32.xlu0 %v1016
    %v1018 = vpop.xlane.xlu0 %1017
    %v1019 = vsel %vm922, %v988, 0.0
    %1020 = vadd.xlane.f32.xlu0 %v1019
    %v1021 = vpop.xlane.xlu0 %1020
    %v1022 = vsel %vm922, %v990, 0.0
    %1023 = vadd.xlane.f32.xlu0 %v1022
    %v1024 = vpop.xlane.xlu0 %1023
    %v1025 = vsel %vm922, %v992, 0.0
    %1026 = vadd.xlane.f32.xlu0 %v1025
    %v1027 = vpop.xlane.xlu0 %1026
    %v1028 = vsel %vm922, %v994, 0.0
    %1029 = vadd.xlane.f32.xlu0 %v1028
    %v1030 = vpop.xlane.xlu0 %1029
    %v1031 = vrcp.pop %v997
    %v1032 = vrcp.pop %v1000
    %v1033 = vrcp.pop %v1003
    %v1034 = vrcp.pop %v1006
    %v1035 = vrcp.pop %v1009
    %v1036 = vrcp.pop %v1012
    %v1037 = vrcp.pop %v1015
    %v1038 = vrcp.pop %v1018
    %v1039 = vrcp.pop %v1021
    %v1040 = vrcp.pop %v1024
    %v1041 = vrcp.pop %v1027
    %v1042 = vrcp.pop %v1030
    %v1043 = vmul.f32 %v972, %v1031
    %v1044 = vmul.f32 %v974, %v1032
    %v1045 = vmul.f32 %v976, %v1033
    %v1046 = vmul.f32 %v978, %v1034
    %v1047 = vmul.f32 %v980, %v1035
    %v1048 = vmul.f32 %v982, %v1036
    %v1049 = vmul.f32 %v984, %v1037
    %v1050 = vmul.f32 %v986, %v1038
    %v1051 = vmul.f32 %v988, %v1039
    %v1052 = vmul.f32 %v990, %v1040
    %v1053 = vmul.f32 %v992, %v1041
    %v1054 = vmul.f32 %v994, %v1042
    %1055 = vrot.lane.b32.xlu0 %v650, 64
    %v1056 = vpop.permute.xlu0 %1055
    %1057 = vrot.lane.b32.xlu0 %v655, 64
    %v1058 = vpop.permute.xlu0 %1057
    %1059 = vrot.lane.b32.xlu0 %v660, 64
    %v1060 = vpop.permute.xlu0 %1059
    %1061 = vrot.lane.b32.xlu0 %v665, 64
    %v1062 = vpop.permute.xlu0 %1061
    %1063 = vrot.lane.b32.xlu0 %v670, 64
    %v1064 = vpop.permute.xlu0 %1063
    %1065 = vrot.lane.b32.xlu0 %v675, 64
    %v1066 = vpop.permute.xlu0 %1065
    %1067 = vrot.lane.b32.xlu0 %v680, 64
    %v1068 = vpop.permute.xlu0 %1067
    %1069 = vrot.lane.b32.xlu0 %v685, 64
    %v1070 = vpop.permute.xlu0 %1069
    %1071 = vrot.lane.b32.xlu0 %v690, 64
    %v1072 = vpop.permute.xlu0 %1071
    %1073 = vrot.lane.b32.xlu0 %v695, 64
    %v1074 = vpop.permute.xlu0 %1073
    %1075 = vrot.lane.b32.xlu0 %v700, 64
    %v1076 = vpop.permute.xlu0 %1075
    %1077 = vrot.lane.b32.xlu0 %v705, 64
    %v1078 = vpop.permute.xlu0 %1077
    %v1092 = vsel %vm922, %v1043, 0
    %v1095 = vsel %vm922, %v1044, 0
    %v1098 = vsel %vm922, %v1045, 0
    %v1101 = vsel %vm922, %v1046, 0
    %v1104 = vsel %vm922, %v1047, 0
    %v1107 = vsel %vm922, %v1048, 0
    %v1110 = vsel %vm922, %v1049, 0
    %v1113 = vsel %vm922, %v1050, 0
    %v1116 = vsel %vm922, %v1051, 0
    %v1119 = vsel %vm922, %v1052, 0
    %v1122 = vsel %vm922, %v1053, 0
    %v1125 = vsel %vm922, %v1054, 0
    %1127 = vmatprep.subr.mxu0 0.0
    %1128 = vmatpush1.msra.mxu0 %v1056
    %1129 = vmatprep.subr.mxu0 0.0
    %1130 = vmatpush1.msra.mxu0 %v1058
    %1131 = vmatprep.subr.mxu0 0.0
    %1132 = vmatpush1.msra.mxu0 %v1060
    %1133 = vmatprep.subr.mxu0 0.0
    %1134 = vmatpush1.msra.mxu0 %v1062
    %1135 = vmatprep.subr.mxu0 0.0
    %1136 = vmatpush1.msra.mxu0 %v1064
    %1137 = vmatprep.subr.mxu0 0.0
    %1138 = vmatpush1.msra.mxu0 %v1066
    %1139 = vmatprep.subr.mxu0 0.0
    %1140 = vmatpush1.msra.mxu0 %v1068
    %1141 = vmatprep.subr.mxu0 0.0
    %1142 = vmatpush1.msra.mxu0 %v1070
    %1143 = vmatprep.subr.mxu0 0.0
    %1144 = vmatpush1.msra.mxu0 %v1072
    %1145 = vmatprep.subr.mxu0 0.0
    %1146 = vmatpush1.msra.mxu0 %v1074
    %1147 = vmatprep.subr.mxu0 0.0
    %1148 = vmatpush1.msra.mxu0 %v1076
    %1149 = vmatprep.subr.mxu0 0.0
    %1150 = vmatpush1.msra.mxu0 %v1078
    %1151 = vmatprep.subr.mxu0 0.0
    %1152 = vmatpush1.msra.mxu0 0.0
    %1153 = vmatprep.subr.mxu0 0.0
    %1154 = vmatpush1.msra.mxu0 0.0
    %1155 = vmatprep.subr.mxu0 0.0
    %1156 = vmatpush1.msra.mxu0 0.0
    %1157 = vmatprep.subr.mxu0 0.0
    %1158 = vmatpush1.msra.mxu0 0.0
    %1159 = vmatprep.subr.mxu0 0.0
    %1160 = vmatpush1.msra.mxu0 0.0
    %1161 = vmatprep.subr.mxu0 0.0
    %1162 = vmatpush1.msra.mxu0 0.0
    %1163 = vmatprep.subr.mxu0 0.0
    %1164 = vmatpush1.msra.mxu0 0.0
    %1165 = vmatprep.subr.mxu0 0.0
    %1166 = vmatpush1.msra.mxu0 0.0
    %1167 = vmatprep.subr.mxu0 0.0
    %1168 = vmatpush1.msra.mxu0 0.0
    %1169 = vmatprep.subr.mxu0 0.0
    %1170 = vmatpush1.msra.mxu0 0.0
    %1171 = vmatprep.subr.mxu0 0.0
    %1172 = vmatpush1.msra.mxu0 0.0
    %1173 = vmatprep.subr.mxu0 0.0
    %1174 = vmatpush1.msra.mxu0 0.0
    %1175 = vmatprep.subr.mxu0 0.0
    %1176 = vmatpush1.msra.mxu0 0.0
    %1177 = vmatprep.subr.mxu0 0.0
    %1178 = vmatpush1.msra.mxu0 0.0
    %1179 = vmatprep.subr.mxu0 0.0
    %1180 = vmatpush1.msra.mxu0 0.0
    %1181 = vmatprep.subr.mxu0 0.0
    %1182 = vmatpush1.msra.mxu0 0.0
    %1183 = vmatprep.subr.mxu0 0.0
    %1184 = vmatpush1.msra.mxu0 0.0
    %1185 = vmatprep.subr.mxu0 0.0
    %1186 = vmatpush1.msra.mxu0 0.0
    %1187 = vmatprep.subr.mxu0 0.0
    %1188 = vmatpush1.msra.mxu0 0.0
    %1189 = vmatprep.subr.mxu0 0.0
    %1190 = vmatpush1.msra.mxu0 0.0
    %1191 = vmatprep.mubr.f32.mxu0 0.0
    %1192 = vmatmul.mubr.f32.gmra.mrb[0].mxu0 %v1092
    %v1193 = vpop.f32.mrb[0].mxu0
    %v1194 = vadd.f32 0.0, %v1193
    %v1195 = vpop.f32.mrb[0].mxu0
    %1196 = vmatprep.mubr.f32.mxu0 0.0
    %1197 = vmatmul.mubr.f32.gmra.mrb[0].mxu0 %v1095
    %v1198 = vpop.f32.mrb[0].mxu0
    %v1199 = vadd.f32 0.0, %v1198
    %v1200 = vpop.f32.mrb[0].mxu0
    %1201 = vmatprep.mubr.f32.mxu0 0.0
    %1202 = vmatmul.mubr.f32.gmra.mrb[0].mxu0 %v1098
    %v1203 = vpop.f32.mrb[0].mxu0
    %v1204 = vadd.f32 0.0, %v1203
    %v1205 = vpop.f32.mrb[0].mxu0
    %1206 = vmatprep.mubr.f32.mxu0 0.0
    %1207 = vmatmul.mubr.f32.gmra.mrb[0].mxu0 %v1101
    %v1208 = vpop.f32.mrb[0].mxu0
    %v1209 = vadd.f32 0.0, %v1208
    %v1210 = vpop.f32.mrb[0].mxu0
    %1211 = vmatprep.mubr.f32.mxu0 0.0
    %1212 = vmatmul.mubr.f32.gmra.mrb[0].mxu0 %v1104
    %v1213 = vpop.f32.mrb[0].mxu0
    %v1214 = vadd.f32 0.0, %v1213
    %v1215 = vpop.f32.mrb[0].mxu0
    %1216 = vmatprep.mubr.f32.mxu0 0.0
    %1217 = vmatmul.mubr.f32.gmra.mrb[0].mxu0 %v1107
    %v1218 = vpop.f32.mrb[0].mxu0
    %v1219 = vadd.f32 0.0, %v1218
    %v1220 = vpop.f32.mrb[0].mxu0
    %1221 = vmatprep.mubr.f32.mxu0 0.0
    %1222 = vmatmul.mubr.f32.gmra.mrb[0].mxu0 %v1110
    %v1223 = vpop.f32.mrb[0].mxu0
    %v1224 = vadd.f32 0.0, %v1223
    %v1225 = vpop.f32.mrb[0].mxu0
    %1226 = vmatprep.mubr.f32.mxu0 0.0
    %1227 = vmatmul.mubr.f32.gmra.mrb[0].mxu0 %v1113
    %v1228 = vpop.f32.mrb[0].mxu0
    %v1229 = vadd.f32 0.0, %v1228
    %v1230 = vpop.f32.mrb[0].mxu0
    %1231 = vmatprep.mubr.f32.mxu0 0.0
    %1232 = vmatmul.mubr.f32.gmra.mrb[0].mxu0 %v1116
    %v1233 = vpop.f32.mrb[0].mxu0
    %v1234 = vadd.f32 0.0, %v1233
    %v1235 = vpop.f32.mrb[0].mxu0
    %1236 = vmatprep.mubr.f32.mxu0 0.0
    %1237 = vmatmul.mubr.f32.gmra.mrb[0].mxu0 %v1119
    %v1238 = vpop.f32.mrb[0].mxu0
    %v1239 = vadd.f32 0.0, %v1238
    %v1240 = vpop.f32.mrb[0].mxu0
    %1241 = vmatprep.mubr.f32.mxu0 0.0
    %1242 = vmatmul.mubr.f32.gmra.mrb[0].mxu0 %v1122
    %v1243 = vpop.f32.mrb[0].mxu0
    %v1244 = vadd.f32 0.0, %v1243
    %v1245 = vpop.f32.mrb[0].mxu0
    %1246 = vmatprep.mubr.f32.mxu0 0.0
    %1247 = vmatmul.mubr.f32.gmra.mrb[0].mxu0 %v1125
    %v1248 = vpop.f32.mrb[0].mxu0
    %v1249 = vadd.f32 0.0, %v1248
    %v1250 = vpop.f32.mrb[0].mxu0
    %1251 = vdwg.mxu0
    %1252 = vrot.lane.b32.xlu0 %v650, 120
    %v1253 = vpop.permute.xlu0 %1252
    %1254 = vrot.lane.b32.xlu0 %v655, 120
    %v1255 = vpop.permute.xlu0 %1254
    %1256 = vrot.lane.b32.xlu0 %v660, 120
    %v1257 = vpop.permute.xlu0 %1256
    %1258 = vrot.lane.b32.xlu0 %v665, 120
    %v1259 = vpop.permute.xlu0 %1258
    %1260 = vrot.lane.b32.xlu0 %v670, 120
    %v1261 = vpop.permute.xlu0 %1260
    %1262 = vrot.lane.b32.xlu0 %v675, 120
    %v1263 = vpop.permute.xlu0 %1262
    %1264 = vrot.lane.b32.xlu0 %v680, 120
    %v1265 = vpop.permute.xlu0 %1264
    %1266 = vrot.lane.b32.xlu0 %v685, 120
    %v1267 = vpop.permute.xlu0 %1266
    %1268 = vrot.lane.b32.xlu0 %v690, 120
    %v1269 = vpop.permute.xlu0 %1268
    %1270 = vrot.lane.b32.xlu0 %v695, 120
    %v1271 = vpop.permute.xlu0 %1270
    %1272 = vrot.lane.b32.xlu0 %v700, 120
    %v1273 = vpop.permute.xlu0 %1272
    %1274 = vrot.lane.b32.xlu0 %v705, 120
    %v1275 = vpop.permute.xlu0 %1274
    %1276 = vrot.lane.b32.xlu0 %v650, 88
    %v1277 = vpop.permute.xlu0 %1276
    %1278 = vrot.lane.b32.xlu0 %v655, 88
    %v1279 = vpop.permute.xlu0 %1278
    %1280 = vrot.lane.b32.xlu0 %v660, 88
    %v1281 = vpop.permute.xlu0 %1280
    %1282 = vrot.lane.b32.xlu0 %v665, 88
    %v1283 = vpop.permute.xlu0 %1282
    %1284 = vrot.lane.b32.xlu0 %v670, 88
    %v1285 = vpop.permute.xlu0 %1284
    %1286 = vrot.lane.b32.xlu0 %v675, 88
    %v1287 = vpop.permute.xlu0 %1286
    %1288 = vrot.lane.b32.xlu0 %v680, 88
    %v1289 = vpop.permute.xlu0 %1288
    %1290 = vrot.lane.b32.xlu0 %v685, 88
    %v1291 = vpop.permute.xlu0 %1290
    %1292 = vrot.lane.b32.xlu0 %v690, 88
    %v1293 = vpop.permute.xlu0 %1292
    %1294 = vrot.lane.b32.xlu0 %v695, 88
    %v1295 = vpop.permute.xlu0 %1294
    %1296 = vrot.lane.b32.xlu0 %v700, 88
    %v1297 = vpop.permute.xlu0 %1296
    %1298 = vrot.lane.b32.xlu0 %v705, 88
    %v1299 = vpop.permute.xlu0 %1298
    %v1300 = vsel %vm748, %v1253, 0
    %v1302 = vsel %vm748, %v1255, 0
    %v1304 = vsel %vm748, %v1257, 0
    %v1306 = vsel %vm748, %v1259, 0
    %v1308 = vsel %vm748, %v1261, 0
    %v1310 = vsel %vm748, %v1263, 0
    %v1312 = vsel %vm748, %v1265, 0
    %v1314 = vsel %vm748, %v1267, 0
    %v1316 = vsel %vm748, %v1269, 0
    %v1318 = vsel %vm748, %v1271, 0
    %v1320 = vsel %vm748, %v1273, 0
    %v1322 = vsel %vm748, %v1275, 0
    %v1324 = vsel %vm748, %v1277, 0
    %v1326 = vsel %vm748, %v1279, 0
    %v1328 = vsel %vm748, %v1281, 0
    %v1330 = vsel %vm748, %v1283, 0
    %v1332 = vsel %vm748, %v1285, 0
    %v1334 = vsel %vm748, %v1287, 0
    %v1336 = vsel %vm748, %v1289, 0
    %v1338 = vsel %vm748, %v1291, 0
    %v1340 = vsel %vm748, %v1293, 0
    %v1342 = vsel %vm748, %v1295, 0
    %v1344 = vsel %vm748, %v1297, 0
    %v1346 = vsel %vm748, %v1299, 0
    %1348 = vmatprep.subr.mxu0 0.0
    %1349 = vmatpush1.xpose.msra.mxu0 %v1324
    %1350 = vmatprep.subr.mxu0 0.0
    %1351 = vmatpush1.xpose.msra.mxu0 %v1326
    %1352 = vmatprep.subr.mxu0 0.0
    %1353 = vmatpush1.xpose.msra.mxu0 %v1328
    %1354 = vmatprep.subr.mxu0 0.0
    %1355 = vmatpush1.xpose.msra.mxu0 %v1330
    %1356 = vmatprep.subr.mxu0 0.0
    %1357 = vmatpush1.xpose.msra.mxu0 %v1332
    %1358 = vmatprep.subr.mxu0 0.0
    %1359 = vmatpush1.xpose.msra.mxu0 %v1334
    %1360 = vmatprep.subr.mxu0 0.0
    %1361 = vmatpush1.xpose.msra.mxu0 %v1336
    %1362 = vmatprep.subr.mxu0 0.0
    %1363 = vmatpush1.xpose.msra.mxu0 %v1338
    %1364 = vmatprep.subr.mxu0 0.0
    %1365 = vmatpush1.xpose.msra.mxu0 %v1340
    %1366 = vmatprep.subr.mxu0 0.0
    %1367 = vmatpush1.xpose.msra.mxu0 %v1342
    %1368 = vmatprep.subr.mxu0 0.0
    %1369 = vmatpush1.xpose.msra.mxu0 %v1344
    %1370 = vmatprep.subr.mxu0 0.0
    %1371 = vmatpush1.xpose.msra.mxu0 %v1346
    %1372 = vmatprep.subr.mxu0 0.0
    %1373 = vmatpush1.xpose.msra.mxu0 0.0
    %1374 = vmatprep.subr.mxu0 0.0
    %1375 = vmatpush1.xpose.msra.mxu0 0.0
    %1376 = vmatprep.subr.mxu0 0.0
    %1377 = vmatpush1.xpose.msra.mxu0 0.0
    %1378 = vmatprep.subr.mxu0 0.0
    %1379 = vmatpush1.xpose.msra.mxu0 0.0
    %1380 = vmatprep.subr.mxu0 0.0
    %1381 = vmatpush1.xpose.msra.mxu0 0.0
    %1382 = vmatprep.subr.mxu0 0.0
    %1383 = vmatpush1.xpose.msra.mxu0 0.0
    %1384 = vmatprep.subr.mxu0 0.0
    %1385 = vmatpush1.xpose.msra.mxu0 0.0
    %1386 = vmatprep.subr.mxu0 0.0
    %1387 = vmatpush1.xpose.msra.mxu0 0.0
    %1388 = vmatprep.subr.mxu0 0.0
    %1389 = vmatpush1.xpose.msra.mxu0 0.0
    %1390 = vmatprep.subr.mxu0 0.0
    %1391 = vmatpush1.xpose.msra.mxu0 0.0
    %1392 = vmatprep.subr.mxu0 0.0
    %1393 = vmatpush1.xpose.msra.mxu0 0.0
    %1394 = vmatprep.subr.mxu0 0.0
    %1395 = vmatpush1.xpose.msra.mxu0 0.0
    %1396 = vmatprep.subr.mxu0 0.0
    %1397 = vmatpush1.xpose.msra.mxu0 0.0
    %1398 = vmatprep.subr.mxu0 0.0
    %1399 = vmatpush1.xpose.msra.mxu0 0.0
    %1400 = vmatprep.subr.mxu0 0.0
    %1401 = vmatpush1.xpose.msra.mxu0 0.0
    %1402 = vmatprep.subr.mxu0 0.0
    %1403 = vmatpush1.xpose.msra.mxu0 0.0
    %1404 = vmatprep.subr.mxu0 0.0
    %1405 = vmatpush1.xpose.msra.mxu0 0.0
    %1406 = vmatprep.subr.mxu0 0.0
    %1407 = vmatpush1.xpose.msra.mxu0 0.0
    %1408 = vmatprep.subr.mxu0 0.0
    %1409 = vmatpush1.xpose.msra.mxu0 0.0
    %1410 = vmatprep.subr.mxu0 0.0
    %1411 = vmatpush1.xpose.msra.mxu0 0.0
    %1412 = vmatprep.mubr.f32.mxu0 0.0
    %1413 = vmatmul.mubr.f32.gmra.mrb[0].mxu0 %v1300
    %v1414 = vpop.f32.mrb[0].mxu0
    %v1415 = vadd.f32 %v84, %v1414
    %v1416 = vpop.f32.mrb[0].mxu0
    %1417 = vmatprep.mubr.f32.mxu0 0.0
    %1418 = vmatmul.mubr.f32.gmra.mrb[0].mxu0 %v1302
    %v1419 = vpop.f32.mrb[0].mxu0
    %v1420 = vadd.f32 %v85, %v1419
    %v1421 = vpop.f32.mrb[0].mxu0
    %1422 = vmatprep.mubr.f32.mxu0 0.0
    %1423 = vmatmul.mubr.f32.gmra.mrb[0].mxu0 %v1304
    %v1424 = vpop.f32.mrb[0].mxu0
    %v1425 = vadd.f32 %v86, %v1424
    %v1426 = vpop.f32.mrb[0].mxu0
    %1427 = vmatprep.mubr.f32.mxu0 0.0
    %1428 = vmatmul.mubr.f32.gmra.mrb[0].mxu0 %v1306
    %v1429 = vpop.f32.mrb[0].mxu0
    %v1430 = vadd.f32 %v87, %v1429
    %v1431 = vpop.f32.mrb[0].mxu0
    %1432 = vmatprep.mubr.f32.mxu0 0.0
    %1433 = vmatmul.mubr.f32.gmra.mrb[0].mxu0 %v1308
    %v1434 = vpop.f32.mrb[0].mxu0
    %v1435 = vadd.f32 %v88, %v1434
    %v1436 = vpop.f32.mrb[0].mxu0
    %1437 = vmatprep.mubr.f32.mxu0 0.0
    %1438 = vmatmul.mubr.f32.gmra.mrb[0].mxu0 %v1310
    %v1439 = vpop.f32.mrb[0].mxu0
    %v1440 = vadd.f32 %v89, %v1439
    %v1441 = vpop.f32.mrb[0].mxu0
    %1442 = vmatprep.mubr.f32.mxu0 0.0
    %1443 = vmatmul.mubr.f32.gmra.mrb[0].mxu0 %v1312
    %v1444 = vpop.f32.mrb[0].mxu0
    %v1445 = vadd.f32 %v90, %v1444
    %v1446 = vpop.f32.mrb[0].mxu0
    %1447 = vmatprep.mubr.f32.mxu0 0.0
    %1448 = vmatmul.mubr.f32.gmra.mrb[0].mxu0 %v1314
    %v1449 = vpop.f32.mrb[0].mxu0
    %v1450 = vadd.f32 %v91, %v1449
    %v1451 = vpop.f32.mrb[0].mxu0
    %1452 = vmatprep.mubr.f32.mxu0 0.0
    %1453 = vmatmul.mubr.f32.gmra.mrb[0].mxu0 %v1316
    %v1454 = vpop.f32.mrb[0].mxu0
    %v1455 = vadd.f32 %v92, %v1454
    %v1456 = vpop.f32.mrb[0].mxu0
    %1457 = vmatprep.mubr.f32.mxu0 0.0
    %1458 = vmatmul.mubr.f32.gmra.mrb[0].mxu0 %v1318
    %v1459 = vpop.f32.mrb[0].mxu0
    %v1460 = vadd.f32 %v93, %v1459
    %v1461 = vpop.f32.mrb[0].mxu0
    %1462 = vmatprep.mubr.f32.mxu0 0.0
    %1463 = vmatmul.mubr.f32.gmra.mrb[0].mxu0 %v1320
    %v1464 = vpop.f32.mrb[0].mxu0
    %v1465 = vadd.f32 %v94, %v1464
    %v1466 = vpop.f32.mrb[0].mxu0
    %1467 = vmatprep.mubr.f32.mxu0 0.0
    %1468 = vmatmul.mubr.f32.gmra.mrb[0].mxu0 %v1322
    %v1469 = vpop.f32.mrb[0].mxu0
    %v1470 = vadd.f32 %v95, %v1469
    %v1471 = vpop.f32.mrb[0].mxu0
    %1472 = vdwg.mxu0
    %v1473 = vsel %vm922, %v1415, -inf
    %1474 = vmax.xlane.f32.xlu0 %v1473
    %v1475 = vpop.xlane.xlu0 %1474
    %v1476 = vsel %vm922, %v1420, -inf
    %1477 = vmax.xlane.f32.xlu0 %v1476
    %v1478 = vpop.xlane.xlu0 %1477
    %v1479 = vsel %vm922, %v1425, -inf
    %1480 = vmax.xlane.f32.xlu0 %v1479
    %v1481 = vpop.xlane.xlu0 %1480
    %v1482 = vsel %vm922, %v1430, -inf
    %1483 = vmax.xlane.f32.xlu0 %v1482
    %v1484 = vpop.xlane.xlu0 %1483
    %v1485 = vsel %vm922, %v1435, -inf
    %1486 = vmax.xlane.f32.xlu0 %v1485
    %v1487 = vpop.xlane.xlu0 %1486
    %v1488 = vsel %vm922, %v1440, -inf
    %1489 = vmax.xlane.f32.xlu0 %v1488
    %v1490 = vpop.xlane.xlu0 %1489
    %v1491 = vsel %vm922, %v1445, -inf
    %1492 = vmax.xlane.f32.xlu0 %v1491
    %v1493 = vpop.xlane.xlu0 %1492
    %v1494 = vsel %vm922, %v1450, -inf
    %1495 = vmax.xlane.f32.xlu0 %v1494
    %v1496 = vpop.xlane.xlu0 %1495
    %v1497 = vsel %vm922, %v1455, -inf
    %1498 = vmax.xlane.f32.xlu0 %v1497
    %v1499 = vpop.xlane.xlu0 %1498
    %v1500 = vsel %vm922, %v1460, -inf
    %1501 = vmax.xlane.f32.xlu0 %v1500
    %v1502 = vpop.xlane.xlu0 %1501
    %v1503 = vsel %vm922, %v1465, -inf
    %1504 = vmax.xlane.f32.xlu0 %v1503
    %v1505 = vpop.xlane.xlu0 %1504
    %v1506 = vsel %vm922, %v1470, -inf
    %1507 = vmax.xlane.f32.xlu0 %v1506
    %v1508 = vpop.xlane.xlu0 %1507
    %v1509 = vsub.f32 %v1415, %v1475
    %v1510 = vsub.f32 %v1420, %v1478
    %v1511 = vsub.f32 %v1425, %v1481
    %v1512 = vsub.f32 %v1430, %v1484
    %v1513 = vsub.f32 %v1435, %v1487
    %v1514 = vsub.f32 %v1440, %v1490
    %v1515 = vsub.f32 %v1445, %v1493
    %v1516 = vsub.f32 %v1450, %v1496
    %v1517 = vsub.f32 %v1455, %v1499
    %v1518 = vsub.f32 %v1460, %v1502
    %v1519 = vsub.f32 %v1465, %v1505
    %v1520 = vsub.f32 %v1470, %v1508
    %v1521 = vmul.f32 %v1509, 1.442695
    %v1522 = vpow.pop %v1521
    %v1523 = vmul.f32 %v1510, 1.442695
    %v1524 = vpow.pop %v1523
    %v1525 = vmul.f32 %v1511, 1.442695
    %v1526 = vpow.pop %v1525
    %v1527 = vmul.f32 %v1512, 1.442695
    %v1528 = vpow.pop %v1527
    %v1529 = vmul.f32 %v1513, 1.442695
    %v1530 = vpow.pop %v1529
    %v1531 = vmul.f32 %v1514, 1.442695
    %v1532 = vpow.pop %v1531
    %v1533 = vmul.f32 %v1515, 1.442695
    %v1534 = vpow.pop %v1533
    %v1535 = vmul.f32 %v1516, 1.442695
    %v1536 = vpow.pop %v1535
    %v1537 = vmul.f32 %v1517, 1.442695
    %v1538 = vpow.pop %v1537
    %v1539 = vmul.f32 %v1518, 1.442695
    %v1540 = vpow.pop %v1539
    %v1541 = vmul.f32 %v1519, 1.442695
    %v1542 = vpow.pop %v1541
    %v1543 = vmul.f32 %v1520, 1.442695
    %v1544 = vpow.pop %v1543
    %v1545 = vsel %vm922, %v1522, 0.0
    %1546 = vadd.xlane.f32.xlu0 %v1545
    %v1547 = vpop.xlane.xlu0 %1546
    %v1548 = vsel %vm922, %v1524, 0.0
    %1549 = vadd.xlane.f32.xlu0 %v1548
    %v1550 = vpop.xlane.xlu0 %1549
    %v1551 = vsel %vm922, %v1526, 0.0
    %1552 = vadd.xlane.f32.xlu0 %v1551
    %v1553 = vpop.xlane.xlu0 %1552
    %v1554 = vsel %vm922, %v1528, 0.0
    %1555 = vadd.xlane.f32.xlu0 %v1554
    %v1556 = vpop.xlane.xlu0 %1555
    %v1557 = vsel %vm922, %v1530, 0.0
    %1558 = vadd.xlane.f32.xlu0 %v1557
    %v1559 = vpop.xlane.xlu0 %1558
    %v1560 = vsel %vm922, %v1532, 0.0
    %1561 = vadd.xlane.f32.xlu0 %v1560
    %v1562 = vpop.xlane.xlu0 %1561
    %v1563 = vsel %vm922, %v1534, 0.0
    %1564 = vadd.xlane.f32.xlu0 %v1563
    %v1565 = vpop.xlane.xlu0 %1564
    %v1566 = vsel %vm922, %v1536, 0.0
    %1567 = vadd.xlane.f32.xlu0 %v1566
    %v1568 = vpop.xlane.xlu0 %1567
    %v1569 = vsel %vm922, %v1538, 0.0
    %1570 = vadd.xlane.f32.xlu0 %v1569
    %v1571 = vpop.xlane.xlu0 %1570
    %v1572 = vsel %vm922, %v1540, 0.0
    %1573 = vadd.xlane.f32.xlu0 %v1572
    %v1574 = vpop.xlane.xlu0 %1573
    %v1575 = vsel %vm922, %v1542, 0.0
    %1576 = vadd.xlane.f32.xlu0 %v1575
    %v1577 = vpop.xlane.xlu0 %1576
    %v1578 = vsel %vm922, %v1544, 0.0
    %1579 = vadd.xlane.f32.xlu0 %v1578
    %v1580 = vpop.xlane.xlu0 %1579
    %v1581 = vrcp.pop %v1547
    %v1582 = vrcp.pop %v1550
    %v1583 = vrcp.pop %v1553
    %v1584 = vrcp.pop %v1556
    %v1585 = vrcp.pop %v1559
    %v1586 = vrcp.pop %v1562
    %v1587 = vrcp.pop %v1565
    %v1588 = vrcp.pop %v1568
    %v1589 = vrcp.pop %v1571
    %v1590 = vrcp.pop %v1574
    %v1591 = vrcp.pop %v1577
    %v1592 = vrcp.pop %v1580
    %v1593 = vmul.f32 %v1522, %v1581
    %v1594 = vmul.f32 %v1524, %v1582
    %v1595 = vmul.f32 %v1526, %v1583
    %v1596 = vmul.f32 %v1528, %v1584
    %v1597 = vmul.f32 %v1530, %v1585
    %v1598 = vmul.f32 %v1532, %v1586
    %v1599 = vmul.f32 %v1534, %v1587
    %v1600 = vmul.f32 %v1536, %v1588
    %v1601 = vmul.f32 %v1538, %v1589
    %v1602 = vmul.f32 %v1540, %v1590
    %v1603 = vmul.f32 %v1542, %v1591
    %v1604 = vmul.f32 %v1544, %v1592
    %1605 = vrot.lane.b32.xlu0 %v650, 56
    %v1606 = vpop.permute.xlu0 %1605
    %1607 = vrot.lane.b32.xlu0 %v655, 56
    %v1608 = vpop.permute.xlu0 %1607
    %1609 = vrot.lane.b32.xlu0 %v660, 56
    %v1610 = vpop.permute.xlu0 %1609
    %1611 = vrot.lane.b32.xlu0 %v665, 56
    %v1612 = vpop.permute.xlu0 %1611
    %1613 = vrot.lane.b32.xlu0 %v670, 56
    %v1614 = vpop.permute.xlu0 %1613
    %1615 = vrot.lane.b32.xlu0 %v675, 56
    %v1616 = vpop.permute.xlu0 %1615
    %1617 = vrot.lane.b32.xlu0 %v680, 56
    %v1618 = vpop.permute.xlu0 %1617
    %1619 = vrot.lane.b32.xlu0 %v685, 56
    %v1620 = vpop.permute.xlu0 %1619
    %1621 = vrot.lane.b32.xlu0 %v690, 56
    %v1622 = vpop.permute.xlu0 %1621
    %1623 = vrot.lane.b32.xlu0 %v695, 56
    %v1624 = vpop.permute.xlu0 %1623
    %1625 = vrot.lane.b32.xlu0 %v700, 56
    %v1626 = vpop.permute.xlu0 %1625
    %1627 = vrot.lane.b32.xlu0 %v705, 56
    %v1628 = vpop.permute.xlu0 %1627
    %v1642 = vsel %vm922, %v1593, 0
    %v1645 = vsel %vm922, %v1594, 0
    %v1648 = vsel %vm922, %v1595, 0
    %v1651 = vsel %vm922, %v1596, 0
    %v1654 = vsel %vm922, %v1597, 0
    %v1657 = vsel %vm922, %v1598, 0
    %v1660 = vsel %vm922, %v1599, 0
    %v1663 = vsel %vm922, %v1600, 0
    %v1666 = vsel %vm922, %v1601, 0
    %v1669 = vsel %vm922, %v1602, 0
    %v1672 = vsel %vm922, %v1603, 0
    %v1675 = vsel %vm922, %v1604, 0
    %1677 = vmatprep.subr.mxu0 0.0
    %1678 = vmatpush1.msra.mxu0 %v1606
    %1679 = vmatprep.subr.mxu0 0.0
    %1680 = vmatpush1.msra.mxu0 %v1608
    %1681 = vmatprep.subr.mxu0 0.0
    %1682 = vmatpush1.msra.mxu0 %v1610
    %1683 = vmatprep.subr.mxu0 0.0
    %1684 = vmatpush1.msra.mxu0 %v1612
    %1685 = vmatprep.subr.mxu0 0.0
    %1686 = vmatpush1.msra.mxu0 %v1614
    %1687 = vmatprep.subr.mxu0 0.0
    %1688 = vmatpush1.msra.mxu0 %v1616
    %1689 = vmatprep.subr.mxu0 0.0
    %1690 = vmatpush1.msra.mxu0 %v1618
    %1691 = vmatprep.subr.mxu0 0.0
    %1692 = vmatpush1.msra.mxu0 %v1620
    %1693 = vmatprep.subr.mxu0 0.0
    %1694 = vmatpush1.msra.mxu0 %v1622
    %1695 = vmatprep.subr.mxu0 0.0
    %1696 = vmatpush1.msra.mxu0 %v1624
    %1697 = vmatprep.subr.mxu0 0.0
    %1698 = vmatpush1.msra.mxu0 %v1626
    %1699 = vmatprep.subr.mxu0 0.0
    %1700 = vmatpush1.msra.mxu0 %v1628
    %1701 = vmatprep.subr.mxu0 0.0
    %1702 = vmatpush1.msra.mxu0 0.0
    %1703 = vmatprep.subr.mxu0 0.0
    %1704 = vmatpush1.msra.mxu0 0.0
    %1705 = vmatprep.subr.mxu0 0.0
    %1706 = vmatpush1.msra.mxu0 0.0
    %1707 = vmatprep.subr.mxu0 0.0
    %1708 = vmatpush1.msra.mxu0 0.0
    %1709 = vmatprep.subr.mxu0 0.0
    %1710 = vmatpush1.msra.mxu0 0.0
    %1711 = vmatprep.subr.mxu0 0.0
    %1712 = vmatpush1.msra.mxu0 0.0
    %1713 = vmatprep.subr.mxu0 0.0
    %1714 = vmatpush1.msra.mxu0 0.0
    %1715 = vmatprep.subr.mxu0 0.0
    %1716 = vmatpush1.msra.mxu0 0.0
    %1717 = vmatprep.subr.mxu0 0.0
    %1718 = vmatpush1.msra.mxu0 0.0
    %1719 = vmatprep.subr.mxu0 0.0
    %1720 = vmatpush1.msra.mxu0 0.0
    %1721 = vmatprep.subr.mxu0 0.0
    %1722 = vmatpush1.msra.mxu0 0.0
    %1723 = vmatprep.subr.mxu0 0.0
    %1724 = vmatpush1.msra.mxu0 0.0
    %1725 = vmatprep.subr.mxu0 0.0
    %1726 = vmatpush1.msra.mxu0 0.0
    %1727 = vmatprep.subr.mxu0 0.0
    %1728 = vmatpush1.msra.mxu0 0.0
    %1729 = vmatprep.subr.mxu0 0.0
    %1730 = vmatpush1.msra.mxu0 0.0
    %1731 = vmatprep.subr.mxu0 0.0
    %1732 = vmatpush1.msra.mxu0 0.0
    %1733 = vmatprep.subr.mxu0 0.0
    %1734 = vmatpush1.msra.mxu0 0.0
    %1735 = vmatprep.subr.mxu0 0.0
    %1736 = vmatpush1.msra.mxu0 0.0
    %1737 = vmatprep.subr.mxu0 0.0
    %1738 = vmatpush1.msra.mxu0 0.0
    %1739 = vmatprep.subr.mxu0 0.0
    %1740 = vmatpush1.msra.mxu0 0.0
    %1741 = vmatprep.mubr.f32.mxu0 0.0
    %1742 = vmatmul.mubr.f32.gmra.mrb[0].mxu0 %v1642
    %v1743 = vpop.f32.mrb[0].mxu0
    %v1744 = vadd.f32 0.0, %v1743
    %v1745 = vpop.f32.mrb[0].mxu0
    %1746 = vmatprep.mubr.f32.mxu0 0.0
    %1747 = vmatmul.mubr.f32.gmra.mrb[0].mxu0 %v1645
    %v1748 = vpop.f32.mrb[0].mxu0
    %v1749 = vadd.f32 0.0, %v1748
    %v1750 = vpop.f32.mrb[0].mxu0
    %1751 = vmatprep.mubr.f32.mxu0 0.0
    %1752 = vmatmul.mubr.f32.gmra.mrb[0].mxu0 %v1648
    %v1753 = vpop.f32.mrb[0].mxu0
    %v1754 = vadd.f32 0.0, %v1753
    %v1755 = vpop.f32.mrb[0].mxu0
    %1756 = vmatprep.mubr.f32.mxu0 0.0
    %1757 = vmatmul.mubr.f32.gmra.mrb[0].mxu0 %v1651
    %v1758 = vpop.f32.mrb[0].mxu0
    %v1759 = vadd.f32 0.0, %v1758
    %v1760 = vpop.f32.mrb[0].mxu0
    %1761 = vmatprep.mubr.f32.mxu0 0.0
    %1762 = vmatmul.mubr.f32.gmra.mrb[0].mxu0 %v1654
    %v1763 = vpop.f32.mrb[0].mxu0
    %v1764 = vadd.f32 0.0, %v1763
    %v1765 = vpop.f32.mrb[0].mxu0
    %1766 = vmatprep.mubr.f32.mxu0 0.0
    %1767 = vmatmul.mubr.f32.gmra.mrb[0].mxu0 %v1657
    %v1768 = vpop.f32.mrb[0].mxu0
    %v1769 = vadd.f32 0.0, %v1768
    %v1770 = vpop.f32.mrb[0].mxu0
    %1771 = vmatprep.mubr.f32.mxu0 0.0
    %1772 = vmatmul.mubr.f32.gmra.mrb[0].mxu0 %v1660
    %v1773 = vpop.f32.mrb[0].mxu0
    %v1774 = vadd.f32 0.0, %v1773
    %v1775 = vpop.f32.mrb[0].mxu0
    %1776 = vmatprep.mubr.f32.mxu0 0.0
    %1777 = vmatmul.mubr.f32.gmra.mrb[0].mxu0 %v1663
    %v1778 = vpop.f32.mrb[0].mxu0
    %v1779 = vadd.f32 0.0, %v1778
    %v1780 = vpop.f32.mrb[0].mxu0
    %1781 = vmatprep.mubr.f32.mxu0 0.0
    %1782 = vmatmul.mubr.f32.gmra.mrb[0].mxu0 %v1666
    %v1783 = vpop.f32.mrb[0].mxu0
    %v1784 = vadd.f32 0.0, %v1783
    %v1785 = vpop.f32.mrb[0].mxu0
    %1786 = vmatprep.mubr.f32.mxu0 0.0
    %1787 = vmatmul.mubr.f32.gmra.mrb[0].mxu0 %v1669
    %v1788 = vpop.f32.mrb[0].mxu0
    %v1789 = vadd.f32 0.0, %v1788
    %v1790 = vpop.f32.mrb[0].mxu0
    %1791 = vmatprep.mubr.f32.mxu0 0.0
    %1792 = vmatmul.mubr.f32.gmra.mrb[0].mxu0 %v1672
    %v1793 = vpop.f32.mrb[0].mxu0
    %v1794 = vadd.f32 0.0, %v1793
    %v1795 = vpop.f32.mrb[0].mxu0
    %1796 = vmatprep.mubr.f32.mxu0 0.0
    %1797 = vmatmul.mubr.f32.gmra.mrb[0].mxu0 %v1675
    %v1798 = vpop.f32.mrb[0].mxu0
    %v1799 = vadd.f32 0.0, %v1798
    %v1800 = vpop.f32.mrb[0].mxu0
    %1801 = vdwg.mxu0
    %v1803 = vsel %vm748, %v1744, 0
    %v1806 = vsel %vm748, %v1749, 0
    %v1809 = vsel %vm748, %v1754, 0
    %v1812 = vsel %vm748, %v1759, 0
    %v1815 = vsel %vm748, %v1764, 0
    %v1818 = vsel %vm748, %v1769, 0
    %v1821 = vsel %vm748, %v1774, 0
    %v1824 = vsel %vm748, %v1779, 0
    %v1827 = vsel %vm748, %v1784, 0
    %v1830 = vsel %vm748, %v1789, 0
    %v1833 = vsel %vm748, %v1794, 0
    %v1836 = vsel %vm748, %v1799, 0
    %1838 = vmatprep.subr.mxu0 0.0
    %1839 = vmatpush1.msra.mxu0 %v709
    %1840 = vmatprep.subr.mxu0 0.0
    %1841 = vmatpush1.msra.mxu0 0.0
    %1842 = vmatprep.subr.mxu0 0.0
    %1843 = vmatpush1.msra.mxu0 0.0
    %1844 = vmatprep.subr.mxu0 0.0
    %1845 = vmatpush1.msra.mxu0 0.0
    %1846 = vmatprep.subr.mxu0 0.0
    %1847 = vmatpush1.msra.mxu0 0.0
    %1848 = vmatprep.subr.mxu0 0.0
    %1849 = vmatpush1.msra.mxu0 0.0
    %1850 = vmatprep.subr.mxu0 0.0
    %1851 = vmatpush1.msra.mxu0 0.0
    %1852 = vmatprep.subr.mxu0 0.0
    %1853 = vmatpush1.msra.mxu0 0.0
    %1854 = vmatprep.subr.mxu0 0.0
    %1855 = vmatpush1.msra.mxu0 0.0
    %1856 = vmatprep.subr.mxu0 0.0
    %1857 = vmatpush1.msra.mxu0 0.0
    %1858 = vmatprep.subr.mxu0 0.0
    %1859 = vmatpush1.msra.mxu0 0.0
    %1860 = vmatprep.subr.mxu0 0.0
    %1861 = vmatpush1.msra.mxu0 0.0
    %1862 = vmatprep.subr.mxu0 0.0
    %1863 = vmatpush1.msra.mxu0 0.0
    %1864 = vmatprep.subr.mxu0 0.0
    %1865 = vmatpush1.msra.mxu0 0.0
    %1866 = vmatprep.subr.mxu0 0.0
    %1867 = vmatpush1.msra.mxu0 0.0
    %1868 = vmatprep.subr.mxu0 0.0
    %1869 = vmatpush1.msra.mxu0 0.0
    %1870 = vmatprep.subr.mxu0 0.0
    %1871 = vmatpush1.msra.mxu0 0.0
    %1872 = vmatprep.subr.mxu0 0.0
    %1873 = vmatpush1.msra.mxu0 0.0
    %1874 = vmatprep.subr.mxu0 0.0
    %1875 = vmatpush1.msra.mxu0 0.0
    %1876 = vmatprep.subr.mxu0 0.0
    %1877 = vmatpush1.msra.mxu0 0.0
    %1878 = vmatprep.subr.mxu0 0.0
    %1879 = vmatpush1.msra.mxu0 0.0
    %1880 = vmatprep.subr.mxu0 0.0
    %1881 = vmatpush1.msra.mxu0 0.0
    %1882 = vmatprep.subr.mxu0 0.0
    %1883 = vmatpush1.msra.mxu0 0.0
    %1884 = vmatprep.subr.mxu0 0.0
    %1885 = vmatpush1.msra.mxu0 0.0
    %1886 = vmatprep.subr.mxu0 0.0
    %1887 = vmatpush1.msra.mxu0 0.0
    %1888 = vmatprep.subr.mxu0 0.0
    %1889 = vmatpush1.msra.mxu0 0.0
    %1890 = vmatprep.subr.mxu0 0.0
    %1891 = vmatpush1.msra.mxu0 0.0
    %1892 = vmatprep.subr.mxu0 0.0
    %1893 = vmatpush1.msra.mxu0 0.0
    %1894 = vmatprep.subr.mxu0 0.0
    %1895 = vmatpush1.msra.mxu0 0.0
    %1896 = vmatprep.subr.mxu0 0.0
    %1897 = vmatpush1.msra.mxu0 0.0
    %1898 = vmatprep.subr.mxu0 0.0
    %1899 = vmatpush1.msra.mxu0 0.0
    %1900 = vmatprep.subr.mxu0 0.0
    %1901 = vmatpush1.msra.mxu0 0.0
    %1902 = vmatprep.mubr.f32.mxu0 0.0
    %1903 = vmatmul.mubr.f32.gmra.mrb[0].mxu0 %v1803
    %v1904 = vpop.f32.mrb[0].mxu0
    %v1905 = vadd.f32 0.0, %v1904
    %v1906 = vpop.f32.mrb[0].mxu0
    %1907 = vmatprep.mubr.f32.mxu0 0.0
    %1908 = vmatmul.mubr.f32.gmra.mrb[0].mxu0 %v1806
    %v1909 = vpop.f32.mrb[0].mxu0
    %v1910 = vadd.f32 0.0, %v1909
    %v1911 = vpop.f32.mrb[0].mxu0
    %1912 = vmatprep.mubr.f32.mxu0 0.0
    %1913 = vmatmul.mubr.f32.gmra.mrb[0].mxu0 %v1809
    %v1914 = vpop.f32.mrb[0].mxu0
    %v1915 = vadd.f32 0.0, %v1914
    %v1916 = vpop.f32.mrb[0].mxu0
    %1917 = vmatprep.mubr.f32.mxu0 0.0
    %1918 = vmatmul.mubr.f32.gmra.mrb[0].mxu0 %v1812
    %v1919 = vpop.f32.mrb[0].mxu0
    %v1920 = vadd.f32 0.0, %v1919
    %v1921 = vpop.f32.mrb[0].mxu0
    %1922 = vmatprep.mubr.f32.mxu0 0.0
    %1923 = vmatmul.mubr.f32.gmra.mrb[0].mxu0 %v1815
    %v1924 = vpop.f32.mrb[0].mxu0
    %v1925 = vadd.f32 0.0, %v1924
    %v1926 = vpop.f32.mrb[0].mxu0
    %1927 = vmatprep.mubr.f32.mxu0 0.0
    %1928 = vmatmul.mubr.f32.gmra.mrb[0].mxu0 %v1818
    %v1929 = vpop.f32.mrb[0].mxu0
    %v1930 = vadd.f32 0.0, %v1929
    %v1931 = vpop.f32.mrb[0].mxu0
    %1932 = vmatprep.mubr.f32.mxu0 0.0
    %1933 = vmatmul.mubr.f32.gmra.mrb[0].mxu0 %v1821
    %v1934 = vpop.f32.mrb[0].mxu0
    %v1935 = vadd.f32 0.0, %v1934
    %v1936 = vpop.f32.mrb[0].mxu0
    %1937 = vmatprep.mubr.f32.mxu0 0.0
    %1938 = vmatmul.mubr.f32.gmra.mrb[0].mxu0 %v1824
    %v1939 = vpop.f32.mrb[0].mxu0
    %v1940 = vadd.f32 0.0, %v1939
    %v1941 = vpop.f32.mrb[0].mxu0
    %1942 = vmatprep.mubr.f32.mxu0 0.0
    %1943 = vmatmul.mubr.f32.gmra.mrb[0].mxu0 %v1827
    %v1944 = vpop.f32.mrb[0].mxu0
    %v1945 = vadd.f32 0.0, %v1944
    %v1946 = vpop.f32.mrb[0].mxu0
    %1947 = vmatprep.mubr.f32.mxu0 0.0
    %1948 = vmatmul.mubr.f32.gmra.mrb[0].mxu0 %v1830
    %v1949 = vpop.f32.mrb[0].mxu0
    %v1950 = vadd.f32 0.0, %v1949
    %v1951 = vpop.f32.mrb[0].mxu0
    %1952 = vmatprep.mubr.f32.mxu0 0.0
    %1953 = vmatmul.mubr.f32.gmra.mrb[0].mxu0 %v1833
    %v1954 = vpop.f32.mrb[0].mxu0
    %v1955 = vadd.f32 0.0, %v1954
    %v1956 = vpop.f32.mrb[0].mxu0
    %1957 = vmatprep.mubr.f32.mxu0 0.0
    %1958 = vmatmul.mubr.f32.gmra.mrb[0].mxu0 %v1836
    %v1959 = vpop.f32.mrb[0].mxu0
    %v1960 = vadd.f32 0.0, %v1959
    %v1961 = vpop.f32.mrb[0].mxu0
    %1962 = vdwg.mxu0
    %v1964 = vsel %vm748, %v1194, 0
    %v1967 = vsel %vm748, %v1199, 0
    %v1970 = vsel %vm748, %v1204, 0
    %v1973 = vsel %vm748, %v1209, 0
    %v1976 = vsel %vm748, %v1214, 0
    %v1979 = vsel %vm748, %v1219, 0
    %v1982 = vsel %vm748, %v1224, 0
    %v1985 = vsel %vm748, %v1229, 0
    %v1988 = vsel %vm748, %v1234, 0
    %v1991 = vsel %vm748, %v1239, 0
    %v1994 = vsel %vm748, %v1244, 0
    %v1997 = vsel %vm748, %v1249, 0
    %1999 = vmatprep.subr.mxu0 0.0
    %2000 = vmatpush1.msra.mxu0 %v708
    %2001 = vmatprep.subr.mxu0 0.0
    %2002 = vmatpush1.msra.mxu0 0.0
    %2003 = vmatprep.subr.mxu0 0.0
    %2004 = vmatpush1.msra.mxu0 0.0
    %2005 = vmatprep.subr.mxu0 0.0
    %2006 = vmatpush1.msra.mxu0 0.0
    %2007 = vmatprep.subr.mxu0 0.0
    %2008 = vmatpush1.msra.mxu0 0.0
    %2009 = vmatprep.subr.mxu0 0.0
    %2010 = vmatpush1.msra.mxu0 0.0
    %2011 = vmatprep.subr.mxu0 0.0
    %2012 = vmatpush1.msra.mxu0 0.0
    %2013 = vmatprep.subr.mxu0 0.0
    %2014 = vmatpush1.msra.mxu0 0.0
    %2015 = vmatprep.subr.mxu0 0.0
    %2016 = vmatpush1.msra.mxu0 0.0
    %2017 = vmatprep.subr.mxu0 0.0
    %2018 = vmatpush1.msra.mxu0 0.0
    %2019 = vmatprep.subr.mxu0 0.0
    %2020 = vmatpush1.msra.mxu0 0.0
    %2021 = vmatprep.subr.mxu0 0.0
    %2022 = vmatpush1.msra.mxu0 0.0
    %2023 = vmatprep.subr.mxu0 0.0
    %2024 = vmatpush1.msra.mxu0 0.0
    %2025 = vmatprep.subr.mxu0 0.0
    %2026 = vmatpush1.msra.mxu0 0.0
    %2027 = vmatprep.subr.mxu0 0.0
    %2028 = vmatpush1.msra.mxu0 0.0
    %2029 = vmatprep.subr.mxu0 0.0
    %2030 = vmatpush1.msra.mxu0 0.0
    %2031 = vmatprep.subr.mxu0 0.0
    %2032 = vmatpush1.msra.mxu0 0.0
    %2033 = vmatprep.subr.mxu0 0.0
    %2034 = vmatpush1.msra.mxu0 0.0
    %2035 = vmatprep.subr.mxu0 0.0
    %2036 = vmatpush1.msra.mxu0 0.0
    %2037 = vmatprep.subr.mxu0 0.0
    %2038 = vmatpush1.msra.mxu0 0.0
    %2039 = vmatprep.subr.mxu0 0.0
    %2040 = vmatpush1.msra.mxu0 0.0
    %2041 = vmatprep.subr.mxu0 0.0
    %2042 = vmatpush1.msra.mxu0 0.0
    %2043 = vmatprep.subr.mxu0 0.0
    %2044 = vmatpush1.msra.mxu0 0.0
    %2045 = vmatprep.subr.mxu0 0.0
    %2046 = vmatpush1.msra.mxu0 0.0
    %2047 = vmatprep.subr.mxu0 0.0
    %2048 = vmatpush1.msra.mxu0 0.0
    %2049 = vmatprep.subr.mxu0 0.0
    %2050 = vmatpush1.msra.mxu0 0.0
    %2051 = vmatprep.subr.mxu0 0.0
    %2052 = vmatpush1.msra.mxu0 0.0
    %2053 = vmatprep.subr.mxu0 0.0
    %2054 = vmatpush1.msra.mxu0 0.0
    %2055 = vmatprep.subr.mxu0 0.0
    %2056 = vmatpush1.msra.mxu0 0.0
    %2057 = vmatprep.subr.mxu0 0.0
    %2058 = vmatpush1.msra.mxu0 0.0
    %2059 = vmatprep.subr.mxu0 0.0
    %2060 = vmatpush1.msra.mxu0 0.0
    %2061 = vmatprep.subr.mxu0 0.0
    %2062 = vmatpush1.msra.mxu0 0.0
    %2063 = vmatprep.mubr.f32.mxu0 0.0
    %2064 = vmatmul.mubr.f32.gmra.mrb[0].mxu0 %v1964
    %v2065 = vpop.f32.mrb[0].mxu0
    %v2066 = vadd.f32 %v1905, %v2065
    %v2067 = vpop.f32.mrb[0].mxu0
    %2068 = vmatprep.mubr.f32.mxu0 0.0
    %2069 = vmatmul.mubr.f32.gmra.mrb[0].mxu0 %v1967
    %v2070 = vpop.f32.mrb[0].mxu0
    %v2071 = vadd.f32 %v1910, %v2070
    %v2072 = vpop.f32.mrb[0].mxu0
    %2073 = vmatprep.mubr.f32.mxu0 0.0
    %2074 = vmatmul.mubr.f32.gmra.mrb[0].mxu0 %v1970
    %v2075 = vpop.f32.mrb[0].mxu0
    %v2076 = vadd.f32 %v1915, %v2075
    %v2077 = vpop.f32.mrb[0].mxu0
    %2078 = vmatprep.mubr.f32.mxu0 0.0
    %2079 = vmatmul.mubr.f32.gmra.mrb[0].mxu0 %v1973
    %v2080 = vpop.f32.mrb[0].mxu0
    %v2081 = vadd.f32 %v1920, %v2080
    %v2082 = vpop.f32.mrb[0].mxu0
    %2083 = vmatprep.mubr.f32.mxu0 0.0
    %2084 = vmatmul.mubr.f32.gmra.mrb[0].mxu0 %v1976
    %v2085 = vpop.f32.mrb[0].mxu0
    %v2086 = vadd.f32 %v1925, %v2085
    %v2087 = vpop.f32.mrb[0].mxu0
    %2088 = vmatprep.mubr.f32.mxu0 0.0
    %2089 = vmatmul.mubr.f32.gmra.mrb[0].mxu0 %v1979
    %v2090 = vpop.f32.mrb[0].mxu0
    %v2091 = vadd.f32 %v1930, %v2090
    %v2092 = vpop.f32.mrb[0].mxu0
    %2093 = vmatprep.mubr.f32.mxu0 0.0
    %2094 = vmatmul.mubr.f32.gmra.mrb[0].mxu0 %v1982
    %v2095 = vpop.f32.mrb[0].mxu0
    %v2096 = vadd.f32 %v1935, %v2095
    %v2097 = vpop.f32.mrb[0].mxu0
    %2098 = vmatprep.mubr.f32.mxu0 0.0
    %2099 = vmatmul.mubr.f32.gmra.mrb[0].mxu0 %v1985
    %v2100 = vpop.f32.mrb[0].mxu0
    %v2101 = vadd.f32 %v1940, %v2100
    %v2102 = vpop.f32.mrb[0].mxu0
    %2103 = vmatprep.mubr.f32.mxu0 0.0
    %2104 = vmatmul.mubr.f32.gmra.mrb[0].mxu0 %v1988
    %v2105 = vpop.f32.mrb[0].mxu0
    %v2106 = vadd.f32 %v1945, %v2105
    %v2107 = vpop.f32.mrb[0].mxu0
    %2108 = vmatprep.mubr.f32.mxu0 0.0
    %2109 = vmatmul.mubr.f32.gmra.mrb[0].mxu0 %v1991
    %v2110 = vpop.f32.mrb[0].mxu0
    %v2111 = vadd.f32 %v1950, %v2110
    %v2112 = vpop.f32.mrb[0].mxu0
    %2113 = vmatprep.mubr.f32.mxu0 0.0
    %2114 = vmatmul.mubr.f32.gmra.mrb[0].mxu0 %v1994
    %v2115 = vpop.f32.mrb[0].mxu0
    %v2116 = vadd.f32 %v1955, %v2115
    %v2117 = vpop.f32.mrb[0].mxu0
    %2118 = vmatprep.mubr.f32.mxu0 0.0
    %2119 = vmatmul.mubr.f32.gmra.mrb[0].mxu0 %v1997
    %v2120 = vpop.f32.mrb[0].mxu0
    %v2121 = vadd.f32 %v1960, %v2120
    %v2122 = vpop.f32.mrb[0].mxu0
    %2123 = vdwg.mxu0
    %2124 = vrot.lane.b32.xlu0 %v650, 112
    %v2125 = vpop.permute.xlu0 %2124
    %2126 = vrot.lane.b32.xlu0 %v655, 112
    %v2127 = vpop.permute.xlu0 %2126
    %2128 = vrot.lane.b32.xlu0 %v660, 112
    %v2129 = vpop.permute.xlu0 %2128
    %2130 = vrot.lane.b32.xlu0 %v665, 112
    %v2131 = vpop.permute.xlu0 %2130
    %2132 = vrot.lane.b32.xlu0 %v670, 112
    %v2133 = vpop.permute.xlu0 %2132
    %2134 = vrot.lane.b32.xlu0 %v675, 112
    %v2135 = vpop.permute.xlu0 %2134
    %2136 = vrot.lane.b32.xlu0 %v680, 112
    %v2137 = vpop.permute.xlu0 %2136
    %2138 = vrot.lane.b32.xlu0 %v685, 112
    %v2139 = vpop.permute.xlu0 %2138
    %2140 = vrot.lane.b32.xlu0 %v690, 112
    %v2141 = vpop.permute.xlu0 %2140
    %2142 = vrot.lane.b32.xlu0 %v695, 112
    %v2143 = vpop.permute.xlu0 %2142
    %2144 = vrot.lane.b32.xlu0 %v700, 112
    %v2145 = vpop.permute.xlu0 %2144
    %2146 = vrot.lane.b32.xlu0 %v705, 112
    %v2147 = vpop.permute.xlu0 %2146
    %2148 = vrot.lane.b32.xlu0 %v650, 80
    %v2149 = vpop.permute.xlu0 %2148
    %2150 = vrot.lane.b32.xlu0 %v655, 80
    %v2151 = vpop.permute.xlu0 %2150
    %2152 = vrot.lane.b32.xlu0 %v660, 80
    %v2153 = vpop.permute.xlu0 %2152
    %2154 = vrot.lane.b32.xlu0 %v665, 80
    %v2155 = vpop.permute.xlu0 %2154
    %2156 = vrot.lane.b32.xlu0 %v670, 80
    %v2157 = vpop.permute.xlu0 %2156
    %2158 = vrot.lane.b32.xlu0 %v675, 80
    %v2159 = vpop.permute.xlu0 %2158
    %2160 = vrot.lane.b32.xlu0 %v680, 80
    %v2161 = vpop.permute.xlu0 %2160
    %2162 = vrot.lane.b32.xlu0 %v685, 80
    %v2163 = vpop.permute.xlu0 %2162
    %2164 = vrot.lane.b32.xlu0 %v690, 80
    %v2165 = vpop.permute.xlu0 %2164
    %2166 = vrot.lane.b32.xlu0 %v695, 80
    %v2167 = vpop.permute.xlu0 %2166
    %2168 = vrot.lane.b32.xlu0 %v700, 80
    %v2169 = vpop.permute.xlu0 %2168
    %2170 = vrot.lane.b32.xlu0 %v705, 80
    %v2171 = vpop.permute.xlu0 %2170
    %v2172 = vsel %vm748, %v2125, 0
    %v2174 = vsel %vm748, %v2127, 0
    %v2176 = vsel %vm748, %v2129, 0
    %v2178 = vsel %vm748, %v2131, 0
    %v2180 = vsel %vm748, %v2133, 0
    %v2182 = vsel %vm748, %v2135, 0
    %v2184 = vsel %vm748, %v2137, 0
    %v2186 = vsel %vm748, %v2139, 0
    %v2188 = vsel %vm748, %v2141, 0
    %v2190 = vsel %vm748, %v2143, 0
    %v2192 = vsel %vm748, %v2145, 0
    %v2194 = vsel %vm748, %v2147, 0
    %v2196 = vsel %vm748, %v2149, 0
    %v2198 = vsel %vm748, %v2151, 0
    %v2200 = vsel %vm748, %v2153, 0
    %v2202 = vsel %vm748, %v2155, 0
    %v2204 = vsel %vm748, %v2157, 0
    %v2206 = vsel %vm748, %v2159, 0
    %v2208 = vsel %vm748, %v2161, 0
    %v2210 = vsel %vm748, %v2163, 0
    %v2212 = vsel %vm748, %v2165, 0
    %v2214 = vsel %vm748, %v2167, 0
    %v2216 = vsel %vm748, %v2169, 0
    %v2218 = vsel %vm748, %v2171, 0
    %2220 = vmatprep.subr.mxu0 0.0
    %2221 = vmatpush1.xpose.msra.mxu0 %v2196
    %2222 = vmatprep.subr.mxu0 0.0
    %2223 = vmatpush1.xpose.msra.mxu0 %v2198
    %2224 = vmatprep.subr.mxu0 0.0
    %2225 = vmatpush1.xpose.msra.mxu0 %v2200
    %2226 = vmatprep.subr.mxu0 0.0
    %2227 = vmatpush1.xpose.msra.mxu0 %v2202
    %2228 = vmatprep.subr.mxu0 0.0
    %2229 = vmatpush1.xpose.msra.mxu0 %v2204
    %2230 = vmatprep.subr.mxu0 0.0
    %2231 = vmatpush1.xpose.msra.mxu0 %v2206
    %2232 = vmatprep.subr.mxu0 0.0
    %2233 = vmatpush1.xpose.msra.mxu0 %v2208
    %2234 = vmatprep.subr.mxu0 0.0
    %2235 = vmatpush1.xpose.msra.mxu0 %v2210
    %2236 = vmatprep.subr.mxu0 0.0
    %2237 = vmatpush1.xpose.msra.mxu0 %v2212
    %2238 = vmatprep.subr.mxu0 0.0
    %2239 = vmatpush1.xpose.msra.mxu0 %v2214
    %2240 = vmatprep.subr.mxu0 0.0
    %2241 = vmatpush1.xpose.msra.mxu0 %v2216
    %2242 = vmatprep.subr.mxu0 0.0
    %2243 = vmatpush1.xpose.msra.mxu0 %v2218
    %2244 = vmatprep.subr.mxu0 0.0
    %2245 = vmatpush1.xpose.msra.mxu0 0.0
    %2246 = vmatprep.subr.mxu0 0.0
    %2247 = vmatpush1.xpose.msra.mxu0 0.0
    %2248 = vmatprep.subr.mxu0 0.0
    %2249 = vmatpush1.xpose.msra.mxu0 0.0
    %2250 = vmatprep.subr.mxu0 0.0
    %2251 = vmatpush1.xpose.msra.mxu0 0.0
    %2252 = vmatprep.subr.mxu0 0.0
    %2253 = vmatpush1.xpose.msra.mxu0 0.0
    %2254 = vmatprep.subr.mxu0 0.0
    %2255 = vmatpush1.xpose.msra.mxu0 0.0
    %2256 = vmatprep.subr.mxu0 0.0
    %2257 = vmatpush1.xpose.msra.mxu0 0.0
    %2258 = vmatprep.subr.mxu0 0.0
    %2259 = vmatpush1.xpose.msra.mxu0 0.0
    %2260 = vmatprep.subr.mxu0 0.0
    %2261 = vmatpush1.xpose.msra.mxu0 0.0
    %2262 = vmatprep.subr.mxu0 0.0
    %2263 = vmatpush1.xpose.msra.mxu0 0.0
    %2264 = vmatprep.subr.mxu0 0.0
    %2265 = vmatpush1.xpose.msra.mxu0 0.0
    %2266 = vmatprep.subr.mxu0 0.0
    %2267 = vmatpush1.xpose.msra.mxu0 0.0
    %2268 = vmatprep.subr.mxu0 0.0
    %2269 = vmatpush1.xpose.msra.mxu0 0.0
    %2270 = vmatprep.subr.mxu0 0.0
    %2271 = vmatpush1.xpose.msra.mxu0 0.0
    %2272 = vmatprep.subr.mxu0 0.0
    %2273 = vmatpush1.xpose.msra.mxu0 0.0
    %2274 = vmatprep.subr.mxu0 0.0
    %2275 = vmatpush1.xpose.msra.mxu0 0.0
    %2276 = vmatprep.subr.mxu0 0.0
    %2277 = vmatpush1.xpose.msra.mxu0 0.0
    %2278 = vmatprep.subr.mxu0 0.0
    %2279 = vmatpush1.xpose.msra.mxu0 0.0
    %2280 = vmatprep.subr.mxu0 0.0
    %2281 = vmatpush1.xpose.msra.mxu0 0.0
    %2282 = vmatprep.subr.mxu0 0.0
    %2283 = vmatpush1.xpose.msra.mxu0 0.0
    %2284 = vmatprep.mubr.f32.mxu0 0.0
    %2285 = vmatmul.mubr.f32.gmra.mrb[0].mxu0 %v2172
    %v2286 = vpop.f32.mrb[0].mxu0
    %v2287 = vadd.f32 %v84, %v2286
    %v2288 = vpop.f32.mrb[0].mxu0
    %2289 = vmatprep.mubr.f32.mxu0 0.0
    %2290 = vmatmul.mubr.f32.gmra.mrb[0].mxu0 %v2174
    %v2291 = vpop.f32.mrb[0].mxu0
    %v2292 = vadd.f32 %v85, %v2291
    %v2293 = vpop.f32.mrb[0].mxu0
    %2294 = vmatprep.mubr.f32.mxu0 0.0
    %2295 = vmatmul.mubr.f32.gmra.mrb[0].mxu0 %v2176
    %v2296 = vpop.f32.mrb[0].mxu0
    %v2297 = vadd.f32 %v86, %v2296
    %v2298 = vpop.f32.mrb[0].mxu0
    %2299 = vmatprep.mubr.f32.mxu0 0.0
    %2300 = vmatmul.mubr.f32.gmra.mrb[0].mxu0 %v2178
    %v2301 = vpop.f32.mrb[0].mxu0
    %v2302 = vadd.f32 %v87, %v2301
    %v2303 = vpop.f32.mrb[0].mxu0
    %2304 = vmatprep.mubr.f32.mxu0 0.0
    %2305 = vmatmul.mubr.f32.gmra.mrb[0].mxu0 %v2180
    %v2306 = vpop.f32.mrb[0].mxu0
    %v2307 = vadd.f32 %v88, %v2306
    %v2308 = vpop.f32.mrb[0].mxu0
    %2309 = vmatprep.mubr.f32.mxu0 0.0
    %2310 = vmatmul.mubr.f32.gmra.mrb[0].mxu0 %v2182
    %v2311 = vpop.f32.mrb[0].mxu0
    %v2312 = vadd.f32 %v89, %v2311
    %v2313 = vpop.f32.mrb[0].mxu0
    %2314 = vmatprep.mubr.f32.mxu0 0.0
    %2315 = vmatmul.mubr.f32.gmra.mrb[0].mxu0 %v2184
    %v2316 = vpop.f32.mrb[0].mxu0
    %v2317 = vadd.f32 %v90, %v2316
    %v2318 = vpop.f32.mrb[0].mxu0
    %2319 = vmatprep.mubr.f32.mxu0 0.0
    %2320 = vmatmul.mubr.f32.gmra.mrb[0].mxu0 %v2186
    %v2321 = vpop.f32.mrb[0].mxu0
    %v2322 = vadd.f32 %v91, %v2321
    %v2323 = vpop.f32.mrb[0].mxu0
    %2324 = vmatprep.mubr.f32.mxu0 0.0
    %2325 = vmatmul.mubr.f32.gmra.mrb[0].mxu0 %v2188
    %v2326 = vpop.f32.mrb[0].mxu0
    %v2327 = vadd.f32 %v92, %v2326
    %v2328 = vpop.f32.mrb[0].mxu0
    %2329 = vmatprep.mubr.f32.mxu0 0.0
    %2330 = vmatmul.mubr.f32.gmra.mrb[0].mxu0 %v2190
    %v2331 = vpop.f32.mrb[0].mxu0
    %v2332 = vadd.f32 %v93, %v2331
    %v2333 = vpop.f32.mrb[0].mxu0
    %2334 = vmatprep.mubr.f32.mxu0 0.0
    %2335 = vmatmul.mubr.f32.gmra.mrb[0].mxu0 %v2192
    %v2336 = vpop.f32.mrb[0].mxu0
    %v2337 = vadd.f32 %v94, %v2336
    %v2338 = vpop.f32.mrb[0].mxu0
    %2339 = vmatprep.mubr.f32.mxu0 0.0
    %2340 = vmatmul.mubr.f32.gmra.mrb[0].mxu0 %v2194
    %v2341 = vpop.f32.mrb[0].mxu0
    %v2342 = vadd.f32 %v95, %v2341
    %v2343 = vpop.f32.mrb[0].mxu0
    %2344 = vdwg.mxu0
    %v2345 = vsel %vm922, %v2287, -inf
    %2346 = vmax.xlane.f32.xlu0 %v2345
    %v2347 = vpop.xlane.xlu0 %2346
    %v2348 = vsel %vm922, %v2292, -inf
    %2349 = vmax.xlane.f32.xlu0 %v2348
    %v2350 = vpop.xlane.xlu0 %2349
    %v2351 = vsel %vm922, %v2297, -inf
    %2352 = vmax.xlane.f32.xlu0 %v2351
    %v2353 = vpop.xlane.xlu0 %2352
    %v2354 = vsel %vm922, %v2302, -inf
    %2355 = vmax.xlane.f32.xlu0 %v2354
    %v2356 = vpop.xlane.xlu0 %2355
    %v2357 = vsel %vm922, %v2307, -inf
    %2358 = vmax.xlane.f32.xlu0 %v2357
    %v2359 = vpop.xlane.xlu0 %2358
    %v2360 = vsel %vm922, %v2312, -inf
    %2361 = vmax.xlane.f32.xlu0 %v2360
    %v2362 = vpop.xlane.xlu0 %2361
    %v2363 = vsel %vm922, %v2317, -inf
    %2364 = vmax.xlane.f32.xlu0 %v2363
    %v2365 = vpop.xlane.xlu0 %2364
    %v2366 = vsel %vm922, %v2322, -inf
    %2367 = vmax.xlane.f32.xlu0 %v2366
    %v2368 = vpop.xlane.xlu0 %2367
    %v2369 = vsel %vm922, %v2327, -inf
    %2370 = vmax.xlane.f32.xlu0 %v2369
    %v2371 = vpop.xlane.xlu0 %2370
    %v2372 = vsel %vm922, %v2332, -inf
    %2373 = vmax.xlane.f32.xlu0 %v2372
    %v2374 = vpop.xlane.xlu0 %2373
    %v2375 = vsel %vm922, %v2337, -inf
    %2376 = vmax.xlane.f32.xlu0 %v2375
    %v2377 = vpop.xlane.xlu0 %2376
    %v2378 = vsel %vm922, %v2342, -inf
    %2379 = vmax.xlane.f32.xlu0 %v2378
    %v2380 = vpop.xlane.xlu0 %2379
    %v2381 = vsub.f32 %v2287, %v2347
    %v2382 = vsub.f32 %v2292, %v2350
    %v2383 = vsub.f32 %v2297, %v2353
    %v2384 = vsub.f32 %v2302, %v2356
    %v2385 = vsub.f32 %v2307, %v2359
    %v2386 = vsub.f32 %v2312, %v2362
    %v2387 = vsub.f32 %v2317, %v2365
    %v2388 = vsub.f32 %v2322, %v2368
    %v2389 = vsub.f32 %v2327, %v2371
    %v2390 = vsub.f32 %v2332, %v2374
    %v2391 = vsub.f32 %v2337, %v2377
    %v2392 = vsub.f32 %v2342, %v2380
    %v2393 = vmul.f32 %v2381, 1.442695
    %v2394 = vpow.pop %v2393
    %v2395 = vmul.f32 %v2382, 1.442695
    %v2396 = vpow.pop %v2395
    %v2397 = vmul.f32 %v2383, 1.442695
    %v2398 = vpow.pop %v2397
    %v2399 = vmul.f32 %v2384, 1.442695
    %v2400 = vpow.pop %v2399
    %v2401 = vmul.f32 %v2385, 1.442695
    %v2402 = vpow.pop %v2401
    %v2403 = vmul.f32 %v2386, 1.442695
    %v2404 = vpow.pop %v2403
    %v2405 = vmul.f32 %v2387, 1.442695
    %v2406 = vpow.pop %v2405
    %v2407 = vmul.f32 %v2388, 1.442695
    %v2408 = vpow.pop %v2407
    %v2409 = vmul.f32 %v2389, 1.442695
    %v2410 = vpow.pop %v2409
    %v2411 = vmul.f32 %v2390, 1.442695
    %v2412 = vpow.pop %v2411
    %v2413 = vmul.f32 %v2391, 1.442695
    %v2414 = vpow.pop %v2413
    %v2415 = vmul.f32 %v2392, 1.442695
    %v2416 = vpow.pop %v2415
    %v2417 = vsel %vm922, %v2394, 0.0
    %2418 = vadd.xlane.f32.xlu0 %v2417
    %v2419 = vpop.xlane.xlu0 %2418
    %v2420 = vsel %vm922, %v2396, 0.0
    %2421 = vadd.xlane.f32.xlu0 %v2420
    %v2422 = vpop.xlane.xlu0 %2421
    %v2423 = vsel %vm922, %v2398, 0.0
    %2424 = vadd.xlane.f32.xlu0 %v2423
    %v2425 = vpop.xlane.xlu0 %2424
    %v2426 = vsel %vm922, %v2400, 0.0
    %2427 = vadd.xlane.f32.xlu0 %v2426
    %v2428 = vpop.xlane.xlu0 %2427
    %v2429 = vsel %vm922, %v2402, 0.0
    %2430 = vadd.xlane.f32.xlu0 %v2429
    %v2431 = vpop.xlane.xlu0 %2430
    %v2432 = vsel %vm922, %v2404, 0.0
    %2433 = vadd.xlane.f32.xlu0 %v2432
    %v2434 = vpop.xlane.xlu0 %2433
    %v2435 = vsel %vm922, %v2406, 0.0
    %2436 = vadd.xlane.f32.xlu0 %v2435
    %v2437 = vpop.xlane.xlu0 %2436
    %v2438 = vsel %vm922, %v2408, 0.0
    %2439 = vadd.xlane.f32.xlu0 %v2438
    %v2440 = vpop.xlane.xlu0 %2439
    %v2441 = vsel %vm922, %v2410, 0.0
    %2442 = vadd.xlane.f32.xlu0 %v2441
    %v2443 = vpop.xlane.xlu0 %2442
    %v2444 = vsel %vm922, %v2412, 0.0
    %2445 = vadd.xlane.f32.xlu0 %v2444
    %v2446 = vpop.xlane.xlu0 %2445
    %v2447 = vsel %vm922, %v2414, 0.0
    %2448 = vadd.xlane.f32.xlu0 %v2447
    %v2449 = vpop.xlane.xlu0 %2448
    %v2450 = vsel %vm922, %v2416, 0.0
    %2451 = vadd.xlane.f32.xlu0 %v2450
    %v2452 = vpop.xlane.xlu0 %2451
    %v2453 = vrcp.pop %v2419
    %v2454 = vrcp.pop %v2422
    %v2455 = vrcp.pop %v2425
    %v2456 = vrcp.pop %v2428
    %v2457 = vrcp.pop %v2431
    %v2458 = vrcp.pop %v2434
    %v2459 = vrcp.pop %v2437
    %v2460 = vrcp.pop %v2440
    %v2461 = vrcp.pop %v2443
    %v2462 = vrcp.pop %v2446
    %v2463 = vrcp.pop %v2449
    %v2464 = vrcp.pop %v2452
    %v2465 = vmul.f32 %v2394, %v2453
    %v2466 = vmul.f32 %v2396, %v2454
    %v2467 = vmul.f32 %v2398, %v2455
    %v2468 = vmul.f32 %v2400, %v2456
    %v2469 = vmul.f32 %v2402, %v2457
    %v2470 = vmul.f32 %v2404, %v2458
    %v2471 = vmul.f32 %v2406, %v2459
    %v2472 = vmul.f32 %v2408, %v2460
    %v2473 = vmul.f32 %v2410, %v2461
    %v2474 = vmul.f32 %v2412, %v2462
    %v2475 = vmul.f32 %v2414, %v2463
    %v2476 = vmul.f32 %v2416, %v2464
    %2477 = vrot.lane.b32.xlu0 %v650, 48
    %v2478 = vpop.permute.xlu0 %2477
    %2479 = vrot.lane.b32.xlu0 %v655, 48
    %v2480 = vpop.permute.xlu0 %2479
    %2481 = vrot.lane.b32.xlu0 %v660, 48
    %v2482 = vpop.permute.xlu0 %2481
    %2483 = vrot.lane.b32.xlu0 %v665, 48
    %v2484 = vpop.permute.xlu0 %2483
    %2485 = vrot.lane.b32.xlu0 %v670, 48
    %v2486 = vpop.permute.xlu0 %2485
    %2487 = vrot.lane.b32.xlu0 %v675, 48
    %v2488 = vpop.permute.xlu0 %2487
    %2489 = vrot.lane.b32.xlu0 %v680, 48
    %v2490 = vpop.permute.xlu0 %2489
    %2491 = vrot.lane.b32.xlu0 %v685, 48
    %v2492 = vpop.permute.xlu0 %2491
    %2493 = vrot.lane.b32.xlu0 %v690, 48
    %v2494 = vpop.permute.xlu0 %2493
    %2495 = vrot.lane.b32.xlu0 %v695, 48
    %v2496 = vpop.permute.xlu0 %2495
    %2497 = vrot.lane.b32.xlu0 %v700, 48
    %v2498 = vpop.permute.xlu0 %2497
    %2499 = vrot.lane.b32.xlu0 %v705, 48
    %v2500 = vpop.permute.xlu0 %2499
    %v2514 = vsel %vm922, %v2465, 0
    %v2517 = vsel %vm922, %v2466, 0
    %v2520 = vsel %vm922, %v2467, 0
    %v2523 = vsel %vm922, %v2468, 0
    %v2526 = vsel %vm922, %v2469, 0
    %v2529 = vsel %vm922, %v2470, 0
    %v2532 = vsel %vm922, %v2471, 0
    %v2535 = vsel %vm922, %v2472, 0
    %v2538 = vsel %vm922, %v2473, 0
    %v2541 = vsel %vm922, %v2474, 0
    %v2544 = vsel %vm922, %v2475, 0
    %v2547 = vsel %vm922, %v2476, 0
    %2549 = vmatprep.subr.mxu0 0.0
    %2550 = vmatpush1.msra.mxu0 %v2478
    %2551 = vmatprep.subr.mxu0 0.0
    %2552 = vmatpush1.msra.mxu0 %v2480
    %2553 = vmatprep.subr.mxu0 0.0
    %2554 = vmatpush1.msra.mxu0 %v2482
    %2555 = vmatprep.subr.mxu0 0.0
    %2556 = vmatpush1.msra.mxu0 %v2484
    %2557 = vmatprep.subr.mxu0 0.0
    %2558 = vmatpush1.msra.mxu0 %v2486
    %2559 = vmatprep.subr.mxu0 0.0
    %2560 = vmatpush1.msra.mxu0 %v2488
    %2561 = vmatprep.subr.mxu0 0.0
    %2562 = vmatpush1.msra.mxu0 %v2490
    %2563 = vmatprep.subr.mxu0 0.0
    %2564 = vmatpush1.msra.mxu0 %v2492
    %2565 = vmatprep.subr.mxu0 0.0
    %2566 = vmatpush1.msra.mxu0 %v2494
    %2567 = vmatprep.subr.mxu0 0.0
    %2568 = vmatpush1.msra.mxu0 %v2496
    %2569 = vmatprep.subr.mxu0 0.0
    %2570 = vmatpush1.msra.mxu0 %v2498
    %2571 = vmatprep.subr.mxu0 0.0
    %2572 = vmatpush1.msra.mxu0 %v2500
    %2573 = vmatprep.subr.mxu0 0.0
    %2574 = vmatpush1.msra.mxu0 0.0
    %2575 = vmatprep.subr.mxu0 0.0
    %2576 = vmatpush1.msra.mxu0 0.0
    %2577 = vmatprep.subr.mxu0 0.0
    %2578 = vmatpush1.msra.mxu0 0.0
    %2579 = vmatprep.subr.mxu0 0.0
    %2580 = vmatpush1.msra.mxu0 0.0
    %2581 = vmatprep.subr.mxu0 0.0
    %2582 = vmatpush1.msra.mxu0 0.0
    %2583 = vmatprep.subr.mxu0 0.0
    %2584 = vmatpush1.msra.mxu0 0.0
    %2585 = vmatprep.subr.mxu0 0.0
    %2586 = vmatpush1.msra.mxu0 0.0
    %2587 = vmatprep.subr.mxu0 0.0
    %2588 = vmatpush1.msra.mxu0 0.0
    %2589 = vmatprep.subr.mxu0 0.0
    %2590 = vmatpush1.msra.mxu0 0.0
    %2591 = vmatprep.subr.mxu0 0.0
    %2592 = vmatpush1.msra.mxu0 0.0
    %2593 = vmatprep.subr.mxu0 0.0
    %2594 = vmatpush1.msra.mxu0 0.0
    %2595 = vmatprep.subr.mxu0 0.0
    %2596 = vmatpush1.msra.mxu0 0.0
    %2597 = vmatprep.subr.mxu0 0.0
    %2598 = vmatpush1.msra.mxu0 0.0
    %2599 = vmatprep.subr.mxu0 0.0
    %2600 = vmatpush1.msra.mxu0 0.0
    %2601 = vmatprep.subr.mxu0 0.0
    %2602 = vmatpush1.msra.mxu0 0.0
    %2603 = vmatprep.subr.mxu0 0.0
    %2604 = vmatpush1.msra.mxu0 0.0
    %2605 = vmatprep.subr.mxu0 0.0
    %2606 = vmatpush1.msra.mxu0 0.0
    %2607 = vmatprep.subr.mxu0 0.0
    %2608 = vmatpush1.msra.mxu0 0.0
    %2609 = vmatprep.subr.mxu0 0.0
    %2610 = vmatpush1.msra.mxu0 0.0
    %2611 = vmatprep.subr.mxu0 0.0
    %2612 = vmatpush1.msra.mxu0 0.0
    %2613 = vmatprep.mubr.f32.mxu0 0.0
    %2614 = vmatmul.mubr.f32.gmra.mrb[0].mxu0 %v2514
    %v2615 = vpop.f32.mrb[0].mxu0
    %v2616 = vadd.f32 0.0, %v2615
    %v2617 = vpop.f32.mrb[0].mxu0
    %2618 = vmatprep.mubr.f32.mxu0 0.0
    %2619 = vmatmul.mubr.f32.gmra.mrb[0].mxu0 %v2517
    %v2620 = vpop.f32.mrb[0].mxu0
    %v2621 = vadd.f32 0.0, %v2620
    %v2622 = vpop.f32.mrb[0].mxu0
    %2623 = vmatprep.mubr.f32.mxu0 0.0
    %2624 = vmatmul.mubr.f32.gmra.mrb[0].mxu0 %v2520
    %v2625 = vpop.f32.mrb[0].mxu0
    %v2626 = vadd.f32 0.0, %v2625
    %v2627 = vpop.f32.mrb[0].mxu0
    %2628 = vmatprep.mubr.f32.mxu0 0.0
    %2629 = vmatmul.mubr.f32.gmra.mrb[0].mxu0 %v2523
    %v2630 = vpop.f32.mrb[0].mxu0
    %v2631 = vadd.f32 0.0, %v2630
    %v2632 = vpop.f32.mrb[0].mxu0
    %2633 = vmatprep.mubr.f32.mxu0 0.0
    %2634 = vmatmul.mubr.f32.gmra.mrb[0].mxu0 %v2526
    %v2635 = vpop.f32.mrb[0].mxu0
    %v2636 = vadd.f32 0.0, %v2635
    %v2637 = vpop.f32.mrb[0].mxu0
    %2638 = vmatprep.mubr.f32.mxu0 0.0
    %2639 = vmatmul.mubr.f32.gmra.mrb[0].mxu0 %v2529
    %v2640 = vpop.f32.mrb[0].mxu0
    %v2641 = vadd.f32 0.0, %v2640
    %v2642 = vpop.f32.mrb[0].mxu0
    %2643 = vmatprep.mubr.f32.mxu0 0.0
    %2644 = vmatmul.mubr.f32.gmra.mrb[0].mxu0 %v2532
    %v2645 = vpop.f32.mrb[0].mxu0
    %v2646 = vadd.f32 0.0, %v2645
    %v2647 = vpop.f32.mrb[0].mxu0
    %2648 = vmatprep.mubr.f32.mxu0 0.0
    %2649 = vmatmul.mubr.f32.gmra.mrb[0].mxu0 %v2535
    %v2650 = vpop.f32.mrb[0].mxu0
    %v2651 = vadd.f32 0.0, %v2650
    %v2652 = vpop.f32.mrb[0].mxu0
    %2653 = vmatprep.mubr.f32.mxu0 0.0
    %2654 = vmatmul.mubr.f32.gmra.mrb[0].mxu0 %v2538
    %v2655 = vpop.f32.mrb[0].mxu0
    %v2656 = vadd.f32 0.0, %v2655
    %v2657 = vpop.f32.mrb[0].mxu0
    %2658 = vmatprep.mubr.f32.mxu0 0.0
    %2659 = vmatmul.mubr.f32.gmra.mrb[0].mxu0 %v2541
    %v2660 = vpop.f32.mrb[0].mxu0
    %v2661 = vadd.f32 0.0, %v2660
    %v2662 = vpop.f32.mrb[0].mxu0
    %2663 = vmatprep.mubr.f32.mxu0 0.0
    %2664 = vmatmul.mubr.f32.gmra.mrb[0].mxu0 %v2544
    %v2665 = vpop.f32.mrb[0].mxu0
    %v2666 = vadd.f32 0.0, %v2665
    %v2667 = vpop.f32.mrb[0].mxu0
    %2668 = vmatprep.mubr.f32.mxu0 0.0
    %2669 = vmatmul.mubr.f32.gmra.mrb[0].mxu0 %v2547
    %v2670 = vpop.f32.mrb[0].mxu0
    %v2671 = vadd.f32 0.0, %v2670
    %v2672 = vpop.f32.mrb[0].mxu0
    %2673 = vdwg.mxu0
    %v2675 = vsel %vm748, %v2616, 0
    %v2678 = vsel %vm748, %v2621, 0
    %v2681 = vsel %vm748, %v2626, 0
    %v2684 = vsel %vm748, %v2631, 0
    %v2687 = vsel %vm748, %v2636, 0
    %v2690 = vsel %vm748, %v2641, 0
    %v2693 = vsel %vm748, %v2646, 0
    %v2696 = vsel %vm748, %v2651, 0
    %v2699 = vsel %vm748, %v2656, 0
    %v2702 = vsel %vm748, %v2661, 0
    %v2705 = vsel %vm748, %v2666, 0
    %v2708 = vsel %vm748, %v2671, 0
    %2710 = vmatprep.subr.mxu0 0.0
    %2711 = vmatpush1.msra.mxu0 %v710
    %2712 = vmatprep.subr.mxu0 0.0
    %2713 = vmatpush1.msra.mxu0 0.0
    %2714 = vmatprep.subr.mxu0 0.0
    %2715 = vmatpush1.msra.mxu0 0.0
    %2716 = vmatprep.subr.mxu0 0.0
    %2717 = vmatpush1.msra.mxu0 0.0
    %2718 = vmatprep.subr.mxu0 0.0
    %2719 = vmatpush1.msra.mxu0 0.0
    %2720 = vmatprep.subr.mxu0 0.0
    %2721 = vmatpush1.msra.mxu0 0.0
    %2722 = vmatprep.subr.mxu0 0.0
    %2723 = vmatpush1.msra.mxu0 0.0
    %2724 = vmatprep.subr.mxu0 0.0
    %2725 = vmatpush1.msra.mxu0 0.0
    %2726 = vmatprep.subr.mxu0 0.0
    %2727 = vmatpush1.msra.mxu0 0.0
    %2728 = vmatprep.subr.mxu0 0.0
    %2729 = vmatpush1.msra.mxu0 0.0
    %2730 = vmatprep.subr.mxu0 0.0
    %2731 = vmatpush1.msra.mxu0 0.0
    %2732 = vmatprep.subr.mxu0 0.0
    %2733 = vmatpush1.msra.mxu0 0.0
    %2734 = vmatprep.subr.mxu0 0.0
    %2735 = vmatpush1.msra.mxu0 0.0
    %2736 = vmatprep.subr.mxu0 0.0
    %2737 = vmatpush1.msra.mxu0 0.0
    %2738 = vmatprep.subr.mxu0 0.0
    %2739 = vmatpush1.msra.mxu0 0.0
    %2740 = vmatprep.subr.mxu0 0.0
    %2741 = vmatpush1.msra.mxu0 0.0
    %2742 = vmatprep.subr.mxu0 0.0
    %2743 = vmatpush1.msra.mxu0 0.0
    %2744 = vmatprep.subr.mxu0 0.0
    %2745 = vmatpush1.msra.mxu0 0.0
    %2746 = vmatprep.subr.mxu0 0.0
    %2747 = vmatpush1.msra.mxu0 0.0
    %2748 = vmatprep.subr.mxu0 0.0
    %2749 = vmatpush1.msra.mxu0 0.0
    %2750 = vmatprep.subr.mxu0 0.0
    %2751 = vmatpush1.msra.mxu0 0.0
    %2752 = vmatprep.subr.mxu0 0.0
    %2753 = vmatpush1.msra.mxu0 0.0
    %2754 = vmatprep.subr.mxu0 0.0
    %2755 = vmatpush1.msra.mxu0 0.0
    %2756 = vmatprep.subr.mxu0 0.0
    %2757 = vmatpush1.msra.mxu0 0.0
    %2758 = vmatprep.subr.mxu0 0.0
    %2759 = vmatpush1.msra.mxu0 0.0
    %2760 = vmatprep.subr.mxu0 0.0
    %2761 = vmatpush1.msra.mxu0 0.0
    %2762 = vmatprep.subr.mxu0 0.0
    %2763 = vmatpush1.msra.mxu0 0.0
    %2764 = vmatprep.subr.mxu0 0.0
    %2765 = vmatpush1.msra.mxu0 0.0
    %2766 = vmatprep.subr.mxu0 0.0
    %2767 = vmatpush1.msra.mxu0 0.0
    %2768 = vmatprep.subr.mxu0 0.0
    %2769 = vmatpush1.msra.mxu0 0.0
    %2770 = vmatprep.subr.mxu0 0.0
    %2771 = vmatpush1.msra.mxu0 0.0
    %2772 = vmatprep.subr.mxu0 0.0
    %2773 = vmatpush1.msra.mxu0 0.0
    %2774 = vmatprep.mubr.f32.mxu0 0.0
    %2775 = vmatmul.mubr.f32.gmra.mrb[0].mxu0 %v2675
    %v2776 = vpop.f32.mrb[0].mxu0
    %v2777 = vadd.f32 0.0, %v2776
    %v2778 = vpop.f32.mrb[0].mxu0
    %2779 = vmatprep.mubr.f32.mxu0 0.0
    %2780 = vmatmul.mubr.f32.gmra.mrb[0].mxu0 %v2678
    %v2781 = vpop.f32.mrb[0].mxu0
    %v2782 = vadd.f32 0.0, %v2781
    %v2783 = vpop.f32.mrb[0].mxu0
    %2784 = vmatprep.mubr.f32.mxu0 0.0
    %2785 = vmatmul.mubr.f32.gmra.mrb[0].mxu0 %v2681
    %v2786 = vpop.f32.mrb[0].mxu0
    %v2787 = vadd.f32 0.0, %v2786
    %v2788 = vpop.f32.mrb[0].mxu0
    %2789 = vmatprep.mubr.f32.mxu0 0.0
    %2790 = vmatmul.mubr.f32.gmra.mrb[0].mxu0 %v2684
    %v2791 = vpop.f32.mrb[0].mxu0
    %v2792 = vadd.f32 0.0, %v2791
    %v2793 = vpop.f32.mrb[0].mxu0
    %2794 = vmatprep.mubr.f32.mxu0 0.0
    %2795 = vmatmul.mubr.f32.gmra.mrb[0].mxu0 %v2687
    %v2796 = vpop.f32.mrb[0].mxu0
    %v2797 = vadd.f32 0.0, %v2796
    %v2798 = vpop.f32.mrb[0].mxu0
    %2799 = vmatprep.mubr.f32.mxu0 0.0
    %2800 = vmatmul.mubr.f32.gmra.mrb[0].mxu0 %v2690
    %v2801 = vpop.f32.mrb[0].mxu0
    %v2802 = vadd.f32 0.0, %v2801
    %v2803 = vpop.f32.mrb[0].mxu0
    %2804 = vmatprep.mubr.f32.mxu0 0.0
    %2805 = vmatmul.mubr.f32.gmra.mrb[0].mxu0 %v2693
    %v2806 = vpop.f32.mrb[0].mxu0
    %v2807 = vadd.f32 0.0, %v2806
    %v2808 = vpop.f32.mrb[0].mxu0
    %2809 = vmatprep.mubr.f32.mxu0 0.0
    %2810 = vmatmul.mubr.f32.gmra.mrb[0].mxu0 %v2696
    %v2811 = vpop.f32.mrb[0].mxu0
    %v2812 = vadd.f32 0.0, %v2811
    %v2813 = vpop.f32.mrb[0].mxu0
    %2814 = vmatprep.mubr.f32.mxu0 0.0
    %2815 = vmatmul.mubr.f32.gmra.mrb[0].mxu0 %v2699
    %v2816 = vpop.f32.mrb[0].mxu0
    %v2817 = vadd.f32 0.0, %v2816
    %v2818 = vpop.f32.mrb[0].mxu0
    %2819 = vmatprep.mubr.f32.mxu0 0.0
    %2820 = vmatmul.mubr.f32.gmra.mrb[0].mxu0 %v2702
    %v2821 = vpop.f32.mrb[0].mxu0
    %v2822 = vadd.f32 0.0, %v2821
    %v2823 = vpop.f32.mrb[0].mxu0
    %2824 = vmatprep.mubr.f32.mxu0 0.0
    %2825 = vmatmul.mubr.f32.gmra.mrb[0].mxu0 %v2705
    %v2826 = vpop.f32.mrb[0].mxu0
    %v2827 = vadd.f32 0.0, %v2826
    %v2828 = vpop.f32.mrb[0].mxu0
    %2829 = vmatprep.mubr.f32.mxu0 0.0
    %2830 = vmatmul.mubr.f32.gmra.mrb[0].mxu0 %v2708
    %v2831 = vpop.f32.mrb[0].mxu0
    %v2832 = vadd.f32 0.0, %v2831
    %v2833 = vpop.f32.mrb[0].mxu0
    %2834 = vdwg.mxu0
    %v2835 = vadd.f32 %v2066, %v2777
    %v2836 = vadd.f32 %v2071, %v2782
    %v2837 = vadd.f32 %v2076, %v2787
    %v2838 = vadd.f32 %v2081, %v2792
    %v2839 = vadd.f32 %v2086, %v2797
    %v2840 = vadd.f32 %v2091, %v2802
    %v2841 = vadd.f32 %v2096, %v2807
    %v2842 = vadd.f32 %v2101, %v2812
    %v2843 = vadd.f32 %v2106, %v2817
    %v2844 = vadd.f32 %v2111, %v2822
    %v2845 = vadd.f32 %v2116, %v2827
    %v2846 = vadd.f32 %v2121, %v2832
    %2847 = vrot.lane.b32.xlu0 %v650, 104
    %v2848 = vpop.permute.xlu0 %2847
    %2849 = vrot.lane.b32.xlu0 %v655, 104
    %v2850 = vpop.permute.xlu0 %2849
    %2851 = vrot.lane.b32.xlu0 %v660, 104
    %v2852 = vpop.permute.xlu0 %2851
    %2853 = vrot.lane.b32.xlu0 %v665, 104
    %v2854 = vpop.permute.xlu0 %2853
    %2855 = vrot.lane.b32.xlu0 %v670, 104
    %v2856 = vpop.permute.xlu0 %2855
    %2857 = vrot.lane.b32.xlu0 %v675, 104
    %v2858 = vpop.permute.xlu0 %2857
    %2859 = vrot.lane.b32.xlu0 %v680, 104
    %v2860 = vpop.permute.xlu0 %2859
    %2861 = vrot.lane.b32.xlu0 %v685, 104
    %v2862 = vpop.permute.xlu0 %2861
    %2863 = vrot.lane.b32.xlu0 %v690, 104
    %v2864 = vpop.permute.xlu0 %2863
    %2865 = vrot.lane.b32.xlu0 %v695, 104
    %v2866 = vpop.permute.xlu0 %2865
    %2867 = vrot.lane.b32.xlu0 %v700, 104
    %v2868 = vpop.permute.xlu0 %2867
    %2869 = vrot.lane.b32.xlu0 %v705, 104
    %v2870 = vpop.permute.xlu0 %2869
    %2871 = vrot.lane.b32.xlu0 %v650, 72
    %v2872 = vpop.permute.xlu0 %2871
    %2873 = vrot.lane.b32.xlu0 %v655, 72
    %v2874 = vpop.permute.xlu0 %2873
    %2875 = vrot.lane.b32.xlu0 %v660, 72
    %v2876 = vpop.permute.xlu0 %2875
    %2877 = vrot.lane.b32.xlu0 %v665, 72
    %v2878 = vpop.permute.xlu0 %2877
    %2879 = vrot.lane.b32.xlu0 %v670, 72
    %v2880 = vpop.permute.xlu0 %2879
    %2881 = vrot.lane.b32.xlu0 %v675, 72
    %v2882 = vpop.permute.xlu0 %2881
    %2883 = vrot.lane.b32.xlu0 %v680, 72
    %v2884 = vpop.permute.xlu0 %2883
    %2885 = vrot.lane.b32.xlu0 %v685, 72
    %v2886 = vpop.permute.xlu0 %2885
    %2887 = vrot.lane.b32.xlu0 %v690, 72
    %v2888 = vpop.permute.xlu0 %2887
    %2889 = vrot.lane.b32.xlu0 %v695, 72
    %v2890 = vpop.permute.xlu0 %2889
    %2891 = vrot.lane.b32.xlu0 %v700, 72
    %v2892 = vpop.permute.xlu0 %2891
    %2893 = vrot.lane.b32.xlu0 %v705, 72
    %v2894 = vpop.permute.xlu0 %2893
    %v2895 = vsel %vm748, %v2848, 0
    %v2897 = vsel %vm748, %v2850, 0
    %v2899 = vsel %vm748, %v2852, 0
    %v2901 = vsel %vm748, %v2854, 0
    %v2903 = vsel %vm748, %v2856, 0
    %v2905 = vsel %vm748, %v2858, 0
    %v2907 = vsel %vm748, %v2860, 0
    %v2909 = vsel %vm748, %v2862, 0
    %v2911 = vsel %vm748, %v2864, 0
    %v2913 = vsel %vm748, %v2866, 0
    %v2915 = vsel %vm748, %v2868, 0
    %v2917 = vsel %vm748, %v2870, 0
    %v2919 = vsel %vm748, %v2872, 0
    %v2921 = vsel %vm748, %v2874, 0
    %v2923 = vsel %vm748, %v2876, 0
    %v2925 = vsel %vm748, %v2878, 0
    %v2927 = vsel %vm748, %v2880, 0
    %v2929 = vsel %vm748, %v2882, 0
    %v2931 = vsel %vm748, %v2884, 0
    %v2933 = vsel %vm748, %v2886, 0
    %v2935 = vsel %vm748, %v2888, 0
    %v2937 = vsel %vm748, %v2890, 0
    %v2939 = vsel %vm748, %v2892, 0
    %v2941 = vsel %vm748, %v2894, 0
    %2943 = vmatprep.subr.mxu0 0.0
    %2944 = vmatpush1.xpose.msra.mxu0 %v2919
    %2945 = vmatprep.subr.mxu0 0.0
    %2946 = vmatpush1.xpose.msra.mxu0 %v2921
    %2947 = vmatprep.subr.mxu0 0.0
    %2948 = vmatpush1.xpose.msra.mxu0 %v2923
    %2949 = vmatprep.subr.mxu0 0.0
    %2950 = vmatpush1.xpose.msra.mxu0 %v2925
    %2951 = vmatprep.subr.mxu0 0.0
    %2952 = vmatpush1.xpose.msra.mxu0 %v2927
    %2953 = vmatprep.subr.mxu0 0.0
    %2954 = vmatpush1.xpose.msra.mxu0 %v2929
    %2955 = vmatprep.subr.mxu0 0.0
    %2956 = vmatpush1.xpose.msra.mxu0 %v2931
    %2957 = vmatprep.subr.mxu0 0.0
    %2958 = vmatpush1.xpose.msra.mxu0 %v2933
    %2959 = vmatprep.subr.mxu0 0.0
    %2960 = vmatpush1.xpose.msra.mxu0 %v2935
    %2961 = vmatprep.subr.mxu0 0.0
    %2962 = vmatpush1.xpose.msra.mxu0 %v2937
    %2963 = vmatprep.subr.mxu0 0.0
    %2964 = vmatpush1.xpose.msra.mxu0 %v2939
    %2965 = vmatprep.subr.mxu0 0.0
    %2966 = vmatpush1.xpose.msra.mxu0 %v2941
    %2967 = vmatprep.subr.mxu0 0.0
    %2968 = vmatpush1.xpose.msra.mxu0 0.0
    %2969 = vmatprep.subr.mxu0 0.0
    %2970 = vmatpush1.xpose.msra.mxu0 0.0
    %2971 = vmatprep.subr.mxu0 0.0
    %2972 = vmatpush1.xpose.msra.mxu0 0.0
    %2973 = vmatprep.subr.mxu0 0.0
    %2974 = vmatpush1.xpose.msra.mxu0 0.0
    %2975 = vmatprep.subr.mxu0 0.0
    %2976 = vmatpush1.xpose.msra.mxu0 0.0
    %2977 = vmatprep.subr.mxu0 0.0
    %2978 = vmatpush1.xpose.msra.mxu0 0.0
    %2979 = vmatprep.subr.mxu0 0.0
    %2980 = vmatpush1.xpose.msra.mxu0 0.0
    %2981 = vmatprep.subr.mxu0 0.0
    %2982 = vmatpush1.xpose.msra.mxu0 0.0
    %2983 = vmatprep.subr.mxu0 0.0
    %2984 = vmatpush1.xpose.msra.mxu0 0.0
    %2985 = vmatprep.subr.mxu0 0.0
    %2986 = vmatpush1.xpose.msra.mxu0 0.0
    %2987 = vmatprep.subr.mxu0 0.0
    %2988 = vmatpush1.xpose.msra.mxu0 0.0
    %2989 = vmatprep.subr.mxu0 0.0
    %2990 = vmatpush1.xpose.msra.mxu0 0.0
    %2991 = vmatprep.subr.mxu0 0.0
    %2992 = vmatpush1.xpose.msra.mxu0 0.0
    %2993 = vmatprep.subr.mxu0 0.0
    %2994 = vmatpush1.xpose.msra.mxu0 0.0
    %2995 = vmatprep.subr.mxu0 0.0
    %2996 = vmatpush1.xpose.msra.mxu0 0.0
    %2997 = vmatprep.subr.mxu0 0.0
    %2998 = vmatpush1.xpose.msra.mxu0 0.0
    %2999 = vmatprep.subr.mxu0 0.0
    %3000 = vmatpush1.xpose.msra.mxu0 0.0
    %3001 = vmatprep.subr.mxu0 0.0
    %3002 = vmatpush1.xpose.msra.mxu0 0.0
    %3003 = vmatprep.subr.mxu0 0.0
    %3004 = vmatpush1.xpose.msra.mxu0 0.0
    %3005 = vmatprep.subr.mxu0 0.0
    %3006 = vmatpush1.xpose.msra.mxu0 0.0
    %3007 = vmatprep.mubr.f32.mxu0 0.0
    %3008 = vmatmul.mubr.f32.gmra.mrb[0].mxu0 %v2895
    %v3009 = vpop.f32.mrb[0].mxu0
    %v3010 = vadd.f32 %v84, %v3009
    %v3011 = vpop.f32.mrb[0].mxu0
    %3012 = vmatprep.mubr.f32.mxu0 0.0
    %3013 = vmatmul.mubr.f32.gmra.mrb[0].mxu0 %v2897
    %v3014 = vpop.f32.mrb[0].mxu0
    %v3015 = vadd.f32 %v85, %v3014
    %v3016 = vpop.f32.mrb[0].mxu0
    %3017 = vmatprep.mubr.f32.mxu0 0.0
    %3018 = vmatmul.mubr.f32.gmra.mrb[0].mxu0 %v2899
    %v3019 = vpop.f32.mrb[0].mxu0
    %v3020 = vadd.f32 %v86, %v3019
    %v3021 = vpop.f32.mrb[0].mxu0
    %3022 = vmatprep.mubr.f32.mxu0 0.0
    %3023 = vmatmul.mubr.f32.gmra.mrb[0].mxu0 %v2901
    %v3024 = vpop.f32.mrb[0].mxu0
    %v3025 = vadd.f32 %v87, %v3024
    %v3026 = vpop.f32.mrb[0].mxu0
    %3027 = vmatprep.mubr.f32.mxu0 0.0
    %3028 = vmatmul.mubr.f32.gmra.mrb[0].mxu0 %v2903
    %v3029 = vpop.f32.mrb[0].mxu0
    %v3030 = vadd.f32 %v88, %v3029
    %v3031 = vpop.f32.mrb[0].mxu0
    %3032 = vmatprep.mubr.f32.mxu0 0.0
    %3033 = vmatmul.mubr.f32.gmra.mrb[0].mxu0 %v2905
    %v3034 = vpop.f32.mrb[0].mxu0
    %v3035 = vadd.f32 %v89, %v3034
    %v3036 = vpop.f32.mrb[0].mxu0
    %3037 = vmatprep.mubr.f32.mxu0 0.0
    %3038 = vmatmul.mubr.f32.gmra.mrb[0].mxu0 %v2907
    %v3039 = vpop.f32.mrb[0].mxu0
    %v3040 = vadd.f32 %v90, %v3039
    %v3041 = vpop.f32.mrb[0].mxu0
    %3042 = vmatprep.mubr.f32.mxu0 0.0
    %3043 = vmatmul.mubr.f32.gmra.mrb[0].mxu0 %v2909
    %v3044 = vpop.f32.mrb[0].mxu0
    %v3045 = vadd.f32 %v91, %v3044
    %v3046 = vpop.f32.mrb[0].mxu0
    %3047 = vmatprep.mubr.f32.mxu0 0.0
    %3048 = vmatmul.mubr.f32.gmra.mrb[0].mxu0 %v2911
    %v3049 = vpop.f32.mrb[0].mxu0
    %v3050 = vadd.f32 %v92, %v3049
    %v3051 = vpop.f32.mrb[0].mxu0
    %3052 = vmatprep.mubr.f32.mxu0 0.0
    %3053 = vmatmul.mubr.f32.gmra.mrb[0].mxu0 %v2913
    %v3054 = vpop.f32.mrb[0].mxu0
    %v3055 = vadd.f32 %v93, %v3054
    %v3056 = vpop.f32.mrb[0].mxu0
    %3057 = vmatprep.mubr.f32.mxu0 0.0
    %3058 = vmatmul.mubr.f32.gmra.mrb[0].mxu0 %v2915
    %v3059 = vpop.f32.mrb[0].mxu0
    %v3060 = vadd.f32 %v94, %v3059
    %v3061 = vpop.f32.mrb[0].mxu0
    %3062 = vmatprep.mubr.f32.mxu0 0.0
    %3063 = vmatmul.mubr.f32.gmra.mrb[0].mxu0 %v2917
    %v3064 = vpop.f32.mrb[0].mxu0
    %v3065 = vadd.f32 %v95, %v3064
    %v3066 = vpop.f32.mrb[0].mxu0
    %3067 = vdwg.mxu0
    %v3068 = vsel %vm922, %v3010, -inf
    %3069 = vmax.xlane.f32.xlu0 %v3068
    %v3070 = vpop.xlane.xlu0 %3069
    %v3071 = vsel %vm922, %v3015, -inf
    %3072 = vmax.xlane.f32.xlu0 %v3071
    %v3073 = vpop.xlane.xlu0 %3072
    %v3074 = vsel %vm922, %v3020, -inf
    %3075 = vmax.xlane.f32.xlu0 %v3074
    %v3076 = vpop.xlane.xlu0 %3075
    %v3077 = vsel %vm922, %v3025, -inf
    %3078 = vmax.xlane.f32.xlu0 %v3077
    %v3079 = vpop.xlane.xlu0 %3078
    %v3080 = vsel %vm922, %v3030, -inf
    %3081 = vmax.xlane.f32.xlu0 %v3080
    %v3082 = vpop.xlane.xlu0 %3081
    %v3083 = vsel %vm922, %v3035, -inf
    %3084 = vmax.xlane.f32.xlu0 %v3083
    %v3085 = vpop.xlane.xlu0 %3084
    %v3086 = vsel %vm922, %v3040, -inf
    %3087 = vmax.xlane.f32.xlu0 %v3086
    %v3088 = vpop.xlane.xlu0 %3087
    %v3089 = vsel %vm922, %v3045, -inf
    %3090 = vmax.xlane.f32.xlu0 %v3089
    %v3091 = vpop.xlane.xlu0 %3090
    %v3092 = vsel %vm922, %v3050, -inf
    %3093 = vmax.xlane.f32.xlu0 %v3092
    %v3094 = vpop.xlane.xlu0 %3093
    %v3095 = vsel %vm922, %v3055, -inf
    %3096 = vmax.xlane.f32.xlu0 %v3095
    %v3097 = vpop.xlane.xlu0 %3096
    %v3098 = vsel %vm922, %v3060, -inf
    %3099 = vmax.xlane.f32.xlu0 %v3098
    %v3100 = vpop.xlane.xlu0 %3099
    %v3101 = vsel %vm922, %v3065, -inf
    %3102 = vmax.xlane.f32.xlu0 %v3101
    %v3103 = vpop.xlane.xlu0 %3102
    %v3104 = vsub.f32 %v3010, %v3070
    %v3105 = vsub.f32 %v3015, %v3073
    %v3106 = vsub.f32 %v3020, %v3076
    %v3107 = vsub.f32 %v3025, %v3079
    %v3108 = vsub.f32 %v3030, %v3082
    %v3109 = vsub.f32 %v3035, %v3085
    %v3110 = vsub.f32 %v3040, %v3088
    %v3111 = vsub.f32 %v3045, %v3091
    %v3112 = vsub.f32 %v3050, %v3094
    %v3113 = vsub.f32 %v3055, %v3097
    %v3114 = vsub.f32 %v3060, %v3100
    %v3115 = vsub.f32 %v3065, %v3103
    %v3116 = vmul.f32 %v3104, 1.442695
    %v3117 = vpow.pop %v3116
    %v3118 = vmul.f32 %v3105, 1.442695
    %v3119 = vpow.pop %v3118
    %v3120 = vmul.f32 %v3106, 1.442695
    %v3121 = vpow.pop %v3120
    %v3122 = vmul.f32 %v3107, 1.442695
    %v3123 = vpow.pop %v3122
    %v3124 = vmul.f32 %v3108, 1.442695
    %v3125 = vpow.pop %v3124
    %v3126 = vmul.f32 %v3109, 1.442695
    %v3127 = vpow.pop %v3126
    %v3128 = vmul.f32 %v3110, 1.442695
    %v3129 = vpow.pop %v3128
    %v3130 = vmul.f32 %v3111, 1.442695
    %v3131 = vpow.pop %v3130
    %v3132 = vmul.f32 %v3112, 1.442695
    %v3133 = vpow.pop %v3132
    %v3134 = vmul.f32 %v3113, 1.442695
    %v3135 = vpow.pop %v3134
    %v3136 = vmul.f32 %v3114, 1.442695
    %v3137 = vpow.pop %v3136
    %v3138 = vmul.f32 %v3115, 1.442695
    %v3139 = vpow.pop %v3138
    %v3140 = vsel %vm922, %v3117, 0.0
    %3141 = vadd.xlane.f32.xlu0 %v3140
    %v3142 = vpop.xlane.xlu0 %3141
    %v3143 = vsel %vm922, %v3119, 0.0
    %3144 = vadd.xlane.f32.xlu0 %v3143
    %v3145 = vpop.xlane.xlu0 %3144
    %v3146 = vsel %vm922, %v3121, 0.0
    %3147 = vadd.xlane.f32.xlu0 %v3146
    %v3148 = vpop.xlane.xlu0 %3147
    %v3149 = vsel %vm922, %v3123, 0.0
    %3150 = vadd.xlane.f32.xlu0 %v3149
    %v3151 = vpop.xlane.xlu0 %3150
    %v3152 = vsel %vm922, %v3125, 0.0
    %3153 = vadd.xlane.f32.xlu0 %v3152
    %v3154 = vpop.xlane.xlu0 %3153
    %v3155 = vsel %vm922, %v3127, 0.0
    %3156 = vadd.xlane.f32.xlu0 %v3155
    %v3157 = vpop.xlane.xlu0 %3156
    %v3158 = vsel %vm922, %v3129, 0.0
    %3159 = vadd.xlane.f32.xlu0 %v3158
    %v3160 = vpop.xlane.xlu0 %3159
    %v3161 = vsel %vm922, %v3131, 0.0
    %3162 = vadd.xlane.f32.xlu0 %v3161
    %v3163 = vpop.xlane.xlu0 %3162
    %v3164 = vsel %vm922, %v3133, 0.0
    %3165 = vadd.xlane.f32.xlu0 %v3164
    %v3166 = vpop.xlane.xlu0 %3165
    %v3167 = vsel %vm922, %v3135, 0.0
    %3168 = vadd.xlane.f32.xlu0 %v3167
    %v3169 = vpop.xlane.xlu0 %3168
    %v3170 = vsel %vm922, %v3137, 0.0
    %3171 = vadd.xlane.f32.xlu0 %v3170
    %v3172 = vpop.xlane.xlu0 %3171
    %v3173 = vsel %vm922, %v3139, 0.0
    %3174 = vadd.xlane.f32.xlu0 %v3173
    %v3175 = vpop.xlane.xlu0 %3174
    %v3176 = vrcp.pop %v3142
    %v3177 = vrcp.pop %v3145
    %v3178 = vrcp.pop %v3148
    %v3179 = vrcp.pop %v3151
    %v3180 = vrcp.pop %v3154
    %v3181 = vrcp.pop %v3157
    %v3182 = vrcp.pop %v3160
    %v3183 = vrcp.pop %v3163
    %v3184 = vrcp.pop %v3166
    %v3185 = vrcp.pop %v3169
    %v3186 = vrcp.pop %v3172
    %v3187 = vrcp.pop %v3175
    %v3188 = vmul.f32 %v3117, %v3176
    %v3189 = vmul.f32 %v3119, %v3177
    %v3190 = vmul.f32 %v3121, %v3178
    %v3191 = vmul.f32 %v3123, %v3179
    %v3192 = vmul.f32 %v3125, %v3180
    %v3193 = vmul.f32 %v3127, %v3181
    %v3194 = vmul.f32 %v3129, %v3182
    %v3195 = vmul.f32 %v3131, %v3183
    %v3196 = vmul.f32 %v3133, %v3184
    %v3197 = vmul.f32 %v3135, %v3185
    %v3198 = vmul.f32 %v3137, %v3186
    %v3199 = vmul.f32 %v3139, %v3187
    %3200 = vrot.lane.b32.xlu0 %v650, 40
    %v3201 = vpop.permute.xlu0 %3200
    %3202 = vrot.lane.b32.xlu0 %v655, 40
    %v3203 = vpop.permute.xlu0 %3202
    %3204 = vrot.lane.b32.xlu0 %v660, 40
    %v3205 = vpop.permute.xlu0 %3204
    %3206 = vrot.lane.b32.xlu0 %v665, 40
    %v3207 = vpop.permute.xlu0 %3206
    %3208 = vrot.lane.b32.xlu0 %v670, 40
    %v3209 = vpop.permute.xlu0 %3208
    %3210 = vrot.lane.b32.xlu0 %v675, 40
    %v3211 = vpop.permute.xlu0 %3210
    %3212 = vrot.lane.b32.xlu0 %v680, 40
    %v3213 = vpop.permute.xlu0 %3212
    %3214 = vrot.lane.b32.xlu0 %v685, 40
    %v3215 = vpop.permute.xlu0 %3214
    %3216 = vrot.lane.b32.xlu0 %v690, 40
    %v3217 = vpop.permute.xlu0 %3216
    %3218 = vrot.lane.b32.xlu0 %v695, 40
    %v3219 = vpop.permute.xlu0 %3218
    %3220 = vrot.lane.b32.xlu0 %v700, 40
    %v3221 = vpop.permute.xlu0 %3220
    %3222 = vrot.lane.b32.xlu0 %v705, 40
    %v3223 = vpop.permute.xlu0 %3222
    %v3237 = vsel %vm922, %v3188, 0
    %v3240 = vsel %vm922, %v3189, 0
    %v3243 = vsel %vm922, %v3190, 0
    %v3246 = vsel %vm922, %v3191, 0
    %v3249 = vsel %vm922, %v3192, 0
    %v3252 = vsel %vm922, %v3193, 0
    %v3255 = vsel %vm922, %v3194, 0
    %v3258 = vsel %vm922, %v3195, 0
    %v3261 = vsel %vm922, %v3196, 0
    %v3264 = vsel %vm922, %v3197, 0
    %v3267 = vsel %vm922, %v3198, 0
    %v3270 = vsel %vm922, %v3199, 0
    %3272 = vmatprep.subr.mxu0 0.0
    %3273 = vmatpush1.msra.mxu0 %v3201
    %3274 = vmatprep.subr.mxu0 0.0
    %3275 = vmatpush1.msra.mxu0 %v3203
    %3276 = vmatprep.subr.mxu0 0.0
    %3277 = vmatpush1.msra.mxu0 %v3205
    %3278 = vmatprep.subr.mxu0 0.0
    %3279 = vmatpush1.msra.mxu0 %v3207
    %3280 = vmatprep.subr.mxu0 0.0
    %3281 = vmatpush1.msra.mxu0 %v3209
    %3282 = vmatprep.subr.mxu0 0.0
    %3283 = vmatpush1.msra.mxu0 %v3211
    %3284 = vmatprep.subr.mxu0 0.0
    %3285 = vmatpush1.msra.mxu0 %v3213
    %3286 = vmatprep.subr.mxu0 0.0
    %3287 = vmatpush1.msra.mxu0 %v3215
    %3288 = vmatprep.subr.mxu0 0.0
    %3289 = vmatpush1.msra.mxu0 %v3217
    %3290 = vmatprep.subr.mxu0 0.0
    %3291 = vmatpush1.msra.mxu0 %v3219
    %3292 = vmatprep.subr.mxu0 0.0
    %3293 = vmatpush1.msra.mxu0 %v3221
    %3294 = vmatprep.subr.mxu0 0.0
    %3295 = vmatpush1.msra.mxu0 %v3223
    %3296 = vmatprep.subr.mxu0 0.0
    %3297 = vmatpush1.msra.mxu0 0.0
    %3298 = vmatprep.subr.mxu0 0.0
    %3299 = vmatpush1.msra.mxu0 0.0
    %3300 = vmatprep.subr.mxu0 0.0
    %3301 = vmatpush1.msra.mxu0 0.0
    %3302 = vmatprep.subr.mxu0 0.0
    %3303 = vmatpush1.msra.mxu0 0.0
    %3304 = vmatprep.subr.mxu0 0.0
    %3305 = vmatpush1.msra.mxu0 0.0
    %3306 = vmatprep.subr.mxu0 0.0
    %3307 = vmatpush1.msra.mxu0 0.0
    %3308 = vmatprep.subr.mxu0 0.0
    %3309 = vmatpush1.msra.mxu0 0.0
    %3310 = vmatprep.subr.mxu0 0.0
    %3311 = vmatpush1.msra.mxu0 0.0
    %3312 = vmatprep.subr.mxu0 0.0
    %3313 = vmatpush1.msra.mxu0 0.0
    %3314 = vmatprep.subr.mxu0 0.0
    %3315 = vmatpush1.msra.mxu0 0.0
    %3316 = vmatprep.subr.mxu0 0.0
    %3317 = vmatpush1.msra.mxu0 0.0
    %3318 = vmatprep.subr.mxu0 0.0
    %3319 = vmatpush1.msra.mxu0 0.0
    %3320 = vmatprep.subr.mxu0 0.0
    %3321 = vmatpush1.msra.mxu0 0.0
    %3322 = vmatprep.subr.mxu0 0.0
    %3323 = vmatpush1.msra.mxu0 0.0
    %3324 = vmatprep.subr.mxu0 0.0
    %3325 = vmatpush1.msra.mxu0 0.0
    %3326 = vmatprep.subr.mxu0 0.0
    %3327 = vmatpush1.msra.mxu0 0.0
    %3328 = vmatprep.subr.mxu0 0.0
    %3329 = vmatpush1.msra.mxu0 0.0
    %3330 = vmatprep.subr.mxu0 0.0
    %3331 = vmatpush1.msra.mxu0 0.0
    %3332 = vmatprep.subr.mxu0 0.0
    %3333 = vmatpush1.msra.mxu0 0.0
    %3334 = vmatprep.subr.mxu0 0.0
    %3335 = vmatpush1.msra.mxu0 0.0
    %3336 = vmatprep.mubr.f32.mxu0 0.0
    %3337 = vmatmul.mubr.f32.gmra.mrb[0].mxu0 %v3237
    %v3338 = vpop.f32.mrb[0].mxu0
    %v3339 = vadd.f32 0.0, %v3338
    %v3340 = vpop.f32.mrb[0].mxu0
    %3341 = vmatprep.mubr.f32.mxu0 0.0
    %3342 = vmatmul.mubr.f32.gmra.mrb[0].mxu0 %v3240
    %v3343 = vpop.f32.mrb[0].mxu0
    %v3344 = vadd.f32 0.0, %v3343
    %v3345 = vpop.f32.mrb[0].mxu0
    %3346 = vmatprep.mubr.f32.mxu0 0.0
    %3347 = vmatmul.mubr.f32.gmra.mrb[0].mxu0 %v3243
    %v3348 = vpop.f32.mrb[0].mxu0
    %v3349 = vadd.f32 0.0, %v3348
    %v3350 = vpop.f32.mrb[0].mxu0
    %3351 = vmatprep.mubr.f32.mxu0 0.0
    %3352 = vmatmul.mubr.f32.gmra.mrb[0].mxu0 %v3246
    %v3353 = vpop.f32.mrb[0].mxu0
    %v3354 = vadd.f32 0.0, %v3353
    %v3355 = vpop.f32.mrb[0].mxu0
    %3356 = vmatprep.mubr.f32.mxu0 0.0
    %3357 = vmatmul.mubr.f32.gmra.mrb[0].mxu0 %v3249
    %v3358 = vpop.f32.mrb[0].mxu0
    %v3359 = vadd.f32 0.0, %v3358
    %v3360 = vpop.f32.mrb[0].mxu0
    %3361 = vmatprep.mubr.f32.mxu0 0.0
    %3362 = vmatmul.mubr.f32.gmra.mrb[0].mxu0 %v3252
    %v3363 = vpop.f32.mrb[0].mxu0
    %v3364 = vadd.f32 0.0, %v3363
    %v3365 = vpop.f32.mrb[0].mxu0
    %3366 = vmatprep.mubr.f32.mxu0 0.0
    %3367 = vmatmul.mubr.f32.gmra.mrb[0].mxu0 %v3255
    %v3368 = vpop.f32.mrb[0].mxu0
    %v3369 = vadd.f32 0.0, %v3368
    %v3370 = vpop.f32.mrb[0].mxu0
    %3371 = vmatprep.mubr.f32.mxu0 0.0
    %3372 = vmatmul.mubr.f32.gmra.mrb[0].mxu0 %v3258
    %v3373 = vpop.f32.mrb[0].mxu0
    %v3374 = vadd.f32 0.0, %v3373
    %v3375 = vpop.f32.mrb[0].mxu0
    %3376 = vmatprep.mubr.f32.mxu0 0.0
    %3377 = vmatmul.mubr.f32.gmra.mrb[0].mxu0 %v3261
    %v3378 = vpop.f32.mrb[0].mxu0
    %v3379 = vadd.f32 0.0, %v3378
    %v3380 = vpop.f32.mrb[0].mxu0
    %3381 = vmatprep.mubr.f32.mxu0 0.0
    %3382 = vmatmul.mubr.f32.gmra.mrb[0].mxu0 %v3264
    %v3383 = vpop.f32.mrb[0].mxu0
    %v3384 = vadd.f32 0.0, %v3383
    %v3385 = vpop.f32.mrb[0].mxu0
    %3386 = vmatprep.mubr.f32.mxu0 0.0
    %3387 = vmatmul.mubr.f32.gmra.mrb[0].mxu0 %v3267
    %v3388 = vpop.f32.mrb[0].mxu0
    %v3389 = vadd.f32 0.0, %v3388
    %v3390 = vpop.f32.mrb[0].mxu0
    %3391 = vmatprep.mubr.f32.mxu0 0.0
    %3392 = vmatmul.mubr.f32.gmra.mrb[0].mxu0 %v3270
    %v3393 = vpop.f32.mrb[0].mxu0
    %v3394 = vadd.f32 0.0, %v3393
    %v3395 = vpop.f32.mrb[0].mxu0
    %3396 = vdwg.mxu0
    %v3398 = vsel %vm748, %v3339, 0
    %v3401 = vsel %vm748, %v3344, 0
    %v3404 = vsel %vm748, %v3349, 0
    %v3407 = vsel %vm748, %v3354, 0
    %v3410 = vsel %vm748, %v3359, 0
    %v3413 = vsel %vm748, %v3364, 0
    %v3416 = vsel %vm748, %v3369, 0
    %v3419 = vsel %vm748, %v3374, 0
    %v3422 = vsel %vm748, %v3379, 0
    %v3425 = vsel %vm748, %v3384, 0
    %v3428 = vsel %vm748, %v3389, 0
    %v3431 = vsel %vm748, %v3394, 0
    %3433 = vmatprep.subr.mxu0 0.0
    %3434 = vmatpush1.msra.mxu0 %v711
    %3435 = vmatprep.subr.mxu0 0.0
    %3436 = vmatpush1.msra.mxu0 0.0
    %3437 = vmatprep.subr.mxu0 0.0
    %3438 = vmatpush1.msra.mxu0 0.0
    %3439 = vmatprep.subr.mxu0 0.0
    %3440 = vmatpush1.msra.mxu0 0.0
    %3441 = vmatprep.subr.mxu0 0.0
    %3442 = vmatpush1.msra.mxu0 0.0
    %3443 = vmatprep.subr.mxu0 0.0
    %3444 = vmatpush1.msra.mxu0 0.0
    %3445 = vmatprep.subr.mxu0 0.0
    %3446 = vmatpush1.msra.mxu0 0.0
    %3447 = vmatprep.subr.mxu0 0.0
    %3448 = vmatpush1.msra.mxu0 0.0
    %3449 = vmatprep.subr.mxu0 0.0
    %3450 = vmatpush1.msra.mxu0 0.0
    %3451 = vmatprep.subr.mxu0 0.0
    %3452 = vmatpush1.msra.mxu0 0.0
    %3453 = vmatprep.subr.mxu0 0.0
    %3454 = vmatpush1.msra.mxu0 0.0
    %3455 = vmatprep.subr.mxu0 0.0
    %3456 = vmatpush1.msra.mxu0 0.0
    %3457 = vmatprep.subr.mxu0 0.0
    %3458 = vmatpush1.msra.mxu0 0.0
    %3459 = vmatprep.subr.mxu0 0.0
    %3460 = vmatpush1.msra.mxu0 0.0
    %3461 = vmatprep.subr.mxu0 0.0
    %3462 = vmatpush1.msra.mxu0 0.0
    %3463 = vmatprep.subr.mxu0 0.0
    %3464 = vmatpush1.msra.mxu0 0.0
    %3465 = vmatprep.subr.mxu0 0.0
    %3466 = vmatpush1.msra.mxu0 0.0
    %3467 = vmatprep.subr.mxu0 0.0
    %3468 = vmatpush1.msra.mxu0 0.0
    %3469 = vmatprep.subr.mxu0 0.0
    %3470 = vmatpush1.msra.mxu0 0.0
    %3471 = vmatprep.subr.mxu0 0.0
    %3472 = vmatpush1.msra.mxu0 0.0
    %3473 = vmatprep.subr.mxu0 0.0
    %3474 = vmatpush1.msra.mxu0 0.0
    %3475 = vmatprep.subr.mxu0 0.0
    %3476 = vmatpush1.msra.mxu0 0.0
    %3477 = vmatprep.subr.mxu0 0.0
    %3478 = vmatpush1.msra.mxu0 0.0
    %3479 = vmatprep.subr.mxu0 0.0
    %3480 = vmatpush1.msra.mxu0 0.0
    %3481 = vmatprep.subr.mxu0 0.0
    %3482 = vmatpush1.msra.mxu0 0.0
    %3483 = vmatprep.subr.mxu0 0.0
    %3484 = vmatpush1.msra.mxu0 0.0
    %3485 = vmatprep.subr.mxu0 0.0
    %3486 = vmatpush1.msra.mxu0 0.0
    %3487 = vmatprep.subr.mxu0 0.0
    %3488 = vmatpush1.msra.mxu0 0.0
    %3489 = vmatprep.subr.mxu0 0.0
    %3490 = vmatpush1.msra.mxu0 0.0
    %3491 = vmatprep.subr.mxu0 0.0
    %3492 = vmatpush1.msra.mxu0 0.0
    %3493 = vmatprep.subr.mxu0 0.0
    %3494 = vmatpush1.msra.mxu0 0.0
    %3495 = vmatprep.subr.mxu0 0.0
    %3496 = vmatpush1.msra.mxu0 0.0
    %3497 = vmatprep.mubr.f32.mxu0 0.0
    %3498 = vmatmul.mubr.f32.gmra.mrb[0].mxu0 %v3398
    %v3499 = vpop.f32.mrb[0].mxu0
    %v3500 = vadd.f32 0.0, %v3499
    %v3501 = vpop.f32.mrb[0].mxu0
    %3502 = vmatprep.mubr.f32.mxu0 0.0
    %3503 = vmatmul.mubr.f32.gmra.mrb[0].mxu0 %v3401
    %v3504 = vpop.f32.mrb[0].mxu0
    %v3505 = vadd.f32 0.0, %v3504
    %v3506 = vpop.f32.mrb[0].mxu0
    %3507 = vmatprep.mubr.f32.mxu0 0.0
    %3508 = vmatmul.mubr.f32.gmra.mrb[0].mxu0 %v3404
    %v3509 = vpop.f32.mrb[0].mxu0
    %v3510 = vadd.f32 0.0, %v3509
    %v3511 = vpop.f32.mrb[0].mxu0
    %3512 = vmatprep.mubr.f32.mxu0 0.0
    %3513 = vmatmul.mubr.f32.gmra.mrb[0].mxu0 %v3407
    %v3514 = vpop.f32.mrb[0].mxu0
    %v3515 = vadd.f32 0.0, %v3514
    %v3516 = vpop.f32.mrb[0].mxu0
    %3517 = vmatprep.mubr.f32.mxu0 0.0
    %3518 = vmatmul.mubr.f32.gmra.mrb[0].mxu0 %v3410
    %v3519 = vpop.f32.mrb[0].mxu0
    %v3520 = vadd.f32 0.0, %v3519
    %v3521 = vpop.f32.mrb[0].mxu0
    %3522 = vmatprep.mubr.f32.mxu0 0.0
    %3523 = vmatmul.mubr.f32.gmra.mrb[0].mxu0 %v3413
    %v3524 = vpop.f32.mrb[0].mxu0
    %v3525 = vadd.f32 0.0, %v3524
    %v3526 = vpop.f32.mrb[0].mxu0
    %3527 = vmatprep.mubr.f32.mxu0 0.0
    %3528 = vmatmul.mubr.f32.gmra.mrb[0].mxu0 %v3416
    %v3529 = vpop.f32.mrb[0].mxu0
    %v3530 = vadd.f32 0.0, %v3529
    %v3531 = vpop.f32.mrb[0].mxu0
    %3532 = vmatprep.mubr.f32.mxu0 0.0
    %3533 = vmatmul.mubr.f32.gmra.mrb[0].mxu0 %v3419
    %v3534 = vpop.f32.mrb[0].mxu0
    %v3535 = vadd.f32 0.0, %v3534
    %v3536 = vpop.f32.mrb[0].mxu0
    %3537 = vmatprep.mubr.f32.mxu0 0.0
    %3538 = vmatmul.mubr.f32.gmra.mrb[0].mxu0 %v3422
    %v3539 = vpop.f32.mrb[0].mxu0
    %v3540 = vadd.f32 0.0, %v3539
    %v3541 = vpop.f32.mrb[0].mxu0
    %3542 = vmatprep.mubr.f32.mxu0 0.0
    %3543 = vmatmul.mubr.f32.gmra.mrb[0].mxu0 %v3425
    %v3544 = vpop.f32.mrb[0].mxu0
    %v3545 = vadd.f32 0.0, %v3544
    %v3546 = vpop.f32.mrb[0].mxu0
    %3547 = vmatprep.mubr.f32.mxu0 0.0
    %3548 = vmatmul.mubr.f32.gmra.mrb[0].mxu0 %v3428
    %v3549 = vpop.f32.mrb[0].mxu0
    %v3550 = vadd.f32 0.0, %v3549
    %v3551 = vpop.f32.mrb[0].mxu0
    %3552 = vmatprep.mubr.f32.mxu0 0.0
    %3553 = vmatmul.mubr.f32.gmra.mrb[0].mxu0 %v3431
    %v3554 = vpop.f32.mrb[0].mxu0
    %v3555 = vadd.f32 0.0, %v3554
    %v3556 = vpop.f32.mrb[0].mxu0
    %3557 = vdwg.mxu0
    %v3558 = vadd.f32 %v2835, %v3500
    %v3559 = vadd.f32 %v2836, %v3505
    %v3560 = vadd.f32 %v2837, %v3510
    %v3561 = vadd.f32 %v2838, %v3515
    %v3562 = vadd.f32 %v2839, %v3520
    %v3563 = vadd.f32 %v2840, %v3525
    %v3564 = vadd.f32 %v2841, %v3530
    %v3565 = vadd.f32 %v2842, %v3535
    %v3566 = vadd.f32 %v2843, %v3540
    %v3567 = vadd.f32 %v2844, %v3545
    %v3568 = vadd.f32 %v2845, %v3550
    %v3569 = vadd.f32 %v2846, %v3555
    %v3570 = vadd.f32 %v482, %v3558
    %v3571 = vadd.f32 %v487, %v3559
    %v3572 = vadd.f32 %v492, %v3560
    %v3573 = vadd.f32 %v497, %v3561
    %v3574 = vadd.f32 %v502, %v3562
    %v3575 = vadd.f32 %v507, %v3563
    %v3576 = vadd.f32 %v512, %v3564
    %v3577 = vadd.f32 %v517, %v3565
    %v3578 = vadd.f32 %v522, %v3566
    %v3579 = vadd.f32 %v527, %v3567
    %v3580 = vadd.f32 %v532, %v3568
    %v3581 = vadd.f32 %v537, %v3569
    %v3582 = vld [vmem:[#allocation6 + $0x3] sm:$0x1]
    %v3583 = vlaneseq
    %v3584 = vshrl.u32 %v3583, 7
    %v3585 = vsub.s32 0, %v3584
    %v3586 = vrot.slane %v3582, %v3585
    %v3587 = vadd.f32 %v3570, %v3586
    %v3588 = vadd.f32 %v3571, %v3586
    %v3589 = vadd.f32 %v3572, %v3586
    %v3590 = vadd.f32 %v3573, %v3586
    %v3591 = vadd.f32 %v3574, %v3586
    %v3592 = vadd.f32 %v3575, %v3586
    %v3593 = vadd.f32 %v3576, %v3586
    %v3594 = vadd.f32 %v3577, %v3586
    %v3595 = vadd.f32 %v3578, %v3586
    %v3596 = vadd.f32 %v3579, %v3586
    %v3597 = vadd.f32 %v3580, %v3586
    %v3598 = vadd.f32 %v3581, %v3586
    %v3599 = vld [vmem:[#allocation6 + $0x4] sm:$0x1]
    %v3600 = vld [vmem:[#allocation6 + $0x5] sm:$0x1]
    %vm3601 = vcmask 261120
    %v3602 = vsel %vm3601, %v3587, 0.0
    %3603 = vadd.xlane.f32.xlu0 %v3602
    %v3604 = vpop.xlane.xlu0 %3603
    %v3605 = vsel %vm3601, %v3588, 0.0
    %3606 = vadd.xlane.f32.xlu0 %v3605
    %v3607 = vpop.xlane.xlu0 %3606
    %v3608 = vsel %vm3601, %v3589, 0.0
    %3609 = vadd.xlane.f32.xlu0 %v3608
    %v3610 = vpop.xlane.xlu0 %3609
    %v3611 = vsel %vm3601, %v3590, 0.0
    %3612 = vadd.xlane.f32.xlu0 %v3611
    %v3613 = vpop.xlane.xlu0 %3612
    %v3614 = vsel %vm3601, %v3591, 0.0
    %3615 = vadd.xlane.f32.xlu0 %v3614
    %v3616 = vpop.xlane.xlu0 %3615
    %v3617 = vsel %vm3601, %v3592, 0.0
    %3618 = vadd.xlane.f32.xlu0 %v3617
    %v3619 = vpop.xlane.xlu0 %3618
    %v3620 = vsel %vm3601, %v3593, 0.0
    %3621 = vadd.xlane.f32.xlu0 %v3620
    %v3622 = vpop.xlane.xlu0 %3621
    %v3623 = vsel %vm3601, %v3594, 0.0
    %3624 = vadd.xlane.f32.xlu0 %v3623
    %v3625 = vpop.xlane.xlu0 %3624
    %v3626 = vsel %vm3601, %v3595, 0.0
    %3627 = vadd.xlane.f32.xlu0 %v3626
    %v3628 = vpop.xlane.xlu0 %3627
    %v3629 = vsel %vm3601, %v3596, 0.0
    %3630 = vadd.xlane.f32.xlu0 %v3629
    %v3631 = vpop.xlane.xlu0 %3630
    %v3632 = vsel %vm3601, %v3597, 0.0
    %3633 = vadd.xlane.f32.xlu0 %v3632
    %v3634 = vpop.xlane.xlu0 %3633
    %v3635 = vsel %vm3601, %v3598, 0.0
    %3636 = vadd.xlane.f32.xlu0 %v3635
    %v3637 = vpop.xlane.xlu0 %3636
    %v3638 = vrcp.pop 32.0
    %v3639 = vmul.f32 %v3604, %v3638
    %v3640 = vmul.f32 %v3607, %v3638
    %v3641 = vmul.f32 %v3610, %v3638
    %v3642 = vmul.f32 %v3613, %v3638
    %v3643 = vmul.f32 %v3616, %v3638
    %v3644 = vmul.f32 %v3619, %v3638
    %v3645 = vmul.f32 %v3622, %v3638
    %v3646 = vmul.f32 %v3625, %v3638
    %v3647 = vmul.f32 %v3628, %v3638
    %v3648 = vmul.f32 %v3631, %v3638
    %v3649 = vmul.f32 %v3634, %v3638
    %v3650 = vmul.f32 %v3637, %v3638
    %v3651 = vsub.f32 %v3587, %v3639
    %v3652 = vsub.f32 %v3588, %v3640
    %v3653 = vsub.f32 %v3589, %v3641
    %v3654 = vsub.f32 %v3590, %v3642
    %v3655 = vsub.f32 %v3591, %v3643
    %v3656 = vsub.f32 %v3592, %v3644
    %v3657 = vsub.f32 %v3593, %v3645
    %v3658 = vsub.f32 %v3594, %v3646
    %v3659 = vsub.f32 %v3595, %v3647
    %v3660 = vsub.f32 %v3596, %v3648
    %v3661 = vsub.f32 %v3597, %v3649
    %v3662 = vsub.f32 %v3598, %v3650
    %v3663 = vmul.f32 %v3651, %v3651
    %v3664 = vmul.f32 %v3652, %v3652
    %v3665 = vmul.f32 %v3653, %v3653
    %v3666 = vmul.f32 %v3654, %v3654
    %v3667 = vmul.f32 %v3655, %v3655
    %v3668 = vmul.f32 %v3656, %v3656
    %v3669 = vmul.f32 %v3657, %v3657
    %v3670 = vmul.f32 %v3658, %v3658
    %v3671 = vmul.f32 %v3659, %v3659
    %v3672 = vmul.f32 %v3660, %v3660
    %v3673 = vmul.f32 %v3661, %v3661
    %v3674 = vmul.f32 %v3662, %v3662
    %v3675 = vsel %vm3601, %v3663, 0.0
    %3676 = vadd.xlane.f32.xlu0 %v3675
    %v3677 = vpop.xlane.xlu0 %3676
    %v3678 = vsel %vm3601, %v3664, 0.0
    %3679 = vadd.xlane.f32.xlu0 %v3678
    %v3680 = vpop.xlane.xlu0 %3679
    %v3681 = vsel %vm3601, %v3665, 0.0
    %3682 = vadd.xlane.f32.xlu0 %v3681
    %v3683 = vpop.xlane.xlu0 %3682
    %v3684 = vsel %vm3601, %v3666, 0.0
    %3685 = vadd.xlane.f32.xlu0 %v3684
    %v3686 = vpop.xlane.xlu0 %3685
    %v3687 = vsel %vm3601, %v3667, 0.0
    %3688 = vadd.xlane.f32.xlu0 %v3687
    %v3689 = vpop.xlane.xlu0 %3688
    %v3690 = vsel %vm3601, %v3668, 0.0
    %3691 = vadd.xlane.f32.xlu0 %v3690
    %v3692 = vpop.xlane.xlu0 %3691
    %v3693 = vsel %vm3601, %v3669, 0.0
    %3694 = vadd.xlane.f32.xlu0 %v3693
    %v3695 = vpop.xlane.xlu0 %3694
    %v3696 = vsel %vm3601, %v3670, 0.0
    %3697 = vadd.xlane.f32.xlu0 %v3696
    %v3698 = vpop.xlane.xlu0 %3697
    %v3699 = vsel %vm3601, %v3671, 0.0
    %3700 = vadd.xlane.f32.xlu0 %v3699
    %v3701 = vpop.xlane.xlu0 %3700
    %v3702 = vsel %vm3601, %v3672, 0.0
    %3703 = vadd.xlane.f32.xlu0 %v3702
    %v3704 = vpop.xlane.xlu0 %3703
    %v3705 = vsel %vm3601, %v3673, 0.0
    %3706 = vadd.xlane.f32.xlu0 %v3705
    %v3707 = vpop.xlane.xlu0 %3706
    %v3708 = vsel %vm3601, %v3674, 0.0
    %3709 = vadd.xlane.f32.xlu0 %v3708
    %v3710 = vpop.xlane.xlu0 %3709
    %v3711 = vmul.f32 %v3677, %v3638
    %v3712 = vmul.f32 %v3680, %v3638
    %v3713 = vmul.f32 %v3683, %v3638
    %v3714 = vmul.f32 %v3686, %v3638
    %v3715 = vmul.f32 %v3689, %v3638
    %v3716 = vmul.f32 %v3692, %v3638
    %v3717 = vmul.f32 %v3695, %v3638
    %v3718 = vmul.f32 %v3698, %v3638
    %v3719 = vmul.f32 %v3701, %v3638
    %v3720 = vmul.f32 %v3704, %v3638
    %v3721 = vmul.f32 %v3707, %v3638
    %v3722 = vmul.f32 %v3710, %v3638
    %v3723 = vrsqrt.pop %v3711
    %v3724 = vmul.f32 %v3711, %v3723
    %vm3725 = vcmp.eq.f32.partialorder %v3711, inf
    %v3726 = vsel %vm3725, %v3711, %v3724
    %vm3727 = vcmp.eq.f32.partialorder %v3711, 0.0
    %v3728 = vand.u32 %v3711, 2147483648
    %v3729 = vsel %vm3727, %v3728, %v3726
    %v3730 = vrsqrt.pop %v3712
    %v3731 = vmul.f32 %v3712, %v3730
    %vm3732 = vcmp.eq.f32.partialorder %v3712, inf
    %v3733 = vsel %vm3732, %v3712, %v3731
    %vm3734 = vcmp.eq.f32.partialorder %v3712, 0.0
    %v3735 = vand.u32 %v3712, 2147483648
    %v3736 = vsel %vm3734, %v3735, %v3733
    %v3737 = vrsqrt.pop %v3713
    %v3738 = vmul.f32 %v3713, %v3737
    %vm3739 = vcmp.eq.f32.partialorder %v3713, inf
    %v3740 = vsel %vm3739, %v3713, %v3738
    %vm3741 = vcmp.eq.f32.partialorder %v3713, 0.0
    %v3742 = vand.u32 %v3713, 2147483648
    %v3743 = vsel %vm3741, %v3742, %v3740
    %v3744 = vrsqrt.pop %v3714
    %v3745 = vmul.f32 %v3714, %v3744
    %vm3746 = vcmp.eq.f32.partialorder %v3714, inf
    %v3747 = vsel %vm3746, %v3714, %v3745
    %vm3748 = vcmp.eq.f32.partialorder %v3714, 0.0
    %v3749 = vand.u32 %v3714, 2147483648
    %v3750 = vsel %vm3748, %v3749, %v3747
    %v3751 = vrsqrt.pop %v3715
    %v3752 = vmul.f32 %v3715, %v3751
    %vm3753 = vcmp.eq.f32.partialorder %v3715, inf
    %v3754 = vsel %vm3753, %v3715, %v3752
    %vm3755 = vcmp.eq.f32.partialorder %v3715, 0.0
    %v3756 = vand.u32 %v3715, 2147483648
    %v3757 = vsel %vm3755, %v3756, %v3754
    %v3758 = vrsqrt.pop %v3716
    %v3759 = vmul.f32 %v3716, %v3758
    %vm3760 = vcmp.eq.f32.partialorder %v3716, inf
    %v3761 = vsel %vm3760, %v3716, %v3759
    %vm3762 = vcmp.eq.f32.partialorder %v3716, 0.0
    %v3763 = vand.u32 %v3716, 2147483648
    %v3764 = vsel %vm3762, %v3763, %v3761
    %v3765 = vrsqrt.pop %v3717
    %v3766 = vmul.f32 %v3717, %v3765
    %vm3767 = vcmp.eq.f32.partialorder %v3717, inf
    %v3768 = vsel %vm3767, %v3717, %v3766
    %vm3769 = vcmp.eq.f32.partialorder %v3717, 0.0
    %v3770 = vand.u32 %v3717, 2147483648
    %v3771 = vsel %vm3769, %v3770, %v3768
    %v3772 = vrsqrt.pop %v3718
    %v3773 = vmul.f32 %v3718, %v3772
    %vm3774 = vcmp.eq.f32.partialorder %v3718, inf
    %v3775 = vsel %vm3774, %v3718, %v3773
    %vm3776 = vcmp.eq.f32.partialorder %v3718, 0.0
    %v3777 = vand.u32 %v3718, 2147483648
    %v3778 = vsel %vm3776, %v3777, %v3775
    %v3779 = vrsqrt.pop %v3719
    %v3780 = vmul.f32 %v3719, %v3779
    %vm3781 = vcmp.eq.f32.partialorder %v3719, inf
    %v3782 = vsel %vm3781, %v3719, %v3780
    %vm3783 = vcmp.eq.f32.partialorder %v3719, 0.0
    %v3784 = vand.u32 %v3719, 2147483648
    %v3785 = vsel %vm3783, %v3784, %v3782
    %v3786 = vrsqrt.pop %v3720
    %v3787 = vmul.f32 %v3720, %v3786
    %vm3788 = vcmp.eq.f32.partialorder %v3720, inf
    %v3789 = vsel %vm3788, %v3720, %v3787
    %vm3790 = vcmp.eq.f32.partialorder %v3720, 0.0
    %v3791 = vand.u32 %v3720, 2147483648
    %v3792 = vsel %vm3790, %v3791, %v3789
    %v3793 = vrsqrt.pop %v3721
    %v3794 = vmul.f32 %v3721, %v3793
    %vm3795 = vcmp.eq.f32.partialorder %v3721, inf
    %v3796 = vsel %vm3795, %v3721, %v3794
    %vm3797 = vcmp.eq.f32.partialorder %v3721, 0.0
    %v3798 = vand.u32 %v3721, 2147483648
    %v3799 = vsel %vm3797, %v3798, %v3796
    %v3800 = vrsqrt.pop %v3722
    %v3801 = vmul.f32 %v3722, %v3800
    %vm3802 = vcmp.eq.f32.partialorder %v3722, inf
    %v3803 = vsel %vm3802, %v3722, %v3801
    %vm3804 = vcmp.eq.f32.partialorder %v3722, 0.0
    %v3805 = vand.u32 %v3722, 2147483648
    %v3806 = vsel %vm3804, %v3805, %v3803
    %v3807 = vadd.f32 %v3729, 1e-05
    %v3808 = vadd.f32 %v3736, 1e-05
    %v3809 = vadd.f32 %v3743, 1e-05
    %v3810 = vadd.f32 %v3750, 1e-05
    %v3811 = vadd.f32 %v3757, 1e-05
    %v3812 = vadd.f32 %v3764, 1e-05
    %v3813 = vadd.f32 %v3771, 1e-05
    %v3814 = vadd.f32 %v3778, 1e-05
    %v3815 = vadd.f32 %v3785, 1e-05
    %v3816 = vadd.f32 %v3792, 1e-05
    %v3817 = vadd.f32 %v3799, 1e-05
    %v3818 = vadd.f32 %v3806, 1e-05
    %v3819 = vrcp.pop %v3807
    %v3820 = vmul.f32 %v3651, %v3819
    %v3821 = vrcp.pop %v3808
    %v3822 = vmul.f32 %v3652, %v3821
    %v3823 = vrcp.pop %v3809
    %v3824 = vmul.f32 %v3653, %v3823
    %v3825 = vrcp.pop %v3810
    %v3826 = vmul.f32 %v3654, %v3825
    %v3827 = vrcp.pop %v3811
    %v3828 = vmul.f32 %v3655, %v3827
    %v3829 = vrcp.pop %v3812
    %v3830 = vmul.f32 %v3656, %v3829
    %v3831 = vrcp.pop %v3813
    %v3832 = vmul.f32 %v3657, %v3831
    %v3833 = vrcp.pop %v3814
    %v3834 = vmul.f32 %v3658, %v3833
    %v3835 = vrcp.pop %v3815
    %v3836 = vmul.f32 %v3659, %v3835
    %v3837 = vrcp.pop %v3816
    %v3838 = vmul.f32 %v3660, %v3837
    %v3839 = vrcp.pop %v3817
    %v3840 = vmul.f32 %v3661, %v3839
    %v3841 = vrcp.pop %v3818
    %v3842 = vmul.f32 %v3662, %v3841
    %v3843 = vlaneseq
    %v3844 = vshrl.u32 %v3843, 7
    %v3845 = vsub.s32 0, %v3844
    %v3846 = vrot.slane %v3599, %v3845
    %v3847 = vmul.f32 %v3820, %v3846
    %v3848 = vmul.f32 %v3822, %v3846
    %v3849 = vmul.f32 %v3824, %v3846
    %v3850 = vmul.f32 %v3826, %v3846
    %v3851 = vmul.f32 %v3828, %v3846
    %v3852 = vmul.f32 %v3830, %v3846
    %v3853 = vmul.f32 %v3832, %v3846
    %v3854 = vmul.f32 %v3834, %v3846
    %v3855 = vmul.f32 %v3836, %v3846
    %v3856 = vmul.f32 %v3838, %v3846
    %v3857 = vmul.f32 %v3840, %v3846
    %v3858 = vmul.f32 %v3842, %v3846
    %v3859 = vlaneseq
    %v3860 = vshrl.u32 %v3859, 7
    %v3861 = vsub.s32 0, %v3860
    %v3862 = vrot.slane %v3600, %v3861
    %v3863 = vadd.f32 %v3847, %v3862
    %v3864 = vadd.f32 %v3848, %v3862
    %v3865 = vadd.f32 %v3849, %v3862
    %v3866 = vadd.f32 %v3850, %v3862
    %v3867 = vadd.f32 %v3851, %v3862
    %v3868 = vadd.f32 %v3852, %v3862
    %v3869 = vadd.f32 %v3853, %v3862
    %v3870 = vadd.f32 %v3854, %v3862
    %v3871 = vadd.f32 %v3855, %v3862
    %v3872 = vadd.f32 %v3856, %v3862
    %v3873 = vadd.f32 %v3857, %v3862
    %v3874 = vadd.f32 %v3858, %v3862
    %v3875 = vld [vmem:[#allocation4 + $0x30] sm:$0xff]
    %v3876 = vld [vmem:[#allocation4 + $0x38] sm:$0xff]
    %v3877 = vld [vmem:[#allocation4 + $0x40] sm:$0xff]
    %v3878 = vld [vmem:[#allocation4 + $0x48] sm:$0xff]
    %v3879 = vld [vmem:[#allocation6 + $0x6] sm:$0x1]
    %v3880 = vlaneseq
    %v3881 = vshrl.u32 %v3880, 7
    %v3882 = vsub.s32 0, %v3881
    %v3883 = vrot.slane %v3879, %v3882
    %v3885 = vsel %vm3601, %v3863, 0
    %v3888 = vsel %vm3601, %v3864, 0
    %v3891 = vsel %vm3601, %v3865, 0
    %v3894 = vsel %vm3601, %v3866, 0
    %v3897 = vsel %vm3601, %v3867, 0
    %v3900 = vsel %vm3601, %v3868, 0
    %v3903 = vsel %vm3601, %v3869, 0
    %v3906 = vsel %vm3601, %v3870, 0
    %v3909 = vsel %vm3601, %v3871, 0
    %v3912 = vsel %vm3601, %v3872, 0
    %v3915 = vsel %vm3601, %v3873, 0
    %v3918 = vsel %vm3601, %v3874, 0
    %3920 = vmatprep.subr.mxu0 0.0
    %3921 = vmatpush1.msra.mxu0 %v3875
    %3922 = vmatprep.subr.mxu0 0.0
    %3923 = vmatpush1.msra.mxu0 %v3876
    %3924 = vmatprep.subr.mxu0 0.0
    %3925 = vmatpush1.msra.mxu0 %v3877
    %3926 = vmatprep.subr.mxu0 0.0
    %3927 = vmatpush1.msra.mxu0 %v3878
    %3928 = vmatprep.subr.mxu0 0.0
    %3929 = vmatpush1.msra.mxu0 0.0
    %3930 = vmatprep.subr.mxu0 0.0
    %3931 = vmatpush1.msra.mxu0 0.0
    %3932 = vmatprep.subr.mxu0 0.0
    %3933 = vmatpush1.msra.mxu0 0.0
    %3934 = vmatprep.subr.mxu0 0.0
    %3935 = vmatpush1.msra.mxu0 0.0
    %3936 = vmatprep.subr.mxu0 0.0
    %3937 = vmatpush1.msra.mxu0 0.0
    %3938 = vmatprep.subr.mxu0 0.0
    %3939 = vmatpush1.msra.mxu0 0.0
    %3940 = vmatprep.subr.mxu0 0.0
    %3941 = vmatpush1.msra.mxu0 0.0
    %3942 = vmatprep.subr.mxu0 0.0
    %3943 = vmatpush1.msra.mxu0 0.0
    %3944 = vmatprep.subr.mxu0 0.0
    %3945 = vmatpush1.msra.mxu0 0.0
    %3946 = vmatprep.subr.mxu0 0.0
    %3947 = vmatpush1.msra.mxu0 0.0
    %3948 = vmatprep.subr.mxu0 0.0
    %3949 = vmatpush1.msra.mxu0 0.0
    %3950 = vmatprep.subr.mxu0 0.0
    %3951 = vmatpush1.msra.mxu0 0.0
    %3952 = vmatprep.subr.mxu0 0.0
    %3953 = vmatpush1.msra.mxu0 0.0
    %3954 = vmatprep.subr.mxu0 0.0
    %3955 = vmatpush1.msra.mxu0 0.0
    %3956 = vmatprep.subr.mxu0 0.0
    %3957 = vmatpush1.msra.mxu0 0.0
    %3958 = vmatprep.subr.mxu0 0.0
    %3959 = vmatpush1.msra.mxu0 0.0
    %3960 = vmatprep.subr.mxu0 0.0
    %3961 = vmatpush1.msra.mxu0 0.0
    %3962 = vmatprep.subr.mxu0 0.0
    %3963 = vmatpush1.msra.mxu0 0.0
    %3964 = vmatprep.subr.mxu0 0.0
    %3965 = vmatpush1.msra.mxu0 0.0
    %3966 = vmatprep.subr.mxu0 0.0
    %3967 = vmatpush1.msra.mxu0 0.0
    %3968 = vmatprep.subr.mxu0 0.0
    %3969 = vmatpush1.msra.mxu0 0.0
    %3970 = vmatprep.subr.mxu0 0.0
    %3971 = vmatpush1.msra.mxu0 0.0
    %3972 = vmatprep.subr.mxu0 0.0
    %3973 = vmatpush1.msra.mxu0 0.0
    %3974 = vmatprep.subr.mxu0 0.0
    %3975 = vmatpush1.msra.mxu0 0.0
    %3976 = vmatprep.subr.mxu0 0.0
    %3977 = vmatpush1.msra.mxu0 0.0
    %3978 = vmatprep.subr.mxu0 0.0
    %3979 = vmatpush1.msra.mxu0 0.0
    %3980 = vmatprep.subr.mxu0 0.0
    %3981 = vmatpush1.msra.mxu0 0.0
    %3982 = vmatprep.subr.mxu0 0.0
    %3983 = vmatpush1.msra.mxu0 0.0
    %3984 = vmatprep.mubr.f32.mxu0 0.0
    %3985 = vmatmul.mubr.f32.gmra.mrb[0].mxu0 %v3885
    %v3986 = vpop.f32.mrb[0].mxu0
    %v3987 = vadd.f32 %v3883, %v3986
    %v3988 = vpop.f32.mrb[0].mxu0
    %3989 = vmatprep.mubr.f32.mxu0 0.0
    %3990 = vmatmul.mubr.f32.gmra.mrb[0].mxu0 %v3888
    %v3991 = vpop.f32.mrb[0].mxu0
    %v3992 = vadd.f32 %v3883, %v3991
    %v3993 = vpop.f32.mrb[0].mxu0
    %3994 = vmatprep.mubr.f32.mxu0 0.0
    %3995 = vmatmul.mubr.f32.gmra.mrb[0].mxu0 %v3891
    %v3996 = vpop.f32.mrb[0].mxu0
    %v3997 = vadd.f32 %v3883, %v3996
    %v3998 = vpop.f32.mrb[0].mxu0
    %3999 = vmatprep.mubr.f32.mxu0 0.0
    %4000 = vmatmul.mubr.f32.gmra.mrb[0].mxu0 %v3894
    %v4001 = vpop.f32.mrb[0].mxu0
    %v4002 = vadd.f32 %v3883, %v4001
    %v4003 = vpop.f32.mrb[0].mxu0
    %4004 = vmatprep.mubr.f32.mxu0 0.0
    %4005 = vmatmul.mubr.f32.gmra.mrb[0].mxu0 %v3897
    %v4006 = vpop.f32.mrb[0].mxu0
    %v4007 = vadd.f32 %v3883, %v4006
    %v4008 = vpop.f32.mrb[0].mxu0
    %4009 = vmatprep.mubr.f32.mxu0 0.0
    %4010 = vmatmul.mubr.f32.gmra.mrb[0].mxu0 %v3900
    %v4011 = vpop.f32.mrb[0].mxu0
    %v4012 = vadd.f32 %v3883, %v4011
    %v4013 = vpop.f32.mrb[0].mxu0
    %4014 = vmatprep.mubr.f32.mxu0 0.0
    %4015 = vmatmul.mubr.f32.gmra.mrb[0].mxu0 %v3903
    %v4016 = vpop.f32.mrb[0].mxu0
    %v4017 = vadd.f32 %v3883, %v4016
    %v4018 = vpop.f32.mrb[0].mxu0
    %4019 = vmatprep.mubr.f32.mxu0 0.0
    %4020 = vmatmul.mubr.f32.gmra.mrb[0].mxu0 %v3906
    %v4021 = vpop.f32.mrb[0].mxu0
    %v4022 = vadd.f32 %v3883, %v4021
    %v4023 = vpop.f32.mrb[0].mxu0
    %4024 = vmatprep.mubr.f32.mxu0 0.0
    %4025 = vmatmul.mubr.f32.gmra.mrb[0].mxu0 %v3909
    %v4026 = vpop.f32.mrb[0].mxu0
    %v4027 = vadd.f32 %v3883, %v4026
    %v4028 = vpop.f32.mrb[0].mxu0
    %4029 = vmatprep.mubr.f32.mxu0 0.0
    %4030 = vmatmul.mubr.f32.gmra.mrb[0].mxu0 %v3912
    %v4031 = vpop.f32.mrb[0].mxu0
    %v4032 = vadd.f32 %v3883, %v4031
    %v4033 = vpop.f32.mrb[0].mxu0
    %4034 = vmatprep.mubr.f32.mxu0 0.0
    %4035 = vmatmul.mubr.f32.gmra.mrb[0].mxu0 %v3915
    %v4036 = vpop.f32.mrb[0].mxu0
    %v4037 = vadd.f32 %v3883, %v4036
    %v4038 = vpop.f32.mrb[0].mxu0
    %4039 = vmatprep.mubr.f32.mxu0 0.0
    %4040 = vmatmul.mubr.f32.gmra.mrb[0].mxu0 %v3918
    %v4041 = vpop.f32.mrb[0].mxu0
    %v4042 = vadd.f32 %v3883, %v4041
    %v4043 = vpop.f32.mrb[0].mxu0
    %4044 = vdwg.mxu0
    %vm4045 = vcmp.gt.f32.partialorder %v3987, 0.0
    %vm4046 = vcmp.gt.f32.partialorder %v3992, 0.0
    %vm4047 = vcmp.gt.f32.partialorder %v3997, 0.0
    %vm4048 = vcmp.gt.f32.partialorder %v4002, 0.0
    %vm4049 = vcmp.gt.f32.partialorder %v4007, 0.0
    %vm4050 = vcmp.gt.f32.partialorder %v4012, 0.0
    %vm4051 = vcmp.gt.f32.partialorder %v4017, 0.0
    %vm4052 = vcmp.gt.f32.partialorder %v4022, 0.0
    %vm4053 = vcmp.gt.f32.partialorder %v4027, 0.0
    %vm4054 = vcmp.gt.f32.partialorder %v4032, 0.0
    %vm4055 = vcmp.gt.f32.partialorder %v4037, 0.0
    %vm4056 = vcmp.gt.f32.partialorder %v4042, 0.0
    %v4057 = vmin.f32 %v3987, 0.0
    %v4058 = vmin.f32 %v3992, 0.0
    %v4059 = vmin.f32 %v3997, 0.0
    %v4060 = vmin.f32 %v4002, 0.0
    %v4061 = vmin.f32 %v4007, 0.0
    %v4062 = vmin.f32 %v4012, 0.0
    %v4063 = vmin.f32 %v4017, 0.0
    %v4064 = vmin.f32 %v4022, 0.0
    %v4065 = vmin.f32 %v4027, 0.0
    %v4066 = vmin.f32 %v4032, 0.0
    %v4067 = vmin.f32 %v4037, 0.0
    %v4068 = vmin.f32 %v4042, 0.0
    %v4069 = vmul.f32 %v4057, 1.442695
    %v4070 = vpow.pop %v4069
    %v4071 = vmul.f32 %v4058, 1.442695
    %v4072 = vpow.pop %v4071
    %v4073 = vmul.f32 %v4059, 1.442695
    %v4074 = vpow.pop %v4073
    %v4075 = vmul.f32 %v4060, 1.442695
    %v4076 = vpow.pop %v4075
    %v4077 = vmul.f32 %v4061, 1.442695
    %v4078 = vpow.pop %v4077
    %v4079 = vmul.f32 %v4062, 1.442695
    %v4080 = vpow.pop %v4079
    %v4081 = vmul.f32 %v4063, 1.442695
    %v4082 = vpow.pop %v4081
    %v4083 = vmul.f32 %v4064, 1.442695
    %v4084 = vpow.pop %v4083
    %v4085 = vmul.f32 %v4065, 1.442695
    %v4086 = vpow.pop %v4085
    %v4087 = vmul.f32 %v4066, 1.442695
    %v4088 = vpow.pop %v4087
    %v4089 = vmul.f32 %v4067, 1.442695
    %v4090 = vpow.pop %v4089
    %v4091 = vmul.f32 %v4068, 1.442695
    %v4092 = vpow.pop %v4091
    %v4093 = vsub.f32 %v4070, 1.0
    %v4094 = vsub.f32 %v4072, 1.0
    %v4095 = vsub.f32 %v4074, 1.0
    %v4096 = vsub.f32 %v4076, 1.0
    %v4097 = vsub.f32 %v4078, 1.0
    %v4098 = vsub.f32 %v4080, 1.0
    %v4099 = vsub.f32 %v4082, 1.0
    %v4100 = vsub.f32 %v4084, 1.0
    %v4101 = vsub.f32 %v4086, 1.0
    %v4102 = vsub.f32 %v4088, 1.0
    %v4103 = vsub.f32 %v4090, 1.0
    %v4104 = vsub.f32 %v4092, 1.0
    %v4105 = vsel %vm4045, %v3987, %v4093
    %v4106 = vsel %vm4046, %v3992, %v4094
    %v4107 = vsel %vm4047, %v3997, %v4095
    %v4108 = vsel %vm4048, %v4002, %v4096
    %v4109 = vsel %vm4049, %v4007, %v4097
    %v4110 = vsel %vm4050, %v4012, %v4098
    %v4111 = vsel %vm4051, %v4017, %v4099
    %v4112 = vsel %vm4052, %v4022, %v4100
    %v4113 = vsel %vm4053, %v4027, %v4101
    %v4114 = vsel %vm4054, %v4032, %v4102
    %v4115 = vsel %vm4055, %v4037, %v4103
    %v4116 = vsel %vm4056, %v4042, %v4104
    %v4117 = vld [vmem:[#allocation4 + $0x50] sm:$0xff]
    %v4118 = vld [vmem:[#allocation4 + $0x58] sm:$0xff]
    %v4119 = vld [vmem:[#allocation4 + $0x60] sm:$0xff]
    %v4120 = vld [vmem:[#allocation4 + $0x68] sm:$0xff]
    %v4121 = vld [vmem:[#allocation4 + $0x70] sm:$0xff]
    %v4122 = vld [vmem:[#allocation4 + $0x78] sm:$0xff]
    %v4123 = vld [vmem:[#allocation4 + $0x80] sm:$0xff]
    %v4124 = vld [vmem:[#allocation4 + $0x88] sm:$0xff]
    %v4125 = vld [vmem:[#allocation6 + $0x7] sm:$0x1]
    %v4126 = vlaneseq
    %v4127 = vshrl.u32 %v4126, 7
    %v4128 = vsub.s32 0, %v4127
    %v4129 = vrot.slane %v4125, %v4128
    %vm4130 = vcmask 523264
    %v4132 = vsel %vm4130, %v4105, 0
    %v4135 = vsel %vm4130, %v4106, 0
    %v4138 = vsel %vm4130, %v4107, 0
    %v4141 = vsel %vm4130, %v4108, 0
    %v4144 = vsel %vm4130, %v4109, 0
    %v4147 = vsel %vm4130, %v4110, 0
    %v4150 = vsel %vm4130, %v4111, 0
    %v4153 = vsel %vm4130, %v4112, 0
    %v4156 = vsel %vm4130, %v4113, 0
    %v4159 = vsel %vm4130, %v4114, 0
    %v4162 = vsel %vm4130, %v4115, 0
    %v4165 = vsel %vm4130, %v4116, 0
    %4167 = vmatprep.subr.mxu0 0.0
    %4168 = vmatpush1.msra.mxu0 %v4117
    %4169 = vmatprep.subr.mxu0 0.0
    %4170 = vmatpush1.msra.mxu0 %v4118
    %4171 = vmatprep.subr.mxu0 0.0
    %4172 = vmatpush1.msra.mxu0 %v4119
    %4173 = vmatprep.subr.mxu0 0.0
    %4174 = vmatpush1.msra.mxu0 %v4120
    %4175 = vmatprep.subr.mxu0 0.0
    %4176 = vmatpush1.msra.mxu0 %v4121
    %4177 = vmatprep.subr.mxu0 0.0
    %4178 = vmatpush1.msra.mxu0 %v4122
    %4179 = vmatprep.subr.mxu0 0.0
    %4180 = vmatpush1.msra.mxu0 %v4123
    %4181 = vmatprep.subr.mxu0 0.0
    %4182 = vmatpush1.msra.mxu0 %v4124
    %4183 = vmatprep.subr.mxu0 0.0
    %4184 = vmatpush1.msra.mxu0 0.0
    %4185 = vmatprep.subr.mxu0 0.0
    %4186 = vmatpush1.msra.mxu0 0.0
    %4187 = vmatprep.subr.mxu0 0.0
    %4188 = vmatpush1.msra.mxu0 0.0
    %4189 = vmatprep.subr.mxu0 0.0
    %4190 = vmatpush1.msra.mxu0 0.0
    %4191 = vmatprep.subr.mxu0 0.0
    %4192 = vmatpush1.msra.mxu0 0.0
    %4193 = vmatprep.subr.mxu0 0.0
    %4194 = vmatpush1.msra.mxu0 0.0
    %4195 = vmatprep.subr.mxu0 0.0
    %4196 = vmatpush1.msra.mxu0 0.0
    %4197 = vmatprep.subr.mxu0 0.0
    %4198 = vmatpush1.msra.mxu0 0.0
    %4199 = vmatprep.subr.mxu0 0.0
    %4200 = vmatpush1.msra.mxu0 0.0
    %4201 = vmatprep.subr.mxu0 0.0
    %4202 = vmatpush1.msra.mxu0 0.0
    %4203 = vmatprep.subr.mxu0 0.0
    %4204 = vmatpush1.msra.mxu0 0.0
    %4205 = vmatprep.subr.mxu0 0.0
    %4206 = vmatpush1.msra.mxu0 0.0
    %4207 = vmatprep.subr.mxu0 0.0
    %4208 = vmatpush1.msra.mxu0 0.0
    %4209 = vmatprep.subr.mxu0 0.0
    %4210 = vmatpush1.msra.mxu0 0.0
    %4211 = vmatprep.subr.mxu0 0.0
    %4212 = vmatpush1.msra.mxu0 0.0
    %4213 = vmatprep.subr.mxu0 0.0
    %4214 = vmatpush1.msra.mxu0 0.0
    %4215 = vmatprep.subr.mxu0 0.0
    %4216 = vmatpush1.msra.mxu0 0.0
    %4217 = vmatprep.subr.mxu0 0.0
    %4218 = vmatpush1.msra.mxu0 0.0
    %4219 = vmatprep.subr.mxu0 0.0
    %4220 = vmatpush1.msra.mxu0 0.0
    %4221 = vmatprep.subr.mxu0 0.0
    %4222 = vmatpush1.msra.mxu0 0.0
    %4223 = vmatprep.subr.mxu0 0.0
    %4224 = vmatpush1.msra.mxu0 0.0
    %4225 = vmatprep.subr.mxu0 0.0
    %4226 = vmatpush1.msra.mxu0 0.0
    %4227 = vmatprep.subr.mxu0 0.0
    %4228 = vmatpush1.msra.mxu0 0.0
    %4229 = vmatprep.subr.mxu0 0.0
    %4230 = vmatpush1.msra.mxu0 0.0
    %4231 = vmatprep.mubr.f32.mxu0 0.0
    %4232 = vmatmul.mubr.f32.gmra.mrb[0].mxu0 %v4132
    %v4233 = vpop.f32.mrb[0].mxu0
    %v4234 = vadd.f32 %v4129, %v4233
    %v4235 = vpop.f32.mrb[0].mxu0
    %4236 = vmatprep.mubr.f32.mxu0 0.0
    %4237 = vmatmul.mubr.f32.gmra.mrb[0].mxu0 %v4135
    %v4238 = vpop.f32.mrb[0].mxu0
    %v4239 = vadd.f32 %v4129, %v4238
    %v4240 = vpop.f32.mrb[0].mxu0
    %4241 = vmatprep.mubr.f32.mxu0 0.0
    %4242 = vmatmul.mubr.f32.gmra.mrb[0].mxu0 %v4138
    %v4243 = vpop.f32.mrb[0].mxu0
    %v4244 = vadd.f32 %v4129, %v4243
    %v4245 = vpop.f32.mrb[0].mxu0
    %4246 = vmatprep.mubr.f32.mxu0 0.0
    %4247 = vmatmul.mubr.f32.gmra.mrb[0].mxu0 %v4141
    %v4248 = vpop.f32.mrb[0].mxu0
    %v4249 = vadd.f32 %v4129, %v4248
    %v4250 = vpop.f32.mrb[0].mxu0
    %4251 = vmatprep.mubr.f32.mxu0 0.0
    %4252 = vmatmul.mubr.f32.gmra.mrb[0].mxu0 %v4144
    %v4253 = vpop.f32.mrb[0].mxu0
    %v4254 = vadd.f32 %v4129, %v4253
    %v4255 = vpop.f32.mrb[0].mxu0
    %4256 = vmatprep.mubr.f32.mxu0 0.0
    %4257 = vmatmul.mubr.f32.gmra.mrb[0].mxu0 %v4147
    %v4258 = vpop.f32.mrb[0].mxu0
    %v4259 = vadd.f32 %v4129, %v4258
    %v4260 = vpop.f32.mrb[0].mxu0
    %4261 = vmatprep.mubr.f32.mxu0 0.0
    %4262 = vmatmul.mubr.f32.gmra.mrb[0].mxu0 %v4150
    %v4263 = vpop.f32.mrb[0].mxu0
    %v4264 = vadd.f32 %v4129, %v4263
    %v4265 = vpop.f32.mrb[0].mxu0
    %4266 = vmatprep.mubr.f32.mxu0 0.0
    %4267 = vmatmul.mubr.f32.gmra.mrb[0].mxu0 %v4153
    %v4268 = vpop.f32.mrb[0].mxu0
    %v4269 = vadd.f32 %v4129, %v4268
    %v4270 = vpop.f32.mrb[0].mxu0
    %4271 = vmatprep.mubr.f32.mxu0 0.0
    %4272 = vmatmul.mubr.f32.gmra.mrb[0].mxu0 %v4156
    %v4273 = vpop.f32.mrb[0].mxu0
    %v4274 = vadd.f32 %v4129, %v4273
    %v4275 = vpop.f32.mrb[0].mxu0
    %4276 = vmatprep.mubr.f32.mxu0 0.0
    %4277 = vmatmul.mubr.f32.gmra.mrb[0].mxu0 %v4159
    %v4278 = vpop.f32.mrb[0].mxu0
    %v4279 = vadd.f32 %v4129, %v4278
    %v4280 = vpop.f32.mrb[0].mxu0
    %4281 = vmatprep.mubr.f32.mxu0 0.0
    %4282 = vmatmul.mubr.f32.gmra.mrb[0].mxu0 %v4162
    %v4283 = vpop.f32.mrb[0].mxu0
    %v4284 = vadd.f32 %v4129, %v4283
    %v4285 = vpop.f32.mrb[0].mxu0
    %4286 = vmatprep.mubr.f32.mxu0 0.0
    %4287 = vmatmul.mubr.f32.gmra.mrb[0].mxu0 %v4165
    %v4288 = vpop.f32.mrb[0].mxu0
    %v4289 = vadd.f32 %v4129, %v4288
    %v4290 = vpop.f32.mrb[0].mxu0
    %4291 = vdwg.mxu0
    %v4292 = vadd.f32 %v3587, %v4234
    %v4293 = vadd.f32 %v3588, %v4239
    %v4294 = vadd.f32 %v3589, %v4244
    %v4295 = vadd.f32 %v3590, %v4249
    %v4296 = vadd.f32 %v3591, %v4254
    %v4297 = vadd.f32 %v3592, %v4259
    %v4298 = vadd.f32 %v3593, %v4264
    %v4299 = vadd.f32 %v3594, %v4269
    %v4300 = vadd.f32 %v3595, %v4274
    %v4301 = vadd.f32 %v3596, %v4279
    %v4302 = vadd.f32 %v3597, %v4284
    %v4303 = vadd.f32 %v3598, %v4289
    %v4304 = vld [vmem:[#allocation6 + $0x9] sm:$0x1]
    %v4305 = vld [vmem:[#allocation6 + $0xa] sm:$0x1]
    %v4306 = vsel %vm3601, %v4292, 0.0
    %4307 = vadd.xlane.f32.xlu0 %v4306
    %v4308 = vpop.xlane.xlu0 %4307
    %v4309 = vsel %vm3601, %v4293, 0.0
    %4310 = vadd.xlane.f32.xlu0 %v4309
    %v4311 = vpop.xlane.xlu0 %4310
    %v4312 = vsel %vm3601, %v4294, 0.0
    %4313 = vadd.xlane.f32.xlu0 %v4312
    %v4314 = vpop.xlane.xlu0 %4313
    %v4315 = vsel %vm3601, %v4295, 0.0
    %4316 = vadd.xlane.f32.xlu0 %v4315
    %v4317 = vpop.xlane.xlu0 %4316
    %v4318 = vsel %vm3601, %v4296, 0.0
    %4319 = vadd.xlane.f32.xlu0 %v4318
    %v4320 = vpop.xlane.xlu0 %4319
    %v4321 = vsel %vm3601, %v4297, 0.0
    %4322 = vadd.xlane.f32.xlu0 %v4321
    %v4323 = vpop.xlane.xlu0 %4322
    %v4324 = vsel %vm3601, %v4298, 0.0
    %4325 = vadd.xlane.f32.xlu0 %v4324
    %v4326 = vpop.xlane.xlu0 %4325
    %v4327 = vsel %vm3601, %v4299, 0.0
    %4328 = vadd.xlane.f32.xlu0 %v4327
    %v4329 = vpop.xlane.xlu0 %4328
    %v4330 = vsel %vm3601, %v4300, 0.0
    %4331 = vadd.xlane.f32.xlu0 %v4330
    %v4332 = vpop.xlane.xlu0 %4331
    %v4333 = vsel %vm3601, %v4301, 0.0
    %4334 = vadd.xlane.f32.xlu0 %v4333
    %v4335 = vpop.xlane.xlu0 %4334
    %v4336 = vsel %vm3601, %v4302, 0.0
    %4337 = vadd.xlane.f32.xlu0 %v4336
    %v4338 = vpop.xlane.xlu0 %4337
    %v4339 = vsel %vm3601, %v4303, 0.0
    %4340 = vadd.xlane.f32.xlu0 %v4339
    %v4341 = vpop.xlane.xlu0 %4340
    %v4342 = vmul.f32 %v4308, %v3638
    %v4343 = vmul.f32 %v4311, %v3638
    %v4344 = vmul.f32 %v4314, %v3638
    %v4345 = vmul.f32 %v4317, %v3638
    %v4346 = vmul.f32 %v4320, %v3638
    %v4347 = vmul.f32 %v4323, %v3638
    %v4348 = vmul.f32 %v4326, %v3638
    %v4349 = vmul.f32 %v4329, %v3638
    %v4350 = vmul.f32 %v4332, %v3638
    %v4351 = vmul.f32 %v4335, %v3638
    %v4352 = vmul.f32 %v4338, %v3638
    %v4353 = vmul.f32 %v4341, %v3638
    %v4354 = vsub.f32 %v4292, %v4342
    %v4355 = vsub.f32 %v4293, %v4343
    %v4356 = vsub.f32 %v4294, %v4344
    %v4357 = vsub.f32 %v4295, %v4345
    %v4358 = vsub.f32 %v4296, %v4346
    %v4359 = vsub.f32 %v4297, %v4347
    %v4360 = vsub.f32 %v4298, %v4348
    %v4361 = vsub.f32 %v4299, %v4349
    %v4362 = vsub.f32 %v4300, %v4350
    %v4363 = vsub.f32 %v4301, %v4351
    %v4364 = vsub.f32 %v4302, %v4352
    %v4365 = vsub.f32 %v4303, %v4353
    %v4366 = vmul.f32 %v4354, %v4354
    %v4367 = vmul.f32 %v4355, %v4355
    %v4368 = vmul.f32 %v4356, %v4356
    %v4369 = vmul.f32 %v4357, %v4357
    %v4370 = vmul.f32 %v4358, %v4358
    %v4371 = vmul.f32 %v4359, %v4359
    %v4372 = vmul.f32 %v4360, %v4360
    %v4373 = vmul.f32 %v4361, %v4361
    %v4374 = vmul.f32 %v4362, %v4362
    %v4375 = vmul.f32 %v4363, %v4363
    %v4376 = vmul.f32 %v4364, %v4364
    %v4377 = vmul.f32 %v4365, %v4365
    %v4378 = vsel %vm3601, %v4366, 0.0
    %4379 = vadd.xlane.f32.xlu0 %v4378
    %v4380 = vpop.xlane.xlu0 %4379
    %v4381 = vsel %vm3601, %v4367, 0.0
    %4382 = vadd.xlane.f32.xlu0 %v4381
    %v4383 = vpop.xlane.xlu0 %4382
    %v4384 = vsel %vm3601, %v4368, 0.0
    %4385 = vadd.xlane.f32.xlu0 %v4384
    %v4386 = vpop.xlane.xlu0 %4385
    %v4387 = vsel %vm3601, %v4369, 0.0
    %4388 = vadd.xlane.f32.xlu0 %v4387
    %v4389 = vpop.xlane.xlu0 %4388
    %v4390 = vsel %vm3601, %v4370, 0.0
    %4391 = vadd.xlane.f32.xlu0 %v4390
    %v4392 = vpop.xlane.xlu0 %4391
    %v4393 = vsel %vm3601, %v4371, 0.0
    %4394 = vadd.xlane.f32.xlu0 %v4393
    %v4395 = vpop.xlane.xlu0 %4394
    %v4396 = vsel %vm3601, %v4372, 0.0
    %4397 = vadd.xlane.f32.xlu0 %v4396
    %v4398 = vpop.xlane.xlu0 %4397
    %v4399 = vsel %vm3601, %v4373, 0.0
    %4400 = vadd.xlane.f32.xlu0 %v4399
    %v4401 = vpop.xlane.xlu0 %4400
    %v4402 = vsel %vm3601, %v4374, 0.0
    %4403 = vadd.xlane.f32.xlu0 %v4402
    %v4404 = vpop.xlane.xlu0 %4403
    %v4405 = vsel %vm3601, %v4375, 0.0
    %4406 = vadd.xlane.f32.xlu0 %v4405
    %v4407 = vpop.xlane.xlu0 %4406
    %v4408 = vsel %vm3601, %v4376, 0.0
    %4409 = vadd.xlane.f32.xlu0 %v4408
    %v4410 = vpop.xlane.xlu0 %4409
    %v4411 = vsel %vm3601, %v4377, 0.0
    %4412 = vadd.xlane.f32.xlu0 %v4411
    %v4413 = vpop.xlane.xlu0 %4412
    %v4414 = vmul.f32 %v4380, %v3638
    %v4415 = vmul.f32 %v4383, %v3638
    %v4416 = vmul.f32 %v4386, %v3638
    %v4417 = vmul.f32 %v4389, %v3638
    %v4418 = vmul.f32 %v4392, %v3638
    %v4419 = vmul.f32 %v4395, %v3638
    %v4420 = vmul.f32 %v4398, %v3638
    %v4421 = vmul.f32 %v4401, %v3638
    %v4422 = vmul.f32 %v4404, %v3638
    %v4423 = vmul.f32 %v4407, %v3638
    %v4424 = vmul.f32 %v4410, %v3638
    %v4425 = vmul.f32 %v4413, %v3638
    %v4426 = vrsqrt.pop %v4414
    %v4427 = vmul.f32 %v4414, %v4426
    %vm4428 = vcmp.eq.f32.partialorder %v4414, inf
    %v4429 = vsel %vm4428, %v4414, %v4427
    %vm4430 = vcmp.eq.f32.partialorder %v4414, 0.0
    %v4431 = vand.u32 %v4414, 2147483648
    %v4432 = vsel %vm4430, %v4431, %v4429
    %v4433 = vrsqrt.pop %v4415
    %v4434 = vmul.f32 %v4415, %v4433
    %vm4435 = vcmp.eq.f32.partialorder %v4415, inf
    %v4436 = vsel %vm4435, %v4415, %v4434
    %vm4437 = vcmp.eq.f32.partialorder %v4415, 0.0
    %v4438 = vand.u32 %v4415, 2147483648
    %v4439 = vsel %vm4437, %v4438, %v4436
    %v4440 = vrsqrt.pop %v4416
    %v4441 = vmul.f32 %v4416, %v4440
    %vm4442 = vcmp.eq.f32.partialorder %v4416, inf
    %v4443 = vsel %vm4442, %v4416, %v4441
    %vm4444 = vcmp.eq.f32.partialorder %v4416, 0.0
    %v4445 = vand.u32 %v4416, 2147483648
    %v4446 = vsel %vm4444, %v4445, %v4443
    %v4447 = vrsqrt.pop %v4417
    %v4448 = vmul.f32 %v4417, %v4447
    %vm4449 = vcmp.eq.f32.partialorder %v4417, inf
    %v4450 = vsel %vm4449, %v4417, %v4448
    %vm4451 = vcmp.eq.f32.partialorder %v4417, 0.0
    %v4452 = vand.u32 %v4417, 2147483648
    %v4453 = vsel %vm4451, %v4452, %v4450
    %v4454 = vrsqrt.pop %v4418
    %v4455 = vmul.f32 %v4418, %v4454
    %vm4456 = vcmp.eq.f32.partialorder %v4418, inf
    %v4457 = vsel %vm4456, %v4418, %v4455
    %vm4458 = vcmp.eq.f32.partialorder %v4418, 0.0
    %v4459 = vand.u32 %v4418, 2147483648
    %v4460 = vsel %vm4458, %v4459, %v4457
    %v4461 = vrsqrt.pop %v4419
    %v4462 = vmul.f32 %v4419, %v4461
    %vm4463 = vcmp.eq.f32.partialorder %v4419, inf
    %v4464 = vsel %vm4463, %v4419, %v4462
    %vm4465 = vcmp.eq.f32.partialorder %v4419, 0.0
    %v4466 = vand.u32 %v4419, 2147483648
    %v4467 = vsel %vm4465, %v4466, %v4464
    %v4468 = vrsqrt.pop %v4420
    %v4469 = vmul.f32 %v4420, %v4468
    %vm4470 = vcmp.eq.f32.partialorder %v4420, inf
    %v4471 = vsel %vm4470, %v4420, %v4469
    %vm4472 = vcmp.eq.f32.partialorder %v4420, 0.0
    %v4473 = vand.u32 %v4420, 2147483648
    %v4474 = vsel %vm4472, %v4473, %v4471
    %v4475 = vrsqrt.pop %v4421
    %v4476 = vmul.f32 %v4421, %v4475
    %vm4477 = vcmp.eq.f32.partialorder %v4421, inf
    %v4478 = vsel %vm4477, %v4421, %v4476
    %vm4479 = vcmp.eq.f32.partialorder %v4421, 0.0
    %v4480 = vand.u32 %v4421, 2147483648
    %v4481 = vsel %vm4479, %v4480, %v4478
    %v4482 = vrsqrt.pop %v4422
    %v4483 = vmul.f32 %v4422, %v4482
    %vm4484 = vcmp.eq.f32.partialorder %v4422, inf
    %v4485 = vsel %vm4484, %v4422, %v4483
    %vm4486 = vcmp.eq.f32.partialorder %v4422, 0.0
    %v4487 = vand.u32 %v4422, 2147483648
    %v4488 = vsel %vm4486, %v4487, %v4485
    %v4489 = vrsqrt.pop %v4423
    %v4490 = vmul.f32 %v4423, %v4489
    %vm4491 = vcmp.eq.f32.partialorder %v4423, inf
    %v4492 = vsel %vm4491, %v4423, %v4490
    %vm4493 = vcmp.eq.f32.partialorder %v4423, 0.0
    %v4494 = vand.u32 %v4423, 2147483648
    %v4495 = vsel %vm4493, %v4494, %v4492
    %v4496 = vrsqrt.pop %v4424
    %v4497 = vmul.f32 %v4424, %v4496
    %vm4498 = vcmp.eq.f32.partialorder %v4424, inf
    %v4499 = vsel %vm4498, %v4424, %v4497
    %vm4500 = vcmp.eq.f32.partialorder %v4424, 0.0
    %v4501 = vand.u32 %v4424, 2147483648
    %v4502 = vsel %vm4500, %v4501, %v4499
    %v4503 = vrsqrt.pop %v4425
    %v4504 = vmul.f32 %v4425, %v4503
    %vm4505 = vcmp.eq.f32.partialorder %v4425, inf
    %v4506 = vsel %vm4505, %v4425, %v4504
    %vm4507 = vcmp.eq.f32.partialorder %v4425, 0.0
    %v4508 = vand.u32 %v4425, 2147483648
    %v4509 = vsel %vm4507, %v4508, %v4506
    %v4510 = vadd.f32 %v4432, 1e-05
    %v4511 = vadd.f32 %v4439, 1e-05
    %v4512 = vadd.f32 %v4446, 1e-05
    %v4513 = vadd.f32 %v4453, 1e-05
    %v4514 = vadd.f32 %v4460, 1e-05
    %v4515 = vadd.f32 %v4467, 1e-05
    %v4516 = vadd.f32 %v4474, 1e-05
    %v4517 = vadd.f32 %v4481, 1e-05
    %v4518 = vadd.f32 %v4488, 1e-05
    %v4519 = vadd.f32 %v4495, 1e-05
    %v4520 = vadd.f32 %v4502, 1e-05
    %v4521 = vadd.f32 %v4509, 1e-05
    %v4522 = vrcp.pop %v4510
    %v4523 = vmul.f32 %v4354, %v4522
    %v4524 = vrcp.pop %v4511
    %v4525 = vmul.f32 %v4355, %v4524
    %v4526 = vrcp.pop %v4512
    %v4527 = vmul.f32 %v4356, %v4526
    %v4528 = vrcp.pop %v4513
    %v4529 = vmul.f32 %v4357, %v4528
    %v4530 = vrcp.pop %v4514
    %v4531 = vmul.f32 %v4358, %v4530
    %v4532 = vrcp.pop %v4515
    %v4533 = vmul.f32 %v4359, %v4532
    %v4534 = vrcp.pop %v4516
    %v4535 = vmul.f32 %v4360, %v4534
    %v4536 = vrcp.pop %v4517
    %v4537 = vmul.f32 %v4361, %v4536
    %v4538 = vrcp.pop %v4518
    %v4539 = vmul.f32 %v4362, %v4538
    %v4540 = vrcp.pop %v4519
    %v4541 = vmul.f32 %v4363, %v4540
    %v4542 = vrcp.pop %v4520
    %v4543 = vmul.f32 %v4364, %v4542
    %v4544 = vrcp.pop %v4521
    %v4545 = vmul.f32 %v4365, %v4544
    %v4546 = vlaneseq
    %v4547 = vshrl.u32 %v4546, 7
    %v4548 = vsub.s32 0, %v4547
    %v4549 = vrot.slane %v4304, %v4548
    %v4550 = vmul.f32 %v4523, %v4549
    %v4551 = vmul.f32 %v4525, %v4549
    %v4552 = vmul.f32 %v4527, %v4549
    %v4553 = vmul.f32 %v4529, %v4549
    %v4554 = vmul.f32 %v4531, %v4549
    %v4555 = vmul.f32 %v4533, %v4549
    %v4556 = vmul.f32 %v4535, %v4549
    %v4557 = vmul.f32 %v4537, %v4549
    %v4558 = vmul.f32 %v4539, %v4549
    %v4559 = vmul.f32 %v4541, %v4549
    %v4560 = vmul.f32 %v4543, %v4549
    %v4561 = vmul.f32 %v4545, %v4549
    %v4562 = vlaneseq
    %v4563 = vshrl.u32 %v4562, 7
    %v4564 = vsub.s32 0, %v4563
    %v4565 = vrot.slane %v4305, %v4564
    %v4566 = vadd.f32 %v4550, %v4565
    %v4567 = vadd.f32 %v4551, %v4565
    %v4568 = vadd.f32 %v4552, %v4565
    %v4569 = vadd.f32 %v4553, %v4565
    %v4570 = vadd.f32 %v4554, %v4565
    %v4571 = vadd.f32 %v4555, %v4565
    %v4572 = vadd.f32 %v4556, %v4565
    %v4573 = vadd.f32 %v4557, %v4565
    %v4574 = vadd.f32 %v4558, %v4565
    %v4575 = vadd.f32 %v4559, %v4565
    %v4576 = vadd.f32 %v4560, %v4565
    %v4577 = vadd.f32 %v4561, %v4565
    %v4578 = vld [vmem:[#allocation4 + $0xa0] sm:$0xff]
    %v4579 = vld [vmem:[#allocation4 + $0xa8] sm:$0xff]
    %v4580 = vld [vmem:[#allocation4 + $0xb0] sm:$0xff]
    %v4581 = vld [vmem:[#allocation4 + $0xb8] sm:$0xff]
    %v4582 = vld [vmem:[#allocation6 + $0xb] sm:$0x1]
    %v4583 = vlaneseq
    %v4584 = vshrl.u32 %v4583, 7
    %v4585 = vsub.s32 0, %v4584
    %v4586 = vrot.slane %v4582, %v4585
    %v4588 = vsel %vm3601, %v4566, 0
    %v4591 = vsel %vm3601, %v4567, 0
    %v4594 = vsel %vm3601, %v4568, 0
    %v4597 = vsel %vm3601, %v4569, 0
    %v4600 = vsel %vm3601, %v4570, 0
    %v4603 = vsel %vm3601, %v4571, 0
    %v4606 = vsel %vm3601, %v4572, 0
    %v4609 = vsel %vm3601, %v4573, 0
    %v4612 = vsel %vm3601, %v4574, 0
    %v4615 = vsel %vm3601, %v4575, 0
    %v4618 = vsel %vm3601, %v4576, 0
    %v4621 = vsel %vm3601, %v4577, 0
    %4623 = vmatprep.subr.mxu0 0.0
    %4624 = vmatpush1.msra.mxu0 %v4578
    %4625 = vmatprep.subr.mxu0 0.0
    %4626 = vmatpush1.msra.mxu0 %v4579
    %4627 = vmatprep.subr.mxu0 0.0
    %4628 = vmatpush1.msra.mxu0 %v4580
    %4629 = vmatprep.subr.mxu0 0.0
    %4630 = vmatpush1.msra.mxu0 %v4581
    %4631 = vmatprep.subr.mxu0 0.0
    %4632 = vmatpush1.msra.mxu0 0.0
    %4633 = vmatprep.subr.mxu0 0.0
    %4634 = vmatpush1.msra.mxu0 0.0
    %4635 = vmatprep.subr.mxu0 0.0
    %4636 = vmatpush1.msra.mxu0 0.0
    %4637 = vmatprep.subr.mxu0 0.0
    %4638 = vmatpush1.msra.mxu0 0.0
    %4639 = vmatprep.subr.mxu0 0.0
    %4640 = vmatpush1.msra.mxu0 0.0
    %4641 = vmatprep.subr.mxu0 0.0
    %4642 = vmatpush1.msra.mxu0 0.0
    %4643 = vmatprep.subr.mxu0 0.0
    %4644 = vmatpush1.msra.mxu0 0.0
    %4645 = vmatprep.subr.mxu0 0.0
    %4646 = vmatpush1.msra.mxu0 0.0
    %4647 = vmatprep.subr.mxu0 0.0
    %4648 = vmatpush1.msra.mxu0 0.0
    %4649 = vmatprep.subr.mxu0 0.0
    %4650 = vmatpush1.msra.mxu0 0.0
    %4651 = vmatprep.subr.mxu0 0.0
    %4652 = vmatpush1.msra.mxu0 0.0
    %4653 = vmatprep.subr.mxu0 0.0
    %4654 = vmatpush1.msra.mxu0 0.0
    %4655 = vmatprep.subr.mxu0 0.0
    %4656 = vmatpush1.msra.mxu0 0.0
    %4657 = vmatprep.subr.mxu0 0.0
    %4658 = vmatpush1.msra.mxu0 0.0
    %4659 = vmatprep.subr.mxu0 0.0
    %4660 = vmatpush1.msra.mxu0 0.0
    %4661 = vmatprep.subr.mxu0 0.0
    %4662 = vmatpush1.msra.mxu0 0.0
    %4663 = vmatprep.subr.mxu0 0.0
    %4664 = vmatpush1.msra.mxu0 0.0
    %4665 = vmatprep.subr.mxu0 0.0
    %4666 = vmatpush1.msra.mxu0 0.0
    %4667 = vmatprep.subr.mxu0 0.0
    %4668 = vmatpush1.msra.mxu0 0.0
    %4669 = vmatprep.subr.mxu0 0.0
    %4670 = vmatpush1.msra.mxu0 0.0
    %4671 = vmatprep.subr.mxu0 0.0
    %4672 = vmatpush1.msra.mxu0 0.0
    %4673 = vmatprep.subr.mxu0 0.0
    %4674 = vmatpush1.msra.mxu0 0.0
    %4675 = vmatprep.subr.mxu0 0.0
    %4676 = vmatpush1.msra.mxu0 0.0
    %4677 = vmatprep.subr.mxu0 0.0
    %4678 = vmatpush1.msra.mxu0 0.0
    %4679 = vmatprep.subr.mxu0 0.0
    %4680 = vmatpush1.msra.mxu0 0.0
    %4681 = vmatprep.subr.mxu0 0.0
    %4682 = vmatpush1.msra.mxu0 0.0
    %4683 = vmatprep.subr.mxu0 0.0
    %4684 = vmatpush1.msra.mxu0 0.0
    %4685 = vmatprep.subr.mxu0 0.0
    %4686 = vmatpush1.msra.mxu0 0.0
    %4687 = vmatprep.mubr.f32.mxu0 0.0
    %4688 = vmatmul.mubr.f32.gmra.mrb[0].mxu0 %v4588
    %v4689 = vpop.f32.mrb[0].mxu0
    %v4690 = vadd.f32 %v4586, %v4689
    %v4691 = vpop.f32.mrb[0].mxu0
    %4692 = vmatprep.mubr.f32.mxu0 0.0
    %4693 = vmatmul.mubr.f32.gmra.mrb[0].mxu0 %v4591
    %v4694 = vpop.f32.mrb[0].mxu0
    %v4695 = vadd.f32 %v4586, %v4694
    %v4696 = vpop.f32.mrb[0].mxu0
    %4697 = vmatprep.mubr.f32.mxu0 0.0
    %4698 = vmatmul.mubr.f32.gmra.mrb[0].mxu0 %v4594
    %v4699 = vpop.f32.mrb[0].mxu0
    %v4700 = vadd.f32 %v4586, %v4699
    %v4701 = vpop.f32.mrb[0].mxu0
    %4702 = vmatprep.mubr.f32.mxu0 0.0
    %4703 = vmatmul.mubr.f32.gmra.mrb[0].mxu0 %v4597
    %v4704 = vpop.f32.mrb[0].mxu0
    %v4705 = vadd.f32 %v4586, %v4704
    %v4706 = vpop.f32.mrb[0].mxu0
    %4707 = vmatprep.mubr.f32.mxu0 0.0
    %4708 = vmatmul.mubr.f32.gmra.mrb[0].mxu0 %v4600
    %v4709 = vpop.f32.mrb[0].mxu0
    %v4710 = vadd.f32 %v4586, %v4709
    %v4711 = vpop.f32.mrb[0].mxu0
    %4712 = vmatprep.mubr.f32.mxu0 0.0
    %4713 = vmatmul.mubr.f32.gmra.mrb[0].mxu0 %v4603
    %v4714 = vpop.f32.mrb[0].mxu0
    %v4715 = vadd.f32 %v4586, %v4714
    %v4716 = vpop.f32.mrb[0].mxu0
    %4717 = vmatprep.mubr.f32.mxu0 0.0
    %4718 = vmatmul.mubr.f32.gmra.mrb[0].mxu0 %v4606
    %v4719 = vpop.f32.mrb[0].mxu0
    %v4720 = vadd.f32 %v4586, %v4719
    %v4721 = vpop.f32.mrb[0].mxu0
    %4722 = vmatprep.mubr.f32.mxu0 0.0
    %4723 = vmatmul.mubr.f32.gmra.mrb[0].mxu0 %v4609
    %v4724 = vpop.f32.mrb[0].mxu0
    %v4725 = vadd.f32 %v4586, %v4724
    %v4726 = vpop.f32.mrb[0].mxu0
    %4727 = vmatprep.mubr.f32.mxu0 0.0
    %4728 = vmatmul.mubr.f32.gmra.mrb[0].mxu0 %v4612
    %v4729 = vpop.f32.mrb[0].mxu0
    %v4730 = vadd.f32 %v4586, %v4729
    %v4731 = vpop.f32.mrb[0].mxu0
    %4732 = vmatprep.mubr.f32.mxu0 0.0
    %4733 = vmatmul.mubr.f32.gmra.mrb[0].mxu0 %v4615
    %v4734 = vpop.f32.mrb[0].mxu0
    %v4735 = vadd.f32 %v4586, %v4734
    %v4736 = vpop.f32.mrb[0].mxu0
    %4737 = vmatprep.mubr.f32.mxu0 0.0
    %4738 = vmatmul.mubr.f32.gmra.mrb[0].mxu0 %v4618
    %v4739 = vpop.f32.mrb[0].mxu0
    %v4740 = vadd.f32 %v4586, %v4739
    %v4741 = vpop.f32.mrb[0].mxu0
    %4742 = vmatprep.mubr.f32.mxu0 0.0
    %4743 = vmatmul.mubr.f32.gmra.mrb[0].mxu0 %v4621
    %v4744 = vpop.f32.mrb[0].mxu0
    %v4745 = vadd.f32 %v4586, %v4744
    %v4746 = vpop.f32.mrb[0].mxu0
    %4747 = vdwg.mxu0
    %v4748 = vld [vmem:[#allocation4 + $0xc0] sm:$0xff]
    %v4749 = vld [vmem:[#allocation4 + $0xc8] sm:$0xff]
    %v4750 = vld [vmem:[#allocation4 + $0xd0] sm:$0xff]
    %v4751 = vld [vmem:[#allocation4 + $0xd8] sm:$0xff]
    %4764 = vrot.lane.b32.xlu0 %v4690, 96
    %v4765 = vpop.permute.xlu0 %4764
    %4766 = vrot.lane.b32.xlu0 %v4695, 96
    %v4767 = vpop.permute.xlu0 %4766
    %4768 = vrot.lane.b32.xlu0 %v4700, 96
    %v4769 = vpop.permute.xlu0 %4768
    %4770 = vrot.lane.b32.xlu0 %v4705, 96
    %v4771 = vpop.permute.xlu0 %4770
    %4772 = vrot.lane.b32.xlu0 %v4710, 96
    %v4773 = vpop.permute.xlu0 %4772
    %4774 = vrot.lane.b32.xlu0 %v4715, 96
    %v4775 = vpop.permute.xlu0 %4774
    %4776 = vrot.lane.b32.xlu0 %v4720, 96
    %v4777 = vpop.permute.xlu0 %4776
    %4778 = vrot.lane.b32.xlu0 %v4725, 96
    %v4779 = vpop.permute.xlu0 %4778
    %4780 = vrot.lane.b32.xlu0 %v4730, 96
    %v4781 = vpop.permute.xlu0 %4780
    %4782 = vrot.lane.b32.xlu0 %v4735, 96
    %v4783 = vpop.permute.xlu0 %4782
    %4784 = vrot.lane.b32.xlu0 %v4740, 96
    %v4785 = vpop.permute.xlu0 %4784
    %4786 = vrot.lane.b32.xlu0 %v4745, 96
    %v4787 = vpop.permute.xlu0 %4786
    %v4788 = vsel %vm748, %v4690, 0
    %v4790 = vsel %vm748, %v4695, 0
    %v4792 = vsel %vm748, %v4700, 0
    %v4794 = vsel %vm748, %v4705, 0
    %v4796 = vsel %vm748, %v4710, 0
    %v4798 = vsel %vm748, %v4715, 0
    %v4800 = vsel %vm748, %v4720, 0
    %v4802 = vsel %vm748, %v4725, 0
    %v4804 = vsel %vm748, %v4730, 0
    %v4806 = vsel %vm748, %v4735, 0
    %v4808 = vsel %vm748, %v4740, 0
    %v4810 = vsel %vm748, %v4745, 0
    %v4812 = vsel %vm748, %v4765, 0
    %v4814 = vsel %vm748, %v4767, 0
    %v4816 = vsel %vm748, %v4769, 0
    %v4818 = vsel %vm748, %v4771, 0
    %v4820 = vsel %vm748, %v4773, 0
    %v4822 = vsel %vm748, %v4775, 0
    %v4824 = vsel %vm748, %v4777, 0
    %v4826 = vsel %vm748, %v4779, 0
    %v4828 = vsel %vm748, %v4781, 0
    %v4830 = vsel %vm748, %v4783, 0
    %v4832 = vsel %vm748, %v4785, 0
    %v4834 = vsel %vm748, %v4787, 0
    %4836 = vmatprep.subr.mxu0 0.0
    %4837 = vmatpush1.xpose.msra.mxu0 %v4812
    %4838 = vmatprep.subr.mxu0 0.0
    %4839 = vmatpush1.xpose.msra.mxu0 %v4814
    %4840 = vmatprep.subr.mxu0 0.0
    %4841 = vmatpush1.xpose.msra.mxu0 %v4816
    %4842 = vmatprep.subr.mxu0 0.0
    %4843 = vmatpush1.xpose.msra.mxu0 %v4818
    %4844 = vmatprep.subr.mxu0 0.0
    %4845 = vmatpush1.xpose.msra.mxu0 %v4820
    %4846 = vmatprep.subr.mxu0 0.0
    %4847 = vmatpush1.xpose.msra.mxu0 %v4822
    %4848 = vmatprep.subr.mxu0 0.0
    %4849 = vmatpush1.xpose.msra.mxu0 %v4824
    %4850 = vmatprep.subr.mxu0 0.0
    %4851 = vmatpush1.xpose.msra.mxu0 %v4826
    %4852 = vmatprep.subr.mxu0 0.0
    %4853 = vmatpush1.xpose.msra.mxu0 %v4828
    %4854 = vmatprep.subr.mxu0 0.0
    %4855 = vmatpush1.xpose.msra.mxu0 %v4830
    %4856 = vmatprep.subr.mxu0 0.0
    %4857 = vmatpush1.xpose.msra.mxu0 %v4832
    %4858 = vmatprep.subr.mxu0 0.0
    %4859 = vmatpush1.xpose.msra.mxu0 %v4834
    %4860 = vmatprep.subr.mxu0 0.0
    %4861 = vmatpush1.xpose.msra.mxu0 0.0
    %4862 = vmatprep.subr.mxu0 0.0
    %4863 = vmatpush1.xpose.msra.mxu0 0.0
    %4864 = vmatprep.subr.mxu0 0.0
    %4865 = vmatpush1.xpose.msra.mxu0 0.0
    %4866 = vmatprep.subr.mxu0 0.0
    %4867 = vmatpush1.xpose.msra.mxu0 0.0
    %4868 = vmatprep.subr.mxu0 0.0
    %4869 = vmatpush1.xpose.msra.mxu0 0.0
    %4870 = vmatprep.subr.mxu0 0.0
    %4871 = vmatpush1.xpose.msra.mxu0 0.0
    %4872 = vmatprep.subr.mxu0 0.0
    %4873 = vmatpush1.xpose.msra.mxu0 0.0
    %4874 = vmatprep.subr.mxu0 0.0
    %4875 = vmatpush1.xpose.msra.mxu0 0.0
    %4876 = vmatprep.subr.mxu0 0.0
    %4877 = vmatpush1.xpose.msra.mxu0 0.0
    %4878 = vmatprep.subr.mxu0 0.0
    %4879 = vmatpush1.xpose.msra.mxu0 0.0
    %4880 = vmatprep.subr.mxu0 0.0
    %4881 = vmatpush1.xpose.msra.mxu0 0.0
    %4882 = vmatprep.subr.mxu0 0.0
    %4883 = vmatpush1.xpose.msra.mxu0 0.0
    %4884 = vmatprep.subr.mxu0 0.0
    %4885 = vmatpush1.xpose.msra.mxu0 0.0
    %4886 = vmatprep.subr.mxu0 0.0
    %4887 = vmatpush1.xpose.msra.mxu0 0.0
    %4888 = vmatprep.subr.mxu0 0.0
    %4889 = vmatpush1.xpose.msra.mxu0 0.0
    %4890 = vmatprep.subr.mxu0 0.0
    %4891 = vmatpush1.xpose.msra.mxu0 0.0
    %4892 = vmatprep.subr.mxu0 0.0
    %4893 = vmatpush1.xpose.msra.mxu0 0.0
    %4894 = vmatprep.subr.mxu0 0.0
    %4895 = vmatpush1.xpose.msra.mxu0 0.0
    %4896 = vmatprep.subr.mxu0 0.0
    %4897 = vmatpush1.xpose.msra.mxu0 0.0
    %4898 = vmatprep.subr.mxu0 0.0
    %4899 = vmatpush1.xpose.msra.mxu0 0.0
    %4900 = vmatprep.mubr.f32.mxu0 0.0
    %4901 = vmatmul.mubr.f32.gmra.mrb[0].mxu0 %v4788
    %v4902 = vpop.f32.mrb[0].mxu0
    %v4903 = vadd.f32 %v84, %v4902
    %v4904 = vpop.f32.mrb[0].mxu0
    %4905 = vmatprep.mubr.f32.mxu0 0.0
    %4906 = vmatmul.mubr.f32.gmra.mrb[0].mxu0 %v4790
    %v4907 = vpop.f32.mrb[0].mxu0
    %v4908 = vadd.f32 %v85, %v4907
    %v4909 = vpop.f32.mrb[0].mxu0
    %4910 = vmatprep.mubr.f32.mxu0 0.0
    %4911 = vmatmul.mubr.f32.gmra.mrb[0].mxu0 %v4792
    %v4912 = vpop.f32.mrb[0].mxu0
    %v4913 = vadd.f32 %v86, %v4912
    %v4914 = vpop.f32.mrb[0].mxu0
    %4915 = vmatprep.mubr.f32.mxu0 0.0
    %4916 = vmatmul.mubr.f32.gmra.mrb[0].mxu0 %v4794
    %v4917 = vpop.f32.mrb[0].mxu0
    %v4918 = vadd.f32 %v87, %v4917
    %v4919 = vpop.f32.mrb[0].mxu0
    %4920 = vmatprep.mubr.f32.mxu0 0.0
    %4921 = vmatmul.mubr.f32.gmra.mrb[0].mxu0 %v4796
    %v4922 = vpop.f32.mrb[0].mxu0
    %v4923 = vadd.f32 %v88, %v4922
    %v4924 = vpop.f32.mrb[0].mxu0
    %4925 = vmatprep.mubr.f32.mxu0 0.0
    %4926 = vmatmul.mubr.f32.gmra.mrb[0].mxu0 %v4798
    %v4927 = vpop.f32.mrb[0].mxu0
    %v4928 = vadd.f32 %v89, %v4927
    %v4929 = vpop.f32.mrb[0].mxu0
    %4930 = vmatprep.mubr.f32.mxu0 0.0
    %4931 = vmatmul.mubr.f32.gmra.mrb[0].mxu0 %v4800
    %v4932 = vpop.f32.mrb[0].mxu0
    %v4933 = vadd.f32 %v90, %v4932
    %v4934 = vpop.f32.mrb[0].mxu0
    %4935 = vmatprep.mubr.f32.mxu0 0.0
    %4936 = vmatmul.mubr.f32.gmra.mrb[0].mxu0 %v4802
    %v4937 = vpop.f32.mrb[0].mxu0
    %v4938 = vadd.f32 %v91, %v4937
    %v4939 = vpop.f32.mrb[0].mxu0
    %4940 = vmatprep.mubr.f32.mxu0 0.0
    %4941 = vmatmul.mubr.f32.gmra.mrb[0].mxu0 %v4804
    %v4942 = vpop.f32.mrb[0].mxu0
    %v4943 = vadd.f32 %v92, %v4942
    %v4944 = vpop.f32.mrb[0].mxu0
    %4945 = vmatprep.mubr.f32.mxu0 0.0
    %4946 = vmatmul.mubr.f32.gmra.mrb[0].mxu0 %v4806
    %v4947 = vpop.f32.mrb[0].mxu0
    %v4948 = vadd.f32 %v93, %v4947
    %v4949 = vpop.f32.mrb[0].mxu0
    %4950 = vmatprep.mubr.f32.mxu0 0.0
    %4951 = vmatmul.mubr.f32.gmra.mrb[0].mxu0 %v4808
    %v4952 = vpop.f32.mrb[0].mxu0
    %v4953 = vadd.f32 %v94, %v4952
    %v4954 = vpop.f32.mrb[0].mxu0
    %4955 = vmatprep.mubr.f32.mxu0 0.0
    %4956 = vmatmul.mubr.f32.gmra.mrb[0].mxu0 %v4810
    %v4957 = vpop.f32.mrb[0].mxu0
    %v4958 = vadd.f32 %v95, %v4957
    %v4959 = vpop.f32.mrb[0].mxu0
    %4960 = vdwg.mxu0
    %v4961 = vsel %vm922, %v4903, -inf
    %4962 = vmax.xlane.f32.xlu0 %v4961
    %v4963 = vpop.xlane.xlu0 %4962
    %v4964 = vsel %vm922, %v4908, -inf
    %4965 = vmax.xlane.f32.xlu0 %v4964
    %v4966 = vpop.xlane.xlu0 %4965
    %v4967 = vsel %vm922, %v4913, -inf
    %4968 = vmax.xlane.f32.xlu0 %v4967
    %v4969 = vpop.xlane.xlu0 %4968
    %v4970 = vsel %vm922, %v4918, -inf
    %4971 = vmax.xlane.f32.xlu0 %v4970
    %v4972 = vpop.xlane.xlu0 %4971
    %v4973 = vsel %vm922, %v4923, -inf
    %4974 = vmax.xlane.f32.xlu0 %v4973
    %v4975 = vpop.xlane.xlu0 %4974
    %v4976 = vsel %vm922, %v4928, -inf
    %4977 = vmax.xlane.f32.xlu0 %v4976
    %v4978 = vpop.xlane.xlu0 %4977
    %v4979 = vsel %vm922, %v4933, -inf
    %4980 = vmax.xlane.f32.xlu0 %v4979
    %v4981 = vpop.xlane.xlu0 %4980
    %v4982 = vsel %vm922, %v4938, -inf
    %4983 = vmax.xlane.f32.xlu0 %v4982
    %v4984 = vpop.xlane.xlu0 %4983
    %v4985 = vsel %vm922, %v4943, -inf
    %4986 = vmax.xlane.f32.xlu0 %v4985
    %v4987 = vpop.xlane.xlu0 %4986
    %v4988 = vsel %vm922, %v4948, -inf
    %4989 = vmax.xlane.f32.xlu0 %v4988
    %v4990 = vpop.xlane.xlu0 %4989
    %v4991 = vsel %vm922, %v4953, -inf
    %4992 = vmax.xlane.f32.xlu0 %v4991
    %v4993 = vpop.xlane.xlu0 %4992
    %v4994 = vsel %vm922, %v4958, -inf
    %4995 = vmax.xlane.f32.xlu0 %v4994
    %v4996 = vpop.xlane.xlu0 %4995
    %v4997 = vsub.f32 %v4903, %v4963
    %v4998 = vsub.f32 %v4908, %v4966
    %v4999 = vsub.f32 %v4913, %v4969
    %v5000 = vsub.f32 %v4918, %v4972
    %v5001 = vsub.f32 %v4923, %v4975
    %v5002 = vsub.f32 %v4928, %v4978
    %v5003 = vsub.f32 %v4933, %v4981
    %v5004 = vsub.f32 %v4938, %v4984
    %v5005 = vsub.f32 %v4943, %v4987
    %v5006 = vsub.f32 %v4948, %v4990
    %v5007 = vsub.f32 %v4953, %v4993
    %v5008 = vsub.f32 %v4958, %v4996
    %v5009 = vmul.f32 %v4997, 1.442695
    %v5010 = vpow.pop %v5009
    %v5011 = vmul.f32 %v4998, 1.442695
    %v5012 = vpow.pop %v5011
    %v5013 = vmul.f32 %v4999, 1.442695
    %v5014 = vpow.pop %v5013
    %v5015 = vmul.f32 %v5000, 1.442695
    %v5016 = vpow.pop %v5015
    %v5017 = vmul.f32 %v5001, 1.442695
    %v5018 = vpow.pop %v5017
    %v5019 = vmul.f32 %v5002, 1.442695
    %v5020 = vpow.pop %v5019
    %v5021 = vmul.f32 %v5003, 1.442695
    %v5022 = vpow.pop %v5021
    %v5023 = vmul.f32 %v5004, 1.442695
    %v5024 = vpow.pop %v5023
    %v5025 = vmul.f32 %v5005, 1.442695
    %v5026 = vpow.pop %v5025
    %v5027 = vmul.f32 %v5006, 1.442695
    %v5028 = vpow.pop %v5027
    %v5029 = vmul.f32 %v5007, 1.442695
    %v5030 = vpow.pop %v5029
    %v5031 = vmul.f32 %v5008, 1.442695
    %v5032 = vpow.pop %v5031
    %v5033 = vsel %vm922, %v5010, 0.0
    %5034 = vadd.xlane.f32.xlu0 %v5033
    %v5035 = vpop.xlane.xlu0 %5034
    %v5036 = vsel %vm922, %v5012, 0.0
    %5037 = vadd.xlane.f32.xlu0 %v5036
    %v5038 = vpop.xlane.xlu0 %5037
    %v5039 = vsel %vm922, %v5014, 0.0
    %5040 = vadd.xlane.f32.xlu0 %v5039
    %v5041 = vpop.xlane.xlu0 %5040
    %v5042 = vsel %vm922, %v5016, 0.0
    %5043 = vadd.xlane.f32.xlu0 %v5042
    %v5044 = vpop.xlane.xlu0 %5043
    %v5045 = vsel %vm922, %v5018, 0.0
    %5046 = vadd.xlane.f32.xlu0 %v5045
    %v5047 = vpop.xlane.xlu0 %5046
    %v5048 = vsel %vm922, %v5020, 0.0
    %5049 = vadd.xlane.f32.xlu0 %v5048
    %v5050 = vpop.xlane.xlu0 %5049
    %v5051 = vsel %vm922, %v5022, 0.0
    %5052 = vadd.xlane.f32.xlu0 %v5051
    %v5053 = vpop.xlane.xlu0 %5052
    %v5054 = vsel %vm922, %v5024, 0.0
    %5055 = vadd.xlane.f32.xlu0 %v5054
    %v5056 = vpop.xlane.xlu0 %5055
    %v5057 = vsel %vm922, %v5026, 0.0
    %5058 = vadd.xlane.f32.xlu0 %v5057
    %v5059 = vpop.xlane.xlu0 %5058
    %v5060 = vsel %vm922, %v5028, 0.0
    %5061 = vadd.xlane.f32.xlu0 %v5060
    %v5062 = vpop.xlane.xlu0 %5061
    %v5063 = vsel %vm922, %v5030, 0.0
    %5064 = vadd.xlane.f32.xlu0 %v5063
    %v5065 = vpop.xlane.xlu0 %5064
    %v5066 = vsel %vm922, %v5032, 0.0
    %5067 = vadd.xlane.f32.xlu0 %v5066
    %v5068 = vpop.xlane.xlu0 %5067
    %v5069 = vrcp.pop %v5035
    %v5070 = vrcp.pop %v5038
    %v5071 = vrcp.pop %v5041
    %v5072 = vrcp.pop %v5044
    %v5073 = vrcp.pop %v5047
    %v5074 = vrcp.pop %v5050
    %v5075 = vrcp.pop %v5053
    %v5076 = vrcp.pop %v5056
    %v5077 = vrcp.pop %v5059
    %v5078 = vrcp.pop %v5062
    %v5079 = vrcp.pop %v5065
    %v5080 = vrcp.pop %v5068
    %v5081 = vmul.f32 %v5010, %v5069
    %v5082 = vmul.f32 %v5012, %v5070
    %v5083 = vmul.f32 %v5014, %v5071
    %v5084 = vmul.f32 %v5016, %v5072
    %v5085 = vmul.f32 %v5018, %v5073
    %v5086 = vmul.f32 %v5020, %v5074
    %v5087 = vmul.f32 %v5022, %v5075
    %v5088 = vmul.f32 %v5024, %v5076
    %v5089 = vmul.f32 %v5026, %v5077
    %v5090 = vmul.f32 %v5028, %v5078
    %v5091 = vmul.f32 %v5030, %v5079
    %v5092 = vmul.f32 %v5032, %v5080
    %5093 = vrot.lane.b32.xlu0 %v4690, 64
    %v5094 = vpop.permute.xlu0 %5093
    %5095 = vrot.lane.b32.xlu0 %v4695, 64
    %v5096 = vpop.permute.xlu0 %5095
    %5097 = vrot.lane.b32.xlu0 %v4700, 64
    %v5098 = vpop.permute.xlu0 %5097
    %5099 = vrot.lane.b32.xlu0 %v4705, 64
    %v5100 = vpop.permute.xlu0 %5099
    %5101 = vrot.lane.b32.xlu0 %v4710, 64
    %v5102 = vpop.permute.xlu0 %5101
    %5103 = vrot.lane.b32.xlu0 %v4715, 64
    %v5104 = vpop.permute.xlu0 %5103
    %5105 = vrot.lane.b32.xlu0 %v4720, 64
    %v5106 = vpop.permute.xlu0 %5105
    %5107 = vrot.lane.b32.xlu0 %v4725, 64
    %v5108 = vpop.permute.xlu0 %5107
    %5109 = vrot.lane.b32.xlu0 %v4730, 64
    %v5110 = vpop.permute.xlu0 %5109
    %5111 = vrot.lane.b32.xlu0 %v4735, 64
    %v5112 = vpop.permute.xlu0 %5111
    %5113 = vrot.lane.b32.xlu0 %v4740, 64
    %v5114 = vpop.permute.xlu0 %5113
    %5115 = vrot.lane.b32.xlu0 %v4745, 64
    %v5116 = vpop.permute.xlu0 %5115
    %v5130 = vsel %vm922, %v5081, 0
    %v5133 = vsel %vm922, %v5082, 0
    %v5136 = vsel %vm922, %v5083, 0
    %v5139 = vsel %vm922, %v5084, 0
    %v5142 = vsel %vm922, %v5085, 0
    %v5145 = vsel %vm922, %v5086, 0
    %v5148 = vsel %vm922, %v5087, 0
    %v5151 = vsel %vm922, %v5088, 0
    %v5154 = vsel %vm922, %v5089, 0
    %v5157 = vsel %vm922, %v5090, 0
    %v5160 = vsel %vm922, %v5091, 0
    %v5163 = vsel %vm922, %v5092, 0
    %5165 = vmatprep.subr.mxu0 0.0
    %5166 = vmatpush1.msra.mxu0 %v5094
    %5167 = vmatprep.subr.mxu0 0.0
    %5168 = vmatpush1.msra.mxu0 %v5096
    %5169 = vmatprep.subr.mxu0 0.0
    %5170 = vmatpush1.msra.mxu0 %v5098
    %5171 = vmatprep.subr.mxu0 0.0
    %5172 = vmatpush1.msra.mxu0 %v5100
    %5173 = vmatprep.subr.mxu0 0.0
    %5174 = vmatpush1.msra.mxu0 %v5102
    %5175 = vmatprep.subr.mxu0 0.0
    %5176 = vmatpush1.msra.mxu0 %v5104
    %5177 = vmatprep.subr.mxu0 0.0
    %5178 = vmatpush1.msra.mxu0 %v5106
    %5179 = vmatprep.subr.mxu0 0.0
    %5180 = vmatpush1.msra.mxu0 %v5108
    %5181 = vmatprep.subr.mxu0 0.0
    %5182 = vmatpush1.msra.mxu0 %v5110
    %5183 = vmatprep.subr.mxu0 0.0
    %5184 = vmatpush1.msra.mxu0 %v5112
    %5185 = vmatprep.subr.mxu0 0.0
    %5186 = vmatpush1.msra.mxu0 %v5114
    %5187 = vmatprep.subr.mxu0 0.0
    %5188 = vmatpush1.msra.mxu0 %v5116
    %5189 = vmatprep.subr.mxu0 0.0
    %5190 = vmatpush1.msra.mxu0 0.0
    %5191 = vmatprep.subr.mxu0 0.0
    %5192 = vmatpush1.msra.mxu0 0.0
    %5193 = vmatprep.subr.mxu0 0.0
    %5194 = vmatpush1.msra.mxu0 0.0
    %5195 = vmatprep.subr.mxu0 0.0
    %5196 = vmatpush1.msra.mxu0 0.0
    %5197 = vmatprep.subr.mxu0 0.0
    %5198 = vmatpush1.msra.mxu0 0.0
    %5199 = vmatprep.subr.mxu0 0.0
    %5200 = vmatpush1.msra.mxu0 0.0
    %5201 = vmatprep.subr.mxu0 0.0
    %5202 = vmatpush1.msra.mxu0 0.0
    %5203 = vmatprep.subr.mxu0 0.0
    %5204 = vmatpush1.msra.mxu0 0.0
    %5205 = vmatprep.subr.mxu0 0.0
    %5206 = vmatpush1.msra.mxu0 0.0
    %5207 = vmatprep.subr.mxu0 0.0
    %5208 = vmatpush1.msra.mxu0 0.0
    %5209 = vmatprep.subr.mxu0 0.0
    %5210 = vmatpush1.msra.mxu0 0.0
    %5211 = vmatprep.subr.mxu0 0.0
    %5212 = vmatpush1.msra.mxu0 0.0
    %5213 = vmatprep.subr.mxu0 0.0
    %5214 = vmatpush1.msra.mxu0 0.0
    %5215 = vmatprep.subr.mxu0 0.0
    %5216 = vmatpush1.msra.mxu0 0.0
    %5217 = vmatprep.subr.mxu0 0.0
    %5218 = vmatpush1.msra.mxu0 0.0
    %5219 = vmatprep.subr.mxu0 0.0
    %5220 = vmatpush1.msra.mxu0 0.0
    %5221 = vmatprep.subr.mxu0 0.0
    %5222 = vmatpush1.msra.mxu0 0.0
    %5223 = vmatprep.subr.mxu0 0.0
    %5224 = vmatpush1.msra.mxu0 0.0
    %5225 = vmatprep.subr.mxu0 0.0
    %5226 = vmatpush1.msra.mxu0 0.0
    %5227 = vmatprep.subr.mxu0 0.0
    %5228 = vmatpush1.msra.mxu0 0.0
    %5229 = vmatprep.mubr.f32.mxu0 0.0
    %5230 = vmatmul.mubr.f32.gmra.mrb[0].mxu0 %v5130
    %v5231 = vpop.f32.mrb[0].mxu0
    %v5232 = vadd.f32 0.0, %v5231
    %v5233 = vpop.f32.mrb[0].mxu0
    %5234 = vmatprep.mubr.f32.mxu0 0.0
    %5235 = vmatmul.mubr.f32.gmra.mrb[0].mxu0 %v5133
    %v5236 = vpop.f32.mrb[0].mxu0
    %v5237 = vadd.f32 0.0, %v5236
    %v5238 = vpop.f32.mrb[0].mxu0
    %5239 = vmatprep.mubr.f32.mxu0 0.0
    %5240 = vmatmul.mubr.f32.gmra.mrb[0].mxu0 %v5136
    %v5241 = vpop.f32.mrb[0].mxu0
    %v5242 = vadd.f32 0.0, %v5241
    %v5243 = vpop.f32.mrb[0].mxu0
    %5244 = vmatprep.mubr.f32.mxu0 0.0
    %5245 = vmatmul.mubr.f32.gmra.mrb[0].mxu0 %v5139
    %v5246 = vpop.f32.mrb[0].mxu0
    %v5247 = vadd.f32 0.0, %v5246
    %v5248 = vpop.f32.mrb[0].mxu0
    %5249 = vmatprep.mubr.f32.mxu0 0.0
    %5250 = vmatmul.mubr.f32.gmra.mrb[0].mxu0 %v5142
    %v5251 = vpop.f32.mrb[0].mxu0
    %v5252 = vadd.f32 0.0, %v5251
    %v5253 = vpop.f32.mrb[0].mxu0
    %5254 = vmatprep.mubr.f32.mxu0 0.0
    %5255 = vmatmul.mubr.f32.gmra.mrb[0].mxu0 %v5145
    %v5256 = vpop.f32.mrb[0].mxu0
    %v5257 = vadd.f32 0.0, %v5256
    %v5258 = vpop.f32.mrb[0].mxu0
    %5259 = vmatprep.mubr.f32.mxu0 0.0
    %5260 = vmatmul.mubr.f32.gmra.mrb[0].mxu0 %v5148
    %v5261 = vpop.f32.mrb[0].mxu0
    %v5262 = vadd.f32 0.0, %v5261
    %v5263 = vpop.f32.mrb[0].mxu0
    %5264 = vmatprep.mubr.f32.mxu0 0.0
    %5265 = vmatmul.mubr.f32.gmra.mrb[0].mxu0 %v5151
    %v5266 = vpop.f32.mrb[0].mxu0
    %v5267 = vadd.f32 0.0, %v5266
    %v5268 = vpop.f32.mrb[0].mxu0
    %5269 = vmatprep.mubr.f32.mxu0 0.0
    %5270 = vmatmul.mubr.f32.gmra.mrb[0].mxu0 %v5154
    %v5271 = vpop.f32.mrb[0].mxu0
    %v5272 = vadd.f32 0.0, %v5271
    %v5273 = vpop.f32.mrb[0].mxu0
    %5274 = vmatprep.mubr.f32.mxu0 0.0
    %5275 = vmatmul.mubr.f32.gmra.mrb[0].mxu0 %v5157
    %v5276 = vpop.f32.mrb[0].mxu0
    %v5277 = vadd.f32 0.0, %v5276
    %v5278 = vpop.f32.mrb[0].mxu0
    %5279 = vmatprep.mubr.f32.mxu0 0.0
    %5280 = vmatmul.mubr.f32.gmra.mrb[0].mxu0 %v5160
    %v5281 = vpop.f32.mrb[0].mxu0
    %v5282 = vadd.f32 0.0, %v5281
    %v5283 = vpop.f32.mrb[0].mxu0
    %5284 = vmatprep.mubr.f32.mxu0 0.0
    %5285 = vmatmul.mubr.f32.gmra.mrb[0].mxu0 %v5163
    %v5286 = vpop.f32.mrb[0].mxu0
    %v5287 = vadd.f32 0.0, %v5286
    %v5288 = vpop.f32.mrb[0].mxu0
    %5289 = vdwg.mxu0
    %5290 = vrot.lane.b32.xlu0 %v4690, 120
    %v5291 = vpop.permute.xlu0 %5290
    %5292 = vrot.lane.b32.xlu0 %v4695, 120
    %v5293 = vpop.permute.xlu0 %5292
    %5294 = vrot.lane.b32.xlu0 %v4700, 120
    %v5295 = vpop.permute.xlu0 %5294
    %5296 = vrot.lane.b32.xlu0 %v4705, 120
    %v5297 = vpop.permute.xlu0 %5296
    %5298 = vrot.lane.b32.xlu0 %v4710, 120
    %v5299 = vpop.permute.xlu0 %5298
    %5300 = vrot.lane.b32.xlu0 %v4715, 120
    %v5301 = vpop.permute.xlu0 %5300
    %5302 = vrot.lane.b32.xlu0 %v4720, 120
    %v5303 = vpop.permute.xlu0 %5302
    %5304 = vrot.lane.b32.xlu0 %v4725, 120
    %v5305 = vpop.permute.xlu0 %5304
    %5306 = vrot.lane.b32.xlu0 %v4730, 120
    %v5307 = vpop.permute.xlu0 %5306
    %5308 = vrot.lane.b32.xlu0 %v4735, 120
    %v5309 = vpop.permute.xlu0 %5308
    %5310 = vrot.lane.b32.xlu0 %v4740, 120
    %v5311 = vpop.permute.xlu0 %5310
    %5312 = vrot.lane.b32.xlu0 %v4745, 120
    %v5313 = vpop.permute.xlu0 %5312
    %5314 = vrot.lane.b32.xlu0 %v4690, 88
    %v5315 = vpop.permute.xlu0 %5314
    %5316 = vrot.lane.b32.xlu0 %v4695, 88
    %v5317 = vpop.permute.xlu0 %5316
    %5318 = vrot.lane.b32.xlu0 %v4700, 88
    %v5319 = vpop.permute.xlu0 %5318
    %5320 = vrot.lane.b32.xlu0 %v4705, 88
    %v5321 = vpop.permute.xlu0 %5320
    %5322 = vrot.lane.b32.xlu0 %v4710, 88
    %v5323 = vpop.permute.xlu0 %5322
    %5324 = vrot.lane.b32.xlu0 %v4715, 88
    %v5325 = vpop.permute.xlu0 %5324
    %5326 = vrot.lane.b32.xlu0 %v4720, 88
    %v5327 = vpop.permute.xlu0 %5326
    %5328 = vrot.lane.b32.xlu0 %v4725, 88
    %v5329 = vpop.permute.xlu0 %5328
    %5330 = vrot.lane.b32.xlu0 %v4730, 88
    %v5331 = vpop.permute.xlu0 %5330
    %5332 = vrot.lane.b32.xlu0 %v4735, 88
    %v5333 = vpop.permute.xlu0 %5332
    %5334 = vrot.lane.b32.xlu0 %v4740, 88
    %v5335 = vpop.permute.xlu0 %5334
    %5336 = vrot.lane.b32.xlu0 %v4745, 88
    %v5337 = vpop.permute.xlu0 %5336
    %v5338 = vsel %vm748, %v5291, 0
    %v5340 = vsel %vm748, %v5293, 0
    %v5342 = vsel %vm748, %v5295, 0
    %v5344 = vsel %vm748, %v5297, 0
    %v5346 = vsel %vm748, %v5299, 0
    %v5348 = vsel %vm748, %v5301, 0
    %v5350 = vsel %vm748, %v5303, 0
    %v5352 = vsel %vm748, %v5305, 0
    %v5354 = vsel %vm748, %v5307, 0
    %v5356 = vsel %vm748, %v5309, 0
    %v5358 = vsel %vm748, %v5311, 0
    %v5360 = vsel %vm748, %v5313, 0
    %v5362 = vsel %vm748, %v5315, 0
    %v5364 = vsel %vm748, %v5317, 0
    %v5366 = vsel %vm748, %v5319, 0
    %v5368 = vsel %vm748, %v5321, 0
    %v5370 = vsel %vm748, %v5323, 0
    %v5372 = vsel %vm748, %v5325, 0
    %v5374 = vsel %vm748, %v5327, 0
    %v5376 = vsel %vm748, %v5329, 0
    %v5378 = vsel %vm748, %v5331, 0
    %v5380 = vsel %vm748, %v5333, 0
    %v5382 = vsel %vm748, %v5335, 0
    %v5384 = vsel %vm748, %v5337, 0
    %5386 = vmatprep.subr.mxu0 0.0
    %5387 = vmatpush1.xpose.msra.mxu0 %v5362
    %5388 = vmatprep.subr.mxu0 0.0
    %5389 = vmatpush1.xpose.msra.mxu0 %v5364
    %5390 = vmatprep.subr.mxu0 0.0
    %5391 = vmatpush1.xpose.msra.mxu0 %v5366
    %5392 = vmatprep.subr.mxu0 0.0
    %5393 = vmatpush1.xpose.msra.mxu0 %v5368
    %5394 = vmatprep.subr.mxu0 0.0
    %5395 = vmatpush1.xpose.msra.mxu0 %v5370
    %5396 = vmatprep.subr.mxu0 0.0
    %5397 = vmatpush1.xpose.msra.mxu0 %v5372
    %5398 = vmatprep.subr.mxu0 0.0
    %5399 = vmatpush1.xpose.msra.mxu0 %v5374
    %5400 = vmatprep.subr.mxu0 0.0
    %5401 = vmatpush1.xpose.msra.mxu0 %v5376
    %5402 = vmatprep.subr.mxu0 0.0
    %5403 = vmatpush1.xpose.msra.mxu0 %v5378
    %5404 = vmatprep.subr.mxu0 0.0
    %5405 = vmatpush1.xpose.msra.mxu0 %v5380
    %5406 = vmatprep.subr.mxu0 0.0
    %5407 = vmatpush1.xpose.msra.mxu0 %v5382
    %5408 = vmatprep.subr.mxu0 0.0
    %5409 = vmatpush1.xpose.msra.mxu0 %v5384
    %5410 = vmatprep.subr.mxu0 0.0
    %5411 = vmatpush1.xpose.msra.mxu0 0.0
    %5412 = vmatprep.subr.mxu0 0.0
    %5413 = vmatpush1.xpose.msra.mxu0 0.0
    %5414 = vmatprep.subr.mxu0 0.0
    %5415 = vmatpush1.xpose.msra.mxu0 0.0
    %5416 = vmatprep.subr.mxu0 0.0
    %5417 = vmatpush1.xpose.msra.mxu0 0.0
    %5418 = vmatprep.subr.mxu0 0.0
    %5419 = vmatpush1.xpose.msra.mxu0 0.0
    %5420 = vmatprep.subr.mxu0 0.0
    %5421 = vmatpush1.xpose.msra.mxu0 0.0
    %5422 = vmatprep.subr.mxu0 0.0
    %5423 = vmatpush1.xpose.msra.mxu0 0.0
    %5424 = vmatprep.subr.mxu0 0.0
    %5425 = vmatpush1.xpose.msra.mxu0 0.0
    %5426 = vmatprep.subr.mxu0 0.0
    %5427 = vmatpush1.xpose.msra.mxu0 0.0
    %5428 = vmatprep.subr.mxu0 0.0
    %5429 = vmatpush1.xpose.msra.mxu0 0.0
    %5430 = vmatprep.subr.mxu0 0.0
    %5431 = vmatpush1.xpose.msra.mxu0 0.0
    %5432 = vmatprep.subr.mxu0 0.0
    %5433 = vmatpush1.xpose.msra.mxu0 0.0
    %5434 = vmatprep.subr.mxu0 0.0
    %5435 = vmatpush1.xpose.msra.mxu0 0.0
    %5436 = vmatprep.subr.mxu0 0.0
    %5437 = vmatpush1.xpose.msra.mxu0 0.0
    %5438 = vmatprep.subr.mxu0 0.0
    %5439 = vmatpush1.xpose.msra.mxu0 0.0
    %5440 = vmatprep.subr.mxu0 0.0
    %5441 = vmatpush1.xpose.msra.mxu0 0.0
    %5442 = vmatprep.subr.mxu0 0.0
    %5443 = vmatpush1.xpose.msra.mxu0 0.0
    %5444 = vmatprep.subr.mxu0 0.0
    %5445 = vmatpush1.xpose.msra.mxu0 0.0
    %5446 = vmatprep.subr.mxu0 0.0
    %5447 = vmatpush1.xpose.msra.mxu0 0.0
    %5448 = vmatprep.subr.mxu0 0.0
    %5449 = vmatpush1.xpose.msra.mxu0 0.0
    %5450 = vmatprep.mubr.f32.mxu0 0.0
    %5451 = vmatmul.mubr.f32.gmra.mrb[0].mxu0 %v5338
    %v5452 = vpop.f32.mrb[0].mxu0
    %v5453 = vadd.f32 %v84, %v5452
    %v5454 = vpop.f32.mrb[0].mxu0
    %5455 = vmatprep.mubr.f32.mxu0 0.0
    %5456 = vmatmul.mubr.f32.gmra.mrb[0].mxu0 %v5340
    %v5457 = vpop.f32.mrb[0].mxu0
    %v5458 = vadd.f32 %v85, %v5457
    %v5459 = vpop.f32.mrb[0].mxu0
    %5460 = vmatprep.mubr.f32.mxu0 0.0
    %5461 = vmatmul.mubr.f32.gmra.mrb[0].mxu0 %v5342
    %v5462 = vpop.f32.mrb[0].mxu0
    %v5463 = vadd.f32 %v86, %v5462
    %v5464 = vpop.f32.mrb[0].mxu0
    %5465 = vmatprep.mubr.f32.mxu0 0.0
    %5466 = vmatmul.mubr.f32.gmra.mrb[0].mxu0 %v5344
    %v5467 = vpop.f32.mrb[0].mxu0
    %v5468 = vadd.f32 %v87, %v5467
    %v5469 = vpop.f32.mrb[0].mxu0
    %5470 = vmatprep.mubr.f32.mxu0 0.0
    %5471 = vmatmul.mubr.f32.gmra.mrb[0].mxu0 %v5346
    %v5472 = vpop.f32.mrb[0].mxu0
    %v5473 = vadd.f32 %v88, %v5472
    %v5474 = vpop.f32.mrb[0].mxu0
    %5475 = vmatprep.mubr.f32.mxu0 0.0
    %5476 = vmatmul.mubr.f32.gmra.mrb[0].mxu0 %v5348
    %v5477 = vpop.f32.mrb[0].mxu0
    %v5478 = vadd.f32 %v89, %v5477
    %v5479 = vpop.f32.mrb[0].mxu0
    %5480 = vmatprep.mubr.f32.mxu0 0.0
    %5481 = vmatmul.mubr.f32.gmra.mrb[0].mxu0 %v5350
    %v5482 = vpop.f32.mrb[0].mxu0
    %v5483 = vadd.f32 %v90, %v5482
    %v5484 = vpop.f32.mrb[0].mxu0
    %5485 = vmatprep.mubr.f32.mxu0 0.0
    %5486 = vmatmul.mubr.f32.gmra.mrb[0].mxu0 %v5352
    %v5487 = vpop.f32.mrb[0].mxu0
    %v5488 = vadd.f32 %v91, %v5487
    %v5489 = vpop.f32.mrb[0].mxu0
    %5490 = vmatprep.mubr.f32.mxu0 0.0
    %5491 = vmatmul.mubr.f32.gmra.mrb[0].mxu0 %v5354
    %v5492 = vpop.f32.mrb[0].mxu0
    %v5493 = vadd.f32 %v92, %v5492
    %v5494 = vpop.f32.mrb[0].mxu0
    %5495 = vmatprep.mubr.f32.mxu0 0.0
    %5496 = vmatmul.mubr.f32.gmra.mrb[0].mxu0 %v5356
    %v5497 = vpop.f32.mrb[0].mxu0
    %v5498 = vadd.f32 %v93, %v5497
    %v5499 = vpop.f32.mrb[0].mxu0
    %5500 = vmatprep.mubr.f32.mxu0 0.0
    %5501 = vmatmul.mubr.f32.gmra.mrb[0].mxu0 %v5358
    %v5502 = vpop.f32.mrb[0].mxu0
    %v5503 = vadd.f32 %v94, %v5502
    %v5504 = vpop.f32.mrb[0].mxu0
    %5505 = vmatprep.mubr.f32.mxu0 0.0
    %5506 = vmatmul.mubr.f32.gmra.mrb[0].mxu0 %v5360
    %v5507 = vpop.f32.mrb[0].mxu0
    %v5508 = vadd.f32 %v95, %v5507
    %v5509 = vpop.f32.mrb[0].mxu0
    %5510 = vdwg.mxu0
    %v5511 = vsel %vm922, %v5453, -inf
    %5512 = vmax.xlane.f32.xlu0 %v5511
    %v5513 = vpop.xlane.xlu0 %5512
    %v5514 = vsel %vm922, %v5458, -inf
    %5515 = vmax.xlane.f32.xlu0 %v5514
    %v5516 = vpop.xlane.xlu0 %5515
    %v5517 = vsel %vm922, %v5463, -inf
    %5518 = vmax.xlane.f32.xlu0 %v5517
    %v5519 = vpop.xlane.xlu0 %5518
    %v5520 = vsel %vm922, %v5468, -inf
    %5521 = vmax.xlane.f32.xlu0 %v5520
    %v5522 = vpop.xlane.xlu0 %5521
    %v5523 = vsel %vm922, %v5473, -inf
    %5524 = vmax.xlane.f32.xlu0 %v5523
    %v5525 = vpop.xlane.xlu0 %5524
    %v5526 = vsel %vm922, %v5478, -inf
    %5527 = vmax.xlane.f32.xlu0 %v5526
    %v5528 = vpop.xlane.xlu0 %5527
    %v5529 = vsel %vm922, %v5483, -inf
    %5530 = vmax.xlane.f32.xlu0 %v5529
    %v5531 = vpop.xlane.xlu0 %5530
    %v5532 = vsel %vm922, %v5488, -inf
    %5533 = vmax.xlane.f32.xlu0 %v5532
    %v5534 = vpop.xlane.xlu0 %5533
    %v5535 = vsel %vm922, %v5493, -inf
    %5536 = vmax.xlane.f32.xlu0 %v5535
    %v5537 = vpop.xlane.xlu0 %5536
    %v5538 = vsel %vm922, %v5498, -inf
    %5539 = vmax.xlane.f32.xlu0 %v5538
    %v5540 = vpop.xlane.xlu0 %5539
    %v5541 = vsel %vm922, %v5503, -inf
    %5542 = vmax.xlane.f32.xlu0 %v5541
    %v5543 = vpop.xlane.xlu0 %5542
    %v5544 = vsel %vm922, %v5508, -inf
    %5545 = vmax.xlane.f32.xlu0 %v5544
    %v5546 = vpop.xlane.xlu0 %5545
    %v5547 = vsub.f32 %v5453, %v5513
    %v5548 = vsub.f32 %v5458, %v5516
    %v5549 = vsub.f32 %v5463, %v5519
    %v5550 = vsub.f32 %v5468, %v5522
    %v5551 = vsub.f32 %v5473, %v5525
    %v5552 = vsub.f32 %v5478, %v5528
    %v5553 = vsub.f32 %v5483, %v5531
    %v5554 = vsub.f32 %v5488, %v5534
    %v5555 = vsub.f32 %v5493, %v5537
    %v5556 = vsub.f32 %v5498, %v5540
    %v5557 = vsub.f32 %v5503, %v5543
    %v5558 = vsub.f32 %v5508, %v5546
    %v5559 = vmul.f32 %v5547, 1.442695
    %v5560 = vpow.pop %v5559
    %v5561 = vmul.f32 %v5548, 1.442695
    %v5562 = vpow.pop %v5561
    %v5563 = vmul.f32 %v5549, 1.442695
    %v5564 = vpow.pop %v5563
    %v5565 = vmul.f32 %v5550, 1.442695
    %v5566 = vpow.pop %v5565
    %v5567 = vmul.f32 %v5551, 1.442695
    %v5568 = vpow.pop %v5567
    %v5569 = vmul.f32 %v5552, 1.442695
    %v5570 = vpow.pop %v5569
    %v5571 = vmul.f32 %v5553, 1.442695
    %v5572 = vpow.pop %v5571
    %v5573 = vmul.f32 %v5554, 1.442695
    %v5574 = vpow.pop %v5573
    %v5575 = vmul.f32 %v5555, 1.442695
    %v5576 = vpow.pop %v5575
    %v5577 = vmul.f32 %v5556, 1.442695
    %v5578 = vpow.pop %v5577
    %v5579 = vmul.f32 %v5557, 1.442695
    %v5580 = vpow.pop %v5579
    %v5581 = vmul.f32 %v5558, 1.442695
    %v5582 = vpow.pop %v5581
    %v5583 = vsel %vm922, %v5560, 0.0
    %5584 = vadd.xlane.f32.xlu0 %v5583
    %v5585 = vpop.xlane.xlu0 %5584
    %v5586 = vsel %vm922, %v5562, 0.0
    %5587 = vadd.xlane.f32.xlu0 %v5586
    %v5588 = vpop.xlane.xlu0 %5587
    %v5589 = vsel %vm922, %v5564, 0.0
    %5590 = vadd.xlane.f32.xlu0 %v5589
    %v5591 = vpop.xlane.xlu0 %5590
    %v5592 = vsel %vm922, %v5566, 0.0
    %5593 = vadd.xlane.f32.xlu0 %v5592
    %v5594 = vpop.xlane.xlu0 %5593
    %v5595 = vsel %vm922, %v5568, 0.0
    %5596 = vadd.xlane.f32.xlu0 %v5595
    %v5597 = vpop.xlane.xlu0 %5596
    %v5598 = vsel %vm922, %v5570, 0.0
    %5599 = vadd.xlane.f32.xlu0 %v5598
    %v5600 = vpop.xlane.xlu0 %5599
    %v5601 = vsel %vm922, %v5572, 0.0
    %5602 = vadd.xlane.f32.xlu0 %v5601
    %v5603 = vpop.xlane.xlu0 %5602
    %v5604 = vsel %vm922, %v5574, 0.0
    %5605 = vadd.xlane.f32.xlu0 %v5604
    %v5606 = vpop.xlane.xlu0 %5605
    %v5607 = vsel %vm922, %v5576, 0.0
    %5608 = vadd.xlane.f32.xlu0 %v5607
    %v5609 = vpop.xlane.xlu0 %5608
    %v5610 = vsel %vm922, %v5578, 0.0
    %5611 = vadd.xlane.f32.xlu0 %v5610
    %v5612 = vpop.xlane.xlu0 %5611
    %v5613 = vsel %vm922, %v5580, 0.0
    %5614 = vadd.xlane.f32.xlu0 %v5613
    %v5615 = vpop.xlane.xlu0 %5614
    %v5616 = vsel %vm922, %v5582, 0.0
    %5617 = vadd.xlane.f32.xlu0 %v5616
    %v5618 = vpop.xlane.xlu0 %5617
    %v5619 = vrcp.pop %v5585
    %v5620 = vrcp.pop %v5588
    %v5621 = vrcp.pop %v5591
    %v5622 = vrcp.pop %v5594
    %v5623 = vrcp.pop %v5597
    %v5624 = vrcp.pop %v5600
    %v5625 = vrcp.pop %v5603
    %v5626 = vrcp.pop %v5606
    %v5627 = vrcp.pop %v5609
    %v5628 = vrcp.pop %v5612
    %v5629 = vrcp.pop %v5615
    %v5630 = vrcp.pop %v5618
    %v5631 = vmul.f32 %v5560, %v5619
    %v5632 = vmul.f32 %v5562, %v5620
    %v5633 = vmul.f32 %v5564, %v5621
    %v5634 = vmul.f32 %v5566, %v5622
    %v5635 = vmul.f32 %v5568, %v5623
    %v5636 = vmul.f32 %v5570, %v5624
    %v5637 = vmul.f32 %v5572, %v5625
    %v5638 = vmul.f32 %v5574, %v5626
    %v5639 = vmul.f32 %v5576, %v5627
    %v5640 = vmul.f32 %v5578, %v5628
    %v5641 = vmul.f32 %v5580, %v5629
    %v5642 = vmul.f32 %v5582, %v5630
    %5643 = vrot.lane.b32.xlu0 %v4690, 56
    %v5644 = vpop.permute.xlu0 %5643
    %5645 = vrot.lane.b32.xlu0 %v4695, 56
    %v5646 = vpop.permute.xlu0 %5645
    %5647 = vrot.lane.b32.xlu0 %v4700, 56
    %v5648 = vpop.permute.xlu0 %5647
    %5649 = vrot.lane.b32.xlu0 %v4705, 56
    %v5650 = vpop.permute.xlu0 %5649
    %5651 = vrot.lane.b32.xlu0 %v4710, 56
    %v5652 = vpop.permute.xlu0 %5651
    %5653 = vrot.lane.b32.xlu0 %v4715, 56
    %v5654 = vpop.permute.xlu0 %5653
    %5655 = vrot.lane.b32.xlu0 %v4720, 56
    %v5656 = vpop.permute.xlu0 %5655
    %5657 = vrot.lane.b32.xlu0 %v4725, 56
    %v5658 = vpop.permute.xlu0 %5657
    %5659 = vrot.lane.b32.xlu0 %v4730, 56
    %v5660 = vpop.permute.xlu0 %5659
    %5661 = vrot.lane.b32.xlu0 %v4735, 56
    %v5662 = vpop.permute.xlu0 %5661
    %5663 = vrot.lane.b32.xlu0 %v4740, 56
    %v5664 = vpop.permute.xlu0 %5663
    %5665 = vrot.lane.b32.xlu0 %v4745, 56
    %v5666 = vpop.permute.xlu0 %5665
    %v5680 = vsel %vm922, %v5631, 0
    %v5683 = vsel %vm922, %v5632, 0
    %v5686 = vsel %vm922, %v5633, 0
    %v5689 = vsel %vm922, %v5634, 0
    %v5692 = vsel %vm922, %v5635, 0
    %v5695 = vsel %vm922, %v5636, 0
    %v5698 = vsel %vm922, %v5637, 0
    %v5701 = vsel %vm922, %v5638, 0
    %v5704 = vsel %vm922, %v5639, 0
    %v5707 = vsel %vm922, %v5640, 0
    %v5710 = vsel %vm922, %v5641, 0
    %v5713 = vsel %vm922, %v5642, 0
    %5715 = vmatprep.subr.mxu0 0.0
    %5716 = vmatpush1.msra.mxu0 %v5644
    %5717 = vmatprep.subr.mxu0 0.0
    %5718 = vmatpush1.msra.mxu0 %v5646
    %5719 = vmatprep.subr.mxu0 0.0
    %5720 = vmatpush1.msra.mxu0 %v5648
    %5721 = vmatprep.subr.mxu0 0.0
    %5722 = vmatpush1.msra.mxu0 %v5650
    %5723 = vmatprep.subr.mxu0 0.0
    %5724 = vmatpush1.msra.mxu0 %v5652
    %5725 = vmatprep.subr.mxu0 0.0
    %5726 = vmatpush1.msra.mxu0 %v5654
    %5727 = vmatprep.subr.mxu0 0.0
    %5728 = vmatpush1.msra.mxu0 %v5656
    %5729 = vmatprep.subr.mxu0 0.0
    %5730 = vmatpush1.msra.mxu0 %v5658
    %5731 = vmatprep.subr.mxu0 0.0
    %5732 = vmatpush1.msra.mxu0 %v5660
    %5733 = vmatprep.subr.mxu0 0.0
    %5734 = vmatpush1.msra.mxu0 %v5662
    %5735 = vmatprep.subr.mxu0 0.0
    %5736 = vmatpush1.msra.mxu0 %v5664
    %5737 = vmatprep.subr.mxu0 0.0
    %5738 = vmatpush1.msra.mxu0 %v5666
    %5739 = vmatprep.subr.mxu0 0.0
    %5740 = vmatpush1.msra.mxu0 0.0
    %5741 = vmatprep.subr.mxu0 0.0
    %5742 = vmatpush1.msra.mxu0 0.0
    %5743 = vmatprep.subr.mxu0 0.0
    %5744 = vmatpush1.msra.mxu0 0.0
    %5745 = vmatprep.subr.mxu0 0.0
    %5746 = vmatpush1.msra.mxu0 0.0
    %5747 = vmatprep.subr.mxu0 0.0
    %5748 = vmatpush1.msra.mxu0 0.0
    %5749 = vmatprep.subr.mxu0 0.0
    %5750 = vmatpush1.msra.mxu0 0.0
    %5751 = vmatprep.subr.mxu0 0.0
    %5752 = vmatpush1.msra.mxu0 0.0
    %5753 = vmatprep.subr.mxu0 0.0
    %5754 = vmatpush1.msra.mxu0 0.0
    %5755 = vmatprep.subr.mxu0 0.0
    %5756 = vmatpush1.msra.mxu0 0.0
    %5757 = vmatprep.subr.mxu0 0.0
    %5758 = vmatpush1.msra.mxu0 0.0
    %5759 = vmatprep.subr.mxu0 0.0
    %5760 = vmatpush1.msra.mxu0 0.0
    %5761 = vmatprep.subr.mxu0 0.0
    %5762 = vmatpush1.msra.mxu0 0.0
    %5763 = vmatprep.subr.mxu0 0.0
    %5764 = vmatpush1.msra.mxu0 0.0
    %5765 = vmatprep.subr.mxu0 0.0
    %5766 = vmatpush1.msra.mxu0 0.0
    %5767 = vmatprep.subr.mxu0 0.0
    %5768 = vmatpush1.msra.mxu0 0.0
    %5769 = vmatprep.subr.mxu0 0.0
    %5770 = vmatpush1.msra.mxu0 0.0
    %5771 = vmatprep.subr.mxu0 0.0
    %5772 = vmatpush1.msra.mxu0 0.0
    %5773 = vmatprep.subr.mxu0 0.0
    %5774 = vmatpush1.msra.mxu0 0.0
    %5775 = vmatprep.subr.mxu0 0.0
    %5776 = vmatpush1.msra.mxu0 0.0
    %5777 = vmatprep.subr.mxu0 0.0
    %5778 = vmatpush1.msra.mxu0 0.0
    %5779 = vmatprep.mubr.f32.mxu0 0.0
    %5780 = vmatmul.mubr.f32.gmra.mrb[0].mxu0 %v5680
    %v5781 = vpop.f32.mrb[0].mxu0
    %v5782 = vadd.f32 0.0, %v5781
    %v5783 = vpop.f32.mrb[0].mxu0
    %5784 = vmatprep.mubr.f32.mxu0 0.0
    %5785 = vmatmul.mubr.f32.gmra.mrb[0].mxu0 %v5683
    %v5786 = vpop.f32.mrb[0].mxu0
    %v5787 = vadd.f32 0.0, %v5786
    %v5788 = vpop.f32.mrb[0].mxu0
    %5789 = vmatprep.mubr.f32.mxu0 0.0
    %5790 = vmatmul.mubr.f32.gmra.mrb[0].mxu0 %v5686
    %v5791 = vpop.f32.mrb[0].mxu0
    %v5792 = vadd.f32 0.0, %v5791
    %v5793 = vpop.f32.mrb[0].mxu0
    %5794 = vmatprep.mubr.f32.mxu0 0.0
    %5795 = vmatmul.mubr.f32.gmra.mrb[0].mxu0 %v5689
    %v5796 = vpop.f32.mrb[0].mxu0
    %v5797 = vadd.f32 0.0, %v5796
    %v5798 = vpop.f32.mrb[0].mxu0
    %5799 = vmatprep.mubr.f32.mxu0 0.0
    %5800 = vmatmul.mubr.f32.gmra.mrb[0].mxu0 %v5692
    %v5801 = vpop.f32.mrb[0].mxu0
    %v5802 = vadd.f32 0.0, %v5801
    %v5803 = vpop.f32.mrb[0].mxu0
    %5804 = vmatprep.mubr.f32.mxu0 0.0
    %5805 = vmatmul.mubr.f32.gmra.mrb[0].mxu0 %v5695
    %v5806 = vpop.f32.mrb[0].mxu0
    %v5807 = vadd.f32 0.0, %v5806
    %v5808 = vpop.f32.mrb[0].mxu0
    %5809 = vmatprep.mubr.f32.mxu0 0.0
    %5810 = vmatmul.mubr.f32.gmra.mrb[0].mxu0 %v5698
    %v5811 = vpop.f32.mrb[0].mxu0
    %v5812 = vadd.f32 0.0, %v5811
    %v5813 = vpop.f32.mrb[0].mxu0
    %5814 = vmatprep.mubr.f32.mxu0 0.0
    %5815 = vmatmul.mubr.f32.gmra.mrb[0].mxu0 %v5701
    %v5816 = vpop.f32.mrb[0].mxu0
    %v5817 = vadd.f32 0.0, %v5816
    %v5818 = vpop.f32.mrb[0].mxu0
    %5819 = vmatprep.mubr.f32.mxu0 0.0
    %5820 = vmatmul.mubr.f32.gmra.mrb[0].mxu0 %v5704
    %v5821 = vpop.f32.mrb[0].mxu0
    %v5822 = vadd.f32 0.0, %v5821
    %v5823 = vpop.f32.mrb[0].mxu0
    %5824 = vmatprep.mubr.f32.mxu0 0.0
    %5825 = vmatmul.mubr.f32.gmra.mrb[0].mxu0 %v5707
    %v5826 = vpop.f32.mrb[0].mxu0
    %v5827 = vadd.f32 0.0, %v5826
    %v5828 = vpop.f32.mrb[0].mxu0
    %5829 = vmatprep.mubr.f32.mxu0 0.0
    %5830 = vmatmul.mubr.f32.gmra.mrb[0].mxu0 %v5710
    %v5831 = vpop.f32.mrb[0].mxu0
    %v5832 = vadd.f32 0.0, %v5831
    %v5833 = vpop.f32.mrb[0].mxu0
    %5834 = vmatprep.mubr.f32.mxu0 0.0
    %5835 = vmatmul.mubr.f32.gmra.mrb[0].mxu0 %v5713
    %v5836 = vpop.f32.mrb[0].mxu0
    %v5837 = vadd.f32 0.0, %v5836
    %v5838 = vpop.f32.mrb[0].mxu0
    %5839 = vdwg.mxu0
    %v5841 = vsel %vm748, %v5782, 0
    %v5844 = vsel %vm748, %v5787, 0
    %v5847 = vsel %vm748, %v5792, 0
    %v5850 = vsel %vm748, %v5797, 0
    %v5853 = vsel %vm748, %v5802, 0
    %v5856 = vsel %vm748, %v5807, 0
    %v5859 = vsel %vm748, %v5812, 0
    %v5862 = vsel %vm748, %v5817, 0
    %v5865 = vsel %vm748, %v5822, 0
    %v5868 = vsel %vm748, %v5827, 0
    %v5871 = vsel %vm748, %v5832, 0
    %v5874 = vsel %vm748, %v5837, 0
    %5876 = vmatprep.subr.mxu0 0.0
    %5877 = vmatpush1.msra.mxu0 %v4749
    %5878 = vmatprep.subr.mxu0 0.0
    %5879 = vmatpush1.msra.mxu0 0.0
    %5880 = vmatprep.subr.mxu0 0.0
    %5881 = vmatpush1.msra.mxu0 0.0
    %5882 = vmatprep.subr.mxu0 0.0
    %5883 = vmatpush1.msra.mxu0 0.0
    %5884 = vmatprep.subr.mxu0 0.0
    %5885 = vmatpush1.msra.mxu0 0.0
    %5886 = vmatprep.subr.mxu0 0.0
    %5887 = vmatpush1.msra.mxu0 0.0
    %5888 = vmatprep.subr.mxu0 0.0
    %5889 = vmatpush1.msra.mxu0 0.0
    %5890 = vmatprep.subr.mxu0 0.0
    %5891 = vmatpush1.msra.mxu0 0.0
    %5892 = vmatprep.subr.mxu0 0.0
    %5893 = vmatpush1.msra.mxu0 0.0
    %5894 = vmatprep.subr.mxu0 0.0
    %5895 = vmatpush1.msra.mxu0 0.0
    %5896 = vmatprep.subr.mxu0 0.0
    %5897 = vmatpush1.msra.mxu0 0.0
    %5898 = vmatprep.subr.mxu0 0.0
    %5899 = vmatpush1.msra.mxu0 0.0
    %5900 = vmatprep.subr.mxu0 0.0
    %5901 = vmatpush1.msra.mxu0 0.0
    %5902 = vmatprep.subr.mxu0 0.0
    %5903 = vmatpush1.msra.mxu0 0.0
    %5904 = vmatprep.subr.mxu0 0.0
    %5905 = vmatpush1.msra.mxu0 0.0
    %5906 = vmatprep.subr.mxu0 0.0
    %5907 = vmatpush1.msra.mxu0 0.0
    %5908 = vmatprep.subr.mxu0 0.0
    %5909 = vmatpush1.msra.mxu0 0.0
    %5910 = vmatprep.subr.mxu0 0.0
    %5911 = vmatpush1.msra.mxu0 0.0
    %5912 = vmatprep.subr.mxu0 0.0
    %5913 = vmatpush1.msra.mxu0 0.0
    %5914 = vmatprep.subr.mxu0 0.0
    %5915 = vmatpush1.msra.mxu0 0.0
    %5916 = vmatprep.subr.mxu0 0.0
    %5917 = vmatpush1.msra.mxu0 0.0
    %5918 = vmatprep.subr.mxu0 0.0
    %5919 = vmatpush1.msra.mxu0 0.0
    %5920 = vmatprep.subr.mxu0 0.0
    %5921 = vmatpush1.msra.mxu0 0.0
    %5922 = vmatprep.subr.mxu0 0.0
    %5923 = vmatpush1.msra.mxu0 0.0
    %5924 = vmatprep.subr.mxu0 0.0
    %5925 = vmatpush1.msra.mxu0 0.0
    %5926 = vmatprep.subr.mxu0 0.0
    %5927 = vmatpush1.msra.mxu0 0.0
    %5928 = vmatprep.subr.mxu0 0.0
    %5929 = vmatpush1.msra.mxu0 0.0
    %5930 = vmatprep.subr.mxu0 0.0
    %5931 = vmatpush1.msra.mxu0 0.0
    %5932 = vmatprep.subr.mxu0 0.0
    %5933 = vmatpush1.msra.mxu0 0.0
    %5934 = vmatprep.subr.mxu0 0.0
    %5935 = vmatpush1.msra.mxu0 0.0
    %5936 = vmatprep.subr.mxu0 0.0
    %5937 = vmatpush1.msra.mxu0 0.0
    %5938 = vmatprep.subr.mxu0 0.0
    %5939 = vmatpush1.msra.mxu0 0.0
    %5940 = vmatprep.mubr.f32.mxu0 0.0
    %5941 = vmatmul.mubr.f32.gmra.mrb[0].mxu0 %v5841
    %v5942 = vpop.f32.mrb[0].mxu0
    %v5943 = vadd.f32 0.0, %v5942
    %v5944 = vpop.f32.mrb[0].mxu0
    %5945 = vmatprep.mubr.f32.mxu0 0.0
    %5946 = vmatmul.mubr.f32.gmra.mrb[0].mxu0 %v5844
    %v5947 = vpop.f32.mrb[0].mxu0
    %v5948 = vadd.f32 0.0, %v5947
    %v5949 = vpop.f32.mrb[0].mxu0
    %5950 = vmatprep.mubr.f32.mxu0 0.0
    %5951 = vmatmul.mubr.f32.gmra.mrb[0].mxu0 %v5847
    %v5952 = vpop.f32.mrb[0].mxu0
    %v5953 = vadd.f32 0.0, %v5952
    %v5954 = vpop.f32.mrb[0].mxu0
    %5955 = vmatprep.mubr.f32.mxu0 0.0
    %5956 = vmatmul.mubr.f32.gmra.mrb[0].mxu0 %v5850
    %v5957 = vpop.f32.mrb[0].mxu0
    %v5958 = vadd.f32 0.0, %v5957
    %v5959 = vpop.f32.mrb[0].mxu0
    %5960 = vmatprep.mubr.f32.mxu0 0.0
    %5961 = vmatmul.mubr.f32.gmra.mrb[0].mxu0 %v5853
    %v5962 = vpop.f32.mrb[0].mxu0
    %v5963 = vadd.f32 0.0, %v5962
    %v5964 = vpop.f32.mrb[0].mxu0
    %5965 = vmatprep.mubr.f32.mxu0 0.0
    %5966 = vmatmul.mubr.f32.gmra.mrb[0].mxu0 %v5856
    %v5967 = vpop.f32.mrb[0].mxu0
    %v5968 = vadd.f32 0.0, %v5967
    %v5969 = vpop.f32.mrb[0].mxu0
    %5970 = vmatprep.mubr.f32.mxu0 0.0
    %5971 = vmatmul.mubr.f32.gmra.mrb[0].mxu0 %v5859
    %v5972 = vpop.f32.mrb[0].mxu0
    %v5973 = vadd.f32 0.0, %v5972
    %v5974 = vpop.f32.mrb[0].mxu0
    %5975 = vmatprep.mubr.f32.mxu0 0.0
    %5976 = vmatmul.mubr.f32.gmra.mrb[0].mxu0 %v5862
    %v5977 = vpop.f32.mrb[0].mxu0
    %v5978 = vadd.f32 0.0, %v5977
    %v5979 = vpop.f32.mrb[0].mxu0
    %5980 = vmatprep.mubr.f32.mxu0 0.0
    %5981 = vmatmul.mubr.f32.gmra.mrb[0].mxu0 %v5865
    %v5982 = vpop.f32.mrb[0].mxu0
    %v5983 = vadd.f32 0.0, %v5982
    %v5984 = vpop.f32.mrb[0].mxu0
    %5985 = vmatprep.mubr.f32.mxu0 0.0
    %5986 = vmatmul.mubr.f32.gmra.mrb[0].mxu0 %v5868
    %v5987 = vpop.f32.mrb[0].mxu0
    %v5988 = vadd.f32 0.0, %v5987
    %v5989 = vpop.f32.mrb[0].mxu0
    %5990 = vmatprep.mubr.f32.mxu0 0.0
    %5991 = vmatmul.mubr.f32.gmra.mrb[0].mxu0 %v5871
    %v5992 = vpop.f32.mrb[0].mxu0
    %v5993 = vadd.f32 0.0, %v5992
    %v5994 = vpop.f32.mrb[0].mxu0
    %5995 = vmatprep.mubr.f32.mxu0 0.0
    %5996 = vmatmul.mubr.f32.gmra.mrb[0].mxu0 %v5874
    %v5997 = vpop.f32.mrb[0].mxu0
    %v5998 = vadd.f32 0.0, %v5997
    %v5999 = vpop.f32.mrb[0].mxu0
    %6000 = vdwg.mxu0
    %v6002 = vsel %vm748, %v5232, 0
    %v6005 = vsel %vm748, %v5237, 0
    %v6008 = vsel %vm748, %v5242, 0
    %v6011 = vsel %vm748, %v5247, 0
    %v6014 = vsel %vm748, %v5252, 0
    %v6017 = vsel %vm748, %v5257, 0
    %v6020 = vsel %vm748, %v5262, 0
    %v6023 = vsel %vm748, %v5267, 0
    %v6026 = vsel %vm748, %v5272, 0
    %v6029 = vsel %vm748, %v5277, 0
    %v6032 = vsel %vm748, %v5282, 0
    %v6035 = vsel %vm748, %v5287, 0
    %6037 = vmatprep.subr.mxu0 0.0
    %6038 = vmatpush1.msra.mxu0 %v4748
    %6039 = vmatprep.subr.mxu0 0.0
    %6040 = vmatpush1.msra.mxu0 0.0
    %6041 = vmatprep.subr.mxu0 0.0
    %6042 = vmatpush1.msra.mxu0 0.0
    %6043 = vmatprep.subr.mxu0 0.0
    %6044 = vmatpush1.msra.mxu0 0.0
    %6045 = vmatprep.subr.mxu0 0.0
    %6046 = vmatpush1.msra.mxu0 0.0
    %6047 = vmatprep.subr.mxu0 0.0
    %6048 = vmatpush1.msra.mxu0 0.0
    %6049 = vmatprep.subr.mxu0 0.0
    %6050 = vmatpush1.msra.mxu0 0.0
    %6051 = vmatprep.subr.mxu0 0.0
    %6052 = vmatpush1.msra.mxu0 0.0
    %6053 = vmatprep.subr.mxu0 0.0
    %6054 = vmatpush1.msra.mxu0 0.0
    %6055 = vmatprep.subr.mxu0 0.0
    %6056 = vmatpush1.msra.mxu0 0.0
    %6057 = vmatprep.subr.mxu0 0.0
    %6058 = vmatpush1.msra.mxu0 0.0
    %6059 = vmatprep.subr.mxu0 0.0
    %6060 = vmatpush1.msra.mxu0 0.0
    %6061 = vmatprep.subr.mxu0 0.0
    %6062 = vmatpush1.msra.mxu0 0.0
    %6063 = vmatprep.subr.mxu0 0.0
    %6064 = vmatpush1.msra.mxu0 0.0
    %6065 = vmatprep.subr.mxu0 0.0
    %6066 = vmatpush1.msra.mxu0 0.0
    %6067 = vmatprep.subr.mxu0 0.0
    %6068 = vmatpush1.msra.mxu0 0.0
    %6069 = vmatprep.subr.mxu0 0.0
    %6070 = vmatpush1.msra.mxu0 0.0
    %6071 = vmatprep.subr.mxu0 0.0
    %6072 = vmatpush1.msra.mxu0 0.0
    %6073 = vmatprep.subr.mxu0 0.0
    %6074 = vmatpush1.msra.mxu0 0.0
    %6075 = vmatprep.subr.mxu0 0.0
    %6076 = vmatpush1.msra.mxu0 0.0
    %6077 = vmatprep.subr.mxu0 0.0
    %6078 = vmatpush1.msra.mxu0 0.0
    %6079 = vmatprep.subr.mxu0 0.0
    %6080 = vmatpush1.msra.mxu0 0.0
    %6081 = vmatprep.subr.mxu0 0.0
    %6082 = vmatpush1.msra.mxu0 0.0
    %6083 = vmatprep.subr.mxu0 0.0
    %6084 = vmatpush1.msra.mxu0 0.0
    %6085 = vmatprep.subr.mxu0 0.0
    %6086 = vmatpush1.msra.mxu0 0.0
    %6087 = vmatprep.subr.mxu0 0.0
    %6088 = vmatpush1.msra.mxu0 0.0
    %6089 = vmatprep.subr.mxu0 0.0
    %6090 = vmatpush1.msra.mxu0 0.0
    %6091 = vmatprep.subr.mxu0 0.0
    %6092 = vmatpush1.msra.mxu0 0.0
    %6093 = vmatprep.subr.mxu0 0.0
    %6094 = vmatpush1.msra.mxu0 0.0
    %6095 = vmatprep.subr.mxu0 0.0
    %6096 = vmatpush1.msra.mxu0 0.0
    %6097 = vmatprep.subr.mxu0 0.0
    %6098 = vmatpush1.msra.mxu0 0.0
    %6099 = vmatprep.subr.mxu0 0.0
    %6100 = vmatpush1.msra.mxu0 0.0
    %6101 = vmatprep.mubr.f32.mxu0 0.0
    %6102 = vmatmul.mubr.f32.gmra.mrb[0].mxu0 %v6002
    %v6103 = vpop.f32.mrb[0].mxu0
    %v6104 = vadd.f32 %v5943, %v6103
    %v6105 = vpop.f32.mrb[0].mxu0
    %6106 = vmatprep.mubr.f32.mxu0 0.0
    %6107 = vmatmul.mubr.f32.gmra.mrb[0].mxu0 %v6005
    %v6108 = vpop.f32.mrb[0].mxu0
    %v6109 = vadd.f32 %v5948, %v6108
    %v6110 = vpop.f32.mrb[0].mxu0
    %6111 = vmatprep.mubr.f32.mxu0 0.0
    %6112 = vmatmul.mubr.f32.gmra.mrb[0].mxu0 %v6008
    %v6113 = vpop.f32.mrb[0].mxu0
    %v6114 = vadd.f32 %v5953, %v6113
    %v6115 = vpop.f32.mrb[0].mxu0
    %6116 = vmatprep.mubr.f32.mxu0 0.0
    %6117 = vmatmul.mubr.f32.gmra.mrb[0].mxu0 %v6011
    %v6118 = vpop.f32.mrb[0].mxu0
    %v6119 = vadd.f32 %v5958, %v6118
    %v6120 = vpop.f32.mrb[0].mxu0
    %6121 = vmatprep.mubr.f32.mxu0 0.0
    %6122 = vmatmul.mubr.f32.gmra.mrb[0].mxu0 %v6014
    %v6123 = vpop.f32.mrb[0].mxu0
    %v6124 = vadd.f32 %v5963, %v6123
    %v6125 = vpop.f32.mrb[0].mxu0
    %6126 = vmatprep.mubr.f32.mxu0 0.0
    %6127 = vmatmul.mubr.f32.gmra.mrb[0].mxu0 %v6017
    %v6128 = vpop.f32.mrb[0].mxu0
    %v6129 = vadd.f32 %v5968, %v6128
    %v6130 = vpop.f32.mrb[0].mxu0
    %6131 = vmatprep.mubr.f32.mxu0 0.0
    %6132 = vmatmul.mubr.f32.gmra.mrb[0].mxu0 %v6020
    %v6133 = vpop.f32.mrb[0].mxu0
    %v6134 = vadd.f32 %v5973, %v6133
    %v6135 = vpop.f32.mrb[0].mxu0
    %6136 = vmatprep.mubr.f32.mxu0 0.0
    %6137 = vmatmul.mubr.f32.gmra.mrb[0].mxu0 %v6023
    %v6138 = vpop.f32.mrb[0].mxu0
    %v6139 = vadd.f32 %v5978, %v6138
    %v6140 = vpop.f32.mrb[0].mxu0
    %6141 = vmatprep.mubr.f32.mxu0 0.0
    %6142 = vmatmul.mubr.f32.gmra.mrb[0].mxu0 %v6026
    %v6143 = vpop.f32.mrb[0].mxu0
    %v6144 = vadd.f32 %v5983, %v6143
    %v6145 = vpop.f32.mrb[0].mxu0
    %6146 = vmatprep.mubr.f32.mxu0 0.0
    %6147 = vmatmul.mubr.f32.gmra.mrb[0].mxu0 %v6029
    %v6148 = vpop.f32.mrb[0].mxu0
    %v6149 = vadd.f32 %v5988, %v6148
    %v6150 = vpop.f32.mrb[0].mxu0
    %6151 = vmatprep.mubr.f32.mxu0 0.0
    %6152 = vmatmul.mubr.f32.gmra.mrb[0].mxu0 %v6032
    %v6153 = vpop.f32.mrb[0].mxu0
    %v6154 = vadd.f32 %v5993, %v6153
    %v6155 = vpop.f32.mrb[0].mxu0
    %6156 = vmatprep.mubr.f32.mxu0 0.0
    %6157 = vmatmul.mubr.f32.gmra.mrb[0].mxu0 %v6035
    %v6158 = vpop.f32.mrb[0].mxu0
    %v6159 = vadd.f32 %v5998, %v6158
    %v6160 = vpop.f32.mrb[0].mxu0
    %6161 = vdwg.mxu0
    %6162 = vrot.lane.b32.xlu0 %v4690, 112
    %v6163 = vpop.permute.xlu0 %6162
    %6164 = vrot.lane.b32.xlu0 %v4695, 112
    %v6165 = vpop.permute.xlu0 %6164
    %6166 = vrot.lane.b32.xlu0 %v4700, 112
    %v6167 = vpop.permute.xlu0 %6166
    %6168 = vrot.lane.b32.xlu0 %v4705, 112
    %v6169 = vpop.permute.xlu0 %6168
    %6170 = vrot.lane.b32.xlu0 %v4710, 112
    %v6171 = vpop.permute.xlu0 %6170
    %6172 = vrot.lane.b32.xlu0 %v4715, 112
    %v6173 = vpop.permute.xlu0 %6172
    %6174 = vrot.lane.b32.xlu0 %v4720, 112
    %v6175 = vpop.permute.xlu0 %6174
    %6176 = vrot.lane.b32.xlu0 %v4725, 112
    %v6177 = vpop.permute.xlu0 %6176
    %6178 = vrot.lane.b32.xlu0 %v4730, 112
    %v6179 = vpop.permute.xlu0 %6178
    %6180 = vrot.lane.b32.xlu0 %v4735, 112
    %v6181 = vpop.permute.xlu0 %6180
    %6182 = vrot.lane.b32.xlu0 %v4740, 112
    %v6183 = vpop.permute.xlu0 %6182
    %6184 = vrot.lane.b32.xlu0 %v4745, 112
    %v6185 = vpop.permute.xlu0 %6184
    %6186 = vrot.lane.b32.xlu0 %v4690, 80
    %v6187 = vpop.permute.xlu0 %6186
    %6188 = vrot.lane.b32.xlu0 %v4695, 80
    %v6189 = vpop.permute.xlu0 %6188
    %6190 = vrot.lane.b32.xlu0 %v4700, 80
    %v6191 = vpop.permute.xlu0 %6190
    %6192 = vrot.lane.b32.xlu0 %v4705, 80
    %v6193 = vpop.permute.xlu0 %6192
    %6194 = vrot.lane.b32.xlu0 %v4710, 80
    %v6195 = vpop.permute.xlu0 %6194
    %6196 = vrot.lane.b32.xlu0 %v4715, 80
    %v6197 = vpop.permute.xlu0 %6196
    %6198 = vrot.lane.b32.xlu0 %v4720, 80
    %v6199 = vpop.permute.xlu0 %6198
    %6200 = vrot.lane.b32.xlu0 %v4725, 80
    %v6201 = vpop.permute.xlu0 %6200
    %6202 = vrot.lane.b32.xlu0 %v4730, 80
    %v6203 = vpop.permute.xlu0 %6202
    %6204 = vrot.lane.b32.xlu0 %v4735, 80
    %v6205 = vpop.permute.xlu0 %6204
    %6206 = vrot.lane.b32.xlu0 %v4740, 80
    %v6207 = vpop.permute.xlu0 %6206
    %6208 = vrot.lane.b32.xlu0 %v4745, 80
    %v6209 = vpop.permute.xlu0 %6208
    %v6210 = vsel %vm748, %v6163, 0
    %v6212 = vsel %vm748, %v6165, 0
    %v6214 = vsel %vm748, %v6167, 0
    %v6216 = vsel %vm748, %v6169, 0
    %v6218 = vsel %vm748, %v6171, 0
    %v6220 = vsel %vm748, %v6173, 0
    %v6222 = vsel %vm748, %v6175, 0
    %v6224 = vsel %vm748, %v6177, 0
    %v6226 = vsel %vm748, %v6179, 0
    %v6228 = vsel %vm748, %v6181, 0
    %v6230 = vsel %vm748, %v6183, 0
    %v6232 = vsel %vm748, %v6185, 0
    %v6234 = vsel %vm748, %v6187, 0
    %v6236 = vsel %vm748, %v6189, 0
    %v6238 = vsel %vm748, %v6191, 0
    %v6240 = vsel %vm748, %v6193, 0
    %v6242 = vsel %vm748, %v6195, 0
    %v6244 = vsel %vm748, %v6197, 0
    %v6246 = vsel %vm748, %v6199, 0
    %v6248 = vsel %vm748, %v6201, 0
    %v6250 = vsel %vm748, %v6203, 0
    %v6252 = vsel %vm748, %v6205, 0
    %v6254 = vsel %vm748, %v6207, 0
    %v6256 = vsel %vm748, %v6209, 0
    %6258 = vmatprep.subr.mxu0 0.0
    %6259 = vmatpush1.xpose.msra.mxu0 %v6234
    %6260 = vmatprep.subr.mxu0 0.0
    %6261 = vmatpush1.xpose.msra.mxu0 %v6236
    %6262 = vmatprep.subr.mxu0 0.0
    %6263 = vmatpush1.xpose.msra.mxu0 %v6238
    %6264 = vmatprep.subr.mxu0 0.0
    %6265 = vmatpush1.xpose.msra.mxu0 %v6240
    %6266 = vmatprep.subr.mxu0 0.0
    %6267 = vmatpush1.xpose.msra.mxu0 %v6242
    %6268 = vmatprep.subr.mxu0 0.0
    %6269 = vmatpush1.xpose.msra.mxu0 %v6244
    %6270 = vmatprep.subr.mxu0 0.0
    %6271 = vmatpush1.xpose.msra.mxu0 %v6246
    %6272 = vmatprep.subr.mxu0 0.0
    %6273 = vmatpush1.xpose.msra.mxu0 %v6248
    %6274 = vmatprep.subr.mxu0 0.0
    %6275 = vmatpush1.xpose.msra.mxu0 %v6250
    %6276 = vmatprep.subr.mxu0 0.0
    %6277 = vmatpush1.xpose.msra.mxu0 %v6252
    %6278 = vmatprep.subr.mxu0 0.0
    %6279 = vmatpush1.xpose.msra.mxu0 %v6254
    %6280 = vmatprep.subr.mxu0 0.0
    %6281 = vmatpush1.xpose.msra.mxu0 %v6256
    %6282 = vmatprep.subr.mxu0 0.0
    %6283 = vmatpush1.xpose.msra.mxu0 0.0
    %6284 = vmatprep.subr.mxu0 0.0
    %6285 = vmatpush1.xpose.msra.mxu0 0.0
    %6286 = vmatprep.subr.mxu0 0.0
    %6287 = vmatpush1.xpose.msra.mxu0 0.0
    %6288 = vmatprep.subr.mxu0 0.0
    %6289 = vmatpush1.xpose.msra.mxu0 0.0
    %6290 = vmatprep.subr.mxu0 0.0
    %6291 = vmatpush1.xpose.msra.mxu0 0.0
    %6292 = vmatprep.subr.mxu0 0.0
    %6293 = vmatpush1.xpose.msra.mxu0 0.0
    %6294 = vmatprep.subr.mxu0 0.0
    %6295 = vmatpush1.xpose.msra.mxu0 0.0
    %6296 = vmatprep.subr.mxu0 0.0
    %6297 = vmatpush1.xpose.msra.mxu0 0.0
    %6298 = vmatprep.subr.mxu0 0.0
    %6299 = vmatpush1.xpose.msra.mxu0 0.0
    %6300 = vmatprep.subr.mxu0 0.0
    %6301 = vmatpush1.xpose.msra.mxu0 0.0
    %6302 = vmatprep.subr.mxu0 0.0
    %6303 = vmatpush1.xpose.msra.mxu0 0.0
    %6304 = vmatprep.subr.mxu0 0.0
    %6305 = vmatpush1.xpose.msra.mxu0 0.0
    %6306 = vmatprep.subr.mxu0 0.0
    %6307 = vmatpush1.xpose.msra.mxu0 0.0
    %6308 = vmatprep.subr.mxu0 0.0
    %6309 = vmatpush1.xpose.msra.mxu0 0.0
    %6310 = vmatprep.subr.mxu0 0.0
    %6311 = vmatpush1.xpose.msra.mxu0 0.0
    %6312 = vmatprep.subr.mxu0 0.0
    %6313 = vmatpush1.xpose.msra.mxu0 0.0
    %6314 = vmatprep.subr.mxu0 0.0
    %6315 = vmatpush1.xpose.msra.mxu0 0.0
    %6316 = vmatprep.subr.mxu0 0.0
    %6317 = vmatpush1.xpose.msra.mxu0 0.0
    %6318 = vmatprep.subr.mxu0 0.0
    %6319 = vmatpush1.xpose.msra.mxu0 0.0
    %6320 = vmatprep.subr.mxu0 0.0
    %6321 = vmatpush1.xpose.msra.mxu0 0.0
    %6322 = vmatprep.mubr.f32.mxu0 0.0
    %6323 = vmatmul.mubr.f32.gmra.mrb[0].mxu0 %v6210
    %v6324 = vpop.f32.mrb[0].mxu0
    %v6325 = vadd.f32 %v84, %v6324
    %v6326 = vpop.f32.mrb[0].mxu0
    %6327 = vmatprep.mubr.f32.mxu0 0.0
    %6328 = vmatmul.mubr.f32.gmra.mrb[0].mxu0 %v6212
    %v6329 = vpop.f32.mrb[0].mxu0
    %v6330 = vadd.f32 %v85, %v6329
    %v6331 = vpop.f32.mrb[0].mxu0
    %6332 = vmatprep.mubr.f32.mxu0 0.0
    %6333 = vmatmul.mubr.f32.gmra.mrb[0].mxu0 %v6214
    %v6334 = vpop.f32.mrb[0].mxu0
    %v6335 = vadd.f32 %v86, %v6334
    %v6336 = vpop.f32.mrb[0].mxu0
    %6337 = vmatprep.mubr.f32.mxu0 0.0
    %6338 = vmatmul.mubr.f32.gmra.mrb[0].mxu0 %v6216
    %v6339 = vpop.f32.mrb[0].mxu0
    %v6340 = vadd.f32 %v87, %v6339
    %v6341 = vpop.f32.mrb[0].mxu0
    %6342 = vmatprep.mubr.f32.mxu0 0.0
    %6343 = vmatmul.mubr.f32.gmra.mrb[0].mxu0 %v6218
    %v6344 = vpop.f32.mrb[0].mxu0
    %v6345 = vadd.f32 %v88, %v6344
    %v6346 = vpop.f32.mrb[0].mxu0
    %6347 = vmatprep.mubr.f32.mxu0 0.0
    %6348 = vmatmul.mubr.f32.gmra.mrb[0].mxu0 %v6220
    %v6349 = vpop.f32.mrb[0].mxu0
    %v6350 = vadd.f32 %v89, %v6349
    %v6351 = vpop.f32.mrb[0].mxu0
    %6352 = vmatprep.mubr.f32.mxu0 0.0
    %6353 = vmatmul.mubr.f32.gmra.mrb[0].mxu0 %v6222
    %v6354 = vpop.f32.mrb[0].mxu0
    %v6355 = vadd.f32 %v90, %v6354
    %v6356 = vpop.f32.mrb[0].mxu0
    %6357 = vmatprep.mubr.f32.mxu0 0.0
    %6358 = vmatmul.mubr.f32.gmra.mrb[0].mxu0 %v6224
    %v6359 = vpop.f32.mrb[0].mxu0
    %v6360 = vadd.f32 %v91, %v6359
    %v6361 = vpop.f32.mrb[0].mxu0
    %6362 = vmatprep.mubr.f32.mxu0 0.0
    %6363 = vmatmul.mubr.f32.gmra.mrb[0].mxu0 %v6226
    %v6364 = vpop.f32.mrb[0].mxu0
    %v6365 = vadd.f32 %v92, %v6364
    %v6366 = vpop.f32.mrb[0].mxu0
    %6367 = vmatprep.mubr.f32.mxu0 0.0
    %6368 = vmatmul.mubr.f32.gmra.mrb[0].mxu0 %v6228
    %v6369 = vpop.f32.mrb[0].mxu0
    %v6370 = vadd.f32 %v93, %v6369
    %v6371 = vpop.f32.mrb[0].mxu0
    %6372 = vmatprep.mubr.f32.mxu0 0.0
    %6373 = vmatmul.mubr.f32.gmra.mrb[0].mxu0 %v6230
    %v6374 = vpop.f32.mrb[0].mxu0
    %v6375 = vadd.f32 %v94, %v6374
    %v6376 = vpop.f32.mrb[0].mxu0
    %6377 = vmatprep.mubr.f32.mxu0 0.0
    %6378 = vmatmul.mubr.f32.gmra.mrb[0].mxu0 %v6232
    %v6379 = vpop.f32.mrb[0].mxu0
    %v6380 = vadd.f32 %v95, %v6379
    %v6381 = vpop.f32.mrb[0].mxu0
    %6382 = vdwg.mxu0
    %v6383 = vsel %vm922, %v6325, -inf
    %6384 = vmax.xlane.f32.xlu0 %v6383
    %v6385 = vpop.xlane.xlu0 %6384
    %v6386 = vsel %vm922, %v6330, -inf
    %6387 = vmax.xlane.f32.xlu0 %v6386
    %v6388 = vpop.xlane.xlu0 %6387
    %v6389 = vsel %vm922, %v6335, -inf
    %6390 = vmax.xlane.f32.xlu0 %v6389
    %v6391 = vpop.xlane.xlu0 %6390
    %v6392 = vsel %vm922, %v6340, -inf
    %6393 = vmax.xlane.f32.xlu0 %v6392
    %v6394 = vpop.xlane.xlu0 %6393
    %v6395 = vsel %vm922, %v6345, -inf
    %6396 = vmax.xlane.f32.xlu0 %v6395
    %v6397 = vpop.xlane.xlu0 %6396
    %v6398 = vsel %vm922, %v6350, -inf
    %6399 = vmax.xlane.f32.xlu0 %v6398
    %v6400 = vpop.xlane.xlu0 %6399
    %v6401 = vsel %vm922, %v6355, -inf
    %6402 = vmax.xlane.f32.xlu0 %v6401
    %v6403 = vpop.xlane.xlu0 %6402
    %v6404 = vsel %vm922, %v6360, -inf
    %6405 = vmax.xlane.f32.xlu0 %v6404
    %v6406 = vpop.xlane.xlu0 %6405
    %v6407 = vsel %vm922, %v6365, -inf
    %6408 = vmax.xlane.f32.xlu0 %v6407
    %v6409 = vpop.xlane.xlu0 %6408
    %v6410 = vsel %vm922, %v6370, -inf
    %6411 = vmax.xlane.f32.xlu0 %v6410
    %v6412 = vpop.xlane.xlu0 %6411
    %v6413 = vsel %vm922, %v6375, -inf
    %6414 = vmax.xlane.f32.xlu0 %v6413
    %v6415 = vpop.xlane.xlu0 %6414
    %v6416 = vsel %vm922, %v6380, -inf
    %6417 = vmax.xlane.f32.xlu0 %v6416
    %v6418 = vpop.xlane.xlu0 %6417
    %v6419 = vsub.f32 %v6325, %v6385
    %v6420 = vsub.f32 %v6330, %v6388
    %v6421 = vsub.f32 %v6335, %v6391
    %v6422 = vsub.f32 %v6340, %v6394
    %v6423 = vsub.f32 %v6345, %v6397
    %v6424 = vsub.f32 %v6350, %v6400
    %v6425 = vsub.f32 %v6355, %v6403
    %v6426 = vsub.f32 %v6360, %v6406
    %v6427 = vsub.f32 %v6365, %v6409
    %v6428 = vsub.f32 %v6370, %v6412
    %v6429 = vsub.f32 %v6375, %v6415
    %v6430 = vsub.f32 %v6380, %v6418
    %v6431 = vmul.f32 %v6419, 1.442695
    %v6432 = vpow.pop %v6431
    %v6433 = vmul.f32 %v6420, 1.442695
    %v6434 = vpow.pop %v6433
    %v6435 = vmul.f32 %v6421, 1.442695
    %v6436 = vpow.pop %v6435
    %v6437 = vmul.f32 %v6422, 1.442695
    %v6438 = vpow.pop %v6437
    %v6439 = vmul.f32 %v6423, 1.442695
    %v6440 = vpow.pop %v6439
    %v6441 = vmul.f32 %v6424, 1.442695
    %v6442 = vpow.pop %v6441
    %v6443 = vmul.f32 %v6425, 1.442695
    %v6444 = vpow.pop %v6443
    %v6445 = vmul.f32 %v6426, 1.442695
    %v6446 = vpow.pop %v6445
    %v6447 = vmul.f32 %v6427, 1.442695
    %v6448 = vpow.pop %v6447
    %v6449 = vmul.f32 %v6428, 1.442695
    %v6450 = vpow.pop %v6449
    %v6451 = vmul.f32 %v6429, 1.442695
    %v6452 = vpow.pop %v6451
    %v6453 = vmul.f32 %v6430, 1.442695
    %v6454 = vpow.pop %v6453
    %v6455 = vsel %vm922, %v6432, 0.0
    %6456 = vadd.xlane.f32.xlu0 %v6455
    %v6457 = vpop.xlane.xlu0 %6456
    %v6458 = vsel %vm922, %v6434, 0.0
    %6459 = vadd.xlane.f32.xlu0 %v6458
    %v6460 = vpop.xlane.xlu0 %6459
    %v6461 = vsel %vm922, %v6436, 0.0
    %6462 = vadd.xlane.f32.xlu0 %v6461
    %v6463 = vpop.xlane.xlu0 %6462
    %v6464 = vsel %vm922, %v6438, 0.0
    %6465 = vadd.xlane.f32.xlu0 %v6464
    %v6466 = vpop.xlane.xlu0 %6465
    %v6467 = vsel %vm922, %v6440, 0.0
    %6468 = vadd.xlane.f32.xlu0 %v6467
    %v6469 = vpop.xlane.xlu0 %6468
    %v6470 = vsel %vm922, %v6442, 0.0
    %6471 = vadd.xlane.f32.xlu0 %v6470
    %v6472 = vpop.xlane.xlu0 %6471
    %v6473 = vsel %vm922, %v6444, 0.0
    %6474 = vadd.xlane.f32.xlu0 %v6473
    %v6475 = vpop.xlane.xlu0 %6474
    %v6476 = vsel %vm922, %v6446, 0.0
    %6477 = vadd.xlane.f32.xlu0 %v6476
    %v6478 = vpop.xlane.xlu0 %6477
    %v6479 = vsel %vm922, %v6448, 0.0
    %6480 = vadd.xlane.f32.xlu0 %v6479
    %v6481 = vpop.xlane.xlu0 %6480
    %v6482 = vsel %vm922, %v6450, 0.0
    %6483 = vadd.xlane.f32.xlu0 %v6482
    %v6484 = vpop.xlane.xlu0 %6483
    %v6485 = vsel %vm922, %v6452, 0.0
    %6486 = vadd.xlane.f32.xlu0 %v6485
    %v6487 = vpop.xlane.xlu0 %6486
    %v6488 = vsel %vm922, %v6454, 0.0
    %6489 = vadd.xlane.f32.xlu0 %v6488
    %v6490 = vpop.xlane.xlu0 %6489
    %v6491 = vrcp.pop %v6457
    %v6492 = vrcp.pop %v6460
    %v6493 = vrcp.pop %v6463
    %v6494 = vrcp.pop %v6466
    %v6495 = vrcp.pop %v6469
    %v6496 = vrcp.pop %v6472
    %v6497 = vrcp.pop %v6475
    %v6498 = vrcp.pop %v6478
    %v6499 = vrcp.pop %v6481
    %v6500 = vrcp.pop %v6484
    %v6501 = vrcp.pop %v6487
    %v6502 = vrcp.pop %v6490
    %v6503 = vmul.f32 %v6432, %v6491
    %v6504 = vmul.f32 %v6434, %v6492
    %v6505 = vmul.f32 %v6436, %v6493
    %v6506 = vmul.f32 %v6438, %v6494
    %v6507 = vmul.f32 %v6440, %v6495
    %v6508 = vmul.f32 %v6442, %v6496
    %v6509 = vmul.f32 %v6444, %v6497
    %v6510 = vmul.f32 %v6446, %v6498
    %v6511 = vmul.f32 %v6448, %v6499
    %v6512 = vmul.f32 %v6450, %v6500
    %v6513 = vmul.f32 %v6452, %v6501
    %v6514 = vmul.f32 %v6454, %v6502
    %6515 = vrot.lane.b32.xlu0 %v4690, 48
    %v6516 = vpop.permute.xlu0 %6515
    %6517 = vrot.lane.b32.xlu0 %v4695, 48
    %v6518 = vpop.permute.xlu0 %6517
    %6519 = vrot.lane.b32.xlu0 %v4700, 48
    %v6520 = vpop.permute.xlu0 %6519
    %6521 = vrot.lane.b32.xlu0 %v4705, 48
    %v6522 = vpop.permute.xlu0 %6521
    %6523 = vrot.lane.b32.xlu0 %v4710, 48
    %v6524 = vpop.permute.xlu0 %6523
    %6525 = vrot.lane.b32.xlu0 %v4715, 48
    %v6526 = vpop.permute.xlu0 %6525
    %6527 = vrot.lane.b32.xlu0 %v4720, 48
    %v6528 = vpop.permute.xlu0 %6527
    %6529 = vrot.lane.b32.xlu0 %v4725, 48
    %v6530 = vpop.permute.xlu0 %6529
    %6531 = vrot.lane.b32.xlu0 %v4730, 48
    %v6532 = vpop.permute.xlu0 %6531
    %6533 = vrot.lane.b32.xlu0 %v4735, 48
    %v6534 = vpop.permute.xlu0 %6533
    %6535 = vrot.lane.b32.xlu0 %v4740, 48
    %v6536 = vpop.permute.xlu0 %6535
    %6537 = vrot.lane.b32.xlu0 %v4745, 48
    %v6538 = vpop.permute.xlu0 %6537
    %v6552 = vsel %vm922, %v6503, 0
    %v6555 = vsel %vm922, %v6504, 0
    %v6558 = vsel %vm922, %v6505, 0
    %v6561 = vsel %vm922, %v6506, 0
    %v6564 = vsel %vm922, %v6507, 0
    %v6567 = vsel %vm922, %v6508, 0
    %v6570 = vsel %vm922, %v6509, 0
    %v6573 = vsel %vm922, %v6510, 0
    %v6576 = vsel %vm922, %v6511, 0
    %v6579 = vsel %vm922, %v6512, 0
    %v6582 = vsel %vm922, %v6513, 0
    %v6585 = vsel %vm922, %v6514, 0
    %6587 = vmatprep.subr.mxu0 0.0
    %6588 = vmatpush1.msra.mxu0 %v6516
    %6589 = vmatprep.subr.mxu0 0.0
    %6590 = vmatpush1.msra.mxu0 %v6518
    %6591 = vmatprep.subr.mxu0 0.0
    %6592 = vmatpush1.msra.mxu0 %v6520
    %6593 = vmatprep.subr.mxu0 0.0
    %6594 = vmatpush1.msra.mxu0 %v6522
    %6595 = vmatprep.subr.mxu0 0.0
    %6596 = vmatpush1.msra.mxu0 %v6524
    %6597 = vmatprep.subr.mxu0 0.0
    %6598 = vmatpush1.msra.mxu0 %v6526
    %6599 = vmatprep.subr.mxu0 0.0
    %6600 = vmatpush1.msra.mxu0 %v6528
    %6601 = vmatprep.subr.mxu0 0.0
    %6602 = vmatpush1.msra.mxu0 %v6530
    %6603 = vmatprep.subr.mxu0 0.0
    %6604 = vmatpush1.msra.mxu0 %v6532
    %6605 = vmatprep.subr.mxu0 0.0
    %6606 = vmatpush1.msra.mxu0 %v6534
    %6607 = vmatprep.subr.mxu0 0.0
    %6608 = vmatpush1.msra.mxu0 %v6536
    %6609 = vmatprep.subr.mxu0 0.0
    %6610 = vmatpush1.msra.mxu0 %v6538
    %6611 = vmatprep.subr.mxu0 0.0
    %6612 = vmatpush1.msra.mxu0 0.0
    %6613 = vmatprep.subr.mxu0 0.0
    %6614 = vmatpush1.msra.mxu0 0.0
    %6615 = vmatprep.subr.mxu0 0.0
    %6616 = vmatpush1.msra.mxu0 0.0
    %6617 = vmatprep.subr.mxu0 0.0
    %6618 = vmatpush1.msra.mxu0 0.0
    %6619 = vmatprep.subr.mxu0 0.0
    %6620 = vmatpush1.msra.mxu0 0.0
    %6621 = vmatprep.subr.mxu0 0.0
    %6622 = vmatpush1.msra.mxu0 0.0
    %6623 = vmatprep.subr.mxu0 0.0
    %6624 = vmatpush1.msra.mxu0 0.0
    %6625 = vmatprep.subr.mxu0 0.0
    %6626 = vmatpush1.msra.mxu0 0.0
    %6627 = vmatprep.subr.mxu0 0.0
    %6628 = vmatpush1.msra.mxu0 0.0
    %6629 = vmatprep.subr.mxu0 0.0
    %6630 = vmatpush1.msra.mxu0 0.0
    %6631 = vmatprep.subr.mxu0 0.0
    %6632 = vmatpush1.msra.mxu0 0.0
    %6633 = vmatprep.subr.mxu0 0.0
    %6634 = vmatpush1.msra.mxu0 0.0
    %6635 = vmatprep.subr.mxu0 0.0
    %6636 = vmatpush1.msra.mxu0 0.0
    %6637 = vmatprep.subr.mxu0 0.0
    %6638 = vmatpush1.msra.mxu0 0.0
    %6639 = vmatprep.subr.mxu0 0.0
    %6640 = vmatpush1.msra.mxu0 0.0
    %6641 = vmatprep.subr.mxu0 0.0
    %6642 = vmatpush1.msra.mxu0 0.0
    %6643 = vmatprep.subr.mxu0 0.0
    %6644 = vmatpush1.msra.mxu0 0.0
    %6645 = vmatprep.subr.mxu0 0.0
    %6646 = vmatpush1.msra.mxu0 0.0
    %6647 = vmatprep.subr.mxu0 0.0
    %6648 = vmatpush1.msra.mxu0 0.0
    %6649 = vmatprep.subr.mxu0 0.0
    %6650 = vmatpush1.msra.mxu0 0.0
    %6651 = vmatprep.mubr.f32.mxu0 0.0
    %6652 = vmatmul.mubr.f32.gmra.mrb[0].mxu0 %v6552
    %v6653 = vpop.f32.mrb[0].mxu0
    %v6654 = vadd.f32 0.0, %v6653
    %v6655 = vpop.f32.mrb[0].mxu0
    %6656 = vmatprep.mubr.f32.mxu0 0.0
    %6657 = vmatmul.mubr.f32.gmra.mrb[0].mxu0 %v6555
    %v6658 = vpop.f32.mrb[0].mxu0
    %v6659 = vadd.f32 0.0, %v6658
    %v6660 = vpop.f32.mrb[0].mxu0
    %6661 = vmatprep.mubr.f32.mxu0 0.0
    %6662 = vmatmul.mubr.f32.gmra.mrb[0].mxu0 %v6558
    %v6663 = vpop.f32.mrb[0].mxu0
    %v6664 = vadd.f32 0.0, %v6663
    %v6665 = vpop.f32.mrb[0].mxu0
    %6666 = vmatprep.mubr.f32.mxu0 0.0
    %6667 = vmatmul.mubr.f32.gmra.mrb[0].mxu0 %v6561
    %v6668 = vpop.f32.mrb[0].mxu0
    %v6669 = vadd.f32 0.0, %v6668
    %v6670 = vpop.f32.mrb[0].mxu0
    %6671 = vmatprep.mubr.f32.mxu0 0.0
    %6672 = vmatmul.mubr.f32.gmra.mrb[0].mxu0 %v6564
    %v6673 = vpop.f32.mrb[0].mxu0
    %v6674 = vadd.f32 0.0, %v6673
    %v6675 = vpop.f32.mrb[0].mxu0
    %6676 = vmatprep.mubr.f32.mxu0 0.0
    %6677 = vmatmul.mubr.f32.gmra.mrb[0].mxu0 %v6567
    %v6678 = vpop.f32.mrb[0].mxu0
    %v6679 = vadd.f32 0.0, %v6678
    %v6680 = vpop.f32.mrb[0].mxu0
    %6681 = vmatprep.mubr.f32.mxu0 0.0
    %6682 = vmatmul.mubr.f32.gmra.mrb[0].mxu0 %v6570
    %v6683 = vpop.f32.mrb[0].mxu0
    %v6684 = vadd.f32 0.0, %v6683
    %v6685 = vpop.f32.mrb[0].mxu0
    %6686 = vmatprep.mubr.f32.mxu0 0.0
    %6687 = vmatmul.mubr.f32.gmra.mrb[0].mxu0 %v6573
    %v6688 = vpop.f32.mrb[0].mxu0
    %v6689 = vadd.f32 0.0, %v6688
    %v6690 = vpop.f32.mrb[0].mxu0
    %6691 = vmatprep.mubr.f32.mxu0 0.0
    %6692 = vmatmul.mubr.f32.gmra.mrb[0].mxu0 %v6576
    %v6693 = vpop.f32.mrb[0].mxu0
    %v6694 = vadd.f32 0.0, %v6693
    %v6695 = vpop.f32.mrb[0].mxu0
    %6696 = vmatprep.mubr.f32.mxu0 0.0
    %6697 = vmatmul.mubr.f32.gmra.mrb[0].mxu0 %v6579
    %v6698 = vpop.f32.mrb[0].mxu0
    %v6699 = vadd.f32 0.0, %v6698
    %v6700 = vpop.f32.mrb[0].mxu0
    %6701 = vmatprep.mubr.f32.mxu0 0.0
    %6702 = vmatmul.mubr.f32.gmra.mrb[0].mxu0 %v6582
    %v6703 = vpop.f32.mrb[0].mxu0
    %v6704 = vadd.f32 0.0, %v6703
    %v6705 = vpop.f32.mrb[0].mxu0
    %6706 = vmatprep.mubr.f32.mxu0 0.0
    %6707 = vmatmul.mubr.f32.gmra.mrb[0].mxu0 %v6585
    %v6708 = vpop.f32.mrb[0].mxu0
    %v6709 = vadd.f32 0.0, %v6708
    %v6710 = vpop.f32.mrb[0].mxu0
    %6711 = vdwg.mxu0
    %v6713 = vsel %vm748, %v6654, 0
    %v6716 = vsel %vm748, %v6659, 0
    %v6719 = vsel %vm748, %v6664, 0
    %v6722 = vsel %vm748, %v6669, 0
    %v6725 = vsel %vm748, %v6674, 0
    %v6728 = vsel %vm748, %v6679, 0
    %v6731 = vsel %vm748, %v6684, 0
    %v6734 = vsel %vm748, %v6689, 0
    %v6737 = vsel %vm748, %v6694, 0
    %v6740 = vsel %vm748, %v6699, 0
    %v6743 = vsel %vm748, %v6704, 0
    %v6746 = vsel %vm748, %v6709, 0
    %6748 = vmatprep.subr.mxu0 0.0
    %6749 = vmatpush1.msra.mxu0 %v4750
    %6750 = vmatprep.subr.mxu0 0.0
    %6751 = vmatpush1.msra.mxu0 0.0
    %6752 = vmatprep.subr.mxu0 0.0
    %6753 = vmatpush1.msra.mxu0 0.0
    %6754 = vmatprep.subr.mxu0 0.0
    %6755 = vmatpush1.msra.mxu0 0.0
    %6756 = vmatprep.subr.mxu0 0.0
    %6757 = vmatpush1.msra.mxu0 0.0
    %6758 = vmatprep.subr.mxu0 0.0
    %6759 = vmatpush1.msra.mxu0 0.0
    %6760 = vmatprep.subr.mxu0 0.0
    %6761 = vmatpush1.msra.mxu0 0.0
    %6762 = vmatprep.subr.mxu0 0.0
    %6763 = vmatpush1.msra.mxu0 0.0
    %6764 = vmatprep.subr.mxu0 0.0
    %6765 = vmatpush1.msra.mxu0 0.0
    %6766 = vmatprep.subr.mxu0 0.0
    %6767 = vmatpush1.msra.mxu0 0.0
    %6768 = vmatprep.subr.mxu0 0.0
    %6769 = vmatpush1.msra.mxu0 0.0
    %6770 = vmatprep.subr.mxu0 0.0
    %6771 = vmatpush1.msra.mxu0 0.0
    %6772 = vmatprep.subr.mxu0 0.0
    %6773 = vmatpush1.msra.mxu0 0.0
    %6774 = vmatprep.subr.mxu0 0.0
    %6775 = vmatpush1.msra.mxu0 0.0
    %6776 = vmatprep.subr.mxu0 0.0
    %6777 = vmatpush1.msra.mxu0 0.0
    %6778 = vmatprep.subr.mxu0 0.0
    %6779 = vmatpush1.msra.mxu0 0.0
    %6780 = vmatprep.subr.mxu0 0.0
    %6781 = vmatpush1.msra.mxu0 0.0
    %6782 = vmatprep.subr.mxu0 0.0
    %6783 = vmatpush1.msra.mxu0 0.0
    %6784 = vmatprep.subr.mxu0 0.0
    %6785 = vmatpush1.msra.mxu0 0.0
    %6786 = vmatprep.subr.mxu0 0.0
    %6787 = vmatpush1.msra.mxu0 0.0
    %6788 = vmatprep.subr.mxu0 0.0
    %6789 = vmatpush1.msra.mxu0 0.0
    %6790 = vmatprep.subr.mxu0 0.0
    %6791 = vmatpush1.msra.mxu0 0.0
    %6792 = vmatprep.subr.mxu0 0.0
    %6793 = vmatpush1.msra.mxu0 0.0
    %6794 = vmatprep.subr.mxu0 0.0
    %6795 = vmatpush1.msra.mxu0 0.0
    %6796 = vmatprep.subr.mxu0 0.0
    %6797 = vmatpush1.msra.mxu0 0.0
    %6798 = vmatprep.subr.mxu0 0.0
    %6799 = vmatpush1.msra.mxu0 0.0
    %6800 = vmatprep.subr.mxu0 0.0
    %6801 = vmatpush1.msra.mxu0 0.0
    %6802 = vmatprep.subr.mxu0 0.0
    %6803 = vmatpush1.msra.mxu0 0.0
    %6804 = vmatprep.subr.mxu0 0.0
    %6805 = vmatpush1.msra.mxu0 0.0
    %6806 = vmatprep.subr.mxu0 0.0
    %6807 = vmatpush1.msra.mxu0 0.0
    %6808 = vmatprep.subr.mxu0 0.0
    %6809 = vmatpush1.msra.mxu0 0.0
    %6810 = vmatprep.subr.mxu0 0.0
    %6811 = vmatpush1.msra.mxu0 0.0
    %6812 = vmatprep.mubr.f32.mxu0 0.0
    %6813 = vmatmul.mubr.f32.gmra.mrb[0].mxu0 %v6713
    %v6814 = vpop.f32.mrb[0].mxu0
    %v6815 = vadd.f32 0.0, %v6814
    %v6816 = vpop.f32.mrb[0].mxu0
    %6817 = vmatprep.mubr.f32.mxu0 0.0
    %6818 = vmatmul.mubr.f32.gmra.mrb[0].mxu0 %v6716
    %v6819 = vpop.f32.mrb[0].mxu0
    %v6820 = vadd.f32 0.0, %v6819
    %v6821 = vpop.f32.mrb[0].mxu0
    %6822 = vmatprep.mubr.f32.mxu0 0.0
    %6823 = vmatmul.mubr.f32.gmra.mrb[0].mxu0 %v6719
    %v6824 = vpop.f32.mrb[0].mxu0
    %v6825 = vadd.f32 0.0, %v6824
    %v6826 = vpop.f32.mrb[0].mxu0
    %6827 = vmatprep.mubr.f32.mxu0 0.0
    %6828 = vmatmul.mubr.f32.gmra.mrb[0].mxu0 %v6722
    %v6829 = vpop.f32.mrb[0].mxu0
    %v6830 = vadd.f32 0.0, %v6829
    %v6831 = vpop.f32.mrb[0].mxu0
    %6832 = vmatprep.mubr.f32.mxu0 0.0
    %6833 = vmatmul.mubr.f32.gmra.mrb[0].mxu0 %v6725
    %v6834 = vpop.f32.mrb[0].mxu0
    %v6835 = vadd.f32 0.0, %v6834
    %v6836 = vpop.f32.mrb[0].mxu0
    %6837 = vmatprep.mubr.f32.mxu0 0.0
    %6838 = vmatmul.mubr.f32.gmra.mrb[0].mxu0 %v6728
    %v6839 = vpop.f32.mrb[0].mxu0
    %v6840 = vadd.f32 0.0, %v6839
    %v6841 = vpop.f32.mrb[0].mxu0
    %6842 = vmatprep.mubr.f32.mxu0 0.0
    %6843 = vmatmul.mubr.f32.gmra.mrb[0].mxu0 %v6731
    %v6844 = vpop.f32.mrb[0].mxu0
    %v6845 = vadd.f32 0.0, %v6844
    %v6846 = vpop.f32.mrb[0].mxu0
    %6847 = vmatprep.mubr.f32.mxu0 0.0
    %6848 = vmatmul.mubr.f32.gmra.mrb[0].mxu0 %v6734
    %v6849 = vpop.f32.mrb[0].mxu0
    %v6850 = vadd.f32 0.0, %v6849
    %v6851 = vpop.f32.mrb[0].mxu0
    %6852 = vmatprep.mubr.f32.mxu0 0.0
    %6853 = vmatmul.mubr.f32.gmra.mrb[0].mxu0 %v6737
    %v6854 = vpop.f32.mrb[0].mxu0
    %v6855 = vadd.f32 0.0, %v6854
    %v6856 = vpop.f32.mrb[0].mxu0
    %6857 = vmatprep.mubr.f32.mxu0 0.0
    %6858 = vmatmul.mubr.f32.gmra.mrb[0].mxu0 %v6740
    %v6859 = vpop.f32.mrb[0].mxu0
    %v6860 = vadd.f32 0.0, %v6859
    %v6861 = vpop.f32.mrb[0].mxu0
    %6862 = vmatprep.mubr.f32.mxu0 0.0
    %6863 = vmatmul.mubr.f32.gmra.mrb[0].mxu0 %v6743
    %v6864 = vpop.f32.mrb[0].mxu0
    %v6865 = vadd.f32 0.0, %v6864
    %v6866 = vpop.f32.mrb[0].mxu0
    %6867 = vmatprep.mubr.f32.mxu0 0.0
    %6868 = vmatmul.mubr.f32.gmra.mrb[0].mxu0 %v6746
    %v6869 = vpop.f32.mrb[0].mxu0
    %v6870 = vadd.f32 0.0, %v6869
    %v6871 = vpop.f32.mrb[0].mxu0
    %6872 = vdwg.mxu0
    %v6873 = vadd.f32 %v6104, %v6815
    %v6874 = vadd.f32 %v6109, %v6820
    %v6875 = vadd.f32 %v6114, %v6825
    %v6876 = vadd.f32 %v6119, %v6830
    %v6877 = vadd.f32 %v6124, %v6835
    %v6878 = vadd.f32 %v6129, %v6840
    %v6879 = vadd.f32 %v6134, %v6845
    %v6880 = vadd.f32 %v6139, %v6850
    %v6881 = vadd.f32 %v6144, %v6855
    %v6882 = vadd.f32 %v6149, %v6860
    %v6883 = vadd.f32 %v6154, %v6865
    %v6884 = vadd.f32 %v6159, %v6870
    %6885 = vrot.lane.b32.xlu0 %v4690, 104
    %v6886 = vpop.permute.xlu0 %6885
    %6887 = vrot.lane.b32.xlu0 %v4695, 104
    %v6888 = vpop.permute.xlu0 %6887
    %6889 = vrot.lane.b32.xlu0 %v4700, 104
    %v6890 = vpop.permute.xlu0 %6889
    %6891 = vrot.lane.b32.xlu0 %v4705, 104
    %v6892 = vpop.permute.xlu0 %6891
    %6893 = vrot.lane.b32.xlu0 %v4710, 104
    %v6894 = vpop.permute.xlu0 %6893
    %6895 = vrot.lane.b32.xlu0 %v4715, 104
    %v6896 = vpop.permute.xlu0 %6895
    %6897 = vrot.lane.b32.xlu0 %v4720, 104
    %v6898 = vpop.permute.xlu0 %6897
    %6899 = vrot.lane.b32.xlu0 %v4725, 104
    %v6900 = vpop.permute.xlu0 %6899
    %6901 = vrot.lane.b32.xlu0 %v4730, 104
    %v6902 = vpop.permute.xlu0 %6901
    %6903 = vrot.lane.b32.xlu0 %v4735, 104
    %v6904 = vpop.permute.xlu0 %6903
    %6905 = vrot.lane.b32.xlu0 %v4740, 104
    %v6906 = vpop.permute.xlu0 %6905
    %6907 = vrot.lane.b32.xlu0 %v4745, 104
    %v6908 = vpop.permute.xlu0 %6907
    %6909 = vrot.lane.b32.xlu0 %v4690, 72
    %v6910 = vpop.permute.xlu0 %6909
    %6911 = vrot.lane.b32.xlu0 %v4695, 72
    %v6912 = vpop.permute.xlu0 %6911
    %6913 = vrot.lane.b32.xlu0 %v4700, 72
    %v6914 = vpop.permute.xlu0 %6913
    %6915 = vrot.lane.b32.xlu0 %v4705, 72
    %v6916 = vpop.permute.xlu0 %6915
    %6917 = vrot.lane.b32.xlu0 %v4710, 72
    %v6918 = vpop.permute.xlu0 %6917
    %6919 = vrot.lane.b32.xlu0 %v4715, 72
    %v6920 = vpop.permute.xlu0 %6919
    %6921 = vrot.lane.b32.xlu0 %v4720, 72
    %v6922 = vpop.permute.xlu0 %6921
    %6923 = vrot.lane.b32.xlu0 %v4725, 72
    %v6924 = vpop.permute.xlu0 %6923
    %6925 = vrot.lane.b32.xlu0 %v4730, 72
    %v6926 = vpop.permute.xlu0 %6925
    %6927 = vrot.lane.b32.xlu0 %v4735, 72
    %v6928 = vpop.permute.xlu0 %6927
    %6929 = vrot.lane.b32.xlu0 %v4740, 72
    %v6930 = vpop.permute.xlu0 %6929
    %6931 = vrot.lane.b32.xlu0 %v4745, 72
    %v6932 = vpop.permute.xlu0 %6931
    %v6933 = vsel %vm748, %v6886, 0
    %v6935 = vsel %vm748, %v6888, 0
    %v6937 = vsel %vm748, %v6890, 0
    %v6939 = vsel %vm748, %v6892, 0
    %v6941 = vsel %vm748, %v6894, 0
    %v6943 = vsel %vm748, %v6896, 0
    %v6945 = vsel %vm748, %v6898, 0
    %v6947 = vsel %vm748, %v6900, 0
    %v6949 = vsel %vm748, %v6902, 0
    %v6951 = vsel %vm748, %v6904, 0
    %v6953 = vsel %vm748, %v6906, 0
    %v6955 = vsel %vm748, %v6908, 0
    %v6957 = vsel %vm748, %v6910, 0
    %v6959 = vsel %vm748, %v6912, 0
    %v6961 = vsel %vm748, %v6914, 0
    %v6963 = vsel %vm748, %v6916, 0
    %v6965 = vsel %vm748, %v6918, 0
    %v6967 = vsel %vm748, %v6920, 0
    %v6969 = vsel %vm748, %v6922, 0
    %v6971 = vsel %vm748, %v6924, 0
    %v6973 = vsel %vm748, %v6926, 0
    %v6975 = vsel %vm748, %v6928, 0
    %v6977 = vsel %vm748, %v6930, 0
    %v6979 = vsel %vm748, %v6932, 0
    %6981 = vmatprep.subr.mxu0 0.0
    %6982 = vmatpush1.xpose.msra.mxu0 %v6957
    %6983 = vmatprep.subr.mxu0 0.0
    %6984 = vmatpush1.xpose.msra.mxu0 %v6959
    %6985 = vmatprep.subr.mxu0 0.0
    %6986 = vmatpush1.xpose.msra.mxu0 %v6961
    %6987 = vmatprep.subr.mxu0 0.0
    %6988 = vmatpush1.xpose.msra.mxu0 %v6963
    %6989 = vmatprep.subr.mxu0 0.0
    %6990 = vmatpush1.xpose.msra.mxu0 %v6965
    %6991 = vmatprep.subr.mxu0 0.0
    %6992 = vmatpush1.xpose.msra.mxu0 %v6967
    %6993 = vmatprep.subr.mxu0 0.0
    %6994 = vmatpush1.xpose.msra.mxu0 %v6969
    %6995 = vmatprep.subr.mxu0 0.0
    %6996 = vmatpush1.xpose.msra.mxu0 %v6971
    %6997 = vmatprep.subr.mxu0 0.0
    %6998 = vmatpush1.xpose.msra.mxu0 %v6973
    %6999 = vmatprep.subr.mxu0 0.0
    %7000 = vmatpush1.xpose.msra.mxu0 %v6975
    %7001 = vmatprep.subr.mxu0 0.0
    %7002 = vmatpush1.xpose.msra.mxu0 %v6977
    %7003 = vmatprep.subr.mxu0 0.0
    %7004 = vmatpush1.xpose.msra.mxu0 %v6979
    %7005 = vmatprep.subr.mxu0 0.0
    %7006 = vmatpush1.xpose.msra.mxu0 0.0
    %7007 = vmatprep.subr.mxu0 0.0
    %7008 = vmatpush1.xpose.msra.mxu0 0.0
    %7009 = vmatprep.subr.mxu0 0.0
    %7010 = vmatpush1.xpose.msra.mxu0 0.0
    %7011 = vmatprep.subr.mxu0 0.0
    %7012 = vmatpush1.xpose.msra.mxu0 0.0
    %7013 = vmatprep.subr.mxu0 0.0
    %7014 = vmatpush1.xpose.msra.mxu0 0.0
    %7015 = vmatprep.subr.mxu0 0.0
    %7016 = vmatpush1.xpose.msra.mxu0 0.0
    %7017 = vmatprep.subr.mxu0 0.0
    %7018 = vmatpush1.xpose.msra.mxu0 0.0
    %7019 = vmatprep.subr.mxu0 0.0
    %7020 = vmatpush1.xpose.msra.mxu0 0.0
    %7021 = vmatprep.subr.mxu0 0.0
    %7022 = vmatpush1.xpose.msra.mxu0 0.0
    %7023 = vmatprep.subr.mxu0 0.0
    %7024 = vmatpush1.xpose.msra.mxu0 0.0
    %7025 = vmatprep.subr.mxu0 0.0
    %7026 = vmatpush1.xpose.msra.mxu0 0.0
    %7027 = vmatprep.subr.mxu0 0.0
    %7028 = vmatpush1.xpose.msra.mxu0 0.0
    %7029 = vmatprep.subr.mxu0 0.0
    %7030 = vmatpush1.xpose.msra.mxu0 0.0
    %7031 = vmatprep.subr.mxu0 0.0
    %7032 = vmatpush1.xpose.msra.mxu0 0.0
    %7033 = vmatprep.subr.mxu0 0.0
    %7034 = vmatpush1.xpose.msra.mxu0 0.0
    %7035 = vmatprep.subr.mxu0 0.0
    %7036 = vmatpush1.xpose.msra.mxu0 0.0
    %7037 = vmatprep.subr.mxu0 0.0
    %7038 = vmatpush1.xpose.msra.mxu0 0.0
    %7039 = vmatprep.subr.mxu0 0.0
    %7040 = vmatpush1.xpose.msra.mxu0 0.0
    %7041 = vmatprep.subr.mxu0 0.0
    %7042 = vmatpush1.xpose.msra.mxu0 0.0
    %7043 = vmatprep.subr.mxu0 0.0
    %7044 = vmatpush1.xpose.msra.mxu0 0.0
    %7045 = vmatprep.mubr.f32.mxu0 0.0
    %7046 = vmatmul.mubr.f32.gmra.mrb[0].mxu0 %v6933
    %v7047 = vpop.f32.mrb[0].mxu0
    %v7048 = vadd.f32 %v84, %v7047
    %v7049 = vpop.f32.mrb[0].mxu0
    %7050 = vmatprep.mubr.f32.mxu0 0.0
    %7051 = vmatmul.mubr.f32.gmra.mrb[0].mxu0 %v6935
    %v7052 = vpop.f32.mrb[0].mxu0
    %v7053 = vadd.f32 %v85, %v7052
    %v7054 = vpop.f32.mrb[0].mxu0
    %7055 = vmatprep.mubr.f32.mxu0 0.0
    %7056 = vmatmul.mubr.f32.gmra.mrb[0].mxu0 %v6937
    %v7057 = vpop.f32.mrb[0].mxu0
    %v7058 = vadd.f32 %v86, %v7057
    %v7059 = vpop.f32.mrb[0].mxu0
    %7060 = vmatprep.mubr.f32.mxu0 0.0
    %7061 = vmatmul.mubr.f32.gmra.mrb[0].mxu0 %v6939
    %v7062 = vpop.f32.mrb[0].mxu0
    %v7063 = vadd.f32 %v87, %v7062
    %v7064 = vpop.f32.mrb[0].mxu0
    %7065 = vmatprep.mubr.f32.mxu0 0.0
    %7066 = vmatmul.mubr.f32.gmra.mrb[0].mxu0 %v6941
    %v7067 = vpop.f32.mrb[0].mxu0
    %v7068 = vadd.f32 %v88, %v7067
    %v7069 = vpop.f32.mrb[0].mxu0
    %7070 = vmatprep.mubr.f32.mxu0 0.0
    %7071 = vmatmul.mubr.f32.gmra.mrb[0].mxu0 %v6943
    %v7072 = vpop.f32.mrb[0].mxu0
    %v7073 = vadd.f32 %v89, %v7072
    %v7074 = vpop.f32.mrb[0].mxu0
    %7075 = vmatprep.mubr.f32.mxu0 0.0
    %7076 = vmatmul.mubr.f32.gmra.mrb[0].mxu0 %v6945
    %v7077 = vpop.f32.mrb[0].mxu0
    %v7078 = vadd.f32 %v90, %v7077
    %v7079 = vpop.f32.mrb[0].mxu0
    %7080 = vmatprep.mubr.f32.mxu0 0.0
    %7081 = vmatmul.mubr.f32.gmra.mrb[0].mxu0 %v6947
    %v7082 = vpop.f32.mrb[0].mxu0
    %v7083 = vadd.f32 %v91, %v7082
    %v7084 = vpop.f32.mrb[0].mxu0
    %7085 = vmatprep.mubr.f32.mxu0 0.0
    %7086 = vmatmul.mubr.f32.gmra.mrb[0].mxu0 %v6949
    %v7087 = vpop.f32.mrb[0].mxu0
    %v7088 = vadd.f32 %v92, %v7087
    %v7089 = vpop.f32.mrb[0].mxu0
    %7090 = vmatprep.mubr.f32.mxu0 0.0
    %7091 = vmatmul.mubr.f32.gmra.mrb[0].mxu0 %v6951
    %v7092 = vpop.f32.mrb[0].mxu0
    %v7093 = vadd.f32 %v93, %v7092
    %v7094 = vpop.f32.mrb[0].mxu0
    %7095 = vmatprep.mubr.f32.mxu0 0.0
    %7096 = vmatmul.mubr.f32.gmra.mrb[0].mxu0 %v6953
    %v7097 = vpop.f32.mrb[0].mxu0
    %v7098 = vadd.f32 %v94, %v7097
    %v7099 = vpop.f32.mrb[0].mxu0
    %7100 = vmatprep.mubr.f32.mxu0 0.0
    %7101 = vmatmul.mubr.f32.gmra.mrb[0].mxu0 %v6955
    %v7102 = vpop.f32.mrb[0].mxu0
    %v7103 = vadd.f32 %v95, %v7102
    %v7104 = vpop.f32.mrb[0].mxu0
    %7105 = vdwg.mxu0
    %v7106 = vsel %vm922, %v7048, -inf
    %7107 = vmax.xlane.f32.xlu0 %v7106
    %v7108 = vpop.xlane.xlu0 %7107
    %v7109 = vsel %vm922, %v7053, -inf
    %7110 = vmax.xlane.f32.xlu0 %v7109
    %v7111 = vpop.xlane.xlu0 %7110
    %v7112 = vsel %vm922, %v7058, -inf
    %7113 = vmax.xlane.f32.xlu0 %v7112
    %v7114 = vpop.xlane.xlu0 %7113
    %v7115 = vsel %vm922, %v7063, -inf
    %7116 = vmax.xlane.f32.xlu0 %v7115
    %v7117 = vpop.xlane.xlu0 %7116
    %v7118 = vsel %vm922, %v7068, -inf
    %7119 = vmax.xlane.f32.xlu0 %v7118
    %v7120 = vpop.xlane.xlu0 %7119
    %v7121 = vsel %vm922, %v7073, -inf
    %7122 = vmax.xlane.f32.xlu0 %v7121
    %v7123 = vpop.xlane.xlu0 %7122
    %v7124 = vsel %vm922, %v7078, -inf
    %7125 = vmax.xlane.f32.xlu0 %v7124
    %v7126 = vpop.xlane.xlu0 %7125
    %v7127 = vsel %vm922, %v7083, -inf
    %7128 = vmax.xlane.f32.xlu0 %v7127
    %v7129 = vpop.xlane.xlu0 %7128
    %v7130 = vsel %vm922, %v7088, -inf
    %7131 = vmax.xlane.f32.xlu0 %v7130
    %v7132 = vpop.xlane.xlu0 %7131
    %v7133 = vsel %vm922, %v7093, -inf
    %7134 = vmax.xlane.f32.xlu0 %v7133
    %v7135 = vpop.xlane.xlu0 %7134
    %v7136 = vsel %vm922, %v7098, -inf
    %7137 = vmax.xlane.f32.xlu0 %v7136
    %v7138 = vpop.xlane.xlu0 %7137
    %v7139 = vsel %vm922, %v7103, -inf
    %7140 = vmax.xlane.f32.xlu0 %v7139
    %v7141 = vpop.xlane.xlu0 %7140
    %v7142 = vsub.f32 %v7048, %v7108
    %v7143 = vsub.f32 %v7053, %v7111
    %v7144 = vsub.f32 %v7058, %v7114
    %v7145 = vsub.f32 %v7063, %v7117
    %v7146 = vsub.f32 %v7068, %v7120
    %v7147 = vsub.f32 %v7073, %v7123
    %v7148 = vsub.f32 %v7078, %v7126
    %v7149 = vsub.f32 %v7083, %v7129
    %v7150 = vsub.f32 %v7088, %v7132
    %v7151 = vsub.f32 %v7093, %v7135
    %v7152 = vsub.f32 %v7098, %v7138
    %v7153 = vsub.f32 %v7103, %v7141
    %v7154 = vmul.f32 %v7142, 1.442695
    %v7155 = vpow.pop %v7154
    %v7156 = vmul.f32 %v7143, 1.442695
    %v7157 = vpow.pop %v7156
    %v7158 = vmul.f32 %v7144, 1.442695
    %v7159 = vpow.pop %v7158
    %v7160 = vmul.f32 %v7145, 1.442695
    %v7161 = vpow.pop %v7160
    %v7162 = vmul.f32 %v7146, 1.442695
    %v7163 = vpow.pop %v7162
    %v7164 = vmul.f32 %v7147, 1.442695
    %v7165 = vpow.pop %v7164
    %v7166 = vmul.f32 %v7148, 1.442695
    %v7167 = vpow.pop %v7166
    %v7168 = vmul.f32 %v7149, 1.442695
    %v7169 = vpow.pop %v7168
    %v7170 = vmul.f32 %v7150, 1.442695
    %v7171 = vpow.pop %v7170
    %v7172 = vmul.f32 %v7151, 1.442695
    %v7173 = vpow.pop %v7172
    %v7174 = vmul.f32 %v7152, 1.442695
    %v7175 = vpow.pop %v7174
    %v7176 = vmul.f32 %v7153, 1.442695
    %v7177 = vpow.pop %v7176
    %v7178 = vsel %vm922, %v7155, 0.0
    %7179 = vadd.xlane.f32.xlu0 %v7178
    %v7180 = vpop.xlane.xlu0 %7179
    %v7181 = vsel %vm922, %v7157, 0.0
    %7182 = vadd.xlane.f32.xlu0 %v7181
    %v7183 = vpop.xlane.xlu0 %7182
    %v7184 = vsel %vm922, %v7159, 0.0
    %7185 = vadd.xlane.f32.xlu0 %v7184
    %v7186 = vpop.xlane.xlu0 %7185
    %v7187 = vsel %vm922, %v7161, 0.0
    %7188 = vadd.xlane.f32.xlu0 %v7187
    %v7189 = vpop.xlane.xlu0 %7188
    %v7190 = vsel %vm922, %v7163, 0.0
    %7191 = vadd.xlane.f32.xlu0 %v7190
    %v7192 = vpop.xlane.xlu0 %7191
    %v7193 = vsel %vm922, %v7165, 0.0
    %7194 = vadd.xlane.f32.xlu0 %v7193
    %v7195 = vpop.xlane.xlu0 %7194
    %v7196 = vsel %vm922, %v7167, 0.0
    %7197 = vadd.xlane.f32.xlu0 %v7196
    %v7198 = vpop.xlane.xlu0 %7197
    %v7199 = vsel %vm922, %v7169, 0.0
    %7200 = vadd.xlane.f32.xlu0 %v7199
    %v7201 = vpop.xlane.xlu0 %7200
    %v7202 = vsel %vm922, %v7171, 0.0
    %7203 = vadd.xlane.f32.xlu0 %v7202
    %v7204 = vpop.xlane.xlu0 %7203
    %v7205 = vsel %vm922, %v7173, 0.0
    %7206 = vadd.xlane.f32.xlu0 %v7205
    %v7207 = vpop.xlane.xlu0 %7206
    %v7208 = vsel %vm922, %v7175, 0.0
    %7209 = vadd.xlane.f32.xlu0 %v7208
    %v7210 = vpop.xlane.xlu0 %7209
    %v7211 = vsel %vm922, %v7177, 0.0
    %7212 = vadd.xlane.f32.xlu0 %v7211
    %v7213 = vpop.xlane.xlu0 %7212
    %v7214 = vrcp.pop %v7180
    %v7215 = vrcp.pop %v7183
    %v7216 = vrcp.pop %v7186
    %v7217 = vrcp.pop %v7189
    %v7218 = vrcp.pop %v7192
    %v7219 = vrcp.pop %v7195
    %v7220 = vrcp.pop %v7198
    %v7221 = vrcp.pop %v7201
    %v7222 = vrcp.pop %v7204
    %v7223 = vrcp.pop %v7207
    %v7224 = vrcp.pop %v7210
    %v7225 = vrcp.pop %v7213
    %v7226 = vmul.f32 %v7155, %v7214
    %v7227 = vmul.f32 %v7157, %v7215
    %v7228 = vmul.f32 %v7159, %v7216
    %v7229 = vmul.f32 %v7161, %v7217
    %v7230 = vmul.f32 %v7163, %v7218
    %v7231 = vmul.f32 %v7165, %v7219
    %v7232 = vmul.f32 %v7167, %v7220
    %v7233 = vmul.f32 %v7169, %v7221
    %v7234 = vmul.f32 %v7171, %v7222
    %v7235 = vmul.f32 %v7173, %v7223
    %v7236 = vmul.f32 %v7175, %v7224
    %v7237 = vmul.f32 %v7177, %v7225
    %7238 = vrot.lane.b32.xlu0 %v4690, 40
    %v7239 = vpop.permute.xlu0 %7238
    %7240 = vrot.lane.b32.xlu0 %v4695, 40
    %v7241 = vpop.permute.xlu0 %7240
    %7242 = vrot.lane.b32.xlu0 %v4700, 40
    %v7243 = vpop.permute.xlu0 %7242
    %7244 = vrot.lane.b32.xlu0 %v4705, 40
    %v7245 = vpop.permute.xlu0 %7244
    %7246 = vrot.lane.b32.xlu0 %v4710, 40
    %v7247 = vpop.permute.xlu0 %7246
    %7248 = vrot.lane.b32.xlu0 %v4715, 40
    %v7249 = vpop.permute.xlu0 %7248
    %7250 = vrot.lane.b32.xlu0 %v4720, 40
    %v7251 = vpop.permute.xlu0 %7250
    %7252 = vrot.lane.b32.xlu0 %v4725, 40
    %v7253 = vpop.permute.xlu0 %7252
    %7254 = vrot.lane.b32.xlu0 %v4730, 40
    %v7255 = vpop.permute.xlu0 %7254
    %7256 = vrot.lane.b32.xlu0 %v4735, 40
    %v7257 = vpop.permute.xlu0 %7256
    %7258 = vrot.lane.b32.xlu0 %v4740, 40
    %v7259 = vpop.permute.xlu0 %7258
    %7260 = vrot.lane.b32.xlu0 %v4745, 40
    %v7261 = vpop.permute.xlu0 %7260
    %v7275 = vsel %vm922, %v7226, 0
    %v7278 = vsel %vm922, %v7227, 0
    %v7281 = vsel %vm922, %v7228, 0
    %v7284 = vsel %vm922, %v7229, 0
    %v7287 = vsel %vm922, %v7230, 0
    %v7290 = vsel %vm922, %v7231, 0
    %v7293 = vsel %vm922, %v7232, 0
    %v7296 = vsel %vm922, %v7233, 0
    %v7299 = vsel %vm922, %v7234, 0
    %v7302 = vsel %vm922, %v7235, 0
    %v7305 = vsel %vm922, %v7236, 0
    %v7308 = vsel %vm922, %v7237, 0
    %7310 = vmatprep.subr.mxu0 0.0
    %7311 = vmatpush1.msra.mxu0 %v7239
    %7312 = vmatprep.subr.mxu0 0.0
    %7313 = vmatpush1.msra.mxu0 %v7241
    %7314 = vmatprep.subr.mxu0 0.0
    %7315 = vmatpush1.msra.mxu0 %v7243
    %7316 = vmatprep.subr.mxu0 0.0
    %7317 = vmatpush1.msra.mxu0 %v7245
    %7318 = vmatprep.subr.mxu0 0.0
    %7319 = vmatpush1.msra.mxu0 %v7247
    %7320 = vmatprep.subr.mxu0 0.0
    %7321 = vmatpush1.msra.mxu0 %v7249
    %7322 = vmatprep.subr.mxu0 0.0
    %7323 = vmatpush1.msra.mxu0 %v7251
    %7324 = vmatprep.subr.mxu0 0.0
    %7325 = vmatpush1.msra.mxu0 %v7253
    %7326 = vmatprep.subr.mxu0 0.0
    %7327 = vmatpush1.msra.mxu0 %v7255
    %7328 = vmatprep.subr.mxu0 0.0
    %7329 = vmatpush1.msra.mxu0 %v7257
    %7330 = vmatprep.subr.mxu0 0.0
    %7331 = vmatpush1.msra.mxu0 %v7259
    %7332 = vmatprep.subr.mxu0 0.0
    %7333 = vmatpush1.msra.mxu0 %v7261
    %7334 = vmatprep.subr.mxu0 0.0
    %7335 = vmatpush1.msra.mxu0 0.0
    %7336 = vmatprep.subr.mxu0 0.0
    %7337 = vmatpush1.msra.mxu0 0.0
    %7338 = vmatprep.subr.mxu0 0.0
    %7339 = vmatpush1.msra.mxu0 0.0
    %7340 = vmatprep.subr.mxu0 0.0
    %7341 = vmatpush1.msra.mxu0 0.0
    %7342 = vmatprep.subr.mxu0 0.0
    %7343 = vmatpush1.msra.mxu0 0.0
    %7344 = vmatprep.subr.mxu0 0.0
    %7345 = vmatpush1.msra.mxu0 0.0
    %7346 = vmatprep.subr.mxu0 0.0
    %7347 = vmatpush1.msra.mxu0 0.0
    %7348 = vmatprep.subr.mxu0 0.0
    %7349 = vmatpush1.msra.mxu0 0.0
    %7350 = vmatprep.subr.mxu0 0.0
    %7351 = vmatpush1.msra.mxu0 0.0
    %7352 = vmatprep.subr.mxu0 0.0
    %7353 = vmatpush1.msra.mxu0 0.0
    %7354 = vmatprep.subr.mxu0 0.0
    %7355 = vmatpush1.msra.mxu0 0.0
    %7356 = vmatprep.subr.mxu0 0.0
    %7357 = vmatpush1.msra.mxu0 0.0
    %7358 = vmatprep.subr.mxu0 0.0
    %7359 = vmatpush1.msra.mxu0 0.0
    %7360 = vmatprep.subr.mxu0 0.0
    %7361 = vmatpush1.msra.mxu0 0.0
    %7362 = vmatprep.subr.mxu0 0.0
    %7363 = vmatpush1.msra.mxu0 0.0
    %7364 = vmatprep.subr.mxu0 0.0
    %7365 = vmatpush1.msra.mxu0 0.0
    %7366 = vmatprep.subr.mxu0 0.0
    %7367 = vmatpush1.msra.mxu0 0.0
    %7368 = vmatprep.subr.mxu0 0.0
    %7369 = vmatpush1.msra.mxu0 0.0
    %7370 = vmatprep.subr.mxu0 0.0
    %7371 = vmatpush1.msra.mxu0 0.0
    %7372 = vmatprep.subr.mxu0 0.0
    %7373 = vmatpush1.msra.mxu0 0.0
    %7374 = vmatprep.mubr.f32.mxu0 0.0
    %7375 = vmatmul.mubr.f32.gmra.mrb[0].mxu0 %v7275
    %v7376 = vpop.f32.mrb[0].mxu0
    %v7377 = vadd.f32 0.0, %v7376
    %v7378 = vpop.f32.mrb[0].mxu0
    %7379 = vmatprep.mubr.f32.mxu0 0.0
    %7380 = vmatmul.mubr.f32.gmra.mrb[0].mxu0 %v7278
    %v7381 = vpop.f32.mrb[0].mxu0
    %v7382 = vadd.f32 0.0, %v7381
    %v7383 = vpop.f32.mrb[0].mxu0
    %7384 = vmatprep.mubr.f32.mxu0 0.0
    %7385 = vmatmul.mubr.f32.gmra.mrb[0].mxu0 %v7281
    %v7386 = vpop.f32.mrb[0].mxu0
    %v7387 = vadd.f32 0.0, %v7386
    %v7388 = vpop.f32.mrb[0].mxu0
    %7389 = vmatprep.mubr.f32.mxu0 0.0
    %7390 = vmatmul.mubr.f32.gmra.mrb[0].mxu0 %v7284
    %v7391 = vpop.f32.mrb[0].mxu0
    %v7392 = vadd.f32 0.0, %v7391
    %v7393 = vpop.f32.mrb[0].mxu0
    %7394 = vmatprep.mubr.f32.mxu0 0.0
    %7395 = vmatmul.mubr.f32.gmra.mrb[0].mxu0 %v7287
    %v7396 = vpop.f32.mrb[0].mxu0
    %v7397 = vadd.f32 0.0, %v7396
    %v7398 = vpop.f32.mrb[0].mxu0
    %7399 = vmatprep.mubr.f32.mxu0 0.0
    %7400 = vmatmul.mubr.f32.gmra.mrb[0].mxu0 %v7290
    %v7401 = vpop.f32.mrb[0].mxu0
    %v7402 = vadd.f32 0.0, %v7401
    %v7403 = vpop.f32.mrb[0].mxu0
    %7404 = vmatprep.mubr.f32.mxu0 0.0
    %7405 = vmatmul.mubr.f32.gmra.mrb[0].mxu0 %v7293
    %v7406 = vpop.f32.mrb[0].mxu0
    %v7407 = vadd.f32 0.0, %v7406
    %v7408 = vpop.f32.mrb[0].mxu0
    %7409 = vmatprep.mubr.f32.mxu0 0.0
    %7410 = vmatmul.mubr.f32.gmra.mrb[0].mxu0 %v7296
    %v7411 = vpop.f32.mrb[0].mxu0
    %v7412 = vadd.f32 0.0, %v7411
    %v7413 = vpop.f32.mrb[0].mxu0
    %7414 = vmatprep.mubr.f32.mxu0 0.0
    %7415 = vmatmul.mubr.f32.gmra.mrb[0].mxu0 %v7299
    %v7416 = vpop.f32.mrb[0].mxu0
    %v7417 = vadd.f32 0.0, %v7416
    %v7418 = vpop.f32.mrb[0].mxu0
    %7419 = vmatprep.mubr.f32.mxu0 0.0
    %7420 = vmatmul.mubr.f32.gmra.mrb[0].mxu0 %v7302
    %v7421 = vpop.f32.mrb[0].mxu0
    %v7422 = vadd.f32 0.0, %v7421
    %v7423 = vpop.f32.mrb[0].mxu0
    %7424 = vmatprep.mubr.f32.mxu0 0.0
    %7425 = vmatmul.mubr.f32.gmra.mrb[0].mxu0 %v7305
    %v7426 = vpop.f32.mrb[0].mxu0
    %v7427 = vadd.f32 0.0, %v7426
    %v7428 = vpop.f32.mrb[0].mxu0
    %7429 = vmatprep.mubr.f32.mxu0 0.0
    %7430 = vmatmul.mubr.f32.gmra.mrb[0].mxu0 %v7308
    %v7431 = vpop.f32.mrb[0].mxu0
    %v7432 = vadd.f32 0.0, %v7431
    %v7433 = vpop.f32.mrb[0].mxu0
    %7434 = vdwg.mxu0
    %v7436 = vsel %vm748, %v7377, 0
    %v7439 = vsel %vm748, %v7382, 0
    %v7442 = vsel %vm748, %v7387, 0
    %v7445 = vsel %vm748, %v7392, 0
    %v7448 = vsel %vm748, %v7397, 0
    %v7451 = vsel %vm748, %v7402, 0
    %v7454 = vsel %vm748, %v7407, 0
    %v7457 = vsel %vm748, %v7412, 0
    %v7460 = vsel %vm748, %v7417, 0
    %v7463 = vsel %vm748, %v7422, 0
    %v7466 = vsel %vm748, %v7427, 0
    %v7469 = vsel %vm748, %v7432, 0
    %7471 = vmatprep.subr.mxu0 0.0
    %7472 = vmatpush1.msra.mxu0 %v4751
    %7473 = vmatprep.subr.mxu0 0.0
    %7474 = vmatpush1.msra.mxu0 0.0
    %7475 = vmatprep.subr.mxu0 0.0
    %7476 = vmatpush1.msra.mxu0 0.0
    %7477 = vmatprep.subr.mxu0 0.0
    %7478 = vmatpush1.msra.mxu0 0.0
    %7479 = vmatprep.subr.mxu0 0.0
    %7480 = vmatpush1.msra.mxu0 0.0
    %7481 = vmatprep.subr.mxu0 0.0
    %7482 = vmatpush1.msra.mxu0 0.0
    %7483 = vmatprep.subr.mxu0 0.0
    %7484 = vmatpush1.msra.mxu0 0.0
    %7485 = vmatprep.subr.mxu0 0.0
    %7486 = vmatpush1.msra.mxu0 0.0
    %7487 = vmatprep.subr.mxu0 0.0
    %7488 = vmatpush1.msra.mxu0 0.0
    %7489 = vmatprep.subr.mxu0 0.0
    %7490 = vmatpush1.msra.mxu0 0.0
    %7491 = vmatprep.subr.mxu0 0.0
    %7492 = vmatpush1.msra.mxu0 0.0
    %7493 = vmatprep.subr.mxu0 0.0
    %7494 = vmatpush1.msra.mxu0 0.0
    %7495 = vmatprep.subr.mxu0 0.0
    %7496 = vmatpush1.msra.mxu0 0.0
    %7497 = vmatprep.subr.mxu0 0.0
    %7498 = vmatpush1.msra.mxu0 0.0
    %7499 = vmatprep.subr.mxu0 0.0
    %7500 = vmatpush1.msra.mxu0 0.0
    %7501 = vmatprep.subr.mxu0 0.0
    %7502 = vmatpush1.msra.mxu0 0.0
    %7503 = vmatprep.subr.mxu0 0.0
    %7504 = vmatpush1.msra.mxu0 0.0
    %7505 = vmatprep.subr.mxu0 0.0
    %7506 = vmatpush1.msra.mxu0 0.0
    %7507 = vmatprep.subr.mxu0 0.0
    %7508 = vmatpush1.msra.mxu0 0.0
    %7509 = vmatprep.subr.mxu0 0.0
    %7510 = vmatpush1.msra.mxu0 0.0
    %7511 = vmatprep.subr.mxu0 0.0
    %7512 = vmatpush1.msra.mxu0 0.0
    %7513 = vmatprep.subr.mxu0 0.0
    %7514 = vmatpush1.msra.mxu0 0.0
    %7515 = vmatprep.subr.mxu0 0.0
    %7516 = vmatpush1.msra.mxu0 0.0
    %7517 = vmatprep.subr.mxu0 0.0
    %7518 = vmatpush1.msra.mxu0 0.0
    %7519 = vmatprep.subr.mxu0 0.0
    %7520 = vmatpush1.msra.mxu0 0.0
    %7521 = vmatprep.subr.mxu0 0.0
    %7522 = vmatpush1.msra.mxu0 0.0
    %7523 = vmatprep.subr.mxu0 0.0
    %7524 = vmatpush1.msra.mxu0 0.0
    %7525 = vmatprep.subr.mxu0 0.0
    %7526 = vmatpush1.msra.mxu0 0.0
    %7527 = vmatprep.subr.mxu0 0.0
    %7528 = vmatpush1.msra.mxu0 0.0
    %7529 = vmatprep.subr.mxu0 0.0
    %7530 = vmatpush1.msra.mxu0 0.0
    %7531 = vmatprep.subr.mxu0 0.0
    %7532 = vmatpush1.msra.mxu0 0.0
    %7533 = vmatprep.subr.mxu0 0.0
    %7534 = vmatpush1.msra.mxu0 0.0
    %7535 = vmatprep.mubr.f32.mxu0 0.0
    %7536 = vmatmul.mubr.f32.gmra.mrb[0].mxu0 %v7436
    %v7537 = vpop.f32.mrb[0].mxu0
    %v7538 = vadd.f32 0.0, %v7537
    %v7539 = vpop.f32.mrb[0].mxu0
    %7540 = vmatprep.mubr.f32.mxu0 0.0
    %7541 = vmatmul.mubr.f32.gmra.mrb[0].mxu0 %v7439
    %v7542 = vpop.f32.mrb[0].mxu0
    %v7543 = vadd.f32 0.0, %v7542
    %v7544 = vpop.f32.mrb[0].mxu0
    %7545 = vmatprep.mubr.f32.mxu0 0.0
    %7546 = vmatmul.mubr.f32.gmra.mrb[0].mxu0 %v7442
    %v7547 = vpop.f32.mrb[0].mxu0
    %v7548 = vadd.f32 0.0, %v7547
    %v7549 = vpop.f32.mrb[0].mxu0
    %7550 = vmatprep.mubr.f32.mxu0 0.0
    %7551 = vmatmul.mubr.f32.gmra.mrb[0].mxu0 %v7445
    %v7552 = vpop.f32.mrb[0].mxu0
    %v7553 = vadd.f32 0.0, %v7552
    %v7554 = vpop.f32.mrb[0].mxu0
    %7555 = vmatprep.mubr.f32.mxu0 0.0
    %7556 = vmatmul.mubr.f32.gmra.mrb[0].mxu0 %v7448
    %v7557 = vpop.f32.mrb[0].mxu0
    %v7558 = vadd.f32 0.0, %v7557
    %v7559 = vpop.f32.mrb[0].mxu0
    %7560 = vmatprep.mubr.f32.mxu0 0.0
    %7561 = vmatmul.mubr.f32.gmra.mrb[0].mxu0 %v7451
    %v7562 = vpop.f32.mrb[0].mxu0
    %v7563 = vadd.f32 0.0, %v7562
    %v7564 = vpop.f32.mrb[0].mxu0
    %7565 = vmatprep.mubr.f32.mxu0 0.0
    %7566 = vmatmul.mubr.f32.gmra.mrb[0].mxu0 %v7454
    %v7567 = vpop.f32.mrb[0].mxu0
    %v7568 = vadd.f32 0.0, %v7567
    %v7569 = vpop.f32.mrb[0].mxu0
    %7570 = vmatprep.mubr.f32.mxu0 0.0
    %7571 = vmatmul.mubr.f32.gmra.mrb[0].mxu0 %v7457
    %v7572 = vpop.f32.mrb[0].mxu0
    %v7573 = vadd.f32 0.0, %v7572
    %v7574 = vpop.f32.mrb[0].mxu0
    %7575 = vmatprep.mubr.f32.mxu0 0.0
    %7576 = vmatmul.mubr.f32.gmra.mrb[0].mxu0 %v7460
    %v7577 = vpop.f32.mrb[0].mxu0
    %v7578 = vadd.f32 0.0, %v7577
    %v7579 = vpop.f32.mrb[0].mxu0
    %7580 = vmatprep.mubr.f32.mxu0 0.0
    %7581 = vmatmul.mubr.f32.gmra.mrb[0].mxu0 %v7463
    %v7582 = vpop.f32.mrb[0].mxu0
    %v7583 = vadd.f32 0.0, %v7582
    %v7584 = vpop.f32.mrb[0].mxu0
    %7585 = vmatprep.mubr.f32.mxu0 0.0
    %7586 = vmatmul.mubr.f32.gmra.mrb[0].mxu0 %v7466
    %v7587 = vpop.f32.mrb[0].mxu0
    %v7588 = vadd.f32 0.0, %v7587
    %v7589 = vpop.f32.mrb[0].mxu0
    %7590 = vmatprep.mubr.f32.mxu0 0.0
    %7591 = vmatmul.mubr.f32.gmra.mrb[0].mxu0 %v7469
    %v7592 = vpop.f32.mrb[0].mxu0
    %v7593 = vadd.f32 0.0, %v7592
    %v7594 = vpop.f32.mrb[0].mxu0
    %7595 = vdwg.mxu0
    %v7596 = vadd.f32 %v6873, %v7538
    %v7597 = vadd.f32 %v6874, %v7543
    %v7598 = vadd.f32 %v6875, %v7548
    %v7599 = vadd.f32 %v6876, %v7553
    %v7600 = vadd.f32 %v6877, %v7558
    %v7601 = vadd.f32 %v6878, %v7563
    %v7602 = vadd.f32 %v6879, %v7568
    %v7603 = vadd.f32 %v6880, %v7573
    %v7604 = vadd.f32 %v6881, %v7578
    %v7605 = vadd.f32 %v6882, %v7583
    %v7606 = vadd.f32 %v6883, %v7588
    %v7607 = vadd.f32 %v6884, %v7593
    %v7608 = vadd.f32 %v4292, %v7596
    %v7609 = vadd.f32 %v4293, %v7597
    %v7610 = vadd.f32 %v4294, %v7598
    %v7611 = vadd.f32 %v4295, %v7599
    %v7612 = vadd.f32 %v4296, %v7600
    %v7613 = vadd.f32 %v4297, %v7601
    %v7614 = vadd.f32 %v4298, %v7602
    %v7615 = vadd.f32 %v4299, %v7603
    %v7616 = vadd.f32 %v4300, %v7604
    %v7617 = vadd.f32 %v4301, %v7605
    %v7618 = vadd.f32 %v4302, %v7606
    %v7619 = vadd.f32 %v4303, %v7607
    %v7620 = vld [vmem:[#allocation6 + $0xc] sm:$0x1]
    %v7621 = vlaneseq
    %v7622 = vshrl.u32 %v7621, 7
    %v7623 = vsub.s32 0, %v7622
    %v7624 = vrot.slane %v7620, %v7623
    %v7625 = vadd.f32 %v7608, %v7624
    %v7626 = vadd.f32 %v7609, %v7624
    %v7627 = vadd.f32 %v7610, %v7624
    %v7628 = vadd.f32 %v7611, %v7624
    %v7629 = vadd.f32 %v7612, %v7624
    %v7630 = vadd.f32 %v7613, %v7624
    %v7631 = vadd.f32 %v7614, %v7624
    %v7632 = vadd.f32 %v7615, %v7624
    %v7633 = vadd.f32 %v7616, %v7624
    %v7634 = vadd.f32 %v7617, %v7624
    %v7635 = vadd.f32 %v7618, %v7624
    %v7636 = vadd.f32 %v7619, %v7624
    %v7637 = vld [vmem:[#allocation6 + $0xd] sm:$0x1]
    %v7638 = vld [vmem:[#allocation6 + $0xe] sm:$0x1]
    %v7639 = vsel %vm3601, %v7625, 0.0
    %7640 = vadd.xlane.f32.xlu0 %v7639
    %v7641 = vpop.xlane.xlu0 %7640
    %v7642 = vsel %vm3601, %v7626, 0.0
    %7643 = vadd.xlane.f32.xlu0 %v7642
    %v7644 = vpop.xlane.xlu0 %7643
    %v7645 = vsel %vm3601, %v7627, 0.0
    %7646 = vadd.xlane.f32.xlu0 %v7645
    %v7647 = vpop.xlane.xlu0 %7646
    %v7648 = vsel %vm3601, %v7628, 0.0
    %7649 = vadd.xlane.f32.xlu0 %v7648
    %v7650 = vpop.xlane.xlu0 %7649
    %v7651 = vsel %vm3601, %v7629, 0.0
    %7652 = vadd.xlane.f32.xlu0 %v7651
    %v7653 = vpop.xlane.xlu0 %7652
    %v7654 = vsel %vm3601, %v7630, 0.0
    %7655 = vadd.xlane.f32.xlu0 %v7654
    %v7656 = vpop.xlane.xlu0 %7655
    %v7657 = vsel %vm3601, %v7631, 0.0
    %7658 = vadd.xlane.f32.xlu0 %v7657
    %v7659 = vpop.xlane.xlu0 %7658
    %v7660 = vsel %vm3601, %v7632, 0.0
    %7661 = vadd.xlane.f32.xlu0 %v7660
    %v7662 = vpop.xlane.xlu0 %7661
    %v7663 = vsel %vm3601, %v7633, 0.0
    %7664 = vadd.xlane.f32.xlu0 %v7663
    %v7665 = vpop.xlane.xlu0 %7664
    %v7666 = vsel %vm3601, %v7634, 0.0
    %7667 = vadd.xlane.f32.xlu0 %v7666
    %v7668 = vpop.xlane.xlu0 %7667
    %v7669 = vsel %vm3601, %v7635, 0.0
    %7670 = vadd.xlane.f32.xlu0 %v7669
    %v7671 = vpop.xlane.xlu0 %7670
    %v7672 = vsel %vm3601, %v7636, 0.0
    %7673 = vadd.xlane.f32.xlu0 %v7672
    %v7674 = vpop.xlane.xlu0 %7673
    %v7675 = vmul.f32 %v7641, %v3638
    %v7676 = vmul.f32 %v7644, %v3638
    %v7677 = vmul.f32 %v7647, %v3638
    %v7678 = vmul.f32 %v7650, %v3638
    %v7679 = vmul.f32 %v7653, %v3638
    %v7680 = vmul.f32 %v7656, %v3638
    %v7681 = vmul.f32 %v7659, %v3638
    %v7682 = vmul.f32 %v7662, %v3638
    %v7683 = vmul.f32 %v7665, %v3638
    %v7684 = vmul.f32 %v7668, %v3638
    %v7685 = vmul.f32 %v7671, %v3638
    %v7686 = vmul.f32 %v7674, %v3638
    %v7687 = vsub.f32 %v7625, %v7675
    %v7688 = vsub.f32 %v7626, %v7676
    %v7689 = vsub.f32 %v7627, %v7677
    %v7690 = vsub.f32 %v7628, %v7678
    %v7691 = vsub.f32 %v7629, %v7679
    %v7692 = vsub.f32 %v7630, %v7680
    %v7693 = vsub.f32 %v7631, %v7681
    %v7694 = vsub.f32 %v7632, %v7682
    %v7695 = vsub.f32 %v7633, %v7683
    %v7696 = vsub.f32 %v7634, %v7684
    %v7697 = vsub.f32 %v7635, %v7685
    %v7698 = vsub.f32 %v7636, %v7686
    %v7699 = vmul.f32 %v7687, %v7687
    %v7700 = vmul.f32 %v7688, %v7688
    %v7701 = vmul.f32 %v7689, %v7689
    %v7702 = vmul.f32 %v7690, %v7690
    %v7703 = vmul.f32 %v7691, %v7691
    %v7704 = vmul.f32 %v7692, %v7692
    %v7705 = vmul.f32 %v7693, %v7693
    %v7706 = vmul.f32 %v7694, %v7694
    %v7707 = vmul.f32 %v7695, %v7695
    %v7708 = vmul.f32 %v7696, %v7696
    %v7709 = vmul.f32 %v7697, %v7697
    %v7710 = vmul.f32 %v7698, %v7698
    %v7711 = vsel %vm3601, %v7699, 0.0
    %7712 = vadd.xlane.f32.xlu0 %v7711
    %v7713 = vpop.xlane.xlu0 %7712
    %v7714 = vsel %vm3601, %v7700, 0.0
    %7715 = vadd.xlane.f32.xlu0 %v7714
    %v7716 = vpop.xlane.xlu0 %7715
    %v7717 = vsel %vm3601, %v7701, 0.0
    %7718 = vadd.xlane.f32.xlu0 %v7717
    %v7719 = vpop.xlane.xlu0 %7718
    %v7720 = vsel %vm3601, %v7702, 0.0
    %7721 = vadd.xlane.f32.xlu0 %v7720
    %v7722 = vpop.xlane.xlu0 %7721
    %v7723 = vsel %vm3601, %v7703, 0.0
    %7724 = vadd.xlane.f32.xlu0 %v7723
    %v7725 = vpop.xlane.xlu0 %7724
    %v7726 = vsel %vm3601, %v7704, 0.0
    %7727 = vadd.xlane.f32.xlu0 %v7726
    %v7728 = vpop.xlane.xlu0 %7727
    %v7729 = vsel %vm3601, %v7705, 0.0
    %7730 = vadd.xlane.f32.xlu0 %v7729
    %v7731 = vpop.xlane.xlu0 %7730
    %v7732 = vsel %vm3601, %v7706, 0.0
    %7733 = vadd.xlane.f32.xlu0 %v7732
    %v7734 = vpop.xlane.xlu0 %7733
    %v7735 = vsel %vm3601, %v7707, 0.0
    %7736 = vadd.xlane.f32.xlu0 %v7735
    %v7737 = vpop.xlane.xlu0 %7736
    %v7738 = vsel %vm3601, %v7708, 0.0
    %7739 = vadd.xlane.f32.xlu0 %v7738
    %v7740 = vpop.xlane.xlu0 %7739
    %v7741 = vsel %vm3601, %v7709, 0.0
    %7742 = vadd.xlane.f32.xlu0 %v7741
    %v7743 = vpop.xlane.xlu0 %7742
    %v7744 = vsel %vm3601, %v7710, 0.0
    %7745 = vadd.xlane.f32.xlu0 %v7744
    %v7746 = vpop.xlane.xlu0 %7745
    %v7747 = vmul.f32 %v7713, %v3638
    %v7748 = vmul.f32 %v7716, %v3638
    %v7749 = vmul.f32 %v7719, %v3638
    %v7750 = vmul.f32 %v7722, %v3638
    %v7751 = vmul.f32 %v7725, %v3638
    %v7752 = vmul.f32 %v7728, %v3638
    %v7753 = vmul.f32 %v7731, %v3638
    %v7754 = vmul.f32 %v7734, %v3638
    %v7755 = vmul.f32 %v7737, %v3638
    %v7756 = vmul.f32 %v7740, %v3638
    %v7757 = vmul.f32 %v7743, %v3638
    %v7758 = vmul.f32 %v7746, %v3638
    %v7759 = vrsqrt.pop %v7747
    %v7760 = vmul.f32 %v7747, %v7759
    %vm7761 = vcmp.eq.f32.partialorder %v7747, inf
    %v7762 = vsel %vm7761, %v7747, %v7760
    %vm7763 = vcmp.eq.f32.partialorder %v7747, 0.0
    %v7764 = vand.u32 %v7747, 2147483648
    %v7765 = vsel %vm7763, %v7764, %v7762
    %v7766 = vrsqrt.pop %v7748
    %v7767 = vmul.f32 %v7748, %v7766
    %vm7768 = vcmp.eq.f32.partialorder %v7748, inf
    %v7769 = vsel %vm7768, %v7748, %v7767
    %vm7770 = vcmp.eq.f32.partialorder %v7748, 0.0
    %v7771 = vand.u32 %v7748, 2147483648
    %v7772 = vsel %vm7770, %v7771, %v7769
    %v7773 = vrsqrt.pop %v7749
    %v7774 = vmul.f32 %v7749, %v7773
    %vm7775 = vcmp.eq.f32.partialorder %v7749, inf
    %v7776 = vsel %vm7775, %v7749, %v7774
    %vm7777 = vcmp.eq.f32.partialorder %v7749, 0.0
    %v7778 = vand.u32 %v7749, 2147483648
    %v7779 = vsel %vm7777, %v7778, %v7776
    %v7780 = vrsqrt.pop %v7750
    %v7781 = vmul.f32 %v7750, %v7780
    %vm7782 = vcmp.eq.f32.partialorder %v7750, inf
    %v7783 = vsel %vm7782, %v7750, %v7781
    %vm7784 = vcmp.eq.f32.partialorder %v7750, 0.0
    %v7785 = vand.u32 %v7750, 2147483648
    %v7786 = vsel %vm7784, %v7785, %v7783
    %v7787 = vrsqrt.pop %v7751
    %v7788 = vmul.f32 %v7751, %v7787
    %vm7789 = vcmp.eq.f32.partialorder %v7751, inf
    %v7790 = vsel %vm7789, %v7751, %v7788
    %vm7791 = vcmp.eq.f32.partialorder %v7751, 0.0
    %v7792 = vand.u32 %v7751, 2147483648
    %v7793 = vsel %vm7791, %v7792, %v7790
    %v7794 = vrsqrt.pop %v7752
    %v7795 = vmul.f32 %v7752, %v7794
    %vm7796 = vcmp.eq.f32.partialorder %v7752, inf
    %v7797 = vsel %vm7796, %v7752, %v7795
    %vm7798 = vcmp.eq.f32.partialorder %v7752, 0.0
    %v7799 = vand.u32 %v7752, 2147483648
    %v7800 = vsel %vm7798, %v7799, %v7797
    %v7801 = vrsqrt.pop %v7753
    %v7802 = vmul.f32 %v7753, %v7801
    %vm7803 = vcmp.eq.f32.partialorder %v7753, inf
    %v7804 = vsel %vm7803, %v7753, %v7802
    %vm7805 = vcmp.eq.f32.partialorder %v7753, 0.0
    %v7806 = vand.u32 %v7753, 2147483648
    %v7807 = vsel %vm7805, %v7806, %v7804
    %v7808 = vrsqrt.pop %v7754
    %v7809 = vmul.f32 %v7754, %v7808
    %vm7810 = vcmp.eq.f32.partialorder %v7754, inf
    %v7811 = vsel %vm7810, %v7754, %v7809
    %vm7812 = vcmp.eq.f32.partialorder %v7754, 0.0
    %v7813 = vand.u32 %v7754, 2147483648
    %v7814 = vsel %vm7812, %v7813, %v7811
    %v7815 = vrsqrt.pop %v7755
    %v7816 = vmul.f32 %v7755, %v7815
    %vm7817 = vcmp.eq.f32.partialorder %v7755, inf
    %v7818 = vsel %vm7817, %v7755, %v7816
    %vm7819 = vcmp.eq.f32.partialorder %v7755, 0.0
    %v7820 = vand.u32 %v7755, 2147483648
    %v7821 = vsel %vm7819, %v7820, %v7818
    %v7822 = vrsqrt.pop %v7756
    %v7823 = vmul.f32 %v7756, %v7822
    %vm7824 = vcmp.eq.f32.partialorder %v7756, inf
    %v7825 = vsel %vm7824, %v7756, %v7823
    %vm7826 = vcmp.eq.f32.partialorder %v7756, 0.0
    %v7827 = vand.u32 %v7756, 2147483648
    %v7828 = vsel %vm7826, %v7827, %v7825
    %v7829 = vrsqrt.pop %v7757
    %v7830 = vmul.f32 %v7757, %v7829
    %vm7831 = vcmp.eq.f32.partialorder %v7757, inf
    %v7832 = vsel %vm7831, %v7757, %v7830
    %vm7833 = vcmp.eq.f32.partialorder %v7757, 0.0
    %v7834 = vand.u32 %v7757, 2147483648
    %v7835 = vsel %vm7833, %v7834, %v7832
    %v7836 = vrsqrt.pop %v7758
    %v7837 = vmul.f32 %v7758, %v7836
    %vm7838 = vcmp.eq.f32.partialorder %v7758, inf
    %v7839 = vsel %vm7838, %v7758, %v7837
    %vm7840 = vcmp.eq.f32.partialorder %v7758, 0.0
    %v7841 = vand.u32 %v7758, 2147483648
    %v7842 = vsel %vm7840, %v7841, %v7839
    %v7843 = vadd.f32 %v7765, 1e-05
    %v7844 = vadd.f32 %v7772, 1e-05
    %v7845 = vadd.f32 %v7779, 1e-05
    %v7846 = vadd.f32 %v7786, 1e-05
    %v7847 = vadd.f32 %v7793, 1e-05
    %v7848 = vadd.f32 %v7800, 1e-05
    %v7849 = vadd.f32 %v7807, 1e-05
    %v7850 = vadd.f32 %v7814, 1e-05
    %v7851 = vadd.f32 %v7821, 1e-05
    %v7852 = vadd.f32 %v7828, 1e-05
    %v7853 = vadd.f32 %v7835, 1e-05
    %v7854 = vadd.f32 %v7842, 1e-05
    %v7855 = vrcp.pop %v7843
    %v7856 = vmul.f32 %v7687, %v7855
    %v7857 = vrcp.pop %v7844
    %v7858 = vmul.f32 %v7688, %v7857
    %v7859 = vrcp.pop %v7845
    %v7860 = vmul.f32 %v7689, %v7859
    %v7861 = vrcp.pop %v7846
    %v7862 = vmul.f32 %v7690, %v7861
    %v7863 = vrcp.pop %v7847
    %v7864 = vmul.f32 %v7691, %v7863
    %v7865 = vrcp.pop %v7848
    %v7866 = vmul.f32 %v7692, %v7865
    %v7867 = vrcp.pop %v7849
    %v7868 = vmul.f32 %v7693, %v7867
    %v7869 = vrcp.pop %v7850
    %v7870 = vmul.f32 %v7694, %v7869
    %v7871 = vrcp.pop %v7851
    %v7872 = vmul.f32 %v7695, %v7871
    %v7873 = vrcp.pop %v7852
    %v7874 = vmul.f32 %v7696, %v7873
    %v7875 = vrcp.pop %v7853
    %v7876 = vmul.f32 %v7697, %v7875
    %v7877 = vrcp.pop %v7854
    %v7878 = vmul.f32 %v7698, %v7877
    %v7879 = vlaneseq
    %v7880 = vshrl.u32 %v7879, 7
    %v7881 = vsub.s32 0, %v7880
    %v7882 = vrot.slane %v7637, %v7881
    %v7883 = vmul.f32 %v7856, %v7882
    %v7884 = vmul.f32 %v7858, %v7882
    %v7885 = vmul.f32 %v7860, %v7882
    %v7886 = vmul.f32 %v7862, %v7882
    %v7887 = vmul.f32 %v7864, %v7882
    %v7888 = vmul.f32 %v7866, %v7882
    %v7889 = vmul.f32 %v7868, %v7882
    %v7890 = vmul.f32 %v7870, %v7882
    %v7891 = vmul.f32 %v7872, %v7882
    %v7892 = vmul.f32 %v7874, %v7882
    %v7893 = vmul.f32 %v7876, %v7882
    %v7894 = vmul.f32 %v7878, %v7882
    %v7895 = vlaneseq
    %v7896 = vshrl.u32 %v7895, 7
    %v7897 = vsub.s32 0, %v7896
    %v7898 = vrot.slane %v7638, %v7897
    %v7899 = vadd.f32 %v7883, %v7898
    %v7900 = vadd.f32 %v7884, %v7898
    %v7901 = vadd.f32 %v7885, %v7898
    %v7902 = vadd.f32 %v7886, %v7898
    %v7903 = vadd.f32 %v7887, %v7898
    %v7904 = vadd.f32 %v7888, %v7898
    %v7905 = vadd.f32 %v7889, %v7898
    %v7906 = vadd.f32 %v7890, %v7898
    %v7907 = vadd.f32 %v7891, %v7898
    %v7908 = vadd.f32 %v7892, %v7898
    %v7909 = vadd.f32 %v7893, %v7898
    %v7910 = vadd.f32 %v7894, %v7898
    %v7911 = vld [vmem:[#allocation4 + $0xe0] sm:$0xff]
    %v7912 = vld [vmem:[#allocation4 + $0xe8] sm:$0xff]
    %v7913 = vld [vmem:[#allocation4 + $0xf0] sm:$0xff]
    %v7914 = vld [vmem:[#allocation4 + $0xf8] sm:$0xff]
    %v7915 = vld [vmem:[#allocation6 + $0xf] sm:$0x1]
    %v7916 = vlaneseq
    %v7917 = vshrl.u32 %v7916, 7
    %v7918 = vsub.s32 0, %v7917
    %v7919 = vrot.slane %v7915, %v7918
    %v7921 = vsel %vm3601, %v7899, 0
    %v7924 = vsel %vm3601, %v7900, 0
    %v7927 = vsel %vm3601, %v7901, 0
    %v7930 = vsel %vm3601, %v7902, 0
    %v7933 = vsel %vm3601, %v7903, 0
    %v7936 = vsel %vm3601, %v7904, 0
    %v7939 = vsel %vm3601, %v7905, 0
    %v7942 = vsel %vm3601, %v7906, 0
    %v7945 = vsel %vm3601, %v7907, 0
    %v7948 = vsel %vm3601, %v7908, 0
    %v7951 = vsel %vm3601, %v7909, 0
    %v7954 = vsel %vm3601, %v7910, 0
    %7956 = vmatprep.subr.mxu0 0.0
    %7957 = vmatpush1.msra.mxu0 %v7911
    %7958 = vmatprep.subr.mxu0 0.0
    %7959 = vmatpush1.msra.mxu0 %v7912
    %7960 = vmatprep.subr.mxu0 0.0
    %7961 = vmatpush1.msra.mxu0 %v7913
    %7962 = vmatprep.subr.mxu0 0.0
    %7963 = vmatpush1.msra.mxu0 %v7914
    %7964 = vmatprep.subr.mxu0 0.0
    %7965 = vmatpush1.msra.mxu0 0.0
    %7966 = vmatprep.subr.mxu0 0.0
    %7967 = vmatpush1.msra.mxu0 0.0
    %7968 = vmatprep.subr.mxu0 0.0
    %7969 = vmatpush1.msra.mxu0 0.0
    %7970 = vmatprep.subr.mxu0 0.0
    %7971 = vmatpush1.msra.mxu0 0.0
    %7972 = vmatprep.subr.mxu0 0.0
    %7973 = vmatpush1.msra.mxu0 0.0
    %7974 = vmatprep.subr.mxu0 0.0
    %7975 = vmatpush1.msra.mxu0 0.0
    %7976 = vmatprep.subr.mxu0 0.0
    %7977 = vmatpush1.msra.mxu0 0.0
    %7978 = vmatprep.subr.mxu0 0.0
    %7979 = vmatpush1.msra.mxu0 0.0
    %7980 = vmatprep.subr.mxu0 0.0
    %7981 = vmatpush1.msra.mxu0 0.0
    %7982 = vmatprep.subr.mxu0 0.0
    %7983 = vmatpush1.msra.mxu0 0.0
    %7984 = vmatprep.subr.mxu0 0.0
    %7985 = vmatpush1.msra.mxu0 0.0
    %7986 = vmatprep.subr.mxu0 0.0
    %7987 = vmatpush1.msra.mxu0 0.0
    %7988 = vmatprep.subr.mxu0 0.0
    %7989 = vmatpush1.msra.mxu0 0.0
    %7990 = vmatprep.subr.mxu0 0.0
    %7991 = vmatpush1.msra.mxu0 0.0
    %7992 = vmatprep.subr.mxu0 0.0
    %7993 = vmatpush1.msra.mxu0 0.0
    %7994 = vmatprep.subr.mxu0 0.0
    %7995 = vmatpush1.msra.mxu0 0.0
    %7996 = vmatprep.subr.mxu0 0.0
    %7997 = vmatpush1.msra.mxu0 0.0
    %7998 = vmatprep.subr.mxu0 0.0
    %7999 = vmatpush1.msra.mxu0 0.0
    %8000 = vmatprep.subr.mxu0 0.0
    %8001 = vmatpush1.msra.mxu0 0.0
    %8002 = vmatprep.subr.mxu0 0.0
    %8003 = vmatpush1.msra.mxu0 0.0
    %8004 = vmatprep.subr.mxu0 0.0
    %8005 = vmatpush1.msra.mxu0 0.0
    %8006 = vmatprep.subr.mxu0 0.0
    %8007 = vmatpush1.msra.mxu0 0.0
    %8008 = vmatprep.subr.mxu0 0.0
    %8009 = vmatpush1.msra.mxu0 0.0
    %8010 = vmatprep.subr.mxu0 0.0
    %8011 = vmatpush1.msra.mxu0 0.0
    %8012 = vmatprep.subr.mxu0 0.0
    %8013 = vmatpush1.msra.mxu0 0.0
    %8014 = vmatprep.subr.mxu0 0.0
    %8015 = vmatpush1.msra.mxu0 0.0
    %8016 = vmatprep.subr.mxu0 0.0
    %8017 = vmatpush1.msra.mxu0 0.0
    %8018 = vmatprep.subr.mxu0 0.0
    %8019 = vmatpush1.msra.mxu0 0.0
    %8020 = vmatprep.mubr.f32.mxu0 0.0
    %8021 = vmatmul.mubr.f32.gmra.mrb[0].mxu0 %v7921
    %v8022 = vpop.f32.mrb[0].mxu0
    %v8023 = vadd.f32 %v7919, %v8022
    %v8024 = vpop.f32.mrb[0].mxu0
    %8025 = vmatprep.mubr.f32.mxu0 0.0
    %8026 = vmatmul.mubr.f32.gmra.mrb[0].mxu0 %v7924
    %v8027 = vpop.f32.mrb[0].mxu0
    %v8028 = vadd.f32 %v7919, %v8027
    %v8029 = vpop.f32.mrb[0].mxu0
    %8030 = vmatprep.mubr.f32.mxu0 0.0
    %8031 = vmatmul.mubr.f32.gmra.mrb[0].mxu0 %v7927
    %v8032 = vpop.f32.mrb[0].mxu0
    %v8033 = vadd.f32 %v7919, %v8032
    %v8034 = vpop.f32.mrb[0].mxu0
    %8035 = vmatprep.mubr.f32.mxu0 0.0
    %8036 = vmatmul.mubr.f32.gmra.mrb[0].mxu0 %v7930
    %v8037 = vpop.f32.mrb[0].mxu0
    %v8038 = vadd.f32 %v7919, %v8037
    %v8039 = vpop.f32.mrb[0].mxu0
    %8040 = vmatprep.mubr.f32.mxu0 0.0
    %8041 = vmatmul.mubr.f32.gmra.mrb[0].mxu0 %v7933
    %v8042 = vpop.f32.mrb[0].mxu0
    %v8043 = vadd.f32 %v7919, %v8042
    %v8044 = vpop.f32.mrb[0].mxu0
    %8045 = vmatprep.mubr.f32.mxu0 0.0
    %8046 = vmatmul.mubr.f32.gmra.mrb[0].mxu0 %v7936
    %v8047 = vpop.f32.mrb[0].mxu0
    %v8048 = vadd.f32 %v7919, %v8047
    %v8049 = vpop.f32.mrb[0].mxu0
    %8050 = vmatprep.mubr.f32.mxu0 0.0
    %8051 = vmatmul.mubr.f32.gmra.mrb[0].mxu0 %v7939
    %v8052 = vpop.f32.mrb[0].mxu0
    %v8053 = vadd.f32 %v7919, %v8052
    %v8054 = vpop.f32.mrb[0].mxu0
    %8055 = vmatprep.mubr.f32.mxu0 0.0
    %8056 = vmatmul.mubr.f32.gmra.mrb[0].mxu0 %v7942
    %v8057 = vpop.f32.mrb[0].mxu0
    %v8058 = vadd.f32 %v7919, %v8057
    %v8059 = vpop.f32.mrb[0].mxu0
    %8060 = vmatprep.mubr.f32.mxu0 0.0
    %8061 = vmatmul.mubr.f32.gmra.mrb[0].mxu0 %v7945
    %v8062 = vpop.f32.mrb[0].mxu0
    %v8063 = vadd.f32 %v7919, %v8062
    %v8064 = vpop.f32.mrb[0].mxu0
    %8065 = vmatprep.mubr.f32.mxu0 0.0
    %8066 = vmatmul.mubr.f32.gmra.mrb[0].mxu0 %v7948
    %v8067 = vpop.f32.mrb[0].mxu0
    %v8068 = vadd.f32 %v7919, %v8067
    %v8069 = vpop.f32.mrb[0].mxu0
    %8070 = vmatprep.mubr.f32.mxu0 0.0
    %8071 = vmatmul.mubr.f32.gmra.mrb[0].mxu0 %v7951
    %v8072 = vpop.f32.mrb[0].mxu0
    %v8073 = vadd.f32 %v7919, %v8072
    %v8074 = vpop.f32.mrb[0].mxu0
    %8075 = vmatprep.mubr.f32.mxu0 0.0
    %8076 = vmatmul.mubr.f32.gmra.mrb[0].mxu0 %v7954
    %v8077 = vpop.f32.mrb[0].mxu0
    %v8078 = vadd.f32 %v7919, %v8077
    %v8079 = vpop.f32.mrb[0].mxu0
    %8080 = vdwg.mxu0
    %vm8081 = vcmp.gt.f32.partialorder %v8023, 0.0
    %vm8082 = vcmp.gt.f32.partialorder %v8028, 0.0
    %vm8083 = vcmp.gt.f32.partialorder %v8033, 0.0
    %vm8084 = vcmp.gt.f32.partialorder %v8038, 0.0
    %vm8085 = vcmp.gt.f32.partialorder %v8043, 0.0
    %vm8086 = vcmp.gt.f32.partialorder %v8048, 0.0
    %vm8087 = vcmp.gt.f32.partialorder %v8053, 0.0
    %vm8088 = vcmp.gt.f32.partialorder %v8058, 0.0
    %vm8089 = vcmp.gt.f32.partialorder %v8063, 0.0
    %vm8090 = vcmp.gt.f32.partialorder %v8068, 0.0
    %vm8091 = vcmp.gt.f32.partialorder %v8073, 0.0
    %vm8092 = vcmp.gt.f32.partialorder %v8078, 0.0
    %v8093 = vmin.f32 %v8023, 0.0
    %v8094 = vmin.f32 %v8028, 0.0
    %v8095 = vmin.f32 %v8033, 0.0
    %v8096 = vmin.f32 %v8038, 0.0
    %v8097 = vmin.f32 %v8043, 0.0
    %v8098 = vmin.f32 %v8048, 0.0
    %v8099 = vmin.f32 %v8053, 0.0
    %v8100 = vmin.f32 %v8058, 0.0
    %v8101 = vmin.f32 %v8063, 0.0
    %v8102 = vmin.f32 %v8068, 0.0
    %v8103 = vmin.f32 %v8073, 0.0
    %v8104 = vmin.f32 %v8078, 0.0
    %v8105 = vmul.f32 %v8093, 1.442695
    %v8106 = vpow.pop %v8105
    %v8107 = vmul.f32 %v8094, 1.442695
    %v8108 = vpow.pop %v8107
    %v8109 = vmul.f32 %v8095, 1.442695
    %v8110 = vpow.pop %v8109
    %v8111 = vmul.f32 %v8096, 1.442695
    %v8112 = vpow.pop %v8111
    %v8113 = vmul.f32 %v8097, 1.442695
    %v8114 = vpow.pop %v8113
    %v8115 = vmul.f32 %v8098, 1.442695
    %v8116 = vpow.pop %v8115
    %v8117 = vmul.f32 %v8099, 1.442695
    %v8118 = vpow.pop %v8117
    %v8119 = vmul.f32 %v8100, 1.442695
    %v8120 = vpow.pop %v8119
    %v8121 = vmul.f32 %v8101, 1.442695
    %v8122 = vpow.pop %v8121
    %v8123 = vmul.f32 %v8102, 1.442695
    %v8124 = vpow.pop %v8123
    %v8125 = vmul.f32 %v8103, 1.442695
    %v8126 = vpow.pop %v8125
    %v8127 = vmul.f32 %v8104, 1.442695
    %v8128 = vpow.pop %v8127
    %v8129 = vsub.f32 %v8106, 1.0
    %v8130 = vsub.f32 %v8108, 1.0
    %v8131 = vsub.f32 %v8110, 1.0
    %v8132 = vsub.f32 %v8112, 1.0
    %v8133 = vsub.f32 %v8114, 1.0
    %v8134 = vsub.f32 %v8116, 1.0
    %v8135 = vsub.f32 %v8118, 1.0
    %v8136 = vsub.f32 %v8120, 1.0
    %v8137 = vsub.f32 %v8122, 1.0
    %v8138 = vsub.f32 %v8124, 1.0
    %v8139 = vsub.f32 %v8126, 1.0
    %v8140 = vsub.f32 %v8128, 1.0
    %v8141 = vsel %vm8081, %v8023, %v8129
    %v8142 = vsel %vm8082, %v8028, %v8130
    %v8143 = vsel %vm8083, %v8033, %v8131
    %v8144 = vsel %vm8084, %v8038, %v8132
    %v8145 = vsel %vm8085, %v8043, %v8133
    %v8146 = vsel %vm8086, %v8048, %v8134
    %v8147 = vsel %vm8087, %v8053, %v8135
    %v8148 = vsel %vm8088, %v8058, %v8136
    %v8149 = vsel %vm8089, %v8063, %v8137
    %v8150 = vsel %vm8090, %v8068, %v8138
    %v8151 = vsel %vm8091, %v8073, %v8139
    %v8152 = vsel %vm8092, %v8078, %v8140
    %v8153 = vld [vmem:[#allocation4 + $0x100] sm:$0xff]
    %v8154 = vld [vmem:[#allocation4 + $0x108] sm:$0xff]
    %v8155 = vld [vmem:[#allocation4 + $0x110] sm:$0xff]
    %v8156 = vld [vmem:[#allocation4 + $0x118] sm:$0xff]
    %v8157 = vld [vmem:[#allocation4 + $0x120] sm:$0xff]
    %v8158 = vld [vmem:[#allocation4 + $0x128] sm:$0xff]
    %v8159 = vld [vmem:[#allocation4 + $0x130] sm:$0xff]
    %v8160 = vld [vmem:[#allocation4 + $0x138] sm:$0xff]
    %v8161 = vld [vmem:[#allocation6 + $0x10] sm:$0x1]
    %v8162 = vlaneseq
    %v8163 = vshrl.u32 %v8162, 7
    %v8164 = vsub.s32 0, %v8163
    %v8165 = vrot.slane %v8161, %v8164
    %v8167 = vsel %vm4130, %v8141, 0
    %v8170 = vsel %vm4130, %v8142, 0
    %v8173 = vsel %vm4130, %v8143, 0
    %v8176 = vsel %vm4130, %v8144, 0
    %v8179 = vsel %vm4130, %v8145, 0
    %v8182 = vsel %vm4130, %v8146, 0
    %v8185 = vsel %vm4130, %v8147, 0
    %v8188 = vsel %vm4130, %v8148, 0
    %v8191 = vsel %vm4130, %v8149, 0
    %v8194 = vsel %vm4130, %v8150, 0
    %v8197 = vsel %vm4130, %v8151, 0
    %v8200 = vsel %vm4130, %v8152, 0
    %8202 = vmatprep.subr.mxu0 0.0
    %8203 = vmatpush1.msra.mxu0 %v8153
    %8204 = vmatprep.subr.mxu0 0.0
    %8205 = vmatpush1.msra.mxu0 %v8154
    %8206 = vmatprep.subr.mxu0 0.0
    %8207 = vmatpush1.msra.mxu0 %v8155
    %8208 = vmatprep.subr.mxu0 0.0
    %8209 = vmatpush1.msra.mxu0 %v8156
    %8210 = vmatprep.subr.mxu0 0.0
    %8211 = vmatpush1.msra.mxu0 %v8157
    %8212 = vmatprep.subr.mxu0 0.0
    %8213 = vmatpush1.msra.mxu0 %v8158
    %8214 = vmatprep.subr.mxu0 0.0
    %8215 = vmatpush1.msra.mxu0 %v8159
    %8216 = vmatprep.subr.mxu0 0.0
    %8217 = vmatpush1.msra.mxu0 %v8160
    %8218 = vmatprep.subr.mxu0 0.0
    %8219 = vmatpush1.msra.mxu0 0.0
    %8220 = vmatprep.subr.mxu0 0.0
    %8221 = vmatpush1.msra.mxu0 0.0
    %8222 = vmatprep.subr.mxu0 0.0
    %8223 = vmatpush1.msra.mxu0 0.0
    %8224 = vmatprep.subr.mxu0 0.0
    %8225 = vmatpush1.msra.mxu0 0.0
    %8226 = vmatprep.subr.mxu0 0.0
    %8227 = vmatpush1.msra.mxu0 0.0
    %8228 = vmatprep.subr.mxu0 0.0
    %8229 = vmatpush1.msra.mxu0 0.0
    %8230 = vmatprep.subr.mxu0 0.0
    %8231 = vmatpush1.msra.mxu0 0.0
    %8232 = vmatprep.subr.mxu0 0.0
    %8233 = vmatpush1.msra.mxu0 0.0
    %8234 = vmatprep.subr.mxu0 0.0
    %8235 = vmatpush1.msra.mxu0 0.0
    %8236 = vmatprep.subr.mxu0 0.0
    %8237 = vmatpush1.msra.mxu0 0.0
    %8238 = vmatprep.subr.mxu0 0.0
    %8239 = vmatpush1.msra.mxu0 0.0
    %8240 = vmatprep.subr.mxu0 0.0
    %8241 = vmatpush1.msra.mxu0 0.0
    %8242 = vmatprep.subr.mxu0 0.0
    %8243 = vmatpush1.msra.mxu0 0.0
    %8244 = vmatprep.subr.mxu0 0.0
    %8245 = vmatpush1.msra.mxu0 0.0
    %8246 = vmatprep.subr.mxu0 0.0
    %8247 = vmatpush1.msra.mxu0 0.0
    %8248 = vmatprep.subr.mxu0 0.0
    %8249 = vmatpush1.msra.mxu0 0.0
    %8250 = vmatprep.subr.mxu0 0.0
    %8251 = vmatpush1.msra.mxu0 0.0
    %8252 = vmatprep.subr.mxu0 0.0
    %8253 = vmatpush1.msra.mxu0 0.0
    %8254 = vmatprep.subr.mxu0 0.0
    %8255 = vmatpush1.msra.mxu0 0.0
    %8256 = vmatprep.subr.mxu0 0.0
    %8257 = vmatpush1.msra.mxu0 0.0
    %8258 = vmatprep.subr.mxu0 0.0
    %8259 = vmatpush1.msra.mxu0 0.0
    %8260 = vmatprep.subr.mxu0 0.0
    %8261 = vmatpush1.msra.mxu0 0.0
    %8262 = vmatprep.subr.mxu0 0.0
    %8263 = vmatpush1.msra.mxu0 0.0
    %8264 = vmatprep.subr.mxu0 0.0
    %8265 = vmatpush1.msra.mxu0 0.0
    %8266 = vmatprep.mubr.f32.mxu0 0.0
    %8267 = vmatmul.mubr.f32.gmra.mrb[0].mxu0 %v8167
    %v8268 = vpop.f32.mrb[0].mxu0
    %v8269 = vadd.f32 %v8165, %v8268
    %v8270 = vpop.f32.mrb[0].mxu0
    %8271 = vmatprep.mubr.f32.mxu0 0.0
    %8272 = vmatmul.mubr.f32.gmra.mrb[0].mxu0 %v8170
    %v8273 = vpop.f32.mrb[0].mxu0
    %v8274 = vadd.f32 %v8165, %v8273
    %v8275 = vpop.f32.mrb[0].mxu0
    %8276 = vmatprep.mubr.f32.mxu0 0.0
    %8277 = vmatmul.mubr.f32.gmra.mrb[0].mxu0 %v8173
    %v8278 = vpop.f32.mrb[0].mxu0
    %v8279 = vadd.f32 %v8165, %v8278
    %v8280 = vpop.f32.mrb[0].mxu0
    %8281 = vmatprep.mubr.f32.mxu0 0.0
    %8282 = vmatmul.mubr.f32.gmra.mrb[0].mxu0 %v8176
    %v8283 = vpop.f32.mrb[0].mxu0
    %v8284 = vadd.f32 %v8165, %v8283
    %v8285 = vpop.f32.mrb[0].mxu0
    %8286 = vmatprep.mubr.f32.mxu0 0.0
    %8287 = vmatmul.mubr.f32.gmra.mrb[0].mxu0 %v8179
    %v8288 = vpop.f32.mrb[0].mxu0
    %v8289 = vadd.f32 %v8165, %v8288
    %v8290 = vpop.f32.mrb[0].mxu0
    %8291 = vmatprep.mubr.f32.mxu0 0.0
    %8292 = vmatmul.mubr.f32.gmra.mrb[0].mxu0 %v8182
    %v8293 = vpop.f32.mrb[0].mxu0
    %v8294 = vadd.f32 %v8165, %v8293
    %v8295 = vpop.f32.mrb[0].mxu0
    %8296 = vmatprep.mubr.f32.mxu0 0.0
    %8297 = vmatmul.mubr.f32.gmra.mrb[0].mxu0 %v8185
    %v8298 = vpop.f32.mrb[0].mxu0
    %v8299 = vadd.f32 %v8165, %v8298
    %v8300 = vpop.f32.mrb[0].mxu0
    %8301 = vmatprep.mubr.f32.mxu0 0.0
    %8302 = vmatmul.mubr.f32.gmra.mrb[0].mxu0 %v8188
    %v8303 = vpop.f32.mrb[0].mxu0
    %v8304 = vadd.f32 %v8165, %v8303
    %v8305 = vpop.f32.mrb[0].mxu0
    %8306 = vmatprep.mubr.f32.mxu0 0.0
    %8307 = vmatmul.mubr.f32.gmra.mrb[0].mxu0 %v8191
    %v8308 = vpop.f32.mrb[0].mxu0
    %v8309 = vadd.f32 %v8165, %v8308
    %v8310 = vpop.f32.mrb[0].mxu0
    %8311 = vmatprep.mubr.f32.mxu0 0.0
    %8312 = vmatmul.mubr.f32.gmra.mrb[0].mxu0 %v8194
    %v8313 = vpop.f32.mrb[0].mxu0
    %v8314 = vadd.f32 %v8165, %v8313
    %v8315 = vpop.f32.mrb[0].mxu0
    %8316 = vmatprep.mubr.f32.mxu0 0.0
    %8317 = vmatmul.mubr.f32.gmra.mrb[0].mxu0 %v8197
    %v8318 = vpop.f32.mrb[0].mxu0
    %v8319 = vadd.f32 %v8165, %v8318
    %v8320 = vpop.f32.mrb[0].mxu0
    %8321 = vmatprep.mubr.f32.mxu0 0.0
    %8322 = vmatmul.mubr.f32.gmra.mrb[0].mxu0 %v8200
    %v8323 = vpop.f32.mrb[0].mxu0
    %v8324 = vadd.f32 %v8165, %v8323
    %v8325 = vpop.f32.mrb[0].mxu0
    %8326 = vdwg.mxu0
    %v8327 = vadd.f32 %v7625, %v8269
    %v8328 = vadd.f32 %v7626, %v8274
    %v8329 = vadd.f32 %v7627, %v8279
    %v8330 = vadd.f32 %v7628, %v8284
    %v8331 = vadd.f32 %v7629, %v8289
    %v8332 = vadd.f32 %v7630, %v8294
    %v8333 = vadd.f32 %v7631, %v8299
    %v8334 = vadd.f32 %v7632, %v8304
    %v8335 = vadd.f32 %v7633, %v8309
    %v8336 = vadd.f32 %v7634, %v8314
    %v8337 = vadd.f32 %v7635, %v8319
    %v8338 = vadd.f32 %v7636, %v8324
    %v8339 = vld [vmem:[#allocation4 + $0x140] sm:$0xff]
    %v8340 = vld [vmem:[#allocation4 + $0x148] sm:$0xff]
    %v8341 = vld [vmem:[#allocation4 + $0x150] sm:$0xff]
    %v8342 = vld [vmem:[#allocation4 + $0x158] sm:$0xff]
    %v8343 = vld [vmem:[#allocation6 + $0x11] sm:$0x1]
    %v8344 = vlaneseq
    %v8345 = vshrl.u32 %v8344, 7
    %v8346 = vsub.s32 0, %v8345
    %v8347 = vrot.slane %v8343, %v8346
    %v8349 = vsel %vm3601, %v8327, 0
    %v8352 = vsel %vm3601, %v8328, 0
    %v8355 = vsel %vm3601, %v8329, 0
    %v8358 = vsel %vm3601, %v8330, 0
    %v8361 = vsel %vm3601, %v8331, 0
    %v8364 = vsel %vm3601, %v8332, 0
    %v8367 = vsel %vm3601, %v8333, 0
    %v8370 = vsel %vm3601, %v8334, 0
    %v8373 = vsel %vm3601, %v8335, 0
    %v8376 = vsel %vm3601, %v8336, 0
    %v8379 = vsel %vm3601, %v8337, 0
    %v8382 = vsel %vm3601, %v8338, 0
    %8384 = vmatprep.subr.mxu0 0.0
    %8385 = vmatpush1.msra.mxu0 %v8339
    %8386 = vmatprep.subr.mxu0 0.0
    %8387 = vmatpush1.msra.mxu0 %v8340
    %8388 = vmatprep.subr.mxu0 0.0
    %8389 = vmatpush1.msra.mxu0 %v8341
    %8390 = vmatprep.subr.mxu0 0.0
    %8391 = vmatpush1.msra.mxu0 %v8342
    %8392 = vmatprep.subr.mxu0 0.0
    %8393 = vmatpush1.msra.mxu0 0.0
    %8394 = vmatprep.subr.mxu0 0.0
    %8395 = vmatpush1.msra.mxu0 0.0
    %8396 = vmatprep.subr.mxu0 0.0
    %8397 = vmatpush1.msra.mxu0 0.0
    %8398 = vmatprep.subr.mxu0 0.0
    %8399 = vmatpush1.msra.mxu0 0.0
    %8400 = vmatprep.subr.mxu0 0.0
    %8401 = vmatpush1.msra.mxu0 0.0
    %8402 = vmatprep.subr.mxu0 0.0
    %8403 = vmatpush1.msra.mxu0 0.0
    %8404 = vmatprep.subr.mxu0 0.0
    %8405 = vmatpush1.msra.mxu0 0.0
    %8406 = vmatprep.subr.mxu0 0.0
    %8407 = vmatpush1.msra.mxu0 0.0
    %8408 = vmatprep.subr.mxu0 0.0
    %8409 = vmatpush1.msra.mxu0 0.0
    %8410 = vmatprep.subr.mxu0 0.0
    %8411 = vmatpush1.msra.mxu0 0.0
    %8412 = vmatprep.subr.mxu0 0.0
    %8413 = vmatpush1.msra.mxu0 0.0
    %8414 = vmatprep.subr.mxu0 0.0
    %8415 = vmatpush1.msra.mxu0 0.0
    %8416 = vmatprep.subr.mxu0 0.0
    %8417 = vmatpush1.msra.mxu0 0.0
    %8418 = vmatprep.subr.mxu0 0.0
    %8419 = vmatpush1.msra.mxu0 0.0
    %8420 = vmatprep.subr.mxu0 0.0
    %8421 = vmatpush1.msra.mxu0 0.0
    %8422 = vmatprep.subr.mxu0 0.0
    %8423 = vmatpush1.msra.mxu0 0.0
    %8424 = vmatprep.subr.mxu0 0.0
    %8425 = vmatpush1.msra.mxu0 0.0
    %8426 = vmatprep.subr.mxu0 0.0
    %8427 = vmatpush1.msra.mxu0 0.0
    %8428 = vmatprep.subr.mxu0 0.0
    %8429 = vmatpush1.msra.mxu0 0.0
    %8430 = vmatprep.subr.mxu0 0.0
    %8431 = vmatpush1.msra.mxu0 0.0
    %8432 = vmatprep.subr.mxu0 0.0
    %8433 = vmatpush1.msra.mxu0 0.0
    %8434 = vmatprep.subr.mxu0 0.0
    %8435 = vmatpush1.msra.mxu0 0.0
    %8436 = vmatprep.subr.mxu0 0.0
    %8437 = vmatpush1.msra.mxu0 0.0
    %8438 = vmatprep.subr.mxu0 0.0
    %8439 = vmatpush1.msra.mxu0 0.0
    %8440 = vmatprep.subr.mxu0 0.0
    %8441 = vmatpush1.msra.mxu0 0.0
    %8442 = vmatprep.subr.mxu0 0.0
    %8443 = vmatpush1.msra.mxu0 0.0
    %8444 = vmatprep.subr.mxu0 0.0
    %8445 = vmatpush1.msra.mxu0 0.0
    %8446 = vmatprep.subr.mxu0 0.0
    %8447 = vmatpush1.msra.mxu0 0.0
    %8448 = vmatprep.mubr.f32.mxu0 0.0
    %8449 = vmatmul.mubr.f32.gmra.mrb[0].mxu0 %v8349
    %v8450 = vpop.f32.mrb[0].mxu0
    %v8451 = vadd.f32 %v8347, %v8450
    %v8452 = vpop.f32.mrb[0].mxu0
    %8453 = vmatprep.mubr.f32.mxu0 0.0
    %8454 = vmatmul.mubr.f32.gmra.mrb[0].mxu0 %v8352
    %v8455 = vpop.f32.mrb[0].mxu0
    %v8456 = vadd.f32 %v8347, %v8455
    %v8457 = vpop.f32.mrb[0].mxu0
    %8458 = vmatprep.mubr.f32.mxu0 0.0
    %8459 = vmatmul.mubr.f32.gmra.mrb[0].mxu0 %v8355
    %v8460 = vpop.f32.mrb[0].mxu0
    %v8461 = vadd.f32 %v8347, %v8460
    %v8462 = vpop.f32.mrb[0].mxu0
    %8463 = vmatprep.mubr.f32.mxu0 0.0
    %8464 = vmatmul.mubr.f32.gmra.mrb[0].mxu0 %v8358
    %v8465 = vpop.f32.mrb[0].mxu0
    %v8466 = vadd.f32 %v8347, %v8465
    %v8467 = vpop.f32.mrb[0].mxu0
    %8468 = vmatprep.mubr.f32.mxu0 0.0
    %8469 = vmatmul.mubr.f32.gmra.mrb[0].mxu0 %v8361
    %v8470 = vpop.f32.mrb[0].mxu0
    %v8471 = vadd.f32 %v8347, %v8470
    %v8472 = vpop.f32.mrb[0].mxu0
    %8473 = vmatprep.mubr.f32.mxu0 0.0
    %8474 = vmatmul.mubr.f32.gmra.mrb[0].mxu0 %v8364
    %v8475 = vpop.f32.mrb[0].mxu0
    %v8476 = vadd.f32 %v8347, %v8475
    %v8477 = vpop.f32.mrb[0].mxu0
    %8478 = vmatprep.mubr.f32.mxu0 0.0
    %8479 = vmatmul.mubr.f32.gmra.mrb[0].mxu0 %v8367
    %v8480 = vpop.f32.mrb[0].mxu0
    %v8481 = vadd.f32 %v8347, %v8480
    %v8482 = vpop.f32.mrb[0].mxu0
    %8483 = vmatprep.mubr.f32.mxu0 0.0
    %8484 = vmatmul.mubr.f32.gmra.mrb[0].mxu0 %v8370
    %v8485 = vpop.f32.mrb[0].mxu0
    %v8486 = vadd.f32 %v8347, %v8485
    %v8487 = vpop.f32.mrb[0].mxu0
    %8488 = vmatprep.mubr.f32.mxu0 0.0
    %8489 = vmatmul.mubr.f32.gmra.mrb[0].mxu0 %v8373
    %v8490 = vpop.f32.mrb[0].mxu0
    %v8491 = vadd.f32 %v8347, %v8490
    %v8492 = vpop.f32.mrb[0].mxu0
    %8493 = vmatprep.mubr.f32.mxu0 0.0
    %8494 = vmatmul.mubr.f32.gmra.mrb[0].mxu0 %v8376
    %v8495 = vpop.f32.mrb[0].mxu0
    %v8496 = vadd.f32 %v8347, %v8495
    %v8497 = vpop.f32.mrb[0].mxu0
    %8498 = vmatprep.mubr.f32.mxu0 0.0
    %8499 = vmatmul.mubr.f32.gmra.mrb[0].mxu0 %v8379
    %v8500 = vpop.f32.mrb[0].mxu0
    %v8501 = vadd.f32 %v8347, %v8500
    %v8502 = vpop.f32.mrb[0].mxu0
    %8503 = vmatprep.mubr.f32.mxu0 0.0
    %8504 = vmatmul.mubr.f32.gmra.mrb[0].mxu0 %v8382
    %v8505 = vpop.f32.mrb[0].mxu0
    %v8506 = vadd.f32 %v8347, %v8505
    %v8507 = vpop.f32.mrb[0].mxu0
    %8508 = vdwg.mxu0
    %8509 = vst.msk [vmem:[%s4] sm:$0xff] %vm748, %v8451
    %8510 = vst.msk [vmem:[%s4 + $0x8] sm:$0xff] %vm748, %v8456
    %8511 = vst.msk [vmem:[%s4 + $0x10] sm:$0xff] %vm748, %v8461
    %8512 = vst.msk [vmem:[%s4 + $0x18] sm:$0xff] %vm748, %v8466
    %8513 = vst.msk [vmem:[%s4 + $0x20] sm:$0xff] %vm748, %v8471
    %8514 = vst.msk [vmem:[%s4 + $0x28] sm:$0xff] %vm748, %v8476
    %8515 = vst.msk [vmem:[%s4 + $0x30] sm:$0xff] %vm748, %v8481
    %8516 = vst.msk [vmem:[%s4 + $0x38] sm:$0xff] %vm748, %v8486
    %8517 = vst.msk [vmem:[%s4 + $0x40] sm:$0xff] %vm748, %v8491
    %8518 = vst.msk [vmem:[%s4 + $0x48] sm:$0xff] %vm748, %v8496
    %8519 = vst.msk [vmem:[%s4 + $0x50] sm:$0xff] %vm748, %v8501
    %8520 = vst.msk [vmem:[%s4 + $0x58] sm:$0xff] %vm748, %v8506
    // Predicated region
    $region34: #{tpu_custom_call.1} parent=1 // pred_check
      _
    $region35: #{tpu_custom_call.1} parent=1 // pred_check_branch
      %8522 = sbr.rel (0) target = $region37
    $region36: #{tpu_custom_call.1} parent=1 // pred_region
      _
    $region37: #{tpu_custom_call.1} parent=1 // pred_fallthru
      _
    // Predicated region
    $region38: #{tpu_custom_call.1} parent=1 // pred_check
      _
    $region39: #{tpu_custom_call.1} parent=1 // pred_check_branch
      %8524 = sbr.rel (0) target = $region41
    $region40: #{tpu_custom_call.1} parent=1 // pred_region
      _
    $region41: #{tpu_custom_call.1} parent=1 // pred_fallthru
      _
    %8525 = vsyncpa [#allocation3], 1
    %8526 = vsyncpa [#allocation5], 1
    %8527 = vsyncpa [#allocation8], 1

</llo_original>
